<compile_context>
chip_gen: v7x
topology: tpu7x:2x2x1
jax: 0.10.0
libtpu: 0.0.40
codegen_flags: <defaults>
</compile_context>

<pallas_src>
import jax
import jax.numpy as jnp
from jax.experimental import pallas as pl
from jax.experimental.pallas import tpu as pltpu

EPS = 1e-5


def double_conv_kernel(p1_ref, w1_ref, g1_ref, b1_ref,
                       w2_ref, g2_ref, b2_ref,
                       out_ref, mid_ref):
    N, Hp, Wp, Cp = mid_ref.shape          # Cp = lane-padded channels (x128)
    H, W = Hp - 2, Wp - 2
    M = N * H * W
    inv_m = 1.0 / M

    # ---- conv1: one lane-dense bf16 MXU matmul (im2col done in wrapper) ----
    acc1 = jnp.dot(p1_ref[...], w1_ref[...],
                   preferred_element_type=jnp.float32)          # (M, Cp) f32

    # ---- BN1 (train-mode batch stats) + ReLU ----
    s1 = jnp.sum(acc1, axis=0, keepdims=True)
    ss1 = jnp.sum(acc1 * acc1, axis=0, keepdims=True)
    mean1 = s1 * inv_m
    var1 = jnp.maximum(ss1 * inv_m - mean1 * mean1, 0.0)
    scale1 = jax.lax.rsqrt(var1 + EPS) * g1_ref[...]            # (1, Cp)
    shift1 = b1_ref[...] - mean1 * scale1
    y = jnp.maximum(acc1 * scale1 + shift1, 0.0)                # (M, Cp) f32

    # ---- stage y: dense zero-fill of the scratch, then one interior write ----
    mid_ref[...] = jnp.zeros_like(mid_ref)
    mid_ref[:, 1:1 + H, 1:1 + W, :] = (
        y.astype(mid_ref.dtype).reshape(N, H, W, Cp))

    # ---- conv2: nine per-tap K=Cp matmuls accumulated in f32 (no concat) ----
    acc2 = jnp.zeros((M, Cp), jnp.float32)
    for t, (dy, dx) in enumerate([(dy, dx) for dy in range(3)
                                  for dx in range(3)]):
        tap = mid_ref[:, dy:dy + H, dx:dx + W, :].reshape(M, Cp)   # bf16
        acc2 = acc2 + jnp.dot(tap, w2_ref[t * Cp:(t + 1) * Cp, :],
                              preferred_element_type=jnp.float32)

    # ---- BN2 + ReLU, dense lane-wide bf16 store ----
    s2 = jnp.sum(acc2, axis=0, keepdims=True)
    ss2 = jnp.sum(acc2 * acc2, axis=0, keepdims=True)
    mean2 = s2 * inv_m
    var2 = jnp.maximum(ss2 * inv_m - mean2 * mean2, 0.0)
    scale2 = jax.lax.rsqrt(var2 + EPS) * g2_ref[...]
    shift2 = b2_ref[...] - mean2 * scale2
    out_ref[...] = jnp.maximum(acc2 * scale2 + shift2, 0.0).astype(out_ref.dtype)


@jax.jit
def double_conv(x_nchw, params):
    """DoubleConv forward. Input/output are NCHW (PyTorch convention)."""
    N, Cin, H, W = x_nchw.shape
    Cout = params["w1"].shape[-1]
    Cp = ((Cout + 127) // 128) * 128         # lane-pad output channels
    K1 = 9 * Cin
    K1p = ((K1 + 127) // 128) * 128          # lane-pad conv1 im2col depth
    M = N * H * W

    # NCHW -> NHWC, spatial pad = 1, bf16 for the MXU.
    x = jnp.transpose(x_nchw, (0, 2, 3, 1)).astype(jnp.bfloat16)
    xpad = jnp.pad(x, ((0, 0), (1, 1), (1, 1), (0, 0)))

    # Wrapper-side im2col for conv1 (column order: (dy*3+dx)*Cin + ci).
    taps = [xpad[:, dy:dy + H, dx:dx + W, :]
            for dy in range(3) for dx in range(3)]
    p1 = jnp.concatenate(taps, axis=-1).reshape(M, K1)
    p1p = jnp.zeros((M, K1p), jnp.bfloat16).at[:, :K1].set(p1)

    # Conv weights flattened to im2col layout, zero-padded to (K1p/9*Cp, Cp).
    w1 = params["w1"].astype(jnp.bfloat16).reshape(K1, Cout)
    w1f = jnp.zeros((K1p, Cp), jnp.bfloat16).at[:K1, :Cout].set(w1)
    w2 = params["w2"].astype(jnp.bfloat16)                       # (3,3,Cout,Cout)
    w2p = jnp.zeros((3, 3, Cp, Cp), jnp.bfloat16).at[:, :, :Cout, :Cout].set(w2)
    w2f = w2p.reshape(9 * Cp, Cp)

    def _vec(v):                                                 # -> (1, Cp) f32
        v = jnp.asarray(v, jnp.float32).reshape(1, -1)
        return jnp.zeros((1, Cp), jnp.float32).at[:, :v.shape[1]].set(v)

    out2d = pl.pallas_call(
        double_conv_kernel,
        out_shape=jax.ShapeDtypeStruct((M, Cp), jnp.bfloat16),
        in_specs=[pl.BlockSpec(memory_space=pltpu.MemorySpace.VMEM)] * 7,
        out_specs=pl.BlockSpec(memory_space=pltpu.MemorySpace.VMEM),
        scratch_shapes=[pltpu.VMEM((N, H + 2, W + 2, Cp), jnp.bfloat16)],
        compiler_params=pltpu.CompilerParams(
            vmem_limit_bytes=32 * 1024 * 1024),
    )(p1p, w1f, _vec(params["g1"]), _vec(params["b1"]),
      w2f, _vec(params["g2"]), _vec(params["b2"]))

    out = out2d[:, :Cout].astype(jnp.float32).reshape(N, H, W, Cout)
    return jnp.transpose(out, (0, 3, 1, 2)).astype(x_nchw.dtype)


def make_params(key, in_channels, out_channels):
    """Deterministic synthetic parameters (module's __init__ shapes)."""
    k1, k2, k3, k4, k5, k6 = jax.random.split(key, 6)
    return {
        # Conv2d(in, out, 3, padding=1, bias=False) -> HWIO layout
        "w1": 0.3 * jax.random.normal(k1, (3, 3, in_channels, out_channels),
                                      jnp.float32),
        "g1": 1.0 + 0.1 * jax.random.normal(k2, (1, out_channels), jnp.float32),
        "b1": 0.1 * jax.random.normal(k3, (1, out_channels), jnp.float32),
        # Conv2d(out, out, 3, padding=1, bias=False)
        "w2": 0.3 * jax.random.normal(k4, (3, 3, out_channels, out_channels),
                                      jnp.float32),
        "g2": 1.0 + 0.1 * jax.random.normal(k5, (1, out_channels), jnp.float32),
        "b2": 0.1 * jax.random.normal(k6, (1, out_channels), jnp.float32),
    }


def ref_double_conv(x_nchw, params):
    """Pure-JAX f32 reference (XLA conv) for correctness checking."""
    x = jnp.transpose(x_nchw, (0, 2, 3, 1)).astype(jnp.float32)

    def block(x, w, g, b):
        y = jax.lax.conv_general_dilated(
            x, w, window_strides=(1, 1), padding="SAME",
            dimension_numbers=("NHWC", "HWIO", "NHWC"))
        mean = jnp.mean(y, axis=(0, 1, 2))
        var = jnp.mean((y - mean) ** 2, axis=(0, 1, 2))
        y = (y - mean) * jax.lax.rsqrt(var + EPS) * g.reshape(-1) + b.reshape(-1)
        return jnp.maximum(y, 0.0)

    y = block(x, params["w1"], params["g1"], params["b1"])
    y = block(y, params["w2"], params["g2"], params["b2"])
    return jnp.transpose(y, (0, 3, 1, 2))


if __name__ == "__main__":
    key = jax.random.PRNGKey(0)
    kx, kp = jax.random.split(key)

    N, C_in, C_out, H, W = 2, 4, 8, 16, 16
    x = jax.random.normal(kx, (N, C_in, H, W), jnp.float32)
    params = make_params(kp, C_in, C_out)

    out = jax.block_until_ready(double_conv(x, params))
    ref = jax.block_until_ready(ref_double_conv(x, params))

    assert out.shape == (N, C_out, H, W), out.shape
    # bf16 MXU inputs / bf16 staging & output, f32 accumulation & BN math.
    assert jnp.allclose(out, ref, atol=3e-2, rtol=3e-2), (
        float(jnp.max(jnp.abs(out - ref))))

    print("KERNEL_OK")
</pallas_src>

<mosaic_0001>
module attributes {stable_mosaic.version = 11 : i64} {
  func.func @double_conv_kernel(%arg0: memref<512x128xbf16, #tpu.memory_space<vmem>>, %arg1: memref<128x128xbf16, #tpu.memory_space<vmem>>, %arg2: memref<1x128xf32, #tpu.memory_space<vmem>>, %arg3: memref<1x128xf32, #tpu.memory_space<vmem>>, %arg4: memref<1152x128xbf16, #tpu.memory_space<vmem>>, %arg5: memref<1x128xf32, #tpu.memory_space<vmem>>, %arg6: memref<1x128xf32, #tpu.memory_space<vmem>>, %arg7: memref<512x128xbf16, #tpu.memory_space<vmem>>, %arg8: memref<2x18x18x128xbf16, #tpu.memory_space<vmem>>) attributes {dimension_semantics = [], scalar_prefetch = 0 : i64, scratch_operands = 1 : i64, tpu.core_type = #tpu.core_type<tc>} {
    %c0 = arith.constant 0 : index
    %c0_0 = arith.constant 0 : index
    %0 = vector.load %arg0[%c0, %c0_0] : memref<512x128xbf16, #tpu.memory_space<vmem>>, vector<512x128xbf16>
    %c0_1 = arith.constant 0 : index
    %c0_2 = arith.constant 0 : index
    %1 = vector.load %arg1[%c0_1, %c0_2] : memref<128x128xbf16, #tpu.memory_space<vmem>>, vector<128x128xbf16>
    %cst = arith.constant dense<0.000000e+00> : vector<512x128xf32>
    %2 = tpu.matmul %0, %1, %cst {dimension_numbers = #tpu.dot_dimension_numbers<[1], [0], [0], [1], [0, 0, 1, 1], [], []>} : vector<512x128xbf16>, vector<128x128xbf16>, vector<512x128xf32> -> vector<512x128xf32>
    %cst_3 = arith.constant dense<0.000000e+00> : vector<128xf32>
    %3 = vector.multi_reduction <add>, %2, %cst_3 [0] : vector<512x128xf32> to vector<128xf32>
    %4 = vector.shape_cast %3 : vector<128xf32> to vector<1x128xf32>
    %5 = arith.mulf %2, %2 : vector<512x128xf32>
    %cst_4 = arith.constant dense<0.000000e+00> : vector<128xf32>
    %6 = vector.multi_reduction <add>, %5, %cst_4 [0] : vector<512x128xf32> to vector<128xf32>
    %7 = vector.shape_cast %6 : vector<128xf32> to vector<1x128xf32>
    %cst_5 = arith.constant 0.001953125 : f32
    %8 = vector.broadcast %cst_5 : f32 to vector<1x128xf32>
    %9 = arith.mulf %4, %8 : vector<1x128xf32>
    %cst_6 = arith.constant 0.001953125 : f32
    %10 = vector.broadcast %cst_6 : f32 to vector<1x128xf32>
    %11 = arith.mulf %7, %10 : vector<1x128xf32>
    %12 = arith.mulf %9, %9 : vector<1x128xf32>
    %13 = arith.subf %11, %12 : vector<1x128xf32>
    %cst_7 = arith.constant 0.000000e+00 : f32
    %14 = vector.broadcast %cst_7 : f32 to vector<1x128xf32>
    %15 = arith.maximumf %13, %14 : vector<1x128xf32>
    %cst_8 = arith.constant 9.99999974E-6 : f32
    %16 = vector.broadcast %cst_8 : f32 to vector<1x128xf32>
    %17 = arith.addf %15, %16 : vector<1x128xf32>
    %18 = math.rsqrt %17 : vector<1x128xf32>
    %c0_9 = arith.constant 0 : index
    %c0_10 = arith.constant 0 : index
    %19 = vector.load %arg2[%c0_9, %c0_10] : memref<1x128xf32, #tpu.memory_space<vmem>>, vector<1x128xf32>
    %20 = arith.mulf %18, %19 : vector<1x128xf32>
    %c0_11 = arith.constant 0 : index
    %c0_12 = arith.constant 0 : index
    %21 = vector.load %arg3[%c0_11, %c0_12] : memref<1x128xf32, #tpu.memory_space<vmem>>, vector<1x128xf32>
    %22 = arith.mulf %9, %20 : vector<1x128xf32>
    %23 = arith.subf %21, %22 : vector<1x128xf32>
    %24 = vector.broadcast %20 : vector<1x128xf32> to vector<512x128xf32>
    %25 = arith.mulf %2, %24 : vector<512x128xf32>
    %26 = vector.broadcast %23 : vector<1x128xf32> to vector<512x128xf32>
    %27 = arith.addf %25, %26 : vector<512x128xf32>
    %cst_13 = arith.constant 0.000000e+00 : f32
    %28 = vector.broadcast %cst_13 : f32 to vector<512x128xf32>
    %29 = arith.maximumf %27, %28 : vector<512x128xf32>
    %cst_14 = arith.constant 0.000000e+00 : bf16
    %30 = vector.broadcast %cst_14 : bf16 to vector<2x18x18x128xbf16>
    %c0_15 = arith.constant 0 : index
    %c0_16 = arith.constant 0 : index
    %c0_17 = arith.constant 0 : index
    %c0_18 = arith.constant 0 : index
    %31 = vector.load %arg8[%c0_15, %c0_16, %c0_17, %c0_18] : memref<2x18x18x128xbf16, #tpu.memory_space<vmem>>, vector<2x18x18x128xbf16>
    tpu.vector_store %arg8[%c0_15, %c0_16, %c0_17, %c0_18], %30 {strides = array<i32>} : memref<2x18x18x128xbf16, #tpu.memory_space<vmem>>, vector<2x18x18x128xbf16>,
    %32 = arith.truncf %29 : vector<512x128xf32> to vector<512x128xbf16>
    %33 = vector.shape_cast %32 : vector<512x128xbf16> to vector<2x16x16x128xbf16>
    %c0_19 = arith.constant 0 : index
    %c1 = arith.constant 1 : index
    %c1_20 = arith.constant 1 : index
    %c0_21 = arith.constant 0 : index
    %34 = vector.load %arg8[%c0_19, %c1, %c1_20, %c0_21] : memref<2x18x18x128xbf16, #tpu.memory_space<vmem>>, vector<2x16x16x128xbf16>
    tpu.vector_store %arg8[%c0_19, %c1, %c1_20, %c0_21], %33 {strides = array<i32>} : memref<2x18x18x128xbf16, #tpu.memory_space<vmem>>, vector<2x16x16x128xbf16>,
    %cst_22 = arith.constant 0.000000e+00 : f32
    %35 = vector.broadcast %cst_22 : f32 to vector<512x128xf32>
    %c0_23 = arith.constant 0 : index
    %c0_24 = arith.constant 0 : index
    %c0_25 = arith.constant 0 : index
    %c0_26 = arith.constant 0 : index
    %36 = vector.load %arg8[%c0_23, %c0_24, %c0_25, %c0_26] : memref<2x18x18x128xbf16, #tpu.memory_space<vmem>>, vector<2x16x16x128xbf16>
    %37 = vector.shape_cast %36 : vector<2x16x16x128xbf16> to vector<512x128xbf16>
    %c0_27 = arith.constant 0 : index
    %c0_28 = arith.constant 0 : index
    %38 = vector.load %arg4[%c0_27, %c0_28] : memref<1152x128xbf16, #tpu.memory_space<vmem>>, vector<128x128xbf16>
    %cst_29 = arith.constant dense<0.000000e+00> : vector<512x128xf32>
    %39 = tpu.matmul %37, %38, %cst_29 {dimension_numbers = #tpu.dot_dimension_numbers<[1], [0], [0], [1], [0, 0, 1, 1], [], []>} : vector<512x128xbf16>, vector<128x128xbf16>, vector<512x128xf32> -> vector<512x128xf32>
    %40 = arith.addf %35, %39 : vector<512x128xf32>
    %c0_30 = arith.constant 0 : index
    %c0_31 = arith.constant 0 : index
    %c1_32 = arith.constant 1 : index
    %c0_33 = arith.constant 0 : index
    %41 = vector.load %arg8[%c0_30, %c0_31, %c1_32, %c0_33] : memref<2x18x18x128xbf16, #tpu.memory_space<vmem>>, vector<2x16x16x128xbf16>
    %42 = vector.shape_cast %41 : vector<2x16x16x128xbf16> to vector<512x128xbf16>
    %c128 = arith.constant 128 : index
    %c0_34 = arith.constant 0 : index
    %43 = vector.load %arg4[%c128, %c0_34] : memref<1152x128xbf16, #tpu.memory_space<vmem>>, vector<128x128xbf16>
    %cst_35 = arith.constant dense<0.000000e+00> : vector<512x128xf32>
    %44 = tpu.matmul %42, %43, %cst_35 {dimension_numbers = #tpu.dot_dimension_numbers<[1], [0], [0], [1], [0, 0, 1, 1], [], []>} : vector<512x128xbf16>, vector<128x128xbf16>, vector<512x128xf32> -> vector<512x128xf32>
    %45 = arith.addf %40, %44 : vector<512x128xf32>
    %c0_36 = arith.constant 0 : index
    %c0_37 = arith.constant 0 : index
    %c2 = arith.constant 2 : index
    %c0_38 = arith.constant 0 : index
    %46 = vector.load %arg8[%c0_36, %c0_37, %c2, %c0_38] : memref<2x18x18x128xbf16, #tpu.memory_space<vmem>>, vector<2x16x16x128xbf16>
    %47 = vector.shape_cast %46 : vector<2x16x16x128xbf16> to vector<512x128xbf16>
    %c256 = arith.constant 256 : index
    %c0_39 = arith.constant 0 : index
    %48 = vector.load %arg4[%c256, %c0_39] : memref<1152x128xbf16, #tpu.memory_space<vmem>>, vector<128x128xbf16>
    %cst_40 = arith.constant dense<0.000000e+00> : vector<512x128xf32>
    %49 = tpu.matmul %47, %48, %cst_40 {dimension_numbers = #tpu.dot_dimension_numbers<[1], [0], [0], [1], [0, 0, 1, 1], [], []>} : vector<512x128xbf16>, vector<128x128xbf16>, vector<512x128xf32> -> vector<512x128xf32>
    %50 = arith.addf %45, %49 : vector<512x128xf32>
    %c0_41 = arith.constant 0 : index
    %c1_42 = arith.constant 1 : index
    %c0_43 = arith.constant 0 : index
    %c0_44 = arith.constant 0 : index
    %51 = vector.load %arg8[%c0_41, %c1_42, %c0_43, %c0_44] : memref<2x18x18x128xbf16, #tpu.memory_space<vmem>>, vector<2x16x16x128xbf16>
    %52 = vector.shape_cast %51 : vector<2x16x16x128xbf16> to vector<512x128xbf16>
    %c384 = arith.constant 384 : index
    %c0_45 = arith.constant 0 : index
    %53 = vector.load %arg4[%c384, %c0_45] : memref<1152x128xbf16, #tpu.memory_space<vmem>>, vector<128x128xbf16>
    %cst_46 = arith.constant dense<0.000000e+00> : vector<512x128xf32>
    %54 = tpu.matmul %52, %53, %cst_46 {dimension_numbers = #tpu.dot_dimension_numbers<[1], [0], [0], [1], [0, 0, 1, 1], [], []>} : vector<512x128xbf16>, vector<128x128xbf16>, vector<512x128xf32> -> vector<512x128xf32>
    %55 = arith.addf %50, %54 : vector<512x128xf32>
    %c0_47 = arith.constant 0 : index
    %c1_48 = arith.constant 1 : index
    %c1_49 = arith.constant 1 : index
    %c0_50 = arith.constant 0 : index
    %56 = vector.load %arg8[%c0_47, %c1_48, %c1_49, %c0_50] : memref<2x18x18x128xbf16, #tpu.memory_space<vmem>>, vector<2x16x16x128xbf16>
    %57 = vector.shape_cast %56 : vector<2x16x16x128xbf16> to vector<512x128xbf16>
    %c512 = arith.constant 512 : index
    %c0_51 = arith.constant 0 : index
    %58 = vector.load %arg4[%c512, %c0_51] : memref<1152x128xbf16, #tpu.memory_space<vmem>>, vector<128x128xbf16>
    %cst_52 = arith.constant dense<0.000000e+00> : vector<512x128xf32>
    %59 = tpu.matmul %57, %58, %cst_52 {dimension_numbers = #tpu.dot_dimension_numbers<[1], [0], [0], [1], [0, 0, 1, 1], [], []>} : vector<512x128xbf16>, vector<128x128xbf16>, vector<512x128xf32> -> vector<512x128xf32>
    %60 = arith.addf %55, %59 : vector<512x128xf32>
    %c0_53 = arith.constant 0 : index
    %c1_54 = arith.constant 1 : index
    %c2_55 = arith.constant 2 : index
    %c0_56 = arith.constant 0 : index
    %61 = vector.load %arg8[%c0_53, %c1_54, %c2_55, %c0_56] : memref<2x18x18x128xbf16, #tpu.memory_space<vmem>>, vector<2x16x16x128xbf16>
    %62 = vector.shape_cast %61 : vector<2x16x16x128xbf16> to vector<512x128xbf16>
    %c640 = arith.constant 640 : index
    %c0_57 = arith.constant 0 : index
    %63 = vector.load %arg4[%c640, %c0_57] : memref<1152x128xbf16, #tpu.memory_space<vmem>>, vector<128x128xbf16>
    %cst_58 = arith.constant dense<0.000000e+00> : vector<512x128xf32>
    %64 = tpu.matmul %62, %63, %cst_58 {dimension_numbers = #tpu.dot_dimension_numbers<[1], [0], [0], [1], [0, 0, 1, 1], [], []>} : vector<512x128xbf16>, vector<128x128xbf16>, vector<512x128xf32> -> vector<512x128xf32>
    %65 = arith.addf %60, %64 : vector<512x128xf32>
    %c0_59 = arith.constant 0 : index
    %c2_60 = arith.constant 2 : index
    %c0_61 = arith.constant 0 : index
    %c0_62 = arith.constant 0 : index
    %66 = vector.load %arg8[%c0_59, %c2_60, %c0_61, %c0_62] : memref<2x18x18x128xbf16, #tpu.memory_space<vmem>>, vector<2x16x16x128xbf16>
    %67 = vector.shape_cast %66 : vector<2x16x16x128xbf16> to vector<512x128xbf16>
    %c768 = arith.constant 768 : index
    %c0_63 = arith.constant 0 : index
    %68 = vector.load %arg4[%c768, %c0_63] : memref<1152x128xbf16, #tpu.memory_space<vmem>>, vector<128x128xbf16>
    %cst_64 = arith.constant dense<0.000000e+00> : vector<512x128xf32>
    %69 = tpu.matmul %67, %68, %cst_64 {dimension_numbers = #tpu.dot_dimension_numbers<[1], [0], [0], [1], [0, 0, 1, 1], [], []>} : vector<512x128xbf16>, vector<128x128xbf16>, vector<512x128xf32> -> vector<512x128xf32>
    %70 = arith.addf %65, %69 : vector<512x128xf32>
    %c0_65 = arith.constant 0 : index
    %c2_66 = arith.constant 2 : index
    %c1_67 = arith.constant 1 : index
    %c0_68 = arith.constant 0 : index
    %71 = vector.load %arg8[%c0_65, %c2_66, %c1_67, %c0_68] : memref<2x18x18x128xbf16, #tpu.memory_space<vmem>>, vector<2x16x16x128xbf16>
    %72 = vector.shape_cast %71 : vector<2x16x16x128xbf16> to vector<512x128xbf16>
    %c896 = arith.constant 896 : index
    %c0_69 = arith.constant 0 : index
    %73 = vector.load %arg4[%c896, %c0_69] : memref<1152x128xbf16, #tpu.memory_space<vmem>>, vector<128x128xbf16>
    %cst_70 = arith.constant dense<0.000000e+00> : vector<512x128xf32>
    %74 = tpu.matmul %72, %73, %cst_70 {dimension_numbers = #tpu.dot_dimension_numbers<[1], [0], [0], [1], [0, 0, 1, 1], [], []>} : vector<512x128xbf16>, vector<128x128xbf16>, vector<512x128xf32> -> vector<512x128xf32>
    %75 = arith.addf %70, %74 : vector<512x128xf32>
    %c0_71 = arith.constant 0 : index
    %c2_72 = arith.constant 2 : index
    %c2_73 = arith.constant 2 : index
    %c0_74 = arith.constant 0 : index
    %76 = vector.load %arg8[%c0_71, %c2_72, %c2_73, %c0_74] : memref<2x18x18x128xbf16, #tpu.memory_space<vmem>>, vector<2x16x16x128xbf16>
    %77 = vector.shape_cast %76 : vector<2x16x16x128xbf16> to vector<512x128xbf16>
    %c1024 = arith.constant 1024 : index
    %c0_75 = arith.constant 0 : index
    %78 = vector.load %arg4[%c1024, %c0_75] : memref<1152x128xbf16, #tpu.memory_space<vmem>>, vector<128x128xbf16>
    %cst_76 = arith.constant dense<0.000000e+00> : vector<512x128xf32>
    %79 = tpu.matmul %77, %78, %cst_76 {dimension_numbers = #tpu.dot_dimension_numbers<[1], [0], [0], [1], [0, 0, 1, 1], [], []>} : vector<512x128xbf16>, vector<128x128xbf16>, vector<512x128xf32> -> vector<512x128xf32>
    %80 = arith.addf %75, %79 : vector<512x128xf32>
    %cst_77 = arith.constant dense<0.000000e+00> : vector<128xf32>
    %81 = vector.multi_reduction <add>, %80, %cst_77 [0] : vector<512x128xf32> to vector<128xf32>
    %82 = vector.shape_cast %81 : vector<128xf32> to vector<1x128xf32>
    %83 = arith.mulf %80, %80 : vector<512x128xf32>
    %cst_78 = arith.constant dense<0.000000e+00> : vector<128xf32>
    %84 = vector.multi_reduction <add>, %83, %cst_78 [0] : vector<512x128xf32> to vector<128xf32>
    %85 = vector.shape_cast %84 : vector<128xf32> to vector<1x128xf32>
    %cst_79 = arith.constant 0.001953125 : f32
    %86 = vector.broadcast %cst_79 : f32 to vector<1x128xf32>
    %87 = arith.mulf %82, %86 : vector<1x128xf32>
    %cst_80 = arith.constant 0.001953125 : f32
    %88 = vector.broadcast %cst_80 : f32 to vector<1x128xf32>
    %89 = arith.mulf %85, %88 : vector<1x128xf32>
    %90 = arith.mulf %87, %87 : vector<1x128xf32>
    %91 = arith.subf %89, %90 : vector<1x128xf32>
    %cst_81 = arith.constant 0.000000e+00 : f32
    %92 = vector.broadcast %cst_81 : f32 to vector<1x128xf32>
    %93 = arith.maximumf %91, %92 : vector<1x128xf32>
    %cst_82 = arith.constant 9.99999974E-6 : f32
    %94 = vector.broadcast %cst_82 : f32 to vector<1x128xf32>
    %95 = arith.addf %93, %94 : vector<1x128xf32>
    %96 = math.rsqrt %95 : vector<1x128xf32>
    %c0_83 = arith.constant 0 : index
    %c0_84 = arith.constant 0 : index
    %97 = vector.load %arg5[%c0_83, %c0_84] : memref<1x128xf32, #tpu.memory_space<vmem>>, vector<1x128xf32>
    %98 = arith.mulf %96, %97 : vector<1x128xf32>
    %c0_85 = arith.constant 0 : index
    %c0_86 = arith.constant 0 : index
    %99 = vector.load %arg6[%c0_85, %c0_86] : memref<1x128xf32, #tpu.memory_space<vmem>>, vector<1x128xf32>
    %100 = arith.mulf %87, %98 : vector<1x128xf32>
    %101 = arith.subf %99, %100 : vector<1x128xf32>
    %102 = vector.broadcast %98 : vector<1x128xf32> to vector<512x128xf32>
    %103 = arith.mulf %80, %102 : vector<512x128xf32>
    %104 = vector.broadcast %101 : vector<1x128xf32> to vector<512x128xf32>
    %105 = arith.addf %103, %104 : vector<512x128xf32>
    %cst_87 = arith.constant 0.000000e+00 : f32
    %106 = vector.broadcast %cst_87 : f32 to vector<512x128xf32>
    %107 = arith.maximumf %105, %106 : vector<512x128xf32>
    %108 = arith.truncf %107 : vector<512x128xf32> to vector<512x128xbf16>
    %c0_88 = arith.constant 0 : index
    %c0_89 = arith.constant 0 : index
    %109 = vector.load %arg7[%c0_88, %c0_89] : memref<512x128xbf16, #tpu.memory_space<vmem>>, vector<512x128xbf16>
    tpu.vector_store %arg7[%c0_88, %c0_89], %108 {strides = array<i32>} : memref<512x128xbf16, #tpu.memory_space<vmem>>, vector<512x128xbf16>,
    return
  }
}

</mosaic_0001>

<llo_original>
// kernel: double_conv.1
$region0: #{double_conv.1}
  #allocation0 [shape = 'u32[]', space=smem, size = 0x4, offset = 0x4, fixed_abs, tag = 'smem constant byte address 0x4 - core index']
  #allocation1 [shape = 'u32[144,128]{1,0:T(1,128)}', space=vmem, size = 0x12000, scoped, tag = 'internal scratch']
  #allocation2 [shape = 'bf16[2,18,18,128]{3,2,1,0:T(8,128)(2,1)}', space=vmem, size = 0x36000, scoped, tag = 'scratch operand']
  %s0 = inlined_call_operand.vmem [shape: bf16[512,128], index: 0, kind: input, shape index: {}]
  %s1 = inlined_call_operand.vmem [shape: bf16[128,128], index: 1, kind: input, shape index: {}]
  %s2 = inlined_call_operand.vmem [shape: f32[1,128], index: 2, kind: input, shape index: {}]
  %s3 = inlined_call_operand.vmem [shape: f32[1,128], index: 3, kind: input, shape index: {}]
  %s4 = inlined_call_operand.vmem [shape: bf16[1152,128], index: 4, kind: input, shape index: {}]
  %s5 = inlined_call_operand.vmem [shape: f32[1,128], index: 5, kind: input, shape index: {}]
  %s6 = inlined_call_operand.vmem [shape: f32[1,128], index: 6, kind: input, shape index: {}]
  %s7 = inlined_call_operand.vmem [shape: bf16[512,128], index: 7, kind: output, shape index: {}]
  %s8 = sld [smem:[#allocation0]]
  $region38: #{double_conv.1} parent=0
    _
  %s10 = ssub.s32 1, %s8
  %s11 = scalar_select 0, %s10, %s8
  // Predicated region
  $region2: #{double_conv.1} parent=0 // pred_check
    _
  $region3: #{double_conv.1} parent=0 // pred_check_branch
    %13 = sbr.rel (0) target = $region5
  $region4: #{double_conv.1} parent=0 // pred_region
    _
  $region5: #{double_conv.1} parent=0 // pred_fallthru
    _
  // Predicated region
  $region6: #{double_conv.1} parent=0 // pred_check
    _
  $region7: #{double_conv.1} parent=0 // pred_check_branch
    %15 = sbr.rel (0) target = $region9
  $region8: #{double_conv.1} parent=0 // pred_region
    _
  $region9: #{double_conv.1} parent=0 // pred_fallthru
    _
  // Predicated region
  $region10: #{double_conv.1} parent=0 // pred_check
    _
  $region11: #{double_conv.1} parent=0 // pred_check_branch
    %17 = sbr.rel (0) target = $region13
  $region12: #{double_conv.1} parent=0 // pred_region
    _
  $region13: #{double_conv.1} parent=0 // pred_fallthru
    _
  // Predicated region
  $region14: #{double_conv.1} parent=0 // pred_check
    _
  $region15: #{double_conv.1} parent=0 // pred_check_branch
    %19 = sbr.rel (0) target = $region17
  $region16: #{double_conv.1} parent=0 // pred_region
    _
  $region17: #{double_conv.1} parent=0 // pred_fallthru
    _
  // Predicated region
  $region18: #{double_conv.1} parent=0 // pred_check
    _
  $region19: #{double_conv.1} parent=0 // pred_check_branch
    %21 = sbr.rel (0) target = $region21
  $region20: #{double_conv.1} parent=0 // pred_region
    _
  $region21: #{double_conv.1} parent=0 // pred_fallthru
    _
  // Predicated region
  $region22: #{double_conv.1} parent=0 // pred_check
    _
  $region23: #{double_conv.1} parent=0 // pred_check_branch
    %23 = sbr.rel (0) target = $region25
  $region24: #{double_conv.1} parent=0 // pred_region
    _
  $region25: #{double_conv.1} parent=0 // pred_fallthru
    _
  // Predicated region
  $region26: #{double_conv.1} parent=0 // pred_check
    _
  $region27: #{double_conv.1} parent=0 // pred_check_branch
    %25 = sbr.rel (0) target = $region29
  $region28: #{double_conv.1} parent=0 // pred_region
    _
  $region29: #{double_conv.1} parent=0 // pred_fallthru
    _
  %v27 = vld [vmem:[%s0] sm:$0xf]
  %v28 = vld [vmem:[%s0 + $0x4] sm:$0xf]
  %v29 = vld [vmem:[%s0 + $0x8] sm:$0xf]
  %v30 = vld [vmem:[%s0 + $0xc] sm:$0xf]
  %v31 = vld [vmem:[%s0 + $0x10] sm:$0xf]
  %v32 = vld [vmem:[%s0 + $0x14] sm:$0xf]
  %v33 = vld [vmem:[%s0 + $0x18] sm:$0xf]
  %v34 = vld [vmem:[%s0 + $0x1c] sm:$0xf]
  %v35 = vld [vmem:[%s0 + $0x20] sm:$0xf]
  %v36 = vld [vmem:[%s0 + $0x24] sm:$0xf]
  %v37 = vld [vmem:[%s0 + $0x28] sm:$0xf]
  %v38 = vld [vmem:[%s0 + $0x2c] sm:$0xf]
  %v39 = vld [vmem:[%s0 + $0x30] sm:$0xf]
  %v40 = vld [vmem:[%s0 + $0x34] sm:$0xf]
  %v41 = vld [vmem:[%s0 + $0x38] sm:$0xf]
  %v42 = vld [vmem:[%s0 + $0x3c] sm:$0xf]
  %v43 = vld [vmem:[%s0 + $0x40] sm:$0xf]
  %v44 = vld [vmem:[%s0 + $0x44] sm:$0xf]
  %v45 = vld [vmem:[%s0 + $0x48] sm:$0xf]
  %v46 = vld [vmem:[%s0 + $0x4c] sm:$0xf]
  %v47 = vld [vmem:[%s0 + $0x50] sm:$0xf]
  %v48 = vld [vmem:[%s0 + $0x54] sm:$0xf]
  %v49 = vld [vmem:[%s0 + $0x58] sm:$0xf]
  %v50 = vld [vmem:[%s0 + $0x5c] sm:$0xf]
  %v51 = vld [vmem:[%s0 + $0x60] sm:$0xf]
  %v52 = vld [vmem:[%s0 + $0x64] sm:$0xf]
  %v53 = vld [vmem:[%s0 + $0x68] sm:$0xf]
  %v54 = vld [vmem:[%s0 + $0x6c] sm:$0xf]
  %v55 = vld [vmem:[%s0 + $0x70] sm:$0xf]
  %v56 = vld [vmem:[%s0 + $0x74] sm:$0xf]
  %v57 = vld [vmem:[%s0 + $0x78] sm:$0xf]
  %v58 = vld [vmem:[%s0 + $0x7c] sm:$0xf]
  %v59 = vld [vmem:[%s0 + $0x80] sm:$0xf]
  %v60 = vld [vmem:[%s0 + $0x84] sm:$0xf]
  %v61 = vld [vmem:[%s0 + $0x88] sm:$0xf]
  %v62 = vld [vmem:[%s0 + $0x8c] sm:$0xf]
  %v63 = vld [vmem:[%s0 + $0x90] sm:$0xf]
  %v64 = vld [vmem:[%s0 + $0x94] sm:$0xf]
  %v65 = vld [vmem:[%s0 + $0x98] sm:$0xf]
  %v66 = vld [vmem:[%s0 + $0x9c] sm:$0xf]
  %v67 = vld [vmem:[%s0 + $0xa0] sm:$0xf]
  %v68 = vld [vmem:[%s0 + $0xa4] sm:$0xf]
  %v69 = vld [vmem:[%s0 + $0xa8] sm:$0xf]
  %v70 = vld [vmem:[%s0 + $0xac] sm:$0xf]
  %v71 = vld [vmem:[%s0 + $0xb0] sm:$0xf]
  %v72 = vld [vmem:[%s0 + $0xb4] sm:$0xf]
  %v73 = vld [vmem:[%s0 + $0xb8] sm:$0xf]
  %v74 = vld [vmem:[%s0 + $0xbc] sm:$0xf]
  %v75 = vld [vmem:[%s0 + $0xc0] sm:$0xf]
  %v76 = vld [vmem:[%s0 + $0xc4] sm:$0xf]
  %v77 = vld [vmem:[%s0 + $0xc8] sm:$0xf]
  %v78 = vld [vmem:[%s0 + $0xcc] sm:$0xf]
  %v79 = vld [vmem:[%s0 + $0xd0] sm:$0xf]
  %v80 = vld [vmem:[%s0 + $0xd4] sm:$0xf]
  %v81 = vld [vmem:[%s0 + $0xd8] sm:$0xf]
  %v82 = vld [vmem:[%s0 + $0xdc] sm:$0xf]
  %v83 = vld [vmem:[%s0 + $0xe0] sm:$0xf]
  %v84 = vld [vmem:[%s0 + $0xe4] sm:$0xf]
  %v85 = vld [vmem:[%s0 + $0xe8] sm:$0xf]
  %v86 = vld [vmem:[%s0 + $0xec] sm:$0xf]
  %v87 = vld [vmem:[%s0 + $0xf0] sm:$0xf]
  %v88 = vld [vmem:[%s0 + $0xf4] sm:$0xf]
  %v89 = vld [vmem:[%s0 + $0xf8] sm:$0xf]
  %v90 = vld [vmem:[%s0 + $0xfc] sm:$0xf]
  %v91 = vld [vmem:[%s1] sm:$0xf]
  %v92 = vld [vmem:[%s1 + $0x4] sm:$0xf]
  %v93 = vld [vmem:[%s1 + $0x8] sm:$0xf]
  %v94 = vld [vmem:[%s1 + $0xc] sm:$0xf]
  %v95 = vld [vmem:[%s1 + $0x10] sm:$0xf]
  %v96 = vld [vmem:[%s1 + $0x14] sm:$0xf]
  %v97 = vld [vmem:[%s1 + $0x18] sm:$0xf]
  %v98 = vld [vmem:[%s1 + $0x1c] sm:$0xf]
  %v99 = vld [vmem:[%s1 + $0x20] sm:$0xf]
  %v100 = vld [vmem:[%s1 + $0x24] sm:$0xf]
  %v101 = vld [vmem:[%s1 + $0x28] sm:$0xf]
  %v102 = vld [vmem:[%s1 + $0x2c] sm:$0xf]
  %v103 = vld [vmem:[%s1 + $0x30] sm:$0xf]
  %v104 = vld [vmem:[%s1 + $0x34] sm:$0xf]
  %v105 = vld [vmem:[%s1 + $0x38] sm:$0xf]
  %v106 = vld [vmem:[%s1 + $0x3c] sm:$0xf]
  %v171 = vunpack.c.l.b16 %v27
  %v172 = vunpack.c.l.b16 %v28
  %v173 = vunpack.c.l.b16 %v29
  %v174 = vunpack.c.l.b16 %v30
  %v175 = vunpack.c.l.b16 %v31
  %v176 = vunpack.c.l.b16 %v32
  %v177 = vunpack.c.l.b16 %v33
  %v178 = vunpack.c.l.b16 %v34
  %v179 = vunpack.c.l.b16 %v35
  %v180 = vunpack.c.l.b16 %v36
  %v181 = vunpack.c.l.b16 %v37
  %v182 = vunpack.c.l.b16 %v38
  %v183 = vunpack.c.l.b16 %v39
  %v184 = vunpack.c.l.b16 %v40
  %v185 = vunpack.c.l.b16 %v41
  %v186 = vunpack.c.l.b16 %v42
  %v187 = vunpack.c.l.b16 %v43
  %v188 = vunpack.c.l.b16 %v44
  %v189 = vunpack.c.l.b16 %v45
  %v190 = vunpack.c.l.b16 %v46
  %v191 = vunpack.c.l.b16 %v47
  %v192 = vunpack.c.l.b16 %v48
  %v193 = vunpack.c.l.b16 %v49
  %v194 = vunpack.c.l.b16 %v50
  %v195 = vunpack.c.l.b16 %v51
  %v196 = vunpack.c.l.b16 %v52
  %v197 = vunpack.c.l.b16 %v53
  %v198 = vunpack.c.l.b16 %v54
  %v199 = vunpack.c.l.b16 %v55
  %v200 = vunpack.c.l.b16 %v56
  %v201 = vunpack.c.l.b16 %v57
  %v202 = vunpack.c.l.b16 %v58
  %v203 = vunpack.c.l.b16 %v59
  %v204 = vunpack.c.l.b16 %v60
  %v205 = vunpack.c.l.b16 %v61
  %v206 = vunpack.c.l.b16 %v62
  %v207 = vunpack.c.l.b16 %v63
  %v208 = vunpack.c.l.b16 %v64
  %v209 = vunpack.c.l.b16 %v65
  %v210 = vunpack.c.l.b16 %v66
  %v211 = vunpack.c.l.b16 %v67
  %v212 = vunpack.c.l.b16 %v68
  %v213 = vunpack.c.l.b16 %v69
  %v214 = vunpack.c.l.b16 %v70
  %v215 = vunpack.c.l.b16 %v71
  %v216 = vunpack.c.l.b16 %v72
  %v217 = vunpack.c.l.b16 %v73
  %v218 = vunpack.c.l.b16 %v74
  %v219 = vunpack.c.l.b16 %v75
  %v220 = vunpack.c.l.b16 %v76
  %v221 = vunpack.c.l.b16 %v77
  %v222 = vunpack.c.l.b16 %v78
  %v223 = vunpack.c.l.b16 %v79
  %v224 = vunpack.c.l.b16 %v80
  %v225 = vunpack.c.l.b16 %v81
  %v226 = vunpack.c.l.b16 %v82
  %v227 = vunpack.c.l.b16 %v83
  %v228 = vunpack.c.l.b16 %v84
  %v229 = vunpack.c.l.b16 %v85
  %v230 = vunpack.c.l.b16 %v86
  %v231 = vunpack.c.l.b16 %v87
  %v232 = vunpack.c.l.b16 %v88
  %v233 = vunpack.c.l.b16 %v89
  %v234 = vunpack.c.l.b16 %v90
  %v235 = vpack.c.b16 %v172, %v171
  %v236 = vpack.c.b16 %v174, %v173
  %v237 = vpack.c.b16 %v176, %v175
  %v238 = vpack.c.b16 %v178, %v177
  %v239 = vpack.c.b16 %v180, %v179
  %v240 = vpack.c.b16 %v182, %v181
  %v241 = vpack.c.b16 %v184, %v183
  %v242 = vpack.c.b16 %v186, %v185
  %v243 = vpack.c.b16 %v188, %v187
  %v244 = vpack.c.b16 %v190, %v189
  %v245 = vpack.c.b16 %v192, %v191
  %v246 = vpack.c.b16 %v194, %v193
  %v247 = vpack.c.b16 %v196, %v195
  %v248 = vpack.c.b16 %v198, %v197
  %v249 = vpack.c.b16 %v200, %v199
  %v250 = vpack.c.b16 %v202, %v201
  %v251 = vpack.c.b16 %v204, %v203
  %v252 = vpack.c.b16 %v206, %v205
  %v253 = vpack.c.b16 %v208, %v207
  %v254 = vpack.c.b16 %v210, %v209
  %v255 = vpack.c.b16 %v212, %v211
  %v256 = vpack.c.b16 %v214, %v213
  %v257 = vpack.c.b16 %v216, %v215
  %v258 = vpack.c.b16 %v218, %v217
  %v259 = vpack.c.b16 %v220, %v219
  %v260 = vpack.c.b16 %v222, %v221
  %v261 = vpack.c.b16 %v224, %v223
  %v262 = vpack.c.b16 %v226, %v225
  %v263 = vpack.c.b16 %v228, %v227
  %v264 = vpack.c.b16 %v230, %v229
  %v265 = vpack.c.b16 %v232, %v231
  %v266 = vpack.c.b16 %v234, %v233
  %v315 = vunpack.c.l.b16 %v91
  %v316 = vunpack.c.l.b16 %v92
  %v317 = vunpack.c.l.b16 %v93
  %v318 = vunpack.c.l.b16 %v94
  %v319 = vunpack.c.l.b16 %v95
  %v320 = vunpack.c.l.b16 %v96
  %v321 = vunpack.c.l.b16 %v97
  %v322 = vunpack.c.l.b16 %v98
  %v323 = vunpack.c.l.b16 %v99
  %v324 = vunpack.c.l.b16 %v100
  %v325 = vunpack.c.l.b16 %v101
  %v326 = vunpack.c.l.b16 %v102
  %v327 = vunpack.c.l.b16 %v103
  %v328 = vunpack.c.l.b16 %v104
  %v329 = vunpack.c.l.b16 %v105
  %v330 = vunpack.c.l.b16 %v106
  %v331 = vpack.c.b16 %v316, %v315
  %v332 = vpack.c.b16 %v318, %v317
  %v333 = vpack.c.b16 %v320, %v319
  %v334 = vpack.c.b16 %v322, %v321
  %v335 = vpack.c.b16 %v324, %v323
  %v336 = vpack.c.b16 %v326, %v325
  %v337 = vpack.c.b16 %v328, %v327
  %v338 = vpack.c.b16 %v330, %v329
  %347 = vmatprep.subr.bf16.mxu0 0
  %348 = vmatpush1.bf16.msra.mxu0 %v331
  %349 = vmatprep.subr.bf16.mxu0 0
  %350 = vmatpush1.bf16.msra.mxu0 %v332
  %351 = vmatprep.subr.bf16.mxu0 0
  %352 = vmatpush1.bf16.msra.mxu0 %v333
  %353 = vmatprep.subr.bf16.mxu0 0
  %354 = vmatpush1.bf16.msra.mxu0 %v334
  %355 = vmatprep.subr.bf16.mxu0 0
  %356 = vmatpush1.bf16.msra.mxu0 %v335
  %357 = vmatprep.subr.bf16.mxu0 0
  %358 = vmatpush1.bf16.msra.mxu0 %v336
  %359 = vmatprep.subr.bf16.mxu0 0
  %360 = vmatpush1.bf16.msra.mxu0 %v337
  %361 = vmatprep.subr.bf16.mxu0 0
  %362 = vmatpush1.bf16.msra.mxu0 %v338
  %363 = vmatprep.subr.bf16.mxu0 0
  %364 = vmatpush1.bf16.msra.mxu0 0
  %365 = vmatprep.subr.bf16.mxu0 0
  %366 = vmatpush1.bf16.msra.mxu0 0
  %367 = vmatprep.subr.bf16.mxu0 0
  %368 = vmatpush1.bf16.msra.mxu0 0
  %369 = vmatprep.subr.bf16.mxu0 0
  %370 = vmatpush1.bf16.msra.mxu0 0
  %371 = vmatprep.subr.bf16.mxu0 0
  %372 = vmatpush1.bf16.msra.mxu0 0
  %373 = vmatprep.subr.bf16.mxu0 0
  %374 = vmatpush1.bf16.msra.mxu0 0
  %375 = vmatprep.subr.bf16.mxu0 0
  %376 = vmatpush1.bf16.msra.mxu0 0
  %377 = vmatprep.subr.bf16.mxu0 0
  %378 = vmatpush1.bf16.msra.mxu0 0
  %379 = vmatprep.mubr.bf16.mxu0 0
  %380 = vmatmul.mubr.bf16.gmra.mrb[0].mxu0 %v235
  %v381 = vpop.f32.mrb[0].mxu0
  %v382 = vadd.f32 0.0, %v381
  %v383 = vpop.f32.mrb[0].mxu0
  %v384 = vpop.f32.mrb[0].mxu0
  %v385 = vadd.f32 0.0, %v384
  %v386 = vpop.f32.mrb[0].mxu0
  %387 = vmatprep.mubr.bf16.mxu0 0
  %388 = vmatmul.mubr.bf16.gmra.mrb[0].mxu0 %v236
  %v389 = vpop.f32.mrb[0].mxu0
  %v390 = vadd.f32 0.0, %v389
  %v391 = vpop.f32.mrb[0].mxu0
  %v392 = vpop.f32.mrb[0].mxu0
  %v393 = vadd.f32 0.0, %v392
  %v394 = vpop.f32.mrb[0].mxu0
  %395 = vmatprep.mubr.bf16.mxu0 0
  %396 = vmatmul.mubr.bf16.gmra.mrb[0].mxu0 %v237
  %v397 = vpop.f32.mrb[0].mxu0
  %v398 = vadd.f32 0.0, %v397
  %v399 = vpop.f32.mrb[0].mxu0
  %v400 = vpop.f32.mrb[0].mxu0
  %v401 = vadd.f32 0.0, %v400
  %v402 = vpop.f32.mrb[0].mxu0
  %403 = vmatprep.mubr.bf16.mxu0 0
  %404 = vmatmul.mubr.bf16.gmra.mrb[0].mxu0 %v238
  %v405 = vpop.f32.mrb[0].mxu0
  %v406 = vadd.f32 0.0, %v405
  %v407 = vpop.f32.mrb[0].mxu0
  %v408 = vpop.f32.mrb[0].mxu0
  %v409 = vadd.f32 0.0, %v408
  %v410 = vpop.f32.mrb[0].mxu0
  %411 = vmatprep.mubr.bf16.mxu0 0
  %412 = vmatmul.mubr.bf16.gmra.mrb[0].mxu0 %v239
  %v413 = vpop.f32.mrb[0].mxu0
  %v414 = vadd.f32 0.0, %v413
  %v415 = vpop.f32.mrb[0].mxu0
  %v416 = vpop.f32.mrb[0].mxu0
  %v417 = vadd.f32 0.0, %v416
  %v418 = vpop.f32.mrb[0].mxu0
  %419 = vmatprep.mubr.bf16.mxu0 0
  %420 = vmatmul.mubr.bf16.gmra.mrb[0].mxu0 %v240
  %v421 = vpop.f32.mrb[0].mxu0
  %v422 = vadd.f32 0.0, %v421
  %v423 = vpop.f32.mrb[0].mxu0
  %v424 = vpop.f32.mrb[0].mxu0
  %v425 = vadd.f32 0.0, %v424
  %v426 = vpop.f32.mrb[0].mxu0
  %427 = vmatprep.mubr.bf16.mxu0 0
  %428 = vmatmul.mubr.bf16.gmra.mrb[0].mxu0 %v241
  %v429 = vpop.f32.mrb[0].mxu0
  %v430 = vadd.f32 0.0, %v429
  %v431 = vpop.f32.mrb[0].mxu0
  %v432 = vpop.f32.mrb[0].mxu0
  %v433 = vadd.f32 0.0, %v432
  %v434 = vpop.f32.mrb[0].mxu0
  %435 = vmatprep.mubr.bf16.mxu0 0
  %436 = vmatmul.mubr.bf16.gmra.mrb[0].mxu0 %v242
  %v437 = vpop.f32.mrb[0].mxu0
  %v438 = vadd.f32 0.0, %v437
  %v439 = vpop.f32.mrb[0].mxu0
  %v440 = vpop.f32.mrb[0].mxu0
  %v441 = vadd.f32 0.0, %v440
  %v442 = vpop.f32.mrb[0].mxu0
  %443 = vmatprep.mubr.bf16.mxu0 0
  %444 = vmatmul.mubr.bf16.gmra.mrb[0].mxu0 %v243
  %v445 = vpop.f32.mrb[0].mxu0
  %v446 = vadd.f32 0.0, %v445
  %v447 = vpop.f32.mrb[0].mxu0
  %v448 = vpop.f32.mrb[0].mxu0
  %v449 = vadd.f32 0.0, %v448
  %v450 = vpop.f32.mrb[0].mxu0
  %451 = vmatprep.mubr.bf16.mxu0 0
  %452 = vmatmul.mubr.bf16.gmra.mrb[0].mxu0 %v244
  %v453 = vpop.f32.mrb[0].mxu0
  %v454 = vadd.f32 0.0, %v453
  %v455 = vpop.f32.mrb[0].mxu0
  %v456 = vpop.f32.mrb[0].mxu0
  %v457 = vadd.f32 0.0, %v456
  %v458 = vpop.f32.mrb[0].mxu0
  %459 = vmatprep.mubr.bf16.mxu0 0
  %460 = vmatmul.mubr.bf16.gmra.mrb[0].mxu0 %v245
  %v461 = vpop.f32.mrb[0].mxu0
  %v462 = vadd.f32 0.0, %v461
  %v463 = vpop.f32.mrb[0].mxu0
  %v464 = vpop.f32.mrb[0].mxu0
  %v465 = vadd.f32 0.0, %v464
  %v466 = vpop.f32.mrb[0].mxu0
  %467 = vmatprep.mubr.bf16.mxu0 0
  %468 = vmatmul.mubr.bf16.gmra.mrb[0].mxu0 %v246
  %v469 = vpop.f32.mrb[0].mxu0
  %v470 = vadd.f32 0.0, %v469
  %v471 = vpop.f32.mrb[0].mxu0
  %v472 = vpop.f32.mrb[0].mxu0
  %v473 = vadd.f32 0.0, %v472
  %v474 = vpop.f32.mrb[0].mxu0
  %475 = vmatprep.mubr.bf16.mxu0 0
  %476 = vmatmul.mubr.bf16.gmra.mrb[0].mxu0 %v247
  %v477 = vpop.f32.mrb[0].mxu0
  %v478 = vadd.f32 0.0, %v477
  %v479 = vpop.f32.mrb[0].mxu0
  %v480 = vpop.f32.mrb[0].mxu0
  %v481 = vadd.f32 0.0, %v480
  %v482 = vpop.f32.mrb[0].mxu0
  %483 = vmatprep.mubr.bf16.mxu0 0
  %484 = vmatmul.mubr.bf16.gmra.mrb[0].mxu0 %v248
  %v485 = vpop.f32.mrb[0].mxu0
  %v486 = vadd.f32 0.0, %v485
  %v487 = vpop.f32.mrb[0].mxu0
  %v488 = vpop.f32.mrb[0].mxu0
  %v489 = vadd.f32 0.0, %v488
  %v490 = vpop.f32.mrb[0].mxu0
  %491 = vmatprep.mubr.bf16.mxu0 0
  %492 = vmatmul.mubr.bf16.gmra.mrb[0].mxu0 %v249
  %v493 = vpop.f32.mrb[0].mxu0
  %v494 = vadd.f32 0.0, %v493
  %v495 = vpop.f32.mrb[0].mxu0
  %v496 = vpop.f32.mrb[0].mxu0
  %v497 = vadd.f32 0.0, %v496
  %v498 = vpop.f32.mrb[0].mxu0
  %499 = vmatprep.mubr.bf16.mxu0 0
  %500 = vmatmul.mubr.bf16.gmra.mrb[0].mxu0 %v250
  %v501 = vpop.f32.mrb[0].mxu0
  %v502 = vadd.f32 0.0, %v501
  %v503 = vpop.f32.mrb[0].mxu0
  %v504 = vpop.f32.mrb[0].mxu0
  %v505 = vadd.f32 0.0, %v504
  %v506 = vpop.f32.mrb[0].mxu0
  %507 = vmatprep.mubr.bf16.mxu0 0
  %508 = vmatmul.mubr.bf16.gmra.mrb[0].mxu0 %v251
  %v509 = vpop.f32.mrb[0].mxu0
  %v510 = vadd.f32 0.0, %v509
  %v511 = vpop.f32.mrb[0].mxu0
  %v512 = vpop.f32.mrb[0].mxu0
  %v513 = vadd.f32 0.0, %v512
  %v514 = vpop.f32.mrb[0].mxu0
  %515 = vmatprep.mubr.bf16.mxu0 0
  %516 = vmatmul.mubr.bf16.gmra.mrb[0].mxu0 %v252
  %v517 = vpop.f32.mrb[0].mxu0
  %v518 = vadd.f32 0.0, %v517
  %v519 = vpop.f32.mrb[0].mxu0
  %v520 = vpop.f32.mrb[0].mxu0
  %v521 = vadd.f32 0.0, %v520
  %v522 = vpop.f32.mrb[0].mxu0
  %523 = vmatprep.mubr.bf16.mxu0 0
  %524 = vmatmul.mubr.bf16.gmra.mrb[0].mxu0 %v253
  %v525 = vpop.f32.mrb[0].mxu0
  %v526 = vadd.f32 0.0, %v525
  %v527 = vpop.f32.mrb[0].mxu0
  %v528 = vpop.f32.mrb[0].mxu0
  %v529 = vadd.f32 0.0, %v528
  %v530 = vpop.f32.mrb[0].mxu0
  %531 = vmatprep.mubr.bf16.mxu0 0
  %532 = vmatmul.mubr.bf16.gmra.mrb[0].mxu0 %v254
  %v533 = vpop.f32.mrb[0].mxu0
  %v534 = vadd.f32 0.0, %v533
  %v535 = vpop.f32.mrb[0].mxu0
  %v536 = vpop.f32.mrb[0].mxu0
  %v537 = vadd.f32 0.0, %v536
  %v538 = vpop.f32.mrb[0].mxu0
  %539 = vmatprep.mubr.bf16.mxu0 0
  %540 = vmatmul.mubr.bf16.gmra.mrb[0].mxu0 %v255
  %v541 = vpop.f32.mrb[0].mxu0
  %v542 = vadd.f32 0.0, %v541
  %v543 = vpop.f32.mrb[0].mxu0
  %v544 = vpop.f32.mrb[0].mxu0
  %v545 = vadd.f32 0.0, %v544
  %v546 = vpop.f32.mrb[0].mxu0
  %547 = vmatprep.mubr.bf16.mxu0 0
  %548 = vmatmul.mubr.bf16.gmra.mrb[0].mxu0 %v256
  %v549 = vpop.f32.mrb[0].mxu0
  %v550 = vadd.f32 0.0, %v549
  %v551 = vpop.f32.mrb[0].mxu0
  %v552 = vpop.f32.mrb[0].mxu0
  %v553 = vadd.f32 0.0, %v552
  %v554 = vpop.f32.mrb[0].mxu0
  %555 = vmatprep.mubr.bf16.mxu0 0
  %556 = vmatmul.mubr.bf16.gmra.mrb[0].mxu0 %v257
  %v557 = vpop.f32.mrb[0].mxu0
  %v558 = vadd.f32 0.0, %v557
  %v559 = vpop.f32.mrb[0].mxu0
  %v560 = vpop.f32.mrb[0].mxu0
  %v561 = vadd.f32 0.0, %v560
  %v562 = vpop.f32.mrb[0].mxu0
  %563 = vmatprep.mubr.bf16.mxu0 0
  %564 = vmatmul.mubr.bf16.gmra.mrb[0].mxu0 %v258
  %v565 = vpop.f32.mrb[0].mxu0
  %v566 = vadd.f32 0.0, %v565
  %v567 = vpop.f32.mrb[0].mxu0
  %v568 = vpop.f32.mrb[0].mxu0
  %v569 = vadd.f32 0.0, %v568
  %v570 = vpop.f32.mrb[0].mxu0
  %571 = vmatprep.mubr.bf16.mxu0 0
  %572 = vmatmul.mubr.bf16.gmra.mrb[0].mxu0 %v259
  %v573 = vpop.f32.mrb[0].mxu0
  %v574 = vadd.f32 0.0, %v573
  %v575 = vpop.f32.mrb[0].mxu0
  %v576 = vpop.f32.mrb[0].mxu0
  %v577 = vadd.f32 0.0, %v576
  %v578 = vpop.f32.mrb[0].mxu0
  %579 = vmatprep.mubr.bf16.mxu0 0
  %580 = vmatmul.mubr.bf16.gmra.mrb[0].mxu0 %v260
  %v581 = vpop.f32.mrb[0].mxu0
  %v582 = vadd.f32 0.0, %v581
  %v583 = vpop.f32.mrb[0].mxu0
  %v584 = vpop.f32.mrb[0].mxu0
  %v585 = vadd.f32 0.0, %v584
  %v586 = vpop.f32.mrb[0].mxu0
  %587 = vmatprep.mubr.bf16.mxu0 0
  %588 = vmatmul.mubr.bf16.gmra.mrb[0].mxu0 %v261
  %v589 = vpop.f32.mrb[0].mxu0
  %v590 = vadd.f32 0.0, %v589
  %v591 = vpop.f32.mrb[0].mxu0
  %v592 = vpop.f32.mrb[0].mxu0
  %v593 = vadd.f32 0.0, %v592
  %v594 = vpop.f32.mrb[0].mxu0
  %595 = vmatprep.mubr.bf16.mxu0 0
  %596 = vmatmul.mubr.bf16.gmra.mrb[0].mxu0 %v262
  %v597 = vpop.f32.mrb[0].mxu0
  %v598 = vadd.f32 0.0, %v597
  %v599 = vpop.f32.mrb[0].mxu0
  %v600 = vpop.f32.mrb[0].mxu0
  %v601 = vadd.f32 0.0, %v600
  %v602 = vpop.f32.mrb[0].mxu0
  %603 = vmatprep.mubr.bf16.mxu0 0
  %604 = vmatmul.mubr.bf16.gmra.mrb[0].mxu0 %v263
  %v605 = vpop.f32.mrb[0].mxu0
  %v606 = vadd.f32 0.0, %v605
  %v607 = vpop.f32.mrb[0].mxu0
  %v608 = vpop.f32.mrb[0].mxu0
  %v609 = vadd.f32 0.0, %v608
  %v610 = vpop.f32.mrb[0].mxu0
  %611 = vmatprep.mubr.bf16.mxu0 0
  %612 = vmatmul.mubr.bf16.gmra.mrb[0].mxu0 %v264
  %v613 = vpop.f32.mrb[0].mxu0
  %v614 = vadd.f32 0.0, %v613
  %v615 = vpop.f32.mrb[0].mxu0
  %v616 = vpop.f32.mrb[0].mxu0
  %v617 = vadd.f32 0.0, %v616
  %v618 = vpop.f32.mrb[0].mxu0
  %619 = vmatprep.mubr.bf16.mxu0 0
  %620 = vmatmul.mubr.bf16.gmra.mrb[0].mxu0 %v265
  %v621 = vpop.f32.mrb[0].mxu0
  %v622 = vadd.f32 0.0, %v621
  %v623 = vpop.f32.mrb[0].mxu0
  %v624 = vpop.f32.mrb[0].mxu0
  %v625 = vadd.f32 0.0, %v624
  %v626 = vpop.f32.mrb[0].mxu0
  %627 = vmatprep.mubr.bf16.mxu0 0
  %628 = vmatmul.mubr.bf16.gmra.mrb[0].mxu0 %v266
  %v629 = vpop.f32.mrb[0].mxu0
  %v630 = vadd.f32 0.0, %v629
  %v631 = vpop.f32.mrb[0].mxu0
  %v632 = vpop.f32.mrb[0].mxu0
  %v633 = vadd.f32 0.0, %v632
  %v634 = vpop.f32.mrb[0].mxu0
  %635 = vdwg.mxu0
  %v636 = vadd.f32 %v382, %v385
  %v637 = vadd.f32 %v636, %v390
  %v638 = vadd.f32 %v637, %v393
  %v639 = vadd.f32 %v638, %v398
  %v640 = vadd.f32 %v639, %v401
  %v641 = vadd.f32 %v640, %v406
  %v642 = vadd.f32 %v641, %v409
  %v643 = vadd.f32 %v642, %v414
  %v644 = vadd.f32 %v643, %v417
  %v645 = vadd.f32 %v644, %v422
  %v646 = vadd.f32 %v645, %v425
  %v647 = vadd.f32 %v646, %v430
  %v648 = vadd.f32 %v647, %v433
  %v649 = vadd.f32 %v648, %v438
  %v650 = vadd.f32 %v649, %v441
  %v651 = vadd.f32 %v650, %v446
  %v652 = vadd.f32 %v651, %v449
  %v653 = vadd.f32 %v652, %v454
  %v654 = vadd.f32 %v653, %v457
  %v655 = vadd.f32 %v654, %v462
  %v656 = vadd.f32 %v655, %v465
  %v657 = vadd.f32 %v656, %v470
  %v658 = vadd.f32 %v657, %v473
  %v659 = vadd.f32 %v658, %v478
  %v660 = vadd.f32 %v659, %v481
  %v661 = vadd.f32 %v660, %v486
  %v662 = vadd.f32 %v661, %v489
  %v663 = vadd.f32 %v662, %v494
  %v664 = vadd.f32 %v663, %v497
  %v665 = vadd.f32 %v664, %v502
  %v666 = vadd.f32 %v665, %v505
  %v667 = vadd.f32 %v666, %v510
  %v668 = vadd.f32 %v667, %v513
  %v669 = vadd.f32 %v668, %v518
  %v670 = vadd.f32 %v669, %v521
  %v671 = vadd.f32 %v670, %v526
  %v672 = vadd.f32 %v671, %v529
  %v673 = vadd.f32 %v672, %v534
  %v674 = vadd.f32 %v673, %v537
  %v675 = vadd.f32 %v674, %v542
  %v676 = vadd.f32 %v675, %v545
  %v677 = vadd.f32 %v676, %v550
  %v678 = vadd.f32 %v677, %v553
  %v679 = vadd.f32 %v678, %v558
  %v680 = vadd.f32 %v679, %v561
  %v681 = vadd.f32 %v680, %v566
  %v682 = vadd.f32 %v681, %v569
  %v683 = vadd.f32 %v682, %v574
  %v684 = vadd.f32 %v683, %v577
  %v685 = vadd.f32 %v684, %v582
  %v686 = vadd.f32 %v685, %v585
  %v687 = vadd.f32 %v686, %v590
  %v688 = vadd.f32 %v687, %v593
  %v689 = vadd.f32 %v688, %v598
  %v690 = vadd.f32 %v689, %v601
  %v691 = vadd.f32 %v690, %v606
  %v692 = vadd.f32 %v691, %v609
  %v693 = vadd.f32 %v692, %v614
  %v694 = vadd.f32 %v693, %v617
  %v695 = vadd.f32 %v694, %v622
  %v696 = vadd.f32 %v695, %v625
  %v697 = vadd.f32 %v696, %v630
  %v698 = vadd.f32 %v697, %v633
  %v699 = vrot.slane %v698, 4
  %v700 = vadd.f32 %v698, %v699
  %v701 = vrot.slane %v700, 2
  %v702 = vadd.f32 %v700, %v701
  %v703 = vrot.slane %v702, 1
  %v704 = vadd.f32 %v702, %v703
  %v705 = vmul.f32 %v382, %v382
  %v706 = vmul.f32 %v385, %v385
  %v707 = vmul.f32 %v390, %v390
  %v708 = vmul.f32 %v393, %v393
  %v709 = vmul.f32 %v398, %v398
  %v710 = vmul.f32 %v401, %v401
  %v711 = vmul.f32 %v406, %v406
  %v712 = vmul.f32 %v409, %v409
  %v713 = vmul.f32 %v414, %v414
  %v714 = vmul.f32 %v417, %v417
  %v715 = vmul.f32 %v422, %v422
  %v716 = vmul.f32 %v425, %v425
  %v717 = vmul.f32 %v430, %v430
  %v718 = vmul.f32 %v433, %v433
  %v719 = vmul.f32 %v438, %v438
  %v720 = vmul.f32 %v441, %v441
  %v721 = vmul.f32 %v446, %v446
  %v722 = vmul.f32 %v449, %v449
  %v723 = vmul.f32 %v454, %v454
  %v724 = vmul.f32 %v457, %v457
  %v725 = vmul.f32 %v462, %v462
  %v726 = vmul.f32 %v465, %v465
  %v727 = vmul.f32 %v470, %v470
  %v728 = vmul.f32 %v473, %v473
  %v729 = vmul.f32 %v478, %v478
  %v730 = vmul.f32 %v481, %v481
  %v731 = vmul.f32 %v486, %v486
  %v732 = vmul.f32 %v489, %v489
  %v733 = vmul.f32 %v494, %v494
  %v734 = vmul.f32 %v497, %v497
  %v735 = vmul.f32 %v502, %v502
  %v736 = vmul.f32 %v505, %v505
  %v737 = vmul.f32 %v510, %v510
  %v738 = vmul.f32 %v513, %v513
  %v739 = vmul.f32 %v518, %v518
  %v740 = vmul.f32 %v521, %v521
  %v741 = vmul.f32 %v526, %v526
  %v742 = vmul.f32 %v529, %v529
  %v743 = vmul.f32 %v534, %v534
  %v744 = vmul.f32 %v537, %v537
  %v745 = vmul.f32 %v542, %v542
  %v746 = vmul.f32 %v545, %v545
  %v747 = vmul.f32 %v550, %v550
  %v748 = vmul.f32 %v553, %v553
  %v749 = vmul.f32 %v558, %v558
  %v750 = vmul.f32 %v561, %v561
  %v751 = vmul.f32 %v566, %v566
  %v752 = vmul.f32 %v569, %v569
  %v753 = vmul.f32 %v574, %v574
  %v754 = vmul.f32 %v577, %v577
  %v755 = vmul.f32 %v582, %v582
  %v756 = vmul.f32 %v585, %v585
  %v757 = vmul.f32 %v590, %v590
  %v758 = vmul.f32 %v593, %v593
  %v759 = vmul.f32 %v598, %v598
  %v760 = vmul.f32 %v601, %v601
  %v761 = vmul.f32 %v606, %v606
  %v762 = vmul.f32 %v609, %v609
  %v763 = vmul.f32 %v614, %v614
  %v764 = vmul.f32 %v617, %v617
  %v765 = vmul.f32 %v622, %v622
  %v766 = vmul.f32 %v625, %v625
  %v767 = vmul.f32 %v630, %v630
  %v768 = vmul.f32 %v633, %v633
  %v769 = vadd.f32 %v705, %v706
  %v770 = vadd.f32 %v769, %v707
  %v771 = vadd.f32 %v770, %v708
  %v772 = vadd.f32 %v771, %v709
  %v773 = vadd.f32 %v772, %v710
  %v774 = vadd.f32 %v773, %v711
  %v775 = vadd.f32 %v774, %v712
  %v776 = vadd.f32 %v775, %v713
  %v777 = vadd.f32 %v776, %v714
  %v778 = vadd.f32 %v777, %v715
  %v779 = vadd.f32 %v778, %v716
  %v780 = vadd.f32 %v779, %v717
  %v781 = vadd.f32 %v780, %v718
  %v782 = vadd.f32 %v781, %v719
  %v783 = vadd.f32 %v782, %v720
  %v784 = vadd.f32 %v783, %v721
  %v785 = vadd.f32 %v784, %v722
  %v786 = vadd.f32 %v785, %v723
  %v787 = vadd.f32 %v786, %v724
  %v788 = vadd.f32 %v787, %v725
  %v789 = vadd.f32 %v788, %v726
  %v790 = vadd.f32 %v789, %v727
  %v791 = vadd.f32 %v790, %v728
  %v792 = vadd.f32 %v791, %v729
  %v793 = vadd.f32 %v792, %v730
  %v794 = vadd.f32 %v793, %v731
  %v795 = vadd.f32 %v794, %v732
  %v796 = vadd.f32 %v795, %v733
  %v797 = vadd.f32 %v796, %v734
  %v798 = vadd.f32 %v797, %v735
  %v799 = vadd.f32 %v798, %v736
  %v800 = vadd.f32 %v799, %v737
  %v801 = vadd.f32 %v800, %v738
  %v802 = vadd.f32 %v801, %v739
  %v803 = vadd.f32 %v802, %v740
  %v804 = vadd.f32 %v803, %v741
  %v805 = vadd.f32 %v804, %v742
  %v806 = vadd.f32 %v805, %v743
  %v807 = vadd.f32 %v806, %v744
  %v808 = vadd.f32 %v807, %v745
  %v809 = vadd.f32 %v808, %v746
  %v810 = vadd.f32 %v809, %v747
  %v811 = vadd.f32 %v810, %v748
  %v812 = vadd.f32 %v811, %v749
  %v813 = vadd.f32 %v812, %v750
  %v814 = vadd.f32 %v813, %v751
  %v815 = vadd.f32 %v814, %v752
  %v816 = vadd.f32 %v815, %v753
  %v817 = vadd.f32 %v816, %v754
  %v818 = vadd.f32 %v817, %v755
  %v819 = vadd.f32 %v818, %v756
  %v820 = vadd.f32 %v819, %v757
  %v821 = vadd.f32 %v820, %v758
  %v822 = vadd.f32 %v821, %v759
  %v823 = vadd.f32 %v822, %v760
  %v824 = vadd.f32 %v823, %v761
  %v825 = vadd.f32 %v824, %v762
  %v826 = vadd.f32 %v825, %v763
  %v827 = vadd.f32 %v826, %v764
  %v828 = vadd.f32 %v827, %v765
  %v829 = vadd.f32 %v828, %v766
  %v830 = vadd.f32 %v829, %v767
  %v831 = vadd.f32 %v830, %v768
  %v832 = vrot.slane %v831, 4
  %v833 = vadd.f32 %v831, %v832
  %v834 = vrot.slane %v833, 2
  %v835 = vadd.f32 %v833, %v834
  %v836 = vrot.slane %v835, 1
  %v837 = vadd.f32 %v835, %v836
  %v838 = vmul.f32 %v704, 0.001953125
  %v839 = vmul.f32 %v837, 0.001953125
  %v840 = vmul.f32 %v838, %v838
  %v841 = vsub.f32 %v839, %v840
  %v842 = vmax.f32 %v841, 0.0
  %v843 = vadd.f32 %v842, 1e-05
  %v844 = vrsqrt.pop %v843
  %v845 = vld [vmem:[%s2] sm:$0x1]
  %v846 = vmul.f32 %v844, %v845
  %v847 = vld [vmem:[%s3] sm:$0x1]
  %v848 = vmul.f32 %v838, %v846
  %v849 = vsub.f32 %v847, %v848
  %v850 = vlaneseq
  %v851 = vshrl.u32 %v850, 7
  %v852 = vsub.s32 0, %v851
  %v853 = vrot.slane %v846, %v852
  %v854 = vmul.f32 %v382, %v853
  %v855 = vmul.f32 %v385, %v853
  %v856 = vmul.f32 %v390, %v853
  %v857 = vmul.f32 %v393, %v853
  %v858 = vmul.f32 %v398, %v853
  %v859 = vmul.f32 %v401, %v853
  %v860 = vmul.f32 %v406, %v853
  %v861 = vmul.f32 %v409, %v853
  %v862 = vmul.f32 %v414, %v853
  %v863 = vmul.f32 %v417, %v853
  %v864 = vmul.f32 %v422, %v853
  %v865 = vmul.f32 %v425, %v853
  %v866 = vmul.f32 %v430, %v853
  %v867 = vmul.f32 %v433, %v853
  %v868 = vmul.f32 %v438, %v853
  %v869 = vmul.f32 %v441, %v853
  %v870 = vmul.f32 %v446, %v853
  %v871 = vmul.f32 %v449, %v853
  %v872 = vmul.f32 %v454, %v853
  %v873 = vmul.f32 %v457, %v853
  %v874 = vmul.f32 %v462, %v853
  %v875 = vmul.f32 %v465, %v853
  %v876 = vmul.f32 %v470, %v853
  %v877 = vmul.f32 %v473, %v853
  %v878 = vmul.f32 %v478, %v853
  %v879 = vmul.f32 %v481, %v853
  %v880 = vmul.f32 %v486, %v853
  %v881 = vmul.f32 %v489, %v853
  %v882 = vmul.f32 %v494, %v853
  %v883 = vmul.f32 %v497, %v853
  %v884 = vmul.f32 %v502, %v853
  %v885 = vmul.f32 %v505, %v853
  %v886 = vmul.f32 %v510, %v853
  %v887 = vmul.f32 %v513, %v853
  %v888 = vmul.f32 %v518, %v853
  %v889 = vmul.f32 %v521, %v853
  %v890 = vmul.f32 %v526, %v853
  %v891 = vmul.f32 %v529, %v853
  %v892 = vmul.f32 %v534, %v853
  %v893 = vmul.f32 %v537, %v853
  %v894 = vmul.f32 %v542, %v853
  %v895 = vmul.f32 %v545, %v853
  %v896 = vmul.f32 %v550, %v853
  %v897 = vmul.f32 %v553, %v853
  %v898 = vmul.f32 %v558, %v853
  %v899 = vmul.f32 %v561, %v853
  %v900 = vmul.f32 %v566, %v853
  %v901 = vmul.f32 %v569, %v853
  %v902 = vmul.f32 %v574, %v853
  %v903 = vmul.f32 %v577, %v853
  %v904 = vmul.f32 %v582, %v853
  %v905 = vmul.f32 %v585, %v853
  %v906 = vmul.f32 %v590, %v853
  %v907 = vmul.f32 %v593, %v853
  %v908 = vmul.f32 %v598, %v853
  %v909 = vmul.f32 %v601, %v853
  %v910 = vmul.f32 %v606, %v853
  %v911 = vmul.f32 %v609, %v853
  %v912 = vmul.f32 %v614, %v853
  %v913 = vmul.f32 %v617, %v853
  %v914 = vmul.f32 %v622, %v853
  %v915 = vmul.f32 %v625, %v853
  %v916 = vmul.f32 %v630, %v853
  %v917 = vmul.f32 %v633, %v853
  %v919 = vlaneseq
  %v920 = vshrl.u32 %v919, 7
  %v921 = vsub.s32 0, %v920
  %v922 = vrot.slane %v849, %v921
  %v924 = vadd.f32 %v854, %v922
  %v925 = vadd.f32 %v855, %v922
  %v926 = vadd.f32 %v856, %v922
  %v927 = vadd.f32 %v857, %v922
  %v928 = vadd.f32 %v858, %v922
  %v929 = vadd.f32 %v859, %v922
  %v930 = vadd.f32 %v860, %v922
  %v931 = vadd.f32 %v861, %v922
  %v932 = vadd.f32 %v862, %v922
  %v933 = vadd.f32 %v863, %v922
  %v934 = vadd.f32 %v864, %v922
  %v935 = vadd.f32 %v865, %v922
  %v936 = vadd.f32 %v866, %v922
  %v937 = vadd.f32 %v867, %v922
  %v938 = vadd.f32 %v868, %v922
  %v939 = vadd.f32 %v869, %v922
  %v940 = vadd.f32 %v870, %v922
  %v941 = vadd.f32 %v871, %v922
  %v942 = vadd.f32 %v872, %v922
  %v943 = vadd.f32 %v873, %v922
  %v944 = vadd.f32 %v874, %v922
  %v945 = vadd.f32 %v875, %v922
  %v946 = vadd.f32 %v876, %v922
  %v947 = vadd.f32 %v877, %v922
  %v948 = vadd.f32 %v878, %v922
  %v949 = vadd.f32 %v879, %v922
  %v950 = vadd.f32 %v880, %v922
  %v951 = vadd.f32 %v881, %v922
  %v952 = vadd.f32 %v882, %v922
  %v953 = vadd.f32 %v883, %v922
  %v954 = vadd.f32 %v884, %v922
  %v955 = vadd.f32 %v885, %v922
  %v956 = vadd.f32 %v886, %v922
  %v957 = vadd.f32 %v887, %v922
  %v958 = vadd.f32 %v888, %v922
  %v959 = vadd.f32 %v889, %v922
  %v960 = vadd.f32 %v890, %v922
  %v961 = vadd.f32 %v891, %v922
  %v962 = vadd.f32 %v892, %v922
  %v963 = vadd.f32 %v893, %v922
  %v964 = vadd.f32 %v894, %v922
  %v965 = vadd.f32 %v895, %v922
  %v966 = vadd.f32 %v896, %v922
  %v967 = vadd.f32 %v897, %v922
  %v968 = vadd.f32 %v898, %v922
  %v969 = vadd.f32 %v899, %v922
  %v970 = vadd.f32 %v900, %v922
  %v971 = vadd.f32 %v901, %v922
  %v972 = vadd.f32 %v902, %v922
  %v973 = vadd.f32 %v903, %v922
  %v974 = vadd.f32 %v904, %v922
  %v975 = vadd.f32 %v905, %v922
  %v976 = vadd.f32 %v906, %v922
  %v977 = vadd.f32 %v907, %v922
  %v978 = vadd.f32 %v908, %v922
  %v979 = vadd.f32 %v909, %v922
  %v980 = vadd.f32 %v910, %v922
  %v981 = vadd.f32 %v911, %v922
  %v982 = vadd.f32 %v912, %v922
  %v983 = vadd.f32 %v913, %v922
  %v984 = vadd.f32 %v914, %v922
  %v985 = vadd.f32 %v915, %v922
  %v986 = vadd.f32 %v916, %v922
  %v987 = vadd.f32 %v917, %v922
  %v988 = vmax.f32 %v924, 0.0
  %v989 = vmax.f32 %v925, 0.0
  %v990 = vmax.f32 %v926, 0.0
  %v991 = vmax.f32 %v927, 0.0
  %v992 = vmax.f32 %v928, 0.0
  %v993 = vmax.f32 %v929, 0.0
  %v994 = vmax.f32 %v930, 0.0
  %v995 = vmax.f32 %v931, 0.0
  %v996 = vmax.f32 %v932, 0.0
  %v997 = vmax.f32 %v933, 0.0
  %v998 = vmax.f32 %v934, 0.0
  %v999 = vmax.f32 %v935, 0.0
  %v1000 = vmax.f32 %v936, 0.0
  %v1001 = vmax.f32 %v937, 0.0
  %v1002 = vmax.f32 %v938, 0.0
  %v1003 = vmax.f32 %v939, 0.0
  %v1004 = vmax.f32 %v940, 0.0
  %v1005 = vmax.f32 %v941, 0.0
  %v1006 = vmax.f32 %v942, 0.0
  %v1007 = vmax.f32 %v943, 0.0
  %v1008 = vmax.f32 %v944, 0.0
  %v1009 = vmax.f32 %v945, 0.0
  %v1010 = vmax.f32 %v946, 0.0
  %v1011 = vmax.f32 %v947, 0.0
  %v1012 = vmax.f32 %v948, 0.0
  %v1013 = vmax.f32 %v949, 0.0
  %v1014 = vmax.f32 %v950, 0.0
  %v1015 = vmax.f32 %v951, 0.0
  %v1016 = vmax.f32 %v952, 0.0
  %v1017 = vmax.f32 %v953, 0.0
  %v1018 = vmax.f32 %v954, 0.0
  %v1019 = vmax.f32 %v955, 0.0
  %v1020 = vmax.f32 %v956, 0.0
  %v1021 = vmax.f32 %v957, 0.0
  %v1022 = vmax.f32 %v958, 0.0
  %v1023 = vmax.f32 %v959, 0.0
  %v1024 = vmax.f32 %v960, 0.0
  %v1025 = vmax.f32 %v961, 0.0
  %v1026 = vmax.f32 %v962, 0.0
  %v1027 = vmax.f32 %v963, 0.0
  %v1028 = vmax.f32 %v964, 0.0
  %v1029 = vmax.f32 %v965, 0.0
  %v1030 = vmax.f32 %v966, 0.0
  %v1031 = vmax.f32 %v967, 0.0
  %v1032 = vmax.f32 %v968, 0.0
  %v1033 = vmax.f32 %v969, 0.0
  %v1034 = vmax.f32 %v970, 0.0
  %v1035 = vmax.f32 %v971, 0.0
  %v1036 = vmax.f32 %v972, 0.0
  %v1037 = vmax.f32 %v973, 0.0
  %v1038 = vmax.f32 %v974, 0.0
  %v1039 = vmax.f32 %v975, 0.0
  %v1040 = vmax.f32 %v976, 0.0
  %v1041 = vmax.f32 %v977, 0.0
  %v1042 = vmax.f32 %v978, 0.0
  %v1043 = vmax.f32 %v979, 0.0
  %v1044 = vmax.f32 %v980, 0.0
  %v1045 = vmax.f32 %v981, 0.0
  %v1046 = vmax.f32 %v982, 0.0
  %v1047 = vmax.f32 %v983, 0.0
  %v1048 = vmax.f32 %v984, 0.0
  %v1049 = vmax.f32 %v985, 0.0
  %v1050 = vmax.f32 %v986, 0.0
  %v1051 = vmax.f32 %v987, 0.0
  %1052 = vst [vmem:[#allocation2] sm:$0xf] 0
  %1053 = vst [vmem:[#allocation2 + $0x4] sm:$0xf] 0
  %1054 = vst [vmem:[#allocation2 + $0x8] sm:$0x1] 0
  %1055 = vst [vmem:[#allocation2 + $0xc] sm:$0xf] 0
  %1056 = vst [vmem:[#allocation2 + $0x10] sm:$0xf] 0
  %1057 = vst [vmem:[#allocation2 + $0x14] sm:$0x1] 0
  %1058 = vst [vmem:[#allocation2 + $0x18] sm:$0xf] 0
  %1059 = vst [vmem:[#allocation2 + $0x1c] sm:$0xf] 0
  %1060 = vst [vmem:[#allocation2 + $0x20] sm:$0x1] 0
  %1061 = vst [vmem:[#allocation2 + $0x24] sm:$0xf] 0
  %1062 = vst [vmem:[#allocation2 + $0x28] sm:$0xf] 0
  %1063 = vst [vmem:[#allocation2 + $0x2c] sm:$0x1] 0
  %1064 = vst [vmem:[#allocation2 + $0x30] sm:$0xf] 0
  %1065 = vst [vmem:[#allocation2 + $0x34] sm:$0xf] 0
  %1066 = vst [vmem:[#allocation2 + $0x38] sm:$0x1] 0
  %1067 = vst [vmem:[#allocation2 + $0x3c] sm:$0xf] 0
  %1068 = vst [vmem:[#allocation2 + $0x40] sm:$0xf] 0
  %1069 = vst [vmem:[#allocation2 + $0x44] sm:$0x1] 0
  %1070 = vst [vmem:[#allocation2 + $0x48] sm:$0xf] 0
  %1071 = vst [vmem:[#allocation2 + $0x4c] sm:$0xf] 0
  %1072 = vst [vmem:[#allocation2 + $0x50] sm:$0x1] 0
  %1073 = vst [vmem:[#allocation2 + $0x54] sm:$0xf] 0
  %1074 = vst [vmem:[#allocation2 + $0x58] sm:$0xf] 0
  %1075 = vst [vmem:[#allocation2 + $0x5c] sm:$0x1] 0
  %1076 = vst [vmem:[#allocation2 + $0x60] sm:$0xf] 0
  %1077 = vst [vmem:[#allocation2 + $0x64] sm:$0xf] 0
  %1078 = vst [vmem:[#allocation2 + $0x68] sm:$0x1] 0
  %1079 = vst [vmem:[#allocation2 + $0x6c] sm:$0xf] 0
  %1080 = vst [vmem:[#allocation2 + $0x70] sm:$0xf] 0
  %1081 = vst [vmem:[#allocation2 + $0x74] sm:$0x1] 0
  %1082 = vst [vmem:[#allocation2 + $0x78] sm:$0xf] 0
  %1083 = vst [vmem:[#allocation2 + $0x7c] sm:$0xf] 0
  %1084 = vst [vmem:[#allocation2 + $0x80] sm:$0x1] 0
  %1085 = vst [vmem:[#allocation2 + $0x84] sm:$0xf] 0
  %1086 = vst [vmem:[#allocation2 + $0x88] sm:$0xf] 0
  %1087 = vst [vmem:[#allocation2 + $0x8c] sm:$0x1] 0
  %1088 = vst [vmem:[#allocation2 + $0x90] sm:$0xf] 0
  %1089 = vst [vmem:[#allocation2 + $0x94] sm:$0xf] 0
  %1090 = vst [vmem:[#allocation2 + $0x98] sm:$0x1] 0
  %1091 = vst [vmem:[#allocation2 + $0x9c] sm:$0xf] 0
  %1092 = vst [vmem:[#allocation2 + $0xa0] sm:$0xf] 0
  %1093 = vst [vmem:[#allocation2 + $0xa4] sm:$0x1] 0
  %1094 = vst [vmem:[#allocation2 + $0xa8] sm:$0xf] 0
  %1095 = vst [vmem:[#allocation2 + $0xac] sm:$0xf] 0
  %1096 = vst [vmem:[#allocation2 + $0xb0] sm:$0x1] 0
  %1097 = vst [vmem:[#allocation2 + $0xb4] sm:$0xf] 0
  %1098 = vst [vmem:[#allocation2 + $0xb8] sm:$0xf] 0
  %1099 = vst [vmem:[#allocation2 + $0xbc] sm:$0x1] 0
  %1100 = vst [vmem:[#allocation2 + $0xc0] sm:$0xf] 0
  %1101 = vst [vmem:[#allocation2 + $0xc4] sm:$0xf] 0
  %1102 = vst [vmem:[#allocation2 + $0xc8] sm:$0x1] 0
  %1103 = vst [vmem:[#allocation2 + $0xcc] sm:$0xf] 0
  %1104 = vst [vmem:[#allocation2 + $0xd0] sm:$0xf] 0
  %1105 = vst [vmem:[#allocation2 + $0xd4] sm:$0x1] 0
  %1106 = vst [vmem:[#allocation2 + $0xd8] sm:$0xf] 0
  %1107 = vst [vmem:[#allocation2 + $0xdc] sm:$0xf] 0
  %1108 = vst [vmem:[#allocation2 + $0xe0] sm:$0x1] 0
  %1109 = vst [vmem:[#allocation2 + $0xe4] sm:$0xf] 0
  %1110 = vst [vmem:[#allocation2 + $0xe8] sm:$0xf] 0
  %1111 = vst [vmem:[#allocation2 + $0xec] sm:$0x1] 0
  %1112 = vst [vmem:[#allocation2 + $0xf0] sm:$0xf] 0
  %1113 = vst [vmem:[#allocation2 + $0xf4] sm:$0xf] 0
  %1114 = vst [vmem:[#allocation2 + $0xf8] sm:$0x1] 0
  %1115 = vst [vmem:[#allocation2 + $0xfc] sm:$0xf] 0
  %1116 = vst [vmem:[#allocation2 + $0x100] sm:$0xf] 0
  %1117 = vst [vmem:[#allocation2 + $0x104] sm:$0x1] 0
  %1118 = vst [vmem:[#allocation2 + $0x108] sm:$0xf] 0
  %1119 = vst [vmem:[#allocation2 + $0x10c] sm:$0xf] 0
  %1120 = vst [vmem:[#allocation2 + $0x110] sm:$0x1] 0
  %1121 = vst [vmem:[#allocation2 + $0x114] sm:$0xf] 0
  %1122 = vst [vmem:[#allocation2 + $0x118] sm:$0xf] 0
  %1123 = vst [vmem:[#allocation2 + $0x11c] sm:$0x1] 0
  %1124 = vst [vmem:[#allocation2 + $0x120] sm:$0xf] 0
  %1125 = vst [vmem:[#allocation2 + $0x124] sm:$0xf] 0
  %1126 = vst [vmem:[#allocation2 + $0x128] sm:$0x1] 0
  %1127 = vst [vmem:[#allocation2 + $0x12c] sm:$0xf] 0
  %1128 = vst [vmem:[#allocation2 + $0x130] sm:$0xf] 0
  %1129 = vst [vmem:[#allocation2 + $0x134] sm:$0x1] 0
  %1130 = vst [vmem:[#allocation2 + $0x138] sm:$0xf] 0
  %1131 = vst [vmem:[#allocation2 + $0x13c] sm:$0xf] 0
  %1132 = vst [vmem:[#allocation2 + $0x140] sm:$0x1] 0
  %1133 = vst [vmem:[#allocation2 + $0x144] sm:$0xf] 0
  %1134 = vst [vmem:[#allocation2 + $0x148] sm:$0xf] 0
  %1135 = vst [vmem:[#allocation2 + $0x14c] sm:$0x1] 0
  %1136 = vst [vmem:[#allocation2 + $0x150] sm:$0xf] 0
  %1137 = vst [vmem:[#allocation2 + $0x154] sm:$0xf] 0
  %1138 = vst [vmem:[#allocation2 + $0x158] sm:$0x1] 0
  %1139 = vst [vmem:[#allocation2 + $0x15c] sm:$0xf] 0
  %1140 = vst [vmem:[#allocation2 + $0x160] sm:$0xf] 0
  %1141 = vst [vmem:[#allocation2 + $0x164] sm:$0x1] 0
  %1142 = vst [vmem:[#allocation2 + $0x168] sm:$0xf] 0
  %1143 = vst [vmem:[#allocation2 + $0x16c] sm:$0xf] 0
  %1144 = vst [vmem:[#allocation2 + $0x170] sm:$0x1] 0
  %1145 = vst [vmem:[#allocation2 + $0x174] sm:$0xf] 0
  %1146 = vst [vmem:[#allocation2 + $0x178] sm:$0xf] 0
  %1147 = vst [vmem:[#allocation2 + $0x17c] sm:$0x1] 0
  %1148 = vst [vmem:[#allocation2 + $0x180] sm:$0xf] 0
  %1149 = vst [vmem:[#allocation2 + $0x184] sm:$0xf] 0
  %1150 = vst [vmem:[#allocation2 + $0x188] sm:$0x1] 0
  %1151 = vst [vmem:[#allocation2 + $0x18c] sm:$0xf] 0
  %1152 = vst [vmem:[#allocation2 + $0x190] sm:$0xf] 0
  %1153 = vst [vmem:[#allocation2 + $0x194] sm:$0x1] 0
  %1154 = vst [vmem:[#allocation2 + $0x198] sm:$0xf] 0
  %1155 = vst [vmem:[#allocation2 + $0x19c] sm:$0xf] 0
  %1156 = vst [vmem:[#allocation2 + $0x1a0] sm:$0x1] 0
  %1157 = vst [vmem:[#allocation2 + $0x1a4] sm:$0xf] 0
  %1158 = vst [vmem:[#allocation2 + $0x1a8] sm:$0xf] 0
  %1159 = vst [vmem:[#allocation2 + $0x1ac] sm:$0x1] 0
  %v1160 = vpack.c.bf16 %v989, %v988
  %v1161 = vpack.c.bf16 %v991, %v990
  %v1162 = vpack.c.bf16 %v993, %v992
  %v1163 = vpack.c.bf16 %v995, %v994
  %v1164 = vpack.c.bf16 %v997, %v996
  %v1165 = vpack.c.bf16 %v999, %v998
  %v1166 = vpack.c.bf16 %v1001, %v1000
  %v1167 = vpack.c.bf16 %v1003, %v1002
  %v1168 = vpack.c.bf16 %v1005, %v1004
  %v1169 = vpack.c.bf16 %v1007, %v1006
  %v1170 = vpack.c.bf16 %v1009, %v1008
  %v1171 = vpack.c.bf16 %v1011, %v1010
  %v1172 = vpack.c.bf16 %v1013, %v1012
  %v1173 = vpack.c.bf16 %v1015, %v1014
  %v1174 = vpack.c.bf16 %v1017, %v1016
  %v1175 = vpack.c.bf16 %v1019, %v1018
  %v1176 = vpack.c.bf16 %v1021, %v1020
  %v1177 = vpack.c.bf16 %v1023, %v1022
  %v1178 = vpack.c.bf16 %v1025, %v1024
  %v1179 = vpack.c.bf16 %v1027, %v1026
  %v1180 = vpack.c.bf16 %v1029, %v1028
  %v1181 = vpack.c.bf16 %v1031, %v1030
  %v1182 = vpack.c.bf16 %v1033, %v1032
  %v1183 = vpack.c.bf16 %v1035, %v1034
  %v1184 = vpack.c.bf16 %v1037, %v1036
  %v1185 = vpack.c.bf16 %v1039, %v1038
  %v1186 = vpack.c.bf16 %v1041, %v1040
  %v1187 = vpack.c.bf16 %v1043, %v1042
  %v1188 = vpack.c.bf16 %v1045, %v1044
  %v1189 = vpack.c.bf16 %v1047, %v1046
  %v1190 = vpack.c.bf16 %v1049, %v1048
  %v1191 = vpack.c.bf16 %v1051, %v1050
  %v1224 = vunpack.c.l.b16 %v1160
  %v1225 = vunpack.c.h.b16 %v1160
  %v1226 = vunpack.c.l.b16 %v1161
  %v1227 = vunpack.c.h.b16 %v1161
  %v1228 = vunpack.c.l.b16 %v1162
  %v1229 = vunpack.c.h.b16 %v1162
  %v1230 = vunpack.c.l.b16 %v1163
  %v1231 = vunpack.c.h.b16 %v1163
  %v1232 = vunpack.c.l.b16 %v1164
  %v1233 = vunpack.c.h.b16 %v1164
  %v1234 = vunpack.c.l.b16 %v1165
  %v1235 = vunpack.c.h.b16 %v1165
  %v1236 = vunpack.c.l.b16 %v1166
  %v1237 = vunpack.c.h.b16 %v1166
  %v1238 = vunpack.c.l.b16 %v1167
  %v1239 = vunpack.c.h.b16 %v1167
  %v1240 = vunpack.c.l.b16 %v1168
  %v1241 = vunpack.c.h.b16 %v1168
  %v1242 = vunpack.c.l.b16 %v1169
  %v1243 = vunpack.c.h.b16 %v1169
  %v1244 = vunpack.c.l.b16 %v1170
  %v1245 = vunpack.c.h.b16 %v1170
  %v1246 = vunpack.c.l.b16 %v1171
  %v1247 = vunpack.c.h.b16 %v1171
  %v1248 = vunpack.c.l.b16 %v1172
  %v1249 = vunpack.c.h.b16 %v1172
  %v1250 = vunpack.c.l.b16 %v1173
  %v1251 = vunpack.c.h.b16 %v1173
  %v1252 = vunpack.c.l.b16 %v1174
  %v1253 = vunpack.c.h.b16 %v1174
  %v1254 = vunpack.c.l.b16 %v1175
  %v1255 = vunpack.c.h.b16 %v1175
  %v1256 = vunpack.c.l.b16 %v1176
  %v1257 = vunpack.c.h.b16 %v1176
  %v1258 = vunpack.c.l.b16 %v1177
  %v1259 = vunpack.c.h.b16 %v1177
  %v1260 = vunpack.c.l.b16 %v1178
  %v1261 = vunpack.c.h.b16 %v1178
  %v1262 = vunpack.c.l.b16 %v1179
  %v1263 = vunpack.c.h.b16 %v1179
  %v1264 = vunpack.c.l.b16 %v1180
  %v1265 = vunpack.c.h.b16 %v1180
  %v1266 = vunpack.c.l.b16 %v1181
  %v1267 = vunpack.c.h.b16 %v1181
  %v1268 = vunpack.c.l.b16 %v1182
  %v1269 = vunpack.c.h.b16 %v1182
  %v1270 = vunpack.c.l.b16 %v1183
  %v1271 = vunpack.c.h.b16 %v1183
  %v1272 = vunpack.c.l.b16 %v1184
  %v1273 = vunpack.c.h.b16 %v1184
  %v1274 = vunpack.c.l.b16 %v1185
  %v1275 = vunpack.c.h.b16 %v1185
  %v1276 = vunpack.c.l.b16 %v1186
  %v1277 = vunpack.c.h.b16 %v1186
  %v1278 = vunpack.c.l.b16 %v1187
  %v1279 = vunpack.c.h.b16 %v1187
  %v1280 = vunpack.c.l.b16 %v1188
  %v1281 = vunpack.c.h.b16 %v1188
  %v1282 = vunpack.c.l.b16 %v1189
  %v1283 = vunpack.c.h.b16 %v1189
  %v1284 = vunpack.c.l.b16 %v1190
  %v1285 = vunpack.c.h.b16 %v1190
  %v1286 = vunpack.c.l.b16 %v1191
  %v1287 = vunpack.c.h.b16 %v1191
  %v1288 = vpack.c.b16 %v1224, %v1224
  %v1289 = vpack.c.b16 %v1225, %v1225
  %v1290 = vpack.c.b16 %v1226, %v1226
  %v1291 = vpack.c.b16 %v1227, %v1227
  %v1292 = vpack.c.b16 %v1228, %v1228
  %v1293 = vpack.c.b16 %v1229, %v1229
  %v1294 = vpack.c.b16 %v1230, %v1230
  %v1295 = vpack.c.b16 %v1231, %v1231
  %v1296 = vpack.c.b16 %v1232, %v1232
  %v1297 = vpack.c.b16 %v1233, %v1233
  %v1298 = vpack.c.b16 %v1234, %v1234
  %v1299 = vpack.c.b16 %v1235, %v1235
  %v1300 = vpack.c.b16 %v1236, %v1236
  %v1301 = vpack.c.b16 %v1237, %v1237
  %v1302 = vpack.c.b16 %v1238, %v1238
  %v1303 = vpack.c.b16 %v1239, %v1239
  %v1304 = vpack.c.b16 %v1240, %v1240
  %v1305 = vpack.c.b16 %v1241, %v1241
  %v1306 = vpack.c.b16 %v1242, %v1242
  %v1307 = vpack.c.b16 %v1243, %v1243
  %v1308 = vpack.c.b16 %v1244, %v1244
  %v1309 = vpack.c.b16 %v1245, %v1245
  %v1310 = vpack.c.b16 %v1246, %v1246
  %v1311 = vpack.c.b16 %v1247, %v1247
  %v1312 = vpack.c.b16 %v1248, %v1248
  %v1313 = vpack.c.b16 %v1249, %v1249
  %v1314 = vpack.c.b16 %v1250, %v1250
  %v1315 = vpack.c.b16 %v1251, %v1251
  %v1316 = vpack.c.b16 %v1252, %v1252
  %v1317 = vpack.c.b16 %v1253, %v1253
  %v1318 = vpack.c.b16 %v1254, %v1254
  %v1319 = vpack.c.b16 %v1255, %v1255
  %v1320 = vpack.c.b16 %v1256, %v1256
  %v1321 = vpack.c.b16 %v1257, %v1257
  %v1322 = vpack.c.b16 %v1258, %v1258
  %v1323 = vpack.c.b16 %v1259, %v1259
  %v1324 = vpack.c.b16 %v1260, %v1260
  %v1325 = vpack.c.b16 %v1261, %v1261
  %v1326 = vpack.c.b16 %v1262, %v1262
  %v1327 = vpack.c.b16 %v1263, %v1263
  %v1328 = vpack.c.b16 %v1264, %v1264
  %v1329 = vpack.c.b16 %v1265, %v1265
  %v1330 = vpack.c.b16 %v1266, %v1266
  %v1331 = vpack.c.b16 %v1267, %v1267
  %v1332 = vpack.c.b16 %v1268, %v1268
  %v1333 = vpack.c.b16 %v1269, %v1269
  %v1334 = vpack.c.b16 %v1270, %v1270
  %v1335 = vpack.c.b16 %v1271, %v1271
  %v1336 = vpack.c.b16 %v1272, %v1272
  %v1337 = vpack.c.b16 %v1273, %v1273
  %v1338 = vpack.c.b16 %v1274, %v1274
  %v1339 = vpack.c.b16 %v1275, %v1275
  %v1340 = vpack.c.b16 %v1276, %v1276
  %v1341 = vpack.c.b16 %v1277, %v1277
  %v1342 = vpack.c.b16 %v1278, %v1278
  %v1343 = vpack.c.b16 %v1279, %v1279
  %v1344 = vpack.c.b16 %v1280, %v1280
  %v1345 = vpack.c.b16 %v1281, %v1281
  %v1346 = vpack.c.b16 %v1282, %v1282
  %v1347 = vpack.c.b16 %v1283, %v1283
  %v1348 = vpack.c.b16 %v1284, %v1284
  %v1349 = vpack.c.b16 %v1285, %v1285
  %v1350 = vpack.c.b16 %v1286, %v1286
  %v1351 = vpack.c.b16 %v1287, %v1287
  %vm1352 = vsmask.f32 256
  %vm1353 = vsmask.f32 4368
  %vm1354 = vmor %vm1352, %vm1353
  %v1356 = vshrl.u32 %v1288, 16
  %v1358 = vrot.slane %v1356, 7
  %v1359 = vshll.u32 %v1288, 16
  %v1361 = vor.u32 %v1358, %v1359
  %v1362 = vrot.slane %v1358, 4
  %v1364 = vshrl.u32 %v1289, 16
  %v1366 = vrot.slane %v1364, 7
  %v1367 = vshll.u32 %v1289, 16
  %v1369 = vor.u32 %v1366, %v1367
  %v1370 = vsel %vm1354, %v1362, %v1369
  %v1371 = vrot.slane %v1366, 4
  %v1373 = vshrl.u32 %v1290, 16
  %v1375 = vrot.slane %v1373, 7
  %v1376 = vshll.u32 %v1290, 16
  %v1378 = vor.u32 %v1375, %v1376
  %v1379 = vrot.slane %v1375, 4
  %v1381 = vshrl.u32 %v1291, 16
  %v1383 = vrot.slane %v1381, 7
  %v1384 = vshll.u32 %v1291, 16
  %v1386 = vor.u32 %v1383, %v1384
  %v1387 = vsel %vm1354, %v1379, %v1386
  %v1388 = vrot.slane %v1383, 4
  %v1390 = vshrl.u32 %v1292, 16
  %v1392 = vrot.slane %v1390, 7
  %v1393 = vshll.u32 %v1292, 16
  %v1395 = vor.u32 %v1392, %v1393
  %v1396 = vrot.slane %v1392, 4
  %v1398 = vshrl.u32 %v1293, 16
  %v1400 = vrot.slane %v1398, 7
  %v1401 = vshll.u32 %v1293, 16
  %v1403 = vor.u32 %v1400, %v1401
  %v1404 = vsel %vm1354, %v1396, %v1403
  %v1405 = vrot.slane %v1400, 4
  %v1407 = vshrl.u32 %v1294, 16
  %v1409 = vrot.slane %v1407, 7
  %v1410 = vshll.u32 %v1294, 16
  %v1412 = vor.u32 %v1409, %v1410
  %v1413 = vrot.slane %v1409, 4
  %v1415 = vshrl.u32 %v1295, 16
  %v1417 = vrot.slane %v1415, 7
  %v1418 = vshll.u32 %v1295, 16
  %v1420 = vor.u32 %v1417, %v1418
  %v1421 = vsel %vm1354, %v1413, %v1420
  %v1422 = vrot.slane %v1417, 4
  %v1424 = vshrl.u32 %v1296, 16
  %v1426 = vrot.slane %v1424, 7
  %v1427 = vshll.u32 %v1296, 16
  %v1429 = vor.u32 %v1426, %v1427
  %v1430 = vrot.slane %v1426, 4
  %v1432 = vshrl.u32 %v1297, 16
  %v1434 = vrot.slane %v1432, 7
  %v1435 = vshll.u32 %v1297, 16
  %v1437 = vor.u32 %v1434, %v1435
  %v1438 = vsel %vm1354, %v1430, %v1437
  %v1439 = vrot.slane %v1434, 4
  %v1441 = vshrl.u32 %v1298, 16
  %v1443 = vrot.slane %v1441, 7
  %v1444 = vshll.u32 %v1298, 16
  %v1446 = vor.u32 %v1443, %v1444
  %v1447 = vrot.slane %v1443, 4
  %v1449 = vshrl.u32 %v1299, 16
  %v1451 = vrot.slane %v1449, 7
  %v1452 = vshll.u32 %v1299, 16
  %v1454 = vor.u32 %v1451, %v1452
  %v1455 = vsel %vm1354, %v1447, %v1454
  %v1456 = vrot.slane %v1451, 4
  %v1458 = vshrl.u32 %v1300, 16
  %v1460 = vrot.slane %v1458, 7
  %v1461 = vshll.u32 %v1300, 16
  %v1463 = vor.u32 %v1460, %v1461
  %v1464 = vrot.slane %v1460, 4
  %v1466 = vshrl.u32 %v1301, 16
  %v1468 = vrot.slane %v1466, 7
  %v1469 = vshll.u32 %v1301, 16
  %v1471 = vor.u32 %v1468, %v1469
  %v1472 = vsel %vm1354, %v1464, %v1471
  %v1473 = vrot.slane %v1468, 4
  %v1475 = vshrl.u32 %v1302, 16
  %v1477 = vrot.slane %v1475, 7
  %v1478 = vshll.u32 %v1302, 16
  %v1480 = vor.u32 %v1477, %v1478
  %v1481 = vrot.slane %v1477, 4
  %v1483 = vshrl.u32 %v1303, 16
  %v1485 = vrot.slane %v1483, 7
  %v1486 = vshll.u32 %v1303, 16
  %v1488 = vor.u32 %v1485, %v1486
  %v1489 = vsel %vm1354, %v1481, %v1488
  %v1490 = vrot.slane %v1485, 4
  %v1492 = vshrl.u32 %v1304, 16
  %v1494 = vrot.slane %v1492, 7
  %v1495 = vshll.u32 %v1304, 16
  %v1497 = vor.u32 %v1494, %v1495
  %v1498 = vrot.slane %v1494, 4
  %v1500 = vshrl.u32 %v1305, 16
  %v1502 = vrot.slane %v1500, 7
  %v1503 = vshll.u32 %v1305, 16
  %v1505 = vor.u32 %v1502, %v1503
  %v1506 = vsel %vm1354, %v1498, %v1505
  %v1507 = vrot.slane %v1502, 4
  %v1509 = vshrl.u32 %v1306, 16
  %v1511 = vrot.slane %v1509, 7
  %v1512 = vshll.u32 %v1306, 16
  %v1514 = vor.u32 %v1511, %v1512
  %v1515 = vrot.slane %v1511, 4
  %v1517 = vshrl.u32 %v1307, 16
  %v1519 = vrot.slane %v1517, 7
  %v1520 = vshll.u32 %v1307, 16
  %v1522 = vor.u32 %v1519, %v1520
  %v1523 = vsel %vm1354, %v1515, %v1522
  %v1524 = vrot.slane %v1519, 4
  %v1526 = vshrl.u32 %v1308, 16
  %v1528 = vrot.slane %v1526, 7
  %v1529 = vshll.u32 %v1308, 16
  %v1531 = vor.u32 %v1528, %v1529
  %v1532 = vrot.slane %v1528, 4
  %v1534 = vshrl.u32 %v1309, 16
  %v1536 = vrot.slane %v1534, 7
  %v1537 = vshll.u32 %v1309, 16
  %v1539 = vor.u32 %v1536, %v1537
  %v1540 = vsel %vm1354, %v1532, %v1539
  %v1541 = vrot.slane %v1536, 4
  %v1543 = vshrl.u32 %v1310, 16
  %v1545 = vrot.slane %v1543, 7
  %v1546 = vshll.u32 %v1310, 16
  %v1548 = vor.u32 %v1545, %v1546
  %v1549 = vrot.slane %v1545, 4
  %v1551 = vshrl.u32 %v1311, 16
  %v1553 = vrot.slane %v1551, 7
  %v1554 = vshll.u32 %v1311, 16
  %v1556 = vor.u32 %v1553, %v1554
  %v1557 = vsel %vm1354, %v1549, %v1556
  %v1558 = vrot.slane %v1553, 4
  %v1560 = vshrl.u32 %v1312, 16
  %v1562 = vrot.slane %v1560, 7
  %v1563 = vshll.u32 %v1312, 16
  %v1565 = vor.u32 %v1562, %v1563
  %v1566 = vrot.slane %v1562, 4
  %v1568 = vshrl.u32 %v1313, 16
  %v1570 = vrot.slane %v1568, 7
  %v1571 = vshll.u32 %v1313, 16
  %v1573 = vor.u32 %v1570, %v1571
  %v1574 = vsel %vm1354, %v1566, %v1573
  %v1575 = vrot.slane %v1570, 4
  %v1577 = vshrl.u32 %v1314, 16
  %v1579 = vrot.slane %v1577, 7
  %v1580 = vshll.u32 %v1314, 16
  %v1582 = vor.u32 %v1579, %v1580
  %v1583 = vrot.slane %v1579, 4
  %v1585 = vshrl.u32 %v1315, 16
  %v1587 = vrot.slane %v1585, 7
  %v1588 = vshll.u32 %v1315, 16
  %v1590 = vor.u32 %v1587, %v1588
  %v1591 = vsel %vm1354, %v1583, %v1590
  %v1592 = vrot.slane %v1587, 4
  %v1594 = vshrl.u32 %v1316, 16
  %v1596 = vrot.slane %v1594, 7
  %v1597 = vshll.u32 %v1316, 16
  %v1599 = vor.u32 %v1596, %v1597
  %v1600 = vrot.slane %v1596, 4
  %v1602 = vshrl.u32 %v1317, 16
  %v1604 = vrot.slane %v1602, 7
  %v1605 = vshll.u32 %v1317, 16
  %v1607 = vor.u32 %v1604, %v1605
  %v1608 = vsel %vm1354, %v1600, %v1607
  %v1609 = vrot.slane %v1604, 4
  %v1611 = vshrl.u32 %v1318, 16
  %v1613 = vrot.slane %v1611, 7
  %v1614 = vshll.u32 %v1318, 16
  %v1616 = vor.u32 %v1613, %v1614
  %v1617 = vrot.slane %v1613, 4
  %v1619 = vshrl.u32 %v1319, 16
  %v1621 = vrot.slane %v1619, 7
  %v1622 = vshll.u32 %v1319, 16
  %v1624 = vor.u32 %v1621, %v1622
  %v1625 = vsel %vm1354, %v1617, %v1624
  %v1626 = vrot.slane %v1621, 4
  %v1628 = vshrl.u32 %v1320, 16
  %v1630 = vrot.slane %v1628, 7
  %v1631 = vshll.u32 %v1320, 16
  %v1633 = vor.u32 %v1630, %v1631
  %v1634 = vrot.slane %v1630, 4
  %v1636 = vshrl.u32 %v1321, 16
  %v1638 = vrot.slane %v1636, 7
  %v1639 = vshll.u32 %v1321, 16
  %v1641 = vor.u32 %v1638, %v1639
  %v1642 = vsel %vm1354, %v1634, %v1641
  %v1643 = vrot.slane %v1638, 4
  %v1645 = vshrl.u32 %v1322, 16
  %v1647 = vrot.slane %v1645, 7
  %v1648 = vshll.u32 %v1322, 16
  %v1650 = vor.u32 %v1647, %v1648
  %v1651 = vrot.slane %v1647, 4
  %v1653 = vshrl.u32 %v1323, 16
  %v1655 = vrot.slane %v1653, 7
  %v1656 = vshll.u32 %v1323, 16
  %v1658 = vor.u32 %v1655, %v1656
  %v1659 = vsel %vm1354, %v1651, %v1658
  %v1660 = vrot.slane %v1655, 4
  %v1662 = vshrl.u32 %v1324, 16
  %v1664 = vrot.slane %v1662, 7
  %v1665 = vshll.u32 %v1324, 16
  %v1667 = vor.u32 %v1664, %v1665
  %v1668 = vrot.slane %v1664, 4
  %v1670 = vshrl.u32 %v1325, 16
  %v1672 = vrot.slane %v1670, 7
  %v1673 = vshll.u32 %v1325, 16
  %v1675 = vor.u32 %v1672, %v1673
  %v1676 = vsel %vm1354, %v1668, %v1675
  %v1677 = vrot.slane %v1672, 4
  %v1679 = vshrl.u32 %v1326, 16
  %v1681 = vrot.slane %v1679, 7
  %v1682 = vshll.u32 %v1326, 16
  %v1684 = vor.u32 %v1681, %v1682
  %v1685 = vrot.slane %v1681, 4
  %v1687 = vshrl.u32 %v1327, 16
  %v1689 = vrot.slane %v1687, 7
  %v1690 = vshll.u32 %v1327, 16
  %v1692 = vor.u32 %v1689, %v1690
  %v1693 = vsel %vm1354, %v1685, %v1692
  %v1694 = vrot.slane %v1689, 4
  %v1696 = vshrl.u32 %v1328, 16
  %v1698 = vrot.slane %v1696, 7
  %v1699 = vshll.u32 %v1328, 16
  %v1701 = vor.u32 %v1698, %v1699
  %v1702 = vrot.slane %v1698, 4
  %v1704 = vshrl.u32 %v1329, 16
  %v1706 = vrot.slane %v1704, 7
  %v1707 = vshll.u32 %v1329, 16
  %v1709 = vor.u32 %v1706, %v1707
  %v1710 = vsel %vm1354, %v1702, %v1709
  %v1711 = vrot.slane %v1706, 4
  %v1713 = vshrl.u32 %v1330, 16
  %v1715 = vrot.slane %v1713, 7
  %v1716 = vshll.u32 %v1330, 16
  %v1718 = vor.u32 %v1715, %v1716
  %v1719 = vrot.slane %v1715, 4
  %v1721 = vshrl.u32 %v1331, 16
  %v1723 = vrot.slane %v1721, 7
  %v1724 = vshll.u32 %v1331, 16
  %v1726 = vor.u32 %v1723, %v1724
  %v1727 = vsel %vm1354, %v1719, %v1726
  %v1728 = vrot.slane %v1723, 4
  %v1730 = vshrl.u32 %v1332, 16
  %v1732 = vrot.slane %v1730, 7
  %v1733 = vshll.u32 %v1332, 16
  %v1735 = vor.u32 %v1732, %v1733
  %v1736 = vrot.slane %v1732, 4
  %v1738 = vshrl.u32 %v1333, 16
  %v1740 = vrot.slane %v1738, 7
  %v1741 = vshll.u32 %v1333, 16
  %v1743 = vor.u32 %v1740, %v1741
  %v1744 = vsel %vm1354, %v1736, %v1743
  %v1745 = vrot.slane %v1740, 4
  %v1747 = vshrl.u32 %v1334, 16
  %v1749 = vrot.slane %v1747, 7
  %v1750 = vshll.u32 %v1334, 16
  %v1752 = vor.u32 %v1749, %v1750
  %v1753 = vrot.slane %v1749, 4
  %v1755 = vshrl.u32 %v1335, 16
  %v1757 = vrot.slane %v1755, 7
  %v1758 = vshll.u32 %v1335, 16
  %v1760 = vor.u32 %v1757, %v1758
  %v1761 = vsel %vm1354, %v1753, %v1760
  %v1762 = vrot.slane %v1757, 4
  %v1764 = vshrl.u32 %v1336, 16
  %v1766 = vrot.slane %v1764, 7
  %v1767 = vshll.u32 %v1336, 16
  %v1769 = vor.u32 %v1766, %v1767
  %v1770 = vrot.slane %v1766, 4
  %v1772 = vshrl.u32 %v1337, 16
  %v1774 = vrot.slane %v1772, 7
  %v1775 = vshll.u32 %v1337, 16
  %v1777 = vor.u32 %v1774, %v1775
  %v1778 = vsel %vm1354, %v1770, %v1777
  %v1779 = vrot.slane %v1774, 4
  %v1781 = vshrl.u32 %v1338, 16
  %v1783 = vrot.slane %v1781, 7
  %v1784 = vshll.u32 %v1338, 16
  %v1786 = vor.u32 %v1783, %v1784
  %v1787 = vrot.slane %v1783, 4
  %v1789 = vshrl.u32 %v1339, 16
  %v1791 = vrot.slane %v1789, 7
  %v1792 = vshll.u32 %v1339, 16
  %v1794 = vor.u32 %v1791, %v1792
  %v1795 = vsel %vm1354, %v1787, %v1794
  %v1796 = vrot.slane %v1791, 4
  %v1798 = vshrl.u32 %v1340, 16
  %v1800 = vrot.slane %v1798, 7
  %v1801 = vshll.u32 %v1340, 16
  %v1803 = vor.u32 %v1800, %v1801
  %v1804 = vrot.slane %v1800, 4
  %v1806 = vshrl.u32 %v1341, 16
  %v1808 = vrot.slane %v1806, 7
  %v1809 = vshll.u32 %v1341, 16
  %v1811 = vor.u32 %v1808, %v1809
  %v1812 = vsel %vm1354, %v1804, %v1811
  %v1813 = vrot.slane %v1808, 4
  %v1815 = vshrl.u32 %v1342, 16
  %v1817 = vrot.slane %v1815, 7
  %v1818 = vshll.u32 %v1342, 16
  %v1820 = vor.u32 %v1817, %v1818
  %v1821 = vrot.slane %v1817, 4
  %v1823 = vshrl.u32 %v1343, 16
  %v1825 = vrot.slane %v1823, 7
  %v1826 = vshll.u32 %v1343, 16
  %v1828 = vor.u32 %v1825, %v1826
  %v1829 = vsel %vm1354, %v1821, %v1828
  %v1830 = vrot.slane %v1825, 4
  %v1832 = vshrl.u32 %v1344, 16
  %v1834 = vrot.slane %v1832, 7
  %v1835 = vshll.u32 %v1344, 16
  %v1837 = vor.u32 %v1834, %v1835
  %v1838 = vrot.slane %v1834, 4
  %v1840 = vshrl.u32 %v1345, 16
  %v1842 = vrot.slane %v1840, 7
  %v1843 = vshll.u32 %v1345, 16
  %v1845 = vor.u32 %v1842, %v1843
  %v1846 = vsel %vm1354, %v1838, %v1845
  %v1847 = vrot.slane %v1842, 4
  %v1849 = vshrl.u32 %v1346, 16
  %v1851 = vrot.slane %v1849, 7
  %v1852 = vshll.u32 %v1346, 16
  %v1854 = vor.u32 %v1851, %v1852
  %v1855 = vrot.slane %v1851, 4
  %v1857 = vshrl.u32 %v1347, 16
  %v1859 = vrot.slane %v1857, 7
  %v1860 = vshll.u32 %v1347, 16
  %v1862 = vor.u32 %v1859, %v1860
  %v1863 = vsel %vm1354, %v1855, %v1862
  %v1864 = vrot.slane %v1859, 4
  %v1866 = vshrl.u32 %v1348, 16
  %v1868 = vrot.slane %v1866, 7
  %v1869 = vshll.u32 %v1348, 16
  %v1871 = vor.u32 %v1868, %v1869
  %v1872 = vrot.slane %v1868, 4
  %v1874 = vshrl.u32 %v1349, 16
  %v1876 = vrot.slane %v1874, 7
  %v1877 = vshll.u32 %v1349, 16
  %v1879 = vor.u32 %v1876, %v1877
  %v1880 = vsel %vm1354, %v1872, %v1879
  %v1881 = vrot.slane %v1876, 4
  %v1883 = vshrl.u32 %v1350, 16
  %v1885 = vrot.slane %v1883, 7
  %v1886 = vshll.u32 %v1350, 16
  %v1888 = vor.u32 %v1885, %v1886
  %v1889 = vrot.slane %v1885, 4
  %v1891 = vshrl.u32 %v1351, 16
  %v1893 = vrot.slane %v1891, 7
  %v1894 = vshll.u32 %v1351, 16
  %v1896 = vor.u32 %v1893, %v1894
  %v1897 = vsel %vm1354, %v1889, %v1896
  %v1898 = vrot.slane %v1893, 4
  %s1995 = scalar_lea.vmem [#allocation2], 12
  %vm1996 = vcmask 1043456
  %vm1997 = vsmask.f32 7938
  %vm1998 = vmand %vm1996, %vm1997
  %v1999 = vld [vmem:[%s1995] sm:$0xf]
  %v2000 = vsel %vm1998, %v1361, %v1999
  %2001 = vst [vmem:[%s1995] sm:$0xf] %v2000
  %2002 = vst [vmem:[%s1995 + $0x4] sm:$0xf] %v1370
  %vm2003 = vcmask 1040384
  %vm2004 = vmand %vm2003, %vm1352
  %v2005 = vld [vmem:[%s1995 + $0x8] sm:$0x1]
  %v2006 = vsel %vm2004, %v1371, %v2005
  %2007 = vst [vmem:[%s1995 + $0x8] sm:$0x1] %v2006
  %v2008 = vld [vmem:[%s1995 + $0xc] sm:$0xf]
  %v2009 = vsel %vm1998, %v1378, %v2008
  %2010 = vst [vmem:[%s1995 + $0xc] sm:$0xf] %v2009
  %2011 = vst [vmem:[%s1995 + $0x10] sm:$0xf] %v1387
  %v2012 = vld [vmem:[%s1995 + $0x14] sm:$0x1]
  %v2013 = vsel %vm2004, %v1388, %v2012
  %2014 = vst [vmem:[%s1995 + $0x14] sm:$0x1] %v2013
  %v2015 = vld [vmem:[%s1995 + $0x18] sm:$0xf]
  %v2016 = vsel %vm1998, %v1395, %v2015
  %2017 = vst [vmem:[%s1995 + $0x18] sm:$0xf] %v2016
  %2018 = vst [vmem:[%s1995 + $0x1c] sm:$0xf] %v1404
  %v2019 = vld [vmem:[%s1995 + $0x20] sm:$0x1]
  %v2020 = vsel %vm2004, %v1405, %v2019
  %2021 = vst [vmem:[%s1995 + $0x20] sm:$0x1] %v2020
  %v2022 = vld [vmem:[%s1995 + $0x24] sm:$0xf]
  %v2023 = vsel %vm1998, %v1412, %v2022
  %2024 = vst [vmem:[%s1995 + $0x24] sm:$0xf] %v2023
  %2025 = vst [vmem:[%s1995 + $0x28] sm:$0xf] %v1421
  %v2026 = vld [vmem:[%s1995 + $0x2c] sm:$0x1]
  %v2027 = vsel %vm2004, %v1422, %v2026
  %2028 = vst [vmem:[%s1995 + $0x2c] sm:$0x1] %v2027
  %v2029 = vld [vmem:[%s1995 + $0x30] sm:$0xf]
  %v2030 = vsel %vm1998, %v1429, %v2029
  %2031 = vst [vmem:[%s1995 + $0x30] sm:$0xf] %v2030
  %2032 = vst [vmem:[%s1995 + $0x34] sm:$0xf] %v1438
  %v2033 = vld [vmem:[%s1995 + $0x38] sm:$0x1]
  %v2034 = vsel %vm2004, %v1439, %v2033
  %2035 = vst [vmem:[%s1995 + $0x38] sm:$0x1] %v2034
  %v2036 = vld [vmem:[%s1995 + $0x3c] sm:$0xf]
  %v2037 = vsel %vm1998, %v1446, %v2036
  %2038 = vst [vmem:[%s1995 + $0x3c] sm:$0xf] %v2037
  %2039 = vst [vmem:[%s1995 + $0x40] sm:$0xf] %v1455
  %v2040 = vld [vmem:[%s1995 + $0x44] sm:$0x1]
  %v2041 = vsel %vm2004, %v1456, %v2040
  %2042 = vst [vmem:[%s1995 + $0x44] sm:$0x1] %v2041
  %v2043 = vld [vmem:[%s1995 + $0x48] sm:$0xf]
  %v2044 = vsel %vm1998, %v1463, %v2043
  %2045 = vst [vmem:[%s1995 + $0x48] sm:$0xf] %v2044
  %2046 = vst [vmem:[%s1995 + $0x4c] sm:$0xf] %v1472
  %v2047 = vld [vmem:[%s1995 + $0x50] sm:$0x1]
  %v2048 = vsel %vm2004, %v1473, %v2047
  %2049 = vst [vmem:[%s1995 + $0x50] sm:$0x1] %v2048
  %v2050 = vld [vmem:[%s1995 + $0x54] sm:$0xf]
  %v2051 = vsel %vm1998, %v1480, %v2050
  %2052 = vst [vmem:[%s1995 + $0x54] sm:$0xf] %v2051
  %2053 = vst [vmem:[%s1995 + $0x58] sm:$0xf] %v1489
  %v2054 = vld [vmem:[%s1995 + $0x5c] sm:$0x1]
  %v2055 = vsel %vm2004, %v1490, %v2054
  %2056 = vst [vmem:[%s1995 + $0x5c] sm:$0x1] %v2055
  %v2057 = vld [vmem:[%s1995 + $0x60] sm:$0xf]
  %v2058 = vsel %vm1998, %v1497, %v2057
  %2059 = vst [vmem:[%s1995 + $0x60] sm:$0xf] %v2058
  %2060 = vst [vmem:[%s1995 + $0x64] sm:$0xf] %v1506
  %v2061 = vld [vmem:[%s1995 + $0x68] sm:$0x1]
  %v2062 = vsel %vm2004, %v1507, %v2061
  %2063 = vst [vmem:[%s1995 + $0x68] sm:$0x1] %v2062
  %v2064 = vld [vmem:[%s1995 + $0x6c] sm:$0xf]
  %v2065 = vsel %vm1998, %v1514, %v2064
  %2066 = vst [vmem:[%s1995 + $0x6c] sm:$0xf] %v2065
  %2067 = vst [vmem:[%s1995 + $0x70] sm:$0xf] %v1523
  %v2068 = vld [vmem:[%s1995 + $0x74] sm:$0x1]
  %v2069 = vsel %vm2004, %v1524, %v2068
  %2070 = vst [vmem:[%s1995 + $0x74] sm:$0x1] %v2069
  %v2071 = vld [vmem:[%s1995 + $0x78] sm:$0xf]
  %v2072 = vsel %vm1998, %v1531, %v2071
  %2073 = vst [vmem:[%s1995 + $0x78] sm:$0xf] %v2072
  %2074 = vst [vmem:[%s1995 + $0x7c] sm:$0xf] %v1540
  %v2075 = vld [vmem:[%s1995 + $0x80] sm:$0x1]
  %v2076 = vsel %vm2004, %v1541, %v2075
  %2077 = vst [vmem:[%s1995 + $0x80] sm:$0x1] %v2076
  %v2078 = vld [vmem:[%s1995 + $0x84] sm:$0xf]
  %v2079 = vsel %vm1998, %v1548, %v2078
  %2080 = vst [vmem:[%s1995 + $0x84] sm:$0xf] %v2079
  %2081 = vst [vmem:[%s1995 + $0x88] sm:$0xf] %v1557
  %v2082 = vld [vmem:[%s1995 + $0x8c] sm:$0x1]
  %v2083 = vsel %vm2004, %v1558, %v2082
  %2084 = vst [vmem:[%s1995 + $0x8c] sm:$0x1] %v2083
  %v2085 = vld [vmem:[%s1995 + $0x90] sm:$0xf]
  %v2086 = vsel %vm1998, %v1565, %v2085
  %2087 = vst [vmem:[%s1995 + $0x90] sm:$0xf] %v2086
  %2088 = vst [vmem:[%s1995 + $0x94] sm:$0xf] %v1574
  %v2089 = vld [vmem:[%s1995 + $0x98] sm:$0x1]
  %v2090 = vsel %vm2004, %v1575, %v2089
  %2091 = vst [vmem:[%s1995 + $0x98] sm:$0x1] %v2090
  %v2092 = vld [vmem:[%s1995 + $0x9c] sm:$0xf]
  %v2093 = vsel %vm1998, %v1582, %v2092
  %2094 = vst [vmem:[%s1995 + $0x9c] sm:$0xf] %v2093
  %2095 = vst [vmem:[%s1995 + $0xa0] sm:$0xf] %v1591
  %v2096 = vld [vmem:[%s1995 + $0xa4] sm:$0x1]
  %v2097 = vsel %vm2004, %v1592, %v2096
  %2098 = vst [vmem:[%s1995 + $0xa4] sm:$0x1] %v2097
  %v2099 = vld [vmem:[%s1995 + $0xa8] sm:$0xf]
  %v2100 = vsel %vm1998, %v1599, %v2099
  %2101 = vst [vmem:[%s1995 + $0xa8] sm:$0xf] %v2100
  %2102 = vst [vmem:[%s1995 + $0xac] sm:$0xf] %v1608
  %v2103 = vld [vmem:[%s1995 + $0xb0] sm:$0x1]
  %v2104 = vsel %vm2004, %v1609, %v2103
  %2105 = vst [vmem:[%s1995 + $0xb0] sm:$0x1] %v2104
  %v2106 = vld [vmem:[%s1995 + $0xb4] sm:$0xf]
  %v2107 = vsel %vm1998, %v1616, %v2106
  %2108 = vst [vmem:[%s1995 + $0xb4] sm:$0xf] %v2107
  %2109 = vst [vmem:[%s1995 + $0xb8] sm:$0xf] %v1625
  %v2110 = vld [vmem:[%s1995 + $0xbc] sm:$0x1]
  %v2111 = vsel %vm2004, %v1626, %v2110
  %2112 = vst [vmem:[%s1995 + $0xbc] sm:$0x1] %v2111
  %v2113 = vld [vmem:[%s1995 + $0xd8] sm:$0xf]
  %v2114 = vsel %vm1998, %v1633, %v2113
  %2115 = vst [vmem:[%s1995 + $0xd8] sm:$0xf] %v2114
  %2116 = vst [vmem:[%s1995 + $0xdc] sm:$0xf] %v1642
  %v2117 = vld [vmem:[%s1995 + $0xe0] sm:$0x1]
  %v2118 = vsel %vm2004, %v1643, %v2117
  %2119 = vst [vmem:[%s1995 + $0xe0] sm:$0x1] %v2118
  %v2120 = vld [vmem:[%s1995 + $0xe4] sm:$0xf]
  %v2121 = vsel %vm1998, %v1650, %v2120
  %2122 = vst [vmem:[%s1995 + $0xe4] sm:$0xf] %v2121
  %2123 = vst [vmem:[%s1995 + $0xe8] sm:$0xf] %v1659
  %v2124 = vld [vmem:[%s1995 + $0xec] sm:$0x1]
  %v2125 = vsel %vm2004, %v1660, %v2124
  %2126 = vst [vmem:[%s1995 + $0xec] sm:$0x1] %v2125
  %v2127 = vld [vmem:[%s1995 + $0xf0] sm:$0xf]
  %v2128 = vsel %vm1998, %v1667, %v2127
  %2129 = vst [vmem:[%s1995 + $0xf0] sm:$0xf] %v2128
  %2130 = vst [vmem:[%s1995 + $0xf4] sm:$0xf] %v1676
  %v2131 = vld [vmem:[%s1995 + $0xf8] sm:$0x1]
  %v2132 = vsel %vm2004, %v1677, %v2131
  %2133 = vst [vmem:[%s1995 + $0xf8] sm:$0x1] %v2132
  %v2134 = vld [vmem:[%s1995 + $0xfc] sm:$0xf]
  %v2135 = vsel %vm1998, %v1684, %v2134
  %2136 = vst [vmem:[%s1995 + $0xfc] sm:$0xf] %v2135
  %2137 = vst [vmem:[%s1995 + $0x100] sm:$0xf] %v1693
  %v2138 = vld [vmem:[%s1995 + $0x104] sm:$0x1]
  %v2139 = vsel %vm2004, %v1694, %v2138
  %2140 = vst [vmem:[%s1995 + $0x104] sm:$0x1] %v2139
  %v2141 = vld [vmem:[%s1995 + $0x108] sm:$0xf]
  %v2142 = vsel %vm1998, %v1701, %v2141
  %2143 = vst [vmem:[%s1995 + $0x108] sm:$0xf] %v2142
  %2144 = vst [vmem:[%s1995 + $0x10c] sm:$0xf] %v1710
  %v2145 = vld [vmem:[%s1995 + $0x110] sm:$0x1]
  %v2146 = vsel %vm2004, %v1711, %v2145
  %2147 = vst [vmem:[%s1995 + $0x110] sm:$0x1] %v2146
  %v2148 = vld [vmem:[%s1995 + $0x114] sm:$0xf]
  %v2149 = vsel %vm1998, %v1718, %v2148
  %2150 = vst [vmem:[%s1995 + $0x114] sm:$0xf] %v2149
  %2151 = vst [vmem:[%s1995 + $0x118] sm:$0xf] %v1727
  %v2152 = vld [vmem:[%s1995 + $0x11c] sm:$0x1]
  %v2153 = vsel %vm2004, %v1728, %v2152
  %2154 = vst [vmem:[%s1995 + $0x11c] sm:$0x1] %v2153
  %v2155 = vld [vmem:[%s1995 + $0x120] sm:$0xf]
  %v2156 = vsel %vm1998, %v1735, %v2155
  %2157 = vst [vmem:[%s1995 + $0x120] sm:$0xf] %v2156
  %2158 = vst [vmem:[%s1995 + $0x124] sm:$0xf] %v1744
  %v2159 = vld [vmem:[%s1995 + $0x128] sm:$0x1]
  %v2160 = vsel %vm2004, %v1745, %v2159
  %2161 = vst [vmem:[%s1995 + $0x128] sm:$0x1] %v2160
  %v2162 = vld [vmem:[%s1995 + $0x12c] sm:$0xf]
  %v2163 = vsel %vm1998, %v1752, %v2162
  %2164 = vst [vmem:[%s1995 + $0x12c] sm:$0xf] %v2163
  %2165 = vst [vmem:[%s1995 + $0x130] sm:$0xf] %v1761
  %v2166 = vld [vmem:[%s1995 + $0x134] sm:$0x1]
  %v2167 = vsel %vm2004, %v1762, %v2166
  %2168 = vst [vmem:[%s1995 + $0x134] sm:$0x1] %v2167
  %v2169 = vld [vmem:[%s1995 + $0x138] sm:$0xf]
  %v2170 = vsel %vm1998, %v1769, %v2169
  %2171 = vst [vmem:[%s1995 + $0x138] sm:$0xf] %v2170
  %2172 = vst [vmem:[%s1995 + $0x13c] sm:$0xf] %v1778
  %v2173 = vld [vmem:[%s1995 + $0x140] sm:$0x1]
  %v2174 = vsel %vm2004, %v1779, %v2173
  %2175 = vst [vmem:[%s1995 + $0x140] sm:$0x1] %v2174
  %v2176 = vld [vmem:[%s1995 + $0x144] sm:$0xf]
  %v2177 = vsel %vm1998, %v1786, %v2176
  %2178 = vst [vmem:[%s1995 + $0x144] sm:$0xf] %v2177
  %2179 = vst [vmem:[%s1995 + $0x148] sm:$0xf] %v1795
  %v2180 = vld [vmem:[%s1995 + $0x14c] sm:$0x1]
  %v2181 = vsel %vm2004, %v1796, %v2180
  %2182 = vst [vmem:[%s1995 + $0x14c] sm:$0x1] %v2181
  %v2183 = vld [vmem:[%s1995 + $0x150] sm:$0xf]
  %v2184 = vsel %vm1998, %v1803, %v2183
  %2185 = vst [vmem:[%s1995 + $0x150] sm:$0xf] %v2184
  %2186 = vst [vmem:[%s1995 + $0x154] sm:$0xf] %v1812
  %v2187 = vld [vmem:[%s1995 + $0x158] sm:$0x1]
  %v2188 = vsel %vm2004, %v1813, %v2187
  %2189 = vst [vmem:[%s1995 + $0x158] sm:$0x1] %v2188
  %v2190 = vld [vmem:[%s1995 + $0x15c] sm:$0xf]
  %v2191 = vsel %vm1998, %v1820, %v2190
  %2192 = vst [vmem:[%s1995 + $0x15c] sm:$0xf] %v2191
  %2193 = vst [vmem:[%s1995 + $0x160] sm:$0xf] %v1829
  %v2194 = vld [vmem:[%s1995 + $0x164] sm:$0x1]
  %v2195 = vsel %vm2004, %v1830, %v2194
  %2196 = vst [vmem:[%s1995 + $0x164] sm:$0x1] %v2195
  %v2197 = vld [vmem:[%s1995 + $0x168] sm:$0xf]
  %v2198 = vsel %vm1998, %v1837, %v2197
  %2199 = vst [vmem:[%s1995 + $0x168] sm:$0xf] %v2198
  %2200 = vst [vmem:[%s1995 + $0x16c] sm:$0xf] %v1846
  %v2201 = vld [vmem:[%s1995 + $0x170] sm:$0x1]
  %v2202 = vsel %vm2004, %v1847, %v2201
  %2203 = vst [vmem:[%s1995 + $0x170] sm:$0x1] %v2202
  %v2204 = vld [vmem:[%s1995 + $0x174] sm:$0xf]
  %v2205 = vsel %vm1998, %v1854, %v2204
  %2206 = vst [vmem:[%s1995 + $0x174] sm:$0xf] %v2205
  %2207 = vst [vmem:[%s1995 + $0x178] sm:$0xf] %v1863
  %v2208 = vld [vmem:[%s1995 + $0x17c] sm:$0x1]
  %v2209 = vsel %vm2004, %v1864, %v2208
  %2210 = vst [vmem:[%s1995 + $0x17c] sm:$0x1] %v2209
  %v2211 = vld [vmem:[%s1995 + $0x180] sm:$0xf]
  %v2212 = vsel %vm1998, %v1871, %v2211
  %2213 = vst [vmem:[%s1995 + $0x180] sm:$0xf] %v2212
  %2214 = vst [vmem:[%s1995 + $0x184] sm:$0xf] %v1880
  %v2215 = vld [vmem:[%s1995 + $0x188] sm:$0x1]
  %v2216 = vsel %vm2004, %v1881, %v2215
  %2217 = vst [vmem:[%s1995 + $0x188] sm:$0x1] %v2216
  %v2218 = vld [vmem:[%s1995 + $0x18c] sm:$0xf]
  %v2219 = vsel %vm1998, %v1888, %v2218
  %2220 = vst [vmem:[%s1995 + $0x18c] sm:$0xf] %v2219
  %2221 = vst [vmem:[%s1995 + $0x190] sm:$0xf] %v1897
  %v2222 = vld [vmem:[%s1995 + $0x194] sm:$0x1]
  %v2223 = vsel %vm2004, %v1898, %v2222
  %2224 = vst [vmem:[%s1995 + $0x194] sm:$0x1] %v2223
  %v2225 = vld [vmem:[#allocation2] sm:$0xf]
  %v2226 = vld [vmem:[#allocation2 + $0x4] sm:$0xf]
  %v2227 = vld [vmem:[#allocation2 + $0xc] sm:$0xf]
  %v2228 = vld [vmem:[#allocation2 + $0x10] sm:$0xf]
  %v2229 = vld [vmem:[#allocation2 + $0x18] sm:$0xf]
  %v2230 = vld [vmem:[#allocation2 + $0x1c] sm:$0xf]
  %v2231 = vld [vmem:[#allocation2 + $0x24] sm:$0xf]
  %v2232 = vld [vmem:[#allocation2 + $0x28] sm:$0xf]
  %v2233 = vld [vmem:[#allocation2 + $0x30] sm:$0xf]
  %v2234 = vld [vmem:[#allocation2 + $0x34] sm:$0xf]
  %v2235 = vld [vmem:[#allocation2 + $0x3c] sm:$0xf]
  %v2236 = vld [vmem:[#allocation2 + $0x40] sm:$0xf]
  %v2237 = vld [vmem:[#allocation2 + $0x48] sm:$0xf]
  %v2238 = vld [vmem:[#allocation2 + $0x4c] sm:$0xf]
  %v2239 = vld [vmem:[#allocation2 + $0x54] sm:$0xf]
  %v2240 = vld [vmem:[#allocation2 + $0x58] sm:$0xf]
  %v2241 = vld [vmem:[#allocation2 + $0x60] sm:$0xf]
  %v2242 = vld [vmem:[#allocation2 + $0x64] sm:$0xf]
  %v2243 = vld [vmem:[#allocation2 + $0x6c] sm:$0xf]
  %v2244 = vld [vmem:[#allocation2 + $0x70] sm:$0xf]
  %v2245 = vld [vmem:[#allocation2 + $0x78] sm:$0xf]
  %v2246 = vld [vmem:[#allocation2 + $0x7c] sm:$0xf]
  %v2247 = vld [vmem:[#allocation2 + $0x84] sm:$0xf]
  %v2248 = vld [vmem:[#allocation2 + $0x88] sm:$0xf]
  %v2249 = vld [vmem:[#allocation2 + $0x90] sm:$0xf]
  %v2250 = vld [vmem:[#allocation2 + $0x94] sm:$0xf]
  %v2251 = vld [vmem:[#allocation2 + $0x9c] sm:$0xf]
  %v2252 = vld [vmem:[#allocation2 + $0xa0] sm:$0xf]
  %v2253 = vld [vmem:[#allocation2 + $0xa8] sm:$0xf]
  %v2254 = vld [vmem:[#allocation2 + $0xac] sm:$0xf]
  %v2255 = vld [vmem:[#allocation2 + $0xb4] sm:$0xf]
  %v2256 = vld [vmem:[#allocation2 + $0xb8] sm:$0xf]
  %v2257 = vld [vmem:[#allocation2 + $0xd8] sm:$0xf]
  %v2258 = vld [vmem:[#allocation2 + $0xdc] sm:$0xf]
  %v2259 = vld [vmem:[#allocation2 + $0xe4] sm:$0xf]
  %v2260 = vld [vmem:[#allocation2 + $0xe8] sm:$0xf]
  %v2261 = vld [vmem:[#allocation2 + $0xf0] sm:$0xf]
  %v2262 = vld [vmem:[#allocation2 + $0xf4] sm:$0xf]
  %v2263 = vld [vmem:[#allocation2 + $0xfc] sm:$0xf]
  %v2264 = vld [vmem:[#allocation2 + $0x100] sm:$0xf]
  %v2265 = vld [vmem:[#allocation2 + $0x108] sm:$0xf]
  %v2266 = vld [vmem:[#allocation2 + $0x10c] sm:$0xf]
  %v2267 = vld [vmem:[#allocation2 + $0x114] sm:$0xf]
  %v2268 = vld [vmem:[#allocation2 + $0x118] sm:$0xf]
  %v2269 = vld [vmem:[#allocation2 + $0x120] sm:$0xf]
  %v2270 = vld [vmem:[#allocation2 + $0x124] sm:$0xf]
  %v2271 = vld [vmem:[#allocation2 + $0x12c] sm:$0xf]
  %v2272 = vld [vmem:[#allocation2 + $0x130] sm:$0xf]
  %v2273 = vld [vmem:[#allocation2 + $0x138] sm:$0xf]
  %v2274 = vld [vmem:[#allocation2 + $0x13c] sm:$0xf]
  %v2275 = vld [vmem:[#allocation2 + $0x144] sm:$0xf]
  %v2276 = vld [vmem:[#allocation2 + $0x148] sm:$0xf]
  %v2277 = vld [vmem:[#allocation2 + $0x150] sm:$0xf]
  %v2278 = vld [vmem:[#allocation2 + $0x154] sm:$0xf]
  %v2279 = vld [vmem:[#allocation2 + $0x15c] sm:$0xf]
  %v2280 = vld [vmem:[#allocation2 + $0x160] sm:$0xf]
  %v2281 = vld [vmem:[#allocation2 + $0x168] sm:$0xf]
  %v2282 = vld [vmem:[#allocation2 + $0x16c] sm:$0xf]
  %v2283 = vld [vmem:[#allocation2 + $0x174] sm:$0xf]
  %v2284 = vld [vmem:[#allocation2 + $0x178] sm:$0xf]
  %v2285 = vld [vmem:[#allocation2 + $0x180] sm:$0xf]
  %v2286 = vld [vmem:[#allocation2 + $0x184] sm:$0xf]
  %v2287 = vld [vmem:[#allocation2 + $0x18c] sm:$0xf]
  %v2288 = vld [vmem:[#allocation2 + $0x190] sm:$0xf]
  %v2289 = vld [vmem:[%s4] sm:$0xf]
  %v2290 = vld [vmem:[%s4 + $0x4] sm:$0xf]
  %v2291 = vld [vmem:[%s4 + $0x8] sm:$0xf]
  %v2292 = vld [vmem:[%s4 + $0xc] sm:$0xf]
  %v2293 = vld [vmem:[%s4 + $0x10] sm:$0xf]
  %v2294 = vld [vmem:[%s4 + $0x14] sm:$0xf]
  %v2295 = vld [vmem:[%s4 + $0x18] sm:$0xf]
  %v2296 = vld [vmem:[%s4 + $0x1c] sm:$0xf]
  %v2297 = vld [vmem:[%s4 + $0x20] sm:$0xf]
  %v2298 = vld [vmem:[%s4 + $0x24] sm:$0xf]
  %v2299 = vld [vmem:[%s4 + $0x28] sm:$0xf]
  %v2300 = vld [vmem:[%s4 + $0x2c] sm:$0xf]
  %v2301 = vld [vmem:[%s4 + $0x30] sm:$0xf]
  %v2302 = vld [vmem:[%s4 + $0x34] sm:$0xf]
  %v2303 = vld [vmem:[%s4 + $0x38] sm:$0xf]
  %v2304 = vld [vmem:[%s4 + $0x3c] sm:$0xf]
  %v2305 = vld [vmem:[#allocation2 + $0x8] sm:$0x1]
  %v2306 = vld [vmem:[#allocation2 + $0x14] sm:$0x1]
  %v2307 = vld [vmem:[#allocation2 + $0x20] sm:$0x1]
  %v2308 = vld [vmem:[#allocation2 + $0x2c] sm:$0x1]
  %v2309 = vld [vmem:[#allocation2 + $0x38] sm:$0x1]
  %v2310 = vld [vmem:[#allocation2 + $0x44] sm:$0x1]
  %v2311 = vld [vmem:[#allocation2 + $0x50] sm:$0x1]
  %v2312 = vld [vmem:[#allocation2 + $0x5c] sm:$0x1]
  %v2313 = vld [vmem:[#allocation2 + $0x68] sm:$0x1]
  %v2314 = vld [vmem:[#allocation2 + $0x74] sm:$0x1]
  %v2315 = vld [vmem:[#allocation2 + $0x80] sm:$0x1]
  %v2316 = vld [vmem:[#allocation2 + $0x8c] sm:$0x1]
  %v2317 = vld [vmem:[#allocation2 + $0x98] sm:$0x1]
  %v2318 = vld [vmem:[#allocation2 + $0xa4] sm:$0x1]
  %v2319 = vld [vmem:[#allocation2 + $0xb0] sm:$0x1]
  %v2320 = vld [vmem:[#allocation2 + $0xbc] sm:$0x1]
  %v2321 = vld [vmem:[#allocation2 + $0xe0] sm:$0x1]
  %v2322 = vld [vmem:[#allocation2 + $0xec] sm:$0x1]
  %v2323 = vld [vmem:[#allocation2 + $0xf8] sm:$0x1]
  %v2324 = vld [vmem:[#allocation2 + $0x104] sm:$0x1]
  %v2325 = vld [vmem:[#allocation2 + $0x110] sm:$0x1]
  %v2326 = vld [vmem:[#allocation2 + $0x11c] sm:$0x1]
  %v2327 = vld [vmem:[#allocation2 + $0x128] sm:$0x1]
  %v2328 = vld [vmem:[#allocation2 + $0x134] sm:$0x1]
  %v2329 = vld [vmem:[#allocation2 + $0x140] sm:$0x1]
  %v2330 = vld [vmem:[#allocation2 + $0x14c] sm:$0x1]
  %v2331 = vld [vmem:[#allocation2 + $0x158] sm:$0x1]
  %v2332 = vld [vmem:[#allocation2 + $0x164] sm:$0x1]
  %v2333 = vld [vmem:[#allocation2 + $0x170] sm:$0x1]
  %v2334 = vld [vmem:[#allocation2 + $0x17c] sm:$0x1]
  %v2335 = vld [vmem:[#allocation2 + $0x188] sm:$0x1]
  %v2336 = vld [vmem:[#allocation2 + $0x194] sm:$0x1]
  %vm2337 = vsmask.f32 3328
  %vm2338 = vsmask.f32 7440
  %vm2339 = vmor %vm2337, %vm2338
  %v2341 = vshrl.u32 %v2225, 16
  %v2343 = vrot.slane %v2341, 4
  %v2344 = vshll.u32 %v2225, 16
  %v2346 = vrot.slane %v2344, 5
  %v2347 = vor.u32 %v2343, %v2346
  %v2348 = vrot.slane %v2347, 4
  %v2350 = vshll.u32 %v2226, 16
  %v2352 = vrot.slane %v2350, 5
  %v2353 = vsel %vm2339, %v2348, %v2352
  %v2354 = vshrl.u32 %v2226, 16
  %v2356 = vrot.slane %v2354, 4
  %v2357 = vor.u32 %v2356, %v2352
  %v2358 = vrot.slane %v2357, 4
  %v2360 = vshll.u32 %v2305, 16
  %v2362 = vrot.slane %v2360, 5
  %v2363 = vsel %vm2339, %v2358, %v2362
  %v2365 = vshrl.u32 %v2227, 16
  %v2367 = vrot.slane %v2365, 4
  %v2368 = vshll.u32 %v2227, 16
  %v2370 = vrot.slane %v2368, 5
  %v2371 = vor.u32 %v2367, %v2370
  %v2372 = vrot.slane %v2371, 4
  %v2374 = vshll.u32 %v2228, 16
  %v2376 = vrot.slane %v2374, 5
  %v2377 = vsel %vm2339, %v2372, %v2376
  %v2378 = vshrl.u32 %v2228, 16
  %v2380 = vrot.slane %v2378, 4
  %v2381 = vor.u32 %v2380, %v2376
  %v2382 = vrot.slane %v2381, 4
  %v2384 = vshll.u32 %v2306, 16
  %v2386 = vrot.slane %v2384, 5
  %v2387 = vsel %vm2339, %v2382, %v2386
  %v2389 = vshrl.u32 %v2229, 16
  %v2391 = vrot.slane %v2389, 4
  %v2392 = vshll.u32 %v2229, 16
  %v2394 = vrot.slane %v2392, 5
  %v2395 = vor.u32 %v2391, %v2394
  %v2396 = vrot.slane %v2395, 4
  %v2398 = vshll.u32 %v2230, 16
  %v2400 = vrot.slane %v2398, 5
  %v2401 = vsel %vm2339, %v2396, %v2400
  %v2402 = vshrl.u32 %v2230, 16
  %v2404 = vrot.slane %v2402, 4
  %v2405 = vor.u32 %v2404, %v2400
  %v2406 = vrot.slane %v2405, 4
  %v2408 = vshll.u32 %v2307, 16
  %v2410 = vrot.slane %v2408, 5
  %v2411 = vsel %vm2339, %v2406, %v2410
  %v2413 = vshrl.u32 %v2231, 16
  %v2415 = vrot.slane %v2413, 4
  %v2416 = vshll.u32 %v2231, 16
  %v2418 = vrot.slane %v2416, 5
  %v2419 = vor.u32 %v2415, %v2418
  %v2420 = vrot.slane %v2419, 4
  %v2422 = vshll.u32 %v2232, 16
  %v2424 = vrot.slane %v2422, 5
  %v2425 = vsel %vm2339, %v2420, %v2424
  %v2426 = vshrl.u32 %v2232, 16
  %v2428 = vrot.slane %v2426, 4
  %v2429 = vor.u32 %v2428, %v2424
  %v2430 = vrot.slane %v2429, 4
  %v2432 = vshll.u32 %v2308, 16
  %v2434 = vrot.slane %v2432, 5
  %v2435 = vsel %vm2339, %v2430, %v2434
  %v2437 = vshrl.u32 %v2233, 16
  %v2439 = vrot.slane %v2437, 4
  %v2440 = vshll.u32 %v2233, 16
  %v2442 = vrot.slane %v2440, 5
  %v2443 = vor.u32 %v2439, %v2442
  %v2444 = vrot.slane %v2443, 4
  %v2446 = vshll.u32 %v2234, 16
  %v2448 = vrot.slane %v2446, 5
  %v2449 = vsel %vm2339, %v2444, %v2448
  %v2450 = vshrl.u32 %v2234, 16
  %v2452 = vrot.slane %v2450, 4
  %v2453 = vor.u32 %v2452, %v2448
  %v2454 = vrot.slane %v2453, 4
  %v2456 = vshll.u32 %v2309, 16
  %v2458 = vrot.slane %v2456, 5
  %v2459 = vsel %vm2339, %v2454, %v2458
  %v2461 = vshrl.u32 %v2235, 16
  %v2463 = vrot.slane %v2461, 4
  %v2464 = vshll.u32 %v2235, 16
  %v2466 = vrot.slane %v2464, 5
  %v2467 = vor.u32 %v2463, %v2466
  %v2468 = vrot.slane %v2467, 4
  %v2470 = vshll.u32 %v2236, 16
  %v2472 = vrot.slane %v2470, 5
  %v2473 = vsel %vm2339, %v2468, %v2472
  %v2474 = vshrl.u32 %v2236, 16
  %v2476 = vrot.slane %v2474, 4
  %v2477 = vor.u32 %v2476, %v2472
  %v2478 = vrot.slane %v2477, 4
  %v2480 = vshll.u32 %v2310, 16
  %v2482 = vrot.slane %v2480, 5
  %v2483 = vsel %vm2339, %v2478, %v2482
  %v2485 = vshrl.u32 %v2237, 16
  %v2487 = vrot.slane %v2485, 4
  %v2488 = vshll.u32 %v2237, 16
  %v2490 = vrot.slane %v2488, 5
  %v2491 = vor.u32 %v2487, %v2490
  %v2492 = vrot.slane %v2491, 4
  %v2494 = vshll.u32 %v2238, 16
  %v2496 = vrot.slane %v2494, 5
  %v2497 = vsel %vm2339, %v2492, %v2496
  %v2498 = vshrl.u32 %v2238, 16
  %v2500 = vrot.slane %v2498, 4
  %v2501 = vor.u32 %v2500, %v2496
  %v2502 = vrot.slane %v2501, 4
  %v2504 = vshll.u32 %v2311, 16
  %v2506 = vrot.slane %v2504, 5
  %v2507 = vsel %vm2339, %v2502, %v2506
  %v2509 = vshrl.u32 %v2239, 16
  %v2511 = vrot.slane %v2509, 4
  %v2512 = vshll.u32 %v2239, 16
  %v2514 = vrot.slane %v2512, 5
  %v2515 = vor.u32 %v2511, %v2514
  %v2516 = vrot.slane %v2515, 4
  %v2518 = vshll.u32 %v2240, 16
  %v2520 = vrot.slane %v2518, 5
  %v2521 = vsel %vm2339, %v2516, %v2520
  %v2522 = vshrl.u32 %v2240, 16
  %v2524 = vrot.slane %v2522, 4
  %v2525 = vor.u32 %v2524, %v2520
  %v2526 = vrot.slane %v2525, 4
  %v2528 = vshll.u32 %v2312, 16
  %v2530 = vrot.slane %v2528, 5
  %v2531 = vsel %vm2339, %v2526, %v2530
  %v2533 = vshrl.u32 %v2241, 16
  %v2535 = vrot.slane %v2533, 4
  %v2536 = vshll.u32 %v2241, 16
  %v2538 = vrot.slane %v2536, 5
  %v2539 = vor.u32 %v2535, %v2538
  %v2540 = vrot.slane %v2539, 4
  %v2542 = vshll.u32 %v2242, 16
  %v2544 = vrot.slane %v2542, 5
  %v2545 = vsel %vm2339, %v2540, %v2544
  %v2546 = vshrl.u32 %v2242, 16
  %v2548 = vrot.slane %v2546, 4
  %v2549 = vor.u32 %v2548, %v2544
  %v2550 = vrot.slane %v2549, 4
  %v2552 = vshll.u32 %v2313, 16
  %v2554 = vrot.slane %v2552, 5
  %v2555 = vsel %vm2339, %v2550, %v2554
  %v2557 = vshrl.u32 %v2243, 16
  %v2559 = vrot.slane %v2557, 4
  %v2560 = vshll.u32 %v2243, 16
  %v2562 = vrot.slane %v2560, 5
  %v2563 = vor.u32 %v2559, %v2562
  %v2564 = vrot.slane %v2563, 4
  %v2566 = vshll.u32 %v2244, 16
  %v2568 = vrot.slane %v2566, 5
  %v2569 = vsel %vm2339, %v2564, %v2568
  %v2570 = vshrl.u32 %v2244, 16
  %v2572 = vrot.slane %v2570, 4
  %v2573 = vor.u32 %v2572, %v2568
  %v2574 = vrot.slane %v2573, 4
  %v2576 = vshll.u32 %v2314, 16
  %v2578 = vrot.slane %v2576, 5
  %v2579 = vsel %vm2339, %v2574, %v2578
  %v2581 = vshrl.u32 %v2245, 16
  %v2583 = vrot.slane %v2581, 4
  %v2584 = vshll.u32 %v2245, 16
  %v2586 = vrot.slane %v2584, 5
  %v2587 = vor.u32 %v2583, %v2586
  %v2588 = vrot.slane %v2587, 4
  %v2590 = vshll.u32 %v2246, 16
  %v2592 = vrot.slane %v2590, 5
  %v2593 = vsel %vm2339, %v2588, %v2592
  %v2594 = vshrl.u32 %v2246, 16
  %v2596 = vrot.slane %v2594, 4
  %v2597 = vor.u32 %v2596, %v2592
  %v2598 = vrot.slane %v2597, 4
  %v2600 = vshll.u32 %v2315, 16
  %v2602 = vrot.slane %v2600, 5
  %v2603 = vsel %vm2339, %v2598, %v2602
  %v2605 = vshrl.u32 %v2247, 16
  %v2607 = vrot.slane %v2605, 4
  %v2608 = vshll.u32 %v2247, 16
  %v2610 = vrot.slane %v2608, 5
  %v2611 = vor.u32 %v2607, %v2610
  %v2612 = vrot.slane %v2611, 4
  %v2614 = vshll.u32 %v2248, 16
  %v2616 = vrot.slane %v2614, 5
  %v2617 = vsel %vm2339, %v2612, %v2616
  %v2618 = vshrl.u32 %v2248, 16
  %v2620 = vrot.slane %v2618, 4
  %v2621 = vor.u32 %v2620, %v2616
  %v2622 = vrot.slane %v2621, 4
  %v2624 = vshll.u32 %v2316, 16
  %v2626 = vrot.slane %v2624, 5
  %v2627 = vsel %vm2339, %v2622, %v2626
  %v2629 = vshrl.u32 %v2249, 16
  %v2631 = vrot.slane %v2629, 4
  %v2632 = vshll.u32 %v2249, 16
  %v2634 = vrot.slane %v2632, 5
  %v2635 = vor.u32 %v2631, %v2634
  %v2636 = vrot.slane %v2635, 4
  %v2638 = vshll.u32 %v2250, 16
  %v2640 = vrot.slane %v2638, 5
  %v2641 = vsel %vm2339, %v2636, %v2640
  %v2642 = vshrl.u32 %v2250, 16
  %v2644 = vrot.slane %v2642, 4
  %v2645 = vor.u32 %v2644, %v2640
  %v2646 = vrot.slane %v2645, 4
  %v2648 = vshll.u32 %v2317, 16
  %v2650 = vrot.slane %v2648, 5
  %v2651 = vsel %vm2339, %v2646, %v2650
  %v2653 = vshrl.u32 %v2251, 16
  %v2655 = vrot.slane %v2653, 4
  %v2656 = vshll.u32 %v2251, 16
  %v2658 = vrot.slane %v2656, 5
  %v2659 = vor.u32 %v2655, %v2658
  %v2660 = vrot.slane %v2659, 4
  %v2662 = vshll.u32 %v2252, 16
  %v2664 = vrot.slane %v2662, 5
  %v2665 = vsel %vm2339, %v2660, %v2664
  %v2666 = vshrl.u32 %v2252, 16
  %v2668 = vrot.slane %v2666, 4
  %v2669 = vor.u32 %v2668, %v2664
  %v2670 = vrot.slane %v2669, 4
  %v2672 = vshll.u32 %v2318, 16
  %v2674 = vrot.slane %v2672, 5
  %v2675 = vsel %vm2339, %v2670, %v2674
  %v2677 = vshrl.u32 %v2253, 16
  %v2679 = vrot.slane %v2677, 4
  %v2680 = vshll.u32 %v2253, 16
  %v2682 = vrot.slane %v2680, 5
  %v2683 = vor.u32 %v2679, %v2682
  %v2684 = vrot.slane %v2683, 4
  %v2686 = vshll.u32 %v2254, 16
  %v2688 = vrot.slane %v2686, 5
  %v2689 = vsel %vm2339, %v2684, %v2688
  %v2690 = vshrl.u32 %v2254, 16
  %v2692 = vrot.slane %v2690, 4
  %v2693 = vor.u32 %v2692, %v2688
  %v2694 = vrot.slane %v2693, 4
  %v2696 = vshll.u32 %v2319, 16
  %v2698 = vrot.slane %v2696, 5
  %v2699 = vsel %vm2339, %v2694, %v2698
  %v2701 = vshrl.u32 %v2255, 16
  %v2703 = vrot.slane %v2701, 4
  %v2704 = vshll.u32 %v2255, 16
  %v2706 = vrot.slane %v2704, 5
  %v2707 = vor.u32 %v2703, %v2706
  %v2708 = vrot.slane %v2707, 4
  %v2710 = vshll.u32 %v2256, 16
  %v2712 = vrot.slane %v2710, 5
  %v2713 = vsel %vm2339, %v2708, %v2712
  %v2714 = vshrl.u32 %v2256, 16
  %v2716 = vrot.slane %v2714, 4
  %v2717 = vor.u32 %v2716, %v2712
  %v2718 = vrot.slane %v2717, 4
  %v2720 = vshll.u32 %v2320, 16
  %v2722 = vrot.slane %v2720, 5
  %v2723 = vsel %vm2339, %v2718, %v2722
  %v2725 = vshrl.u32 %v2257, 16
  %v2727 = vrot.slane %v2725, 4
  %v2728 = vshll.u32 %v2257, 16
  %v2730 = vrot.slane %v2728, 5
  %v2731 = vor.u32 %v2727, %v2730
  %v2732 = vrot.slane %v2731, 4
  %v2734 = vshll.u32 %v2258, 16
  %v2736 = vrot.slane %v2734, 5
  %v2737 = vsel %vm2339, %v2732, %v2736
  %v2738 = vshrl.u32 %v2258, 16
  %v2740 = vrot.slane %v2738, 4
  %v2741 = vor.u32 %v2740, %v2736
  %v2742 = vrot.slane %v2741, 4
  %v2744 = vshll.u32 %v2321, 16
  %v2746 = vrot.slane %v2744, 5
  %v2747 = vsel %vm2339, %v2742, %v2746
  %v2749 = vshrl.u32 %v2259, 16
  %v2751 = vrot.slane %v2749, 4
  %v2752 = vshll.u32 %v2259, 16
  %v2754 = vrot.slane %v2752, 5
  %v2755 = vor.u32 %v2751, %v2754
  %v2756 = vrot.slane %v2755, 4
  %v2758 = vshll.u32 %v2260, 16
  %v2760 = vrot.slane %v2758, 5
  %v2761 = vsel %vm2339, %v2756, %v2760
  %v2762 = vshrl.u32 %v2260, 16
  %v2764 = vrot.slane %v2762, 4
  %v2765 = vor.u32 %v2764, %v2760
  %v2766 = vrot.slane %v2765, 4
  %v2768 = vshll.u32 %v2322, 16
  %v2770 = vrot.slane %v2768, 5
  %v2771 = vsel %vm2339, %v2766, %v2770
  %v2773 = vshrl.u32 %v2261, 16
  %v2775 = vrot.slane %v2773, 4
  %v2776 = vshll.u32 %v2261, 16
  %v2778 = vrot.slane %v2776, 5
  %v2779 = vor.u32 %v2775, %v2778
  %v2780 = vrot.slane %v2779, 4
  %v2782 = vshll.u32 %v2262, 16
  %v2784 = vrot.slane %v2782, 5
  %v2785 = vsel %vm2339, %v2780, %v2784
  %v2786 = vshrl.u32 %v2262, 16
  %v2788 = vrot.slane %v2786, 4
  %v2789 = vor.u32 %v2788, %v2784
  %v2790 = vrot.slane %v2789, 4
  %v2792 = vshll.u32 %v2323, 16
  %v2794 = vrot.slane %v2792, 5
  %v2795 = vsel %vm2339, %v2790, %v2794
  %v2797 = vshrl.u32 %v2263, 16
  %v2799 = vrot.slane %v2797, 4
  %v2800 = vshll.u32 %v2263, 16
  %v2802 = vrot.slane %v2800, 5
  %v2803 = vor.u32 %v2799, %v2802
  %v2804 = vrot.slane %v2803, 4
  %v2806 = vshll.u32 %v2264, 16
  %v2808 = vrot.slane %v2806, 5
  %v2809 = vsel %vm2339, %v2804, %v2808
  %v2810 = vshrl.u32 %v2264, 16
  %v2812 = vrot.slane %v2810, 4
  %v2813 = vor.u32 %v2812, %v2808
  %v2814 = vrot.slane %v2813, 4
  %v2816 = vshll.u32 %v2324, 16
  %v2818 = vrot.slane %v2816, 5
  %v2819 = vsel %vm2339, %v2814, %v2818
  %v2821 = vshrl.u32 %v2265, 16
  %v2823 = vrot.slane %v2821, 4
  %v2824 = vshll.u32 %v2265, 16
  %v2826 = vrot.slane %v2824, 5
  %v2827 = vor.u32 %v2823, %v2826
  %v2828 = vrot.slane %v2827, 4
  %v2830 = vshll.u32 %v2266, 16
  %v2832 = vrot.slane %v2830, 5
  %v2833 = vsel %vm2339, %v2828, %v2832
  %v2834 = vshrl.u32 %v2266, 16
  %v2836 = vrot.slane %v2834, 4
  %v2837 = vor.u32 %v2836, %v2832
  %v2838 = vrot.slane %v2837, 4
  %v2840 = vshll.u32 %v2325, 16
  %v2842 = vrot.slane %v2840, 5
  %v2843 = vsel %vm2339, %v2838, %v2842
  %v2845 = vshrl.u32 %v2267, 16
  %v2847 = vrot.slane %v2845, 4
  %v2848 = vshll.u32 %v2267, 16
  %v2850 = vrot.slane %v2848, 5
  %v2851 = vor.u32 %v2847, %v2850
  %v2852 = vrot.slane %v2851, 4
  %v2854 = vshll.u32 %v2268, 16
  %v2856 = vrot.slane %v2854, 5
  %v2857 = vsel %vm2339, %v2852, %v2856
  %v2858 = vshrl.u32 %v2268, 16
  %v2860 = vrot.slane %v2858, 4
  %v2861 = vor.u32 %v2860, %v2856
  %v2862 = vrot.slane %v2861, 4
  %v2864 = vshll.u32 %v2326, 16
  %v2866 = vrot.slane %v2864, 5
  %v2867 = vsel %vm2339, %v2862, %v2866
  %v2869 = vshrl.u32 %v2269, 16
  %v2871 = vrot.slane %v2869, 4
  %v2872 = vshll.u32 %v2269, 16
  %v2874 = vrot.slane %v2872, 5
  %v2875 = vor.u32 %v2871, %v2874
  %v2876 = vrot.slane %v2875, 4
  %v2878 = vshll.u32 %v2270, 16
  %v2880 = vrot.slane %v2878, 5
  %v2881 = vsel %vm2339, %v2876, %v2880
  %v2882 = vshrl.u32 %v2270, 16
  %v2884 = vrot.slane %v2882, 4
  %v2885 = vor.u32 %v2884, %v2880
  %v2886 = vrot.slane %v2885, 4
  %v2888 = vshll.u32 %v2327, 16
  %v2890 = vrot.slane %v2888, 5
  %v2891 = vsel %vm2339, %v2886, %v2890
  %v2893 = vshrl.u32 %v2271, 16
  %v2895 = vrot.slane %v2893, 4
  %v2896 = vshll.u32 %v2271, 16
  %v2898 = vrot.slane %v2896, 5
  %v2899 = vor.u32 %v2895, %v2898
  %v2900 = vrot.slane %v2899, 4
  %v2902 = vshll.u32 %v2272, 16
  %v2904 = vrot.slane %v2902, 5
  %v2905 = vsel %vm2339, %v2900, %v2904
  %v2906 = vshrl.u32 %v2272, 16
  %v2908 = vrot.slane %v2906, 4
  %v2909 = vor.u32 %v2908, %v2904
  %v2910 = vrot.slane %v2909, 4
  %v2912 = vshll.u32 %v2328, 16
  %v2914 = vrot.slane %v2912, 5
  %v2915 = vsel %vm2339, %v2910, %v2914
  %v2917 = vshrl.u32 %v2273, 16
  %v2919 = vrot.slane %v2917, 4
  %v2920 = vshll.u32 %v2273, 16
  %v2922 = vrot.slane %v2920, 5
  %v2923 = vor.u32 %v2919, %v2922
  %v2924 = vrot.slane %v2923, 4
  %v2926 = vshll.u32 %v2274, 16
  %v2928 = vrot.slane %v2926, 5
  %v2929 = vsel %vm2339, %v2924, %v2928
  %v2930 = vshrl.u32 %v2274, 16
  %v2932 = vrot.slane %v2930, 4
  %v2933 = vor.u32 %v2932, %v2928
  %v2934 = vrot.slane %v2933, 4
  %v2936 = vshll.u32 %v2329, 16
  %v2938 = vrot.slane %v2936, 5
  %v2939 = vsel %vm2339, %v2934, %v2938
  %v2941 = vshrl.u32 %v2275, 16
  %v2943 = vrot.slane %v2941, 4
  %v2944 = vshll.u32 %v2275, 16
  %v2946 = vrot.slane %v2944, 5
  %v2947 = vor.u32 %v2943, %v2946
  %v2948 = vrot.slane %v2947, 4
  %v2950 = vshll.u32 %v2276, 16
  %v2952 = vrot.slane %v2950, 5
  %v2953 = vsel %vm2339, %v2948, %v2952
  %v2954 = vshrl.u32 %v2276, 16
  %v2956 = vrot.slane %v2954, 4
  %v2957 = vor.u32 %v2956, %v2952
  %v2958 = vrot.slane %v2957, 4
  %v2960 = vshll.u32 %v2330, 16
  %v2962 = vrot.slane %v2960, 5
  %v2963 = vsel %vm2339, %v2958, %v2962
  %v2965 = vshrl.u32 %v2277, 16
  %v2967 = vrot.slane %v2965, 4
  %v2968 = vshll.u32 %v2277, 16
  %v2970 = vrot.slane %v2968, 5
  %v2971 = vor.u32 %v2967, %v2970
  %v2972 = vrot.slane %v2971, 4
  %v2974 = vshll.u32 %v2278, 16
  %v2976 = vrot.slane %v2974, 5
  %v2977 = vsel %vm2339, %v2972, %v2976
  %v2978 = vshrl.u32 %v2278, 16
  %v2980 = vrot.slane %v2978, 4
  %v2981 = vor.u32 %v2980, %v2976
  %v2982 = vrot.slane %v2981, 4
  %v2984 = vshll.u32 %v2331, 16
  %v2986 = vrot.slane %v2984, 5
  %v2987 = vsel %vm2339, %v2982, %v2986
  %v2989 = vshrl.u32 %v2279, 16
  %v2991 = vrot.slane %v2989, 4
  %v2992 = vshll.u32 %v2279, 16
  %v2994 = vrot.slane %v2992, 5
  %v2995 = vor.u32 %v2991, %v2994
  %v2996 = vrot.slane %v2995, 4
  %v2998 = vshll.u32 %v2280, 16
  %v3000 = vrot.slane %v2998, 5
  %v3001 = vsel %vm2339, %v2996, %v3000
  %v3002 = vshrl.u32 %v2280, 16
  %v3004 = vrot.slane %v3002, 4
  %v3005 = vor.u32 %v3004, %v3000
  %v3006 = vrot.slane %v3005, 4
  %v3008 = vshll.u32 %v2332, 16
  %v3010 = vrot.slane %v3008, 5
  %v3011 = vsel %vm2339, %v3006, %v3010
  %v3013 = vshrl.u32 %v2281, 16
  %v3015 = vrot.slane %v3013, 4
  %v3016 = vshll.u32 %v2281, 16
  %v3018 = vrot.slane %v3016, 5
  %v3019 = vor.u32 %v3015, %v3018
  %v3020 = vrot.slane %v3019, 4
  %v3022 = vshll.u32 %v2282, 16
  %v3024 = vrot.slane %v3022, 5
  %v3025 = vsel %vm2339, %v3020, %v3024
  %v3026 = vshrl.u32 %v2282, 16
  %v3028 = vrot.slane %v3026, 4
  %v3029 = vor.u32 %v3028, %v3024
  %v3030 = vrot.slane %v3029, 4
  %v3032 = vshll.u32 %v2333, 16
  %v3034 = vrot.slane %v3032, 5
  %v3035 = vsel %vm2339, %v3030, %v3034
  %v3037 = vshrl.u32 %v2283, 16
  %v3039 = vrot.slane %v3037, 4
  %v3040 = vshll.u32 %v2283, 16
  %v3042 = vrot.slane %v3040, 5
  %v3043 = vor.u32 %v3039, %v3042
  %v3044 = vrot.slane %v3043, 4
  %v3046 = vshll.u32 %v2284, 16
  %v3048 = vrot.slane %v3046, 5
  %v3049 = vsel %vm2339, %v3044, %v3048
  %v3050 = vshrl.u32 %v2284, 16
  %v3052 = vrot.slane %v3050, 4
  %v3053 = vor.u32 %v3052, %v3048
  %v3054 = vrot.slane %v3053, 4
  %v3056 = vshll.u32 %v2334, 16
  %v3058 = vrot.slane %v3056, 5
  %v3059 = vsel %vm2339, %v3054, %v3058
  %v3061 = vshrl.u32 %v2285, 16
  %v3063 = vrot.slane %v3061, 4
  %v3064 = vshll.u32 %v2285, 16
  %v3066 = vrot.slane %v3064, 5
  %v3067 = vor.u32 %v3063, %v3066
  %v3068 = vrot.slane %v3067, 4
  %v3070 = vshll.u32 %v2286, 16
  %v3072 = vrot.slane %v3070, 5
  %v3073 = vsel %vm2339, %v3068, %v3072
  %v3074 = vshrl.u32 %v2286, 16
  %v3076 = vrot.slane %v3074, 4
  %v3077 = vor.u32 %v3076, %v3072
  %v3078 = vrot.slane %v3077, 4
  %v3080 = vshll.u32 %v2335, 16
  %v3082 = vrot.slane %v3080, 5
  %v3083 = vsel %vm2339, %v3078, %v3082
  %v3085 = vshrl.u32 %v2287, 16
  %v3087 = vrot.slane %v3085, 4
  %v3088 = vshll.u32 %v2287, 16
  %v3090 = vrot.slane %v3088, 5
  %v3091 = vor.u32 %v3087, %v3090
  %v3092 = vrot.slane %v3091, 4
  %v3094 = vshll.u32 %v2288, 16
  %v3096 = vrot.slane %v3094, 5
  %v3097 = vsel %vm2339, %v3092, %v3096
  %v3098 = vshrl.u32 %v2288, 16
  %v3100 = vrot.slane %v3098, 4
  %v3101 = vor.u32 %v3100, %v3096
  %v3102 = vrot.slane %v3101, 4
  %v3104 = vshll.u32 %v2336, 16
  %v3106 = vrot.slane %v3104, 5
  %v3107 = vsel %vm2339, %v3102, %v3106
  %v3108 = vld [vmem:[%s4 + $0x40] sm:$0xf]
  %v3109 = vld [vmem:[%s4 + $0x44] sm:$0xf]
  %v3110 = vld [vmem:[%s4 + $0x48] sm:$0xf]
  %v3111 = vld [vmem:[%s4 + $0x4c] sm:$0xf]
  %v3112 = vld [vmem:[%s4 + $0x50] sm:$0xf]
  %v3113 = vld [vmem:[%s4 + $0x54] sm:$0xf]
  %v3114 = vld [vmem:[%s4 + $0x58] sm:$0xf]
  %v3115 = vld [vmem:[%s4 + $0x5c] sm:$0xf]
  %v3116 = vld [vmem:[%s4 + $0x60] sm:$0xf]
  %v3117 = vld [vmem:[%s4 + $0x64] sm:$0xf]
  %v3118 = vld [vmem:[%s4 + $0x68] sm:$0xf]
  %v3119 = vld [vmem:[%s4 + $0x6c] sm:$0xf]
  %v3120 = vld [vmem:[%s4 + $0x70] sm:$0xf]
  %v3121 = vld [vmem:[%s4 + $0x74] sm:$0xf]
  %v3122 = vld [vmem:[%s4 + $0x78] sm:$0xf]
  %v3123 = vld [vmem:[%s4 + $0x7c] sm:$0xf]
  %v3124 = vunpack.c.l.b16 %v2353
  %v3125 = vunpack.c.l.b16 %v2363
  %v3126 = vunpack.c.l.b16 %v2377
  %v3127 = vunpack.c.l.b16 %v2387
  %v3128 = vunpack.c.l.b16 %v2401
  %v3129 = vunpack.c.l.b16 %v2411
  %v3130 = vunpack.c.l.b16 %v2425
  %v3131 = vunpack.c.l.b16 %v2435
  %v3132 = vunpack.c.l.b16 %v2449
  %v3133 = vunpack.c.l.b16 %v2459
  %v3134 = vunpack.c.l.b16 %v2473
  %v3135 = vunpack.c.l.b16 %v2483
  %v3136 = vunpack.c.l.b16 %v2497
  %v3137 = vunpack.c.l.b16 %v2507
  %v3138 = vunpack.c.l.b16 %v2521
  %v3139 = vunpack.c.l.b16 %v2531
  %v3140 = vunpack.c.l.b16 %v2545
  %v3141 = vunpack.c.l.b16 %v2555
  %v3142 = vunpack.c.l.b16 %v2569
  %v3143 = vunpack.c.l.b16 %v2579
  %v3144 = vunpack.c.l.b16 %v2593
  %v3145 = vunpack.c.l.b16 %v2603
  %v3146 = vunpack.c.l.b16 %v2617
  %v3147 = vunpack.c.l.b16 %v2627
  %v3148 = vunpack.c.l.b16 %v2641
  %v3149 = vunpack.c.l.b16 %v2651
  %v3150 = vunpack.c.l.b16 %v2665
  %v3151 = vunpack.c.l.b16 %v2675
  %v3152 = vunpack.c.l.b16 %v2689
  %v3153 = vunpack.c.l.b16 %v2699
  %v3154 = vunpack.c.l.b16 %v2713
  %v3155 = vunpack.c.l.b16 %v2723
  %v3156 = vunpack.c.l.b16 %v2737
  %v3157 = vunpack.c.l.b16 %v2747
  %v3158 = vunpack.c.l.b16 %v2761
  %v3159 = vunpack.c.l.b16 %v2771
  %v3160 = vunpack.c.l.b16 %v2785
  %v3161 = vunpack.c.l.b16 %v2795
  %v3162 = vunpack.c.l.b16 %v2809
  %v3163 = vunpack.c.l.b16 %v2819
  %v3164 = vunpack.c.l.b16 %v2833
  %v3165 = vunpack.c.l.b16 %v2843
  %v3166 = vunpack.c.l.b16 %v2857
  %v3167 = vunpack.c.l.b16 %v2867
  %v3168 = vunpack.c.l.b16 %v2881
  %v3169 = vunpack.c.l.b16 %v2891
  %v3170 = vunpack.c.l.b16 %v2905
  %v3171 = vunpack.c.l.b16 %v2915
  %v3172 = vunpack.c.l.b16 %v2929
  %v3173 = vunpack.c.l.b16 %v2939
  %v3174 = vunpack.c.l.b16 %v2953
  %v3175 = vunpack.c.l.b16 %v2963
  %v3176 = vunpack.c.l.b16 %v2977
  %v3177 = vunpack.c.l.b16 %v2987
  %v3178 = vunpack.c.l.b16 %v3001
  %v3179 = vunpack.c.l.b16 %v3011
  %v3180 = vunpack.c.l.b16 %v3025
  %v3181 = vunpack.c.l.b16 %v3035
  %v3182 = vunpack.c.l.b16 %v3049
  %v3183 = vunpack.c.l.b16 %v3059
  %v3184 = vunpack.c.l.b16 %v3073
  %v3185 = vunpack.c.l.b16 %v3083
  %v3186 = vunpack.c.l.b16 %v3097
  %v3187 = vunpack.c.l.b16 %v3107
  %v3188 = vpack.c.b16 %v3125, %v3124
  %v3189 = vpack.c.b16 %v3127, %v3126
  %v3190 = vpack.c.b16 %v3129, %v3128
  %v3191 = vpack.c.b16 %v3131, %v3130
  %v3192 = vpack.c.b16 %v3133, %v3132
  %v3193 = vpack.c.b16 %v3135, %v3134
  %v3194 = vpack.c.b16 %v3137, %v3136
  %v3195 = vpack.c.b16 %v3139, %v3138
  %v3196 = vpack.c.b16 %v3141, %v3140
  %v3197 = vpack.c.b16 %v3143, %v3142
  %v3198 = vpack.c.b16 %v3145, %v3144
  %v3199 = vpack.c.b16 %v3147, %v3146
  %v3200 = vpack.c.b16 %v3149, %v3148
  %v3201 = vpack.c.b16 %v3151, %v3150
  %v3202 = vpack.c.b16 %v3153, %v3152
  %v3203 = vpack.c.b16 %v3155, %v3154
  %v3204 = vpack.c.b16 %v3157, %v3156
  %v3205 = vpack.c.b16 %v3159, %v3158
  %v3206 = vpack.c.b16 %v3161, %v3160
  %v3207 = vpack.c.b16 %v3163, %v3162
  %v3208 = vpack.c.b16 %v3165, %v3164
  %v3209 = vpack.c.b16 %v3167, %v3166
  %v3210 = vpack.c.b16 %v3169, %v3168
  %v3211 = vpack.c.b16 %v3171, %v3170
  %v3212 = vpack.c.b16 %v3173, %v3172
  %v3213 = vpack.c.b16 %v3175, %v3174
  %v3214 = vpack.c.b16 %v3177, %v3176
  %v3215 = vpack.c.b16 %v3179, %v3178
  %v3216 = vpack.c.b16 %v3181, %v3180
  %v3217 = vpack.c.b16 %v3183, %v3182
  %v3218 = vpack.c.b16 %v3185, %v3184
  %v3219 = vpack.c.b16 %v3187, %v3186
  %v3268 = vunpack.c.l.b16 %v3108
  %v3269 = vunpack.c.l.b16 %v3109
  %v3270 = vunpack.c.l.b16 %v3110
  %v3271 = vunpack.c.l.b16 %v3111
  %v3272 = vunpack.c.l.b16 %v3112
  %v3273 = vunpack.c.l.b16 %v3113
  %v3274 = vunpack.c.l.b16 %v3114
  %v3275 = vunpack.c.l.b16 %v3115
  %v3276 = vunpack.c.l.b16 %v3116
  %v3277 = vunpack.c.l.b16 %v3117
  %v3278 = vunpack.c.l.b16 %v3118
  %v3279 = vunpack.c.l.b16 %v3119
  %v3280 = vunpack.c.l.b16 %v3120
  %v3281 = vunpack.c.l.b16 %v3121
  %v3282 = vunpack.c.l.b16 %v3122
  %v3283 = vunpack.c.l.b16 %v3123
  %v3284 = vpack.c.b16 %v3269, %v3268
  %v3285 = vpack.c.b16 %v3271, %v3270
  %v3286 = vpack.c.b16 %v3273, %v3272
  %v3287 = vpack.c.b16 %v3275, %v3274
  %v3288 = vpack.c.b16 %v3277, %v3276
  %v3289 = vpack.c.b16 %v3279, %v3278
  %v3290 = vpack.c.b16 %v3281, %v3280
  %v3291 = vpack.c.b16 %v3283, %v3282
  %3300 = vmatprep.subr.bf16.mxu0 0
  %3301 = vmatpush1.bf16.msra.mxu0 %v3284
  %3302 = vmatprep.subr.bf16.mxu0 0
  %3303 = vmatpush1.bf16.msra.mxu0 %v3285
  %3304 = vmatprep.subr.bf16.mxu0 0
  %3305 = vmatpush1.bf16.msra.mxu0 %v3286
  %3306 = vmatprep.subr.bf16.mxu0 0
  %3307 = vmatpush1.bf16.msra.mxu0 %v3287
  %3308 = vmatprep.subr.bf16.mxu0 0
  %3309 = vmatpush1.bf16.msra.mxu0 %v3288
  %3310 = vmatprep.subr.bf16.mxu0 0
  %3311 = vmatpush1.bf16.msra.mxu0 %v3289
  %3312 = vmatprep.subr.bf16.mxu0 0
  %3313 = vmatpush1.bf16.msra.mxu0 %v3290
  %3314 = vmatprep.subr.bf16.mxu0 0
  %3315 = vmatpush1.bf16.msra.mxu0 %v3291
  %3316 = vmatprep.subr.bf16.mxu0 0
  %3317 = vmatpush1.bf16.msra.mxu0 0
  %3318 = vmatprep.subr.bf16.mxu0 0
  %3319 = vmatpush1.bf16.msra.mxu0 0
  %3320 = vmatprep.subr.bf16.mxu0 0
  %3321 = vmatpush1.bf16.msra.mxu0 0
  %3322 = vmatprep.subr.bf16.mxu0 0
  %3323 = vmatpush1.bf16.msra.mxu0 0
  %3324 = vmatprep.subr.bf16.mxu0 0
  %3325 = vmatpush1.bf16.msra.mxu0 0
  %3326 = vmatprep.subr.bf16.mxu0 0
  %3327 = vmatpush1.bf16.msra.mxu0 0
  %3328 = vmatprep.subr.bf16.mxu0 0
  %3329 = vmatpush1.bf16.msra.mxu0 0
  %3330 = vmatprep.subr.bf16.mxu0 0
  %3331 = vmatpush1.bf16.msra.mxu0 0
  %3332 = vmatprep.mubr.bf16.mxu0 0
  %3333 = vmatmul.mubr.bf16.gmra.mrb[0].mxu0 %v3188
  %v3334 = vpop.f32.mrb[0].mxu0
  %v3335 = vadd.f32 0.0, %v3334
  %v3336 = vpop.f32.mrb[0].mxu0
  %v3337 = vpop.f32.mrb[0].mxu0
  %v3338 = vadd.f32 0.0, %v3337
  %v3339 = vpop.f32.mrb[0].mxu0
  %3340 = vmatprep.mubr.bf16.mxu0 0
  %3341 = vmatmul.mubr.bf16.gmra.mrb[0].mxu0 %v3189
  %v3342 = vpop.f32.mrb[0].mxu0
  %v3343 = vadd.f32 0.0, %v3342
  %v3344 = vpop.f32.mrb[0].mxu0
  %v3345 = vpop.f32.mrb[0].mxu0
  %v3346 = vadd.f32 0.0, %v3345
  %v3347 = vpop.f32.mrb[0].mxu0
  %3348 = vmatprep.mubr.bf16.mxu0 0
  %3349 = vmatmul.mubr.bf16.gmra.mrb[0].mxu0 %v3190
  %v3350 = vpop.f32.mrb[0].mxu0
  %v3351 = vadd.f32 0.0, %v3350
  %v3352 = vpop.f32.mrb[0].mxu0
  %v3353 = vpop.f32.mrb[0].mxu0
  %v3354 = vadd.f32 0.0, %v3353
  %v3355 = vpop.f32.mrb[0].mxu0
  %3356 = vmatprep.mubr.bf16.mxu0 0
  %3357 = vmatmul.mubr.bf16.gmra.mrb[0].mxu0 %v3191
  %v3358 = vpop.f32.mrb[0].mxu0
  %v3359 = vadd.f32 0.0, %v3358
  %v3360 = vpop.f32.mrb[0].mxu0
  %v3361 = vpop.f32.mrb[0].mxu0
  %v3362 = vadd.f32 0.0, %v3361
  %v3363 = vpop.f32.mrb[0].mxu0
  %3364 = vmatprep.mubr.bf16.mxu0 0
  %3365 = vmatmul.mubr.bf16.gmra.mrb[0].mxu0 %v3192
  %v3366 = vpop.f32.mrb[0].mxu0
  %v3367 = vadd.f32 0.0, %v3366
  %v3368 = vpop.f32.mrb[0].mxu0
  %v3369 = vpop.f32.mrb[0].mxu0
  %v3370 = vadd.f32 0.0, %v3369
  %v3371 = vpop.f32.mrb[0].mxu0
  %3372 = vmatprep.mubr.bf16.mxu0 0
  %3373 = vmatmul.mubr.bf16.gmra.mrb[0].mxu0 %v3193
  %v3374 = vpop.f32.mrb[0].mxu0
  %v3375 = vadd.f32 0.0, %v3374
  %v3376 = vpop.f32.mrb[0].mxu0
  %v3377 = vpop.f32.mrb[0].mxu0
  %v3378 = vadd.f32 0.0, %v3377
  %v3379 = vpop.f32.mrb[0].mxu0
  %3380 = vmatprep.mubr.bf16.mxu0 0
  %3381 = vmatmul.mubr.bf16.gmra.mrb[0].mxu0 %v3194
  %v3382 = vpop.f32.mrb[0].mxu0
  %v3383 = vadd.f32 0.0, %v3382
  %v3384 = vpop.f32.mrb[0].mxu0
  %v3385 = vpop.f32.mrb[0].mxu0
  %v3386 = vadd.f32 0.0, %v3385
  %v3387 = vpop.f32.mrb[0].mxu0
  %3388 = vmatprep.mubr.bf16.mxu0 0
  %3389 = vmatmul.mubr.bf16.gmra.mrb[0].mxu0 %v3195
  %v3390 = vpop.f32.mrb[0].mxu0
  %v3391 = vadd.f32 0.0, %v3390
  %v3392 = vpop.f32.mrb[0].mxu0
  %v3393 = vpop.f32.mrb[0].mxu0
  %v3394 = vadd.f32 0.0, %v3393
  %v3395 = vpop.f32.mrb[0].mxu0
  %3396 = vmatprep.mubr.bf16.mxu0 0
  %3397 = vmatmul.mubr.bf16.gmra.mrb[0].mxu0 %v3196
  %v3398 = vpop.f32.mrb[0].mxu0
  %v3399 = vadd.f32 0.0, %v3398
  %v3400 = vpop.f32.mrb[0].mxu0
  %v3401 = vpop.f32.mrb[0].mxu0
  %v3402 = vadd.f32 0.0, %v3401
  %v3403 = vpop.f32.mrb[0].mxu0
  %3404 = vmatprep.mubr.bf16.mxu0 0
  %3405 = vmatmul.mubr.bf16.gmra.mrb[0].mxu0 %v3197
  %v3406 = vpop.f32.mrb[0].mxu0
  %v3407 = vadd.f32 0.0, %v3406
  %v3408 = vpop.f32.mrb[0].mxu0
  %v3409 = vpop.f32.mrb[0].mxu0
  %v3410 = vadd.f32 0.0, %v3409
  %v3411 = vpop.f32.mrb[0].mxu0
  %3412 = vmatprep.mubr.bf16.mxu0 0
  %3413 = vmatmul.mubr.bf16.gmra.mrb[0].mxu0 %v3198
  %v3414 = vpop.f32.mrb[0].mxu0
  %v3415 = vadd.f32 0.0, %v3414
  %v3416 = vpop.f32.mrb[0].mxu0
  %v3417 = vpop.f32.mrb[0].mxu0
  %v3418 = vadd.f32 0.0, %v3417
  %v3419 = vpop.f32.mrb[0].mxu0
  %3420 = vmatprep.mubr.bf16.mxu0 0
  %3421 = vmatmul.mubr.bf16.gmra.mrb[0].mxu0 %v3199
  %v3422 = vpop.f32.mrb[0].mxu0
  %v3423 = vadd.f32 0.0, %v3422
  %v3424 = vpop.f32.mrb[0].mxu0
  %v3425 = vpop.f32.mrb[0].mxu0
  %v3426 = vadd.f32 0.0, %v3425
  %v3427 = vpop.f32.mrb[0].mxu0
  %3428 = vmatprep.mubr.bf16.mxu0 0
  %3429 = vmatmul.mubr.bf16.gmra.mrb[0].mxu0 %v3200
  %v3430 = vpop.f32.mrb[0].mxu0
  %v3431 = vadd.f32 0.0, %v3430
  %v3432 = vpop.f32.mrb[0].mxu0
  %v3433 = vpop.f32.mrb[0].mxu0
  %v3434 = vadd.f32 0.0, %v3433
  %v3435 = vpop.f32.mrb[0].mxu0
  %3436 = vmatprep.mubr.bf16.mxu0 0
  %3437 = vmatmul.mubr.bf16.gmra.mrb[0].mxu0 %v3201
  %v3438 = vpop.f32.mrb[0].mxu0
  %v3439 = vadd.f32 0.0, %v3438
  %v3440 = vpop.f32.mrb[0].mxu0
  %v3441 = vpop.f32.mrb[0].mxu0
  %v3442 = vadd.f32 0.0, %v3441
  %v3443 = vpop.f32.mrb[0].mxu0
  %3444 = vmatprep.mubr.bf16.mxu0 0
  %3445 = vmatmul.mubr.bf16.gmra.mrb[0].mxu0 %v3202
  %v3446 = vpop.f32.mrb[0].mxu0
  %v3447 = vadd.f32 0.0, %v3446
  %v3448 = vpop.f32.mrb[0].mxu0
  %v3449 = vpop.f32.mrb[0].mxu0
  %v3450 = vadd.f32 0.0, %v3449
  %v3451 = vpop.f32.mrb[0].mxu0
  %3452 = vmatprep.mubr.bf16.mxu0 0
  %3453 = vmatmul.mubr.bf16.gmra.mrb[0].mxu0 %v3203
  %v3454 = vpop.f32.mrb[0].mxu0
  %v3455 = vadd.f32 0.0, %v3454
  %v3456 = vpop.f32.mrb[0].mxu0
  %v3457 = vpop.f32.mrb[0].mxu0
  %v3458 = vadd.f32 0.0, %v3457
  %v3459 = vpop.f32.mrb[0].mxu0
  %3460 = vmatprep.mubr.bf16.mxu0 0
  %3461 = vmatmul.mubr.bf16.gmra.mrb[0].mxu0 %v3204
  %v3462 = vpop.f32.mrb[0].mxu0
  %v3463 = vadd.f32 0.0, %v3462
  %v3464 = vpop.f32.mrb[0].mxu0
  %v3465 = vpop.f32.mrb[0].mxu0
  %v3466 = vadd.f32 0.0, %v3465
  %v3467 = vpop.f32.mrb[0].mxu0
  %3468 = vmatprep.mubr.bf16.mxu0 0
  %3469 = vmatmul.mubr.bf16.gmra.mrb[0].mxu0 %v3205
  %v3470 = vpop.f32.mrb[0].mxu0
  %v3471 = vadd.f32 0.0, %v3470
  %v3472 = vpop.f32.mrb[0].mxu0
  %v3473 = vpop.f32.mrb[0].mxu0
  %v3474 = vadd.f32 0.0, %v3473
  %v3475 = vpop.f32.mrb[0].mxu0
  %3476 = vmatprep.mubr.bf16.mxu0 0
  %3477 = vmatmul.mubr.bf16.gmra.mrb[0].mxu0 %v3206
  %v3478 = vpop.f32.mrb[0].mxu0
  %v3479 = vadd.f32 0.0, %v3478
  %v3480 = vpop.f32.mrb[0].mxu0
  %v3481 = vpop.f32.mrb[0].mxu0
  %v3482 = vadd.f32 0.0, %v3481
  %v3483 = vpop.f32.mrb[0].mxu0
  %3484 = vmatprep.mubr.bf16.mxu0 0
  %3485 = vmatmul.mubr.bf16.gmra.mrb[0].mxu0 %v3207
  %v3486 = vpop.f32.mrb[0].mxu0
  %v3487 = vadd.f32 0.0, %v3486
  %v3488 = vpop.f32.mrb[0].mxu0
  %v3489 = vpop.f32.mrb[0].mxu0
  %v3490 = vadd.f32 0.0, %v3489
  %v3491 = vpop.f32.mrb[0].mxu0
  %3492 = vmatprep.mubr.bf16.mxu0 0
  %3493 = vmatmul.mubr.bf16.gmra.mrb[0].mxu0 %v3208
  %v3494 = vpop.f32.mrb[0].mxu0
  %v3495 = vadd.f32 0.0, %v3494
  %v3496 = vpop.f32.mrb[0].mxu0
  %v3497 = vpop.f32.mrb[0].mxu0
  %v3498 = vadd.f32 0.0, %v3497
  %v3499 = vpop.f32.mrb[0].mxu0
  %3500 = vmatprep.mubr.bf16.mxu0 0
  %3501 = vmatmul.mubr.bf16.gmra.mrb[0].mxu0 %v3209
  %v3502 = vpop.f32.mrb[0].mxu0
  %v3503 = vadd.f32 0.0, %v3502
  %v3504 = vpop.f32.mrb[0].mxu0
  %v3505 = vpop.f32.mrb[0].mxu0
  %v3506 = vadd.f32 0.0, %v3505
  %v3507 = vpop.f32.mrb[0].mxu0
  %3508 = vmatprep.mubr.bf16.mxu0 0
  %3509 = vmatmul.mubr.bf16.gmra.mrb[0].mxu0 %v3210
  %v3510 = vpop.f32.mrb[0].mxu0
  %v3511 = vadd.f32 0.0, %v3510
  %v3512 = vpop.f32.mrb[0].mxu0
  %v3513 = vpop.f32.mrb[0].mxu0
  %v3514 = vadd.f32 0.0, %v3513
  %v3515 = vpop.f32.mrb[0].mxu0
  %3516 = vmatprep.mubr.bf16.mxu0 0
  %3517 = vmatmul.mubr.bf16.gmra.mrb[0].mxu0 %v3211
  %v3518 = vpop.f32.mrb[0].mxu0
  %v3519 = vadd.f32 0.0, %v3518
  %v3520 = vpop.f32.mrb[0].mxu0
  %v3521 = vpop.f32.mrb[0].mxu0
  %v3522 = vadd.f32 0.0, %v3521
  %v3523 = vpop.f32.mrb[0].mxu0
  %3524 = vmatprep.mubr.bf16.mxu0 0
  %3525 = vmatmul.mubr.bf16.gmra.mrb[0].mxu0 %v3212
  %v3526 = vpop.f32.mrb[0].mxu0
  %v3527 = vadd.f32 0.0, %v3526
  %v3528 = vpop.f32.mrb[0].mxu0
  %v3529 = vpop.f32.mrb[0].mxu0
  %v3530 = vadd.f32 0.0, %v3529
  %v3531 = vpop.f32.mrb[0].mxu0
  %3532 = vmatprep.mubr.bf16.mxu0 0
  %3533 = vmatmul.mubr.bf16.gmra.mrb[0].mxu0 %v3213
  %v3534 = vpop.f32.mrb[0].mxu0
  %v3535 = vadd.f32 0.0, %v3534
  %v3536 = vpop.f32.mrb[0].mxu0
  %v3537 = vpop.f32.mrb[0].mxu0
  %v3538 = vadd.f32 0.0, %v3537
  %v3539 = vpop.f32.mrb[0].mxu0
  %3540 = vmatprep.mubr.bf16.mxu0 0
  %3541 = vmatmul.mubr.bf16.gmra.mrb[0].mxu0 %v3214
  %v3542 = vpop.f32.mrb[0].mxu0
  %v3543 = vadd.f32 0.0, %v3542
  %v3544 = vpop.f32.mrb[0].mxu0
  %v3545 = vpop.f32.mrb[0].mxu0
  %v3546 = vadd.f32 0.0, %v3545
  %v3547 = vpop.f32.mrb[0].mxu0
  %3548 = vmatprep.mubr.bf16.mxu0 0
  %3549 = vmatmul.mubr.bf16.gmra.mrb[0].mxu0 %v3215
  %v3550 = vpop.f32.mrb[0].mxu0
  %v3551 = vadd.f32 0.0, %v3550
  %v3552 = vpop.f32.mrb[0].mxu0
  %v3553 = vpop.f32.mrb[0].mxu0
  %v3554 = vadd.f32 0.0, %v3553
  %v3555 = vpop.f32.mrb[0].mxu0
  %3556 = vmatprep.mubr.bf16.mxu0 0
  %3557 = vmatmul.mubr.bf16.gmra.mrb[0].mxu0 %v3216
  %v3558 = vpop.f32.mrb[0].mxu0
  %v3559 = vadd.f32 0.0, %v3558
  %v3560 = vpop.f32.mrb[0].mxu0
  %v3561 = vpop.f32.mrb[0].mxu0
  %v3562 = vadd.f32 0.0, %v3561
  %v3563 = vpop.f32.mrb[0].mxu0
  %3564 = vmatprep.mubr.bf16.mxu0 0
  %3565 = vmatmul.mubr.bf16.gmra.mrb[0].mxu0 %v3217
  %v3566 = vpop.f32.mrb[0].mxu0
  %v3567 = vadd.f32 0.0, %v3566
  %v3568 = vpop.f32.mrb[0].mxu0
  %v3569 = vpop.f32.mrb[0].mxu0
  %v3570 = vadd.f32 0.0, %v3569
  %v3571 = vpop.f32.mrb[0].mxu0
  %3572 = vmatprep.mubr.bf16.mxu0 0
  %3573 = vmatmul.mubr.bf16.gmra.mrb[0].mxu0 %v3218
  %v3574 = vpop.f32.mrb[0].mxu0
  %v3575 = vadd.f32 0.0, %v3574
  %v3576 = vpop.f32.mrb[0].mxu0
  %v3577 = vpop.f32.mrb[0].mxu0
  %v3578 = vadd.f32 0.0, %v3577
  %v3579 = vpop.f32.mrb[0].mxu0
  %3580 = vmatprep.mubr.bf16.mxu0 0
  %3581 = vmatmul.mubr.bf16.gmra.mrb[0].mxu0 %v3219
  %v3582 = vpop.f32.mrb[0].mxu0
  %v3583 = vadd.f32 0.0, %v3582
  %v3584 = vpop.f32.mrb[0].mxu0
  %v3585 = vpop.f32.mrb[0].mxu0
  %v3586 = vadd.f32 0.0, %v3585
  %v3587 = vpop.f32.mrb[0].mxu0
  %3588 = vdwg.mxu0
  %v3653 = vunpack.c.l.b16 %v2225
  %v3654 = vunpack.c.l.b16 %v2226
  %v3655 = vunpack.c.l.b16 %v2227
  %v3656 = vunpack.c.l.b16 %v2228
  %v3657 = vunpack.c.l.b16 %v2229
  %v3658 = vunpack.c.l.b16 %v2230
  %v3659 = vunpack.c.l.b16 %v2231
  %v3660 = vunpack.c.l.b16 %v2232
  %v3661 = vunpack.c.l.b16 %v2233
  %v3662 = vunpack.c.l.b16 %v2234
  %v3663 = vunpack.c.l.b16 %v2235
  %v3664 = vunpack.c.l.b16 %v2236
  %v3665 = vunpack.c.l.b16 %v2237
  %v3666 = vunpack.c.l.b16 %v2238
  %v3667 = vunpack.c.l.b16 %v2239
  %v3668 = vunpack.c.l.b16 %v2240
  %v3669 = vunpack.c.l.b16 %v2241
  %v3670 = vunpack.c.l.b16 %v2242
  %v3671 = vunpack.c.l.b16 %v2243
  %v3672 = vunpack.c.l.b16 %v2244
  %v3673 = vunpack.c.l.b16 %v2245
  %v3674 = vunpack.c.l.b16 %v2246
  %v3675 = vunpack.c.l.b16 %v2247
  %v3676 = vunpack.c.l.b16 %v2248
  %v3677 = vunpack.c.l.b16 %v2249
  %v3678 = vunpack.c.l.b16 %v2250
  %v3679 = vunpack.c.l.b16 %v2251
  %v3680 = vunpack.c.l.b16 %v2252
  %v3681 = vunpack.c.l.b16 %v2253
  %v3682 = vunpack.c.l.b16 %v2254
  %v3683 = vunpack.c.l.b16 %v2255
  %v3684 = vunpack.c.l.b16 %v2256
  %v3685 = vunpack.c.l.b16 %v2257
  %v3686 = vunpack.c.l.b16 %v2258
  %v3687 = vunpack.c.l.b16 %v2259
  %v3688 = vunpack.c.l.b16 %v2260
  %v3689 = vunpack.c.l.b16 %v2261
  %v3690 = vunpack.c.l.b16 %v2262
  %v3691 = vunpack.c.l.b16 %v2263
  %v3692 = vunpack.c.l.b16 %v2264
  %v3693 = vunpack.c.l.b16 %v2265
  %v3694 = vunpack.c.l.b16 %v2266
  %v3695 = vunpack.c.l.b16 %v2267
  %v3696 = vunpack.c.l.b16 %v2268
  %v3697 = vunpack.c.l.b16 %v2269
  %v3698 = vunpack.c.l.b16 %v2270
  %v3699 = vunpack.c.l.b16 %v2271
  %v3700 = vunpack.c.l.b16 %v2272
  %v3701 = vunpack.c.l.b16 %v2273
  %v3702 = vunpack.c.l.b16 %v2274
  %v3703 = vunpack.c.l.b16 %v2275
  %v3704 = vunpack.c.l.b16 %v2276
  %v3705 = vunpack.c.l.b16 %v2277
  %v3706 = vunpack.c.l.b16 %v2278
  %v3707 = vunpack.c.l.b16 %v2279
  %v3708 = vunpack.c.l.b16 %v2280
  %v3709 = vunpack.c.l.b16 %v2281
  %v3710 = vunpack.c.l.b16 %v2282
  %v3711 = vunpack.c.l.b16 %v2283
  %v3712 = vunpack.c.l.b16 %v2284
  %v3713 = vunpack.c.l.b16 %v2285
  %v3714 = vunpack.c.l.b16 %v2286
  %v3715 = vunpack.c.l.b16 %v2287
  %v3716 = vunpack.c.l.b16 %v2288
  %v3717 = vpack.c.b16 %v3654, %v3653
  %v3718 = vpack.c.b16 %v3656, %v3655
  %v3719 = vpack.c.b16 %v3658, %v3657
  %v3720 = vpack.c.b16 %v3660, %v3659
  %v3721 = vpack.c.b16 %v3662, %v3661
  %v3722 = vpack.c.b16 %v3664, %v3663
  %v3723 = vpack.c.b16 %v3666, %v3665
  %v3724 = vpack.c.b16 %v3668, %v3667
  %v3725 = vpack.c.b16 %v3670, %v3669
  %v3726 = vpack.c.b16 %v3672, %v3671
  %v3727 = vpack.c.b16 %v3674, %v3673
  %v3728 = vpack.c.b16 %v3676, %v3675
  %v3729 = vpack.c.b16 %v3678, %v3677
  %v3730 = vpack.c.b16 %v3680, %v3679
  %v3731 = vpack.c.b16 %v3682, %v3681
  %v3732 = vpack.c.b16 %v3684, %v3683
  %v3733 = vpack.c.b16 %v3686, %v3685
  %v3734 = vpack.c.b16 %v3688, %v3687
  %v3735 = vpack.c.b16 %v3690, %v3689
  %v3736 = vpack.c.b16 %v3692, %v3691
  %v3737 = vpack.c.b16 %v3694, %v3693
  %v3738 = vpack.c.b16 %v3696, %v3695
  %v3739 = vpack.c.b16 %v3698, %v3697
  %v3740 = vpack.c.b16 %v3700, %v3699
  %v3741 = vpack.c.b16 %v3702, %v3701
  %v3742 = vpack.c.b16 %v3704, %v3703
  %v3743 = vpack.c.b16 %v3706, %v3705
  %v3744 = vpack.c.b16 %v3708, %v3707
  %v3745 = vpack.c.b16 %v3710, %v3709
  %v3746 = vpack.c.b16 %v3712, %v3711
  %v3747 = vpack.c.b16 %v3714, %v3713
  %v3748 = vpack.c.b16 %v3716, %v3715
  %v3797 = vunpack.c.l.b16 %v2289
  %v3798 = vunpack.c.l.b16 %v2290
  %v3799 = vunpack.c.l.b16 %v2291
  %v3800 = vunpack.c.l.b16 %v2292
  %v3801 = vunpack.c.l.b16 %v2293
  %v3802 = vunpack.c.l.b16 %v2294
  %v3803 = vunpack.c.l.b16 %v2295
  %v3804 = vunpack.c.l.b16 %v2296
  %v3805 = vunpack.c.l.b16 %v2297
  %v3806 = vunpack.c.l.b16 %v2298
  %v3807 = vunpack.c.l.b16 %v2299
  %v3808 = vunpack.c.l.b16 %v2300
  %v3809 = vunpack.c.l.b16 %v2301
  %v3810 = vunpack.c.l.b16 %v2302
  %v3811 = vunpack.c.l.b16 %v2303
  %v3812 = vunpack.c.l.b16 %v2304
  %v3813 = vpack.c.b16 %v3798, %v3797
  %v3814 = vpack.c.b16 %v3800, %v3799
  %v3815 = vpack.c.b16 %v3802, %v3801
  %v3816 = vpack.c.b16 %v3804, %v3803
  %v3817 = vpack.c.b16 %v3806, %v3805
  %v3818 = vpack.c.b16 %v3808, %v3807
  %v3819 = vpack.c.b16 %v3810, %v3809
  %v3820 = vpack.c.b16 %v3812, %v3811
  %3829 = vmatprep.subr.bf16.mxu0 0
  %3830 = vmatpush1.bf16.msra.mxu0 %v3813
  %3831 = vmatprep.subr.bf16.mxu0 0
  %3832 = vmatpush1.bf16.msra.mxu0 %v3814
  %3833 = vmatprep.subr.bf16.mxu0 0
  %3834 = vmatpush1.bf16.msra.mxu0 %v3815
  %3835 = vmatprep.subr.bf16.mxu0 0
  %3836 = vmatpush1.bf16.msra.mxu0 %v3816
  %3837 = vmatprep.subr.bf16.mxu0 0
  %3838 = vmatpush1.bf16.msra.mxu0 %v3817
  %3839 = vmatprep.subr.bf16.mxu0 0
  %3840 = vmatpush1.bf16.msra.mxu0 %v3818
  %3841 = vmatprep.subr.bf16.mxu0 0
  %3842 = vmatpush1.bf16.msra.mxu0 %v3819
  %3843 = vmatprep.subr.bf16.mxu0 0
  %3844 = vmatpush1.bf16.msra.mxu0 %v3820
  %3845 = vmatprep.subr.bf16.mxu0 0
  %3846 = vmatpush1.bf16.msra.mxu0 0
  %3847 = vmatprep.subr.bf16.mxu0 0
  %3848 = vmatpush1.bf16.msra.mxu0 0
  %3849 = vmatprep.subr.bf16.mxu0 0
  %3850 = vmatpush1.bf16.msra.mxu0 0
  %3851 = vmatprep.subr.bf16.mxu0 0
  %3852 = vmatpush1.bf16.msra.mxu0 0
  %3853 = vmatprep.subr.bf16.mxu0 0
  %3854 = vmatpush1.bf16.msra.mxu0 0
  %3855 = vmatprep.subr.bf16.mxu0 0
  %3856 = vmatpush1.bf16.msra.mxu0 0
  %3857 = vmatprep.subr.bf16.mxu0 0
  %3858 = vmatpush1.bf16.msra.mxu0 0
  %3859 = vmatprep.subr.bf16.mxu0 0
  %3860 = vmatpush1.bf16.msra.mxu0 0
  %3861 = vmatprep.mubr.bf16.mxu0 0
  %3862 = vmatmul.mubr.bf16.gmra.mrb[0].mxu0 %v3717
  %v3863 = vpop.f32.mrb[0].mxu0
  %v3864 = vadd.f32 %v3335, %v3863
  %v3865 = vpop.f32.mrb[0].mxu0
  %v3866 = vpop.f32.mrb[0].mxu0
  %v3867 = vadd.f32 %v3338, %v3866
  %v3868 = vpop.f32.mrb[0].mxu0
  %3869 = vmatprep.mubr.bf16.mxu0 0
  %3870 = vmatmul.mubr.bf16.gmra.mrb[0].mxu0 %v3718
  %v3871 = vpop.f32.mrb[0].mxu0
  %v3872 = vadd.f32 %v3343, %v3871
  %v3873 = vpop.f32.mrb[0].mxu0
  %v3874 = vpop.f32.mrb[0].mxu0
  %v3875 = vadd.f32 %v3346, %v3874
  %v3876 = vpop.f32.mrb[0].mxu0
  %3877 = vmatprep.mubr.bf16.mxu0 0
  %3878 = vmatmul.mubr.bf16.gmra.mrb[0].mxu0 %v3719
  %v3879 = vpop.f32.mrb[0].mxu0
  %v3880 = vadd.f32 %v3351, %v3879
  %v3881 = vpop.f32.mrb[0].mxu0
  %v3882 = vpop.f32.mrb[0].mxu0
  %v3883 = vadd.f32 %v3354, %v3882
  %v3884 = vpop.f32.mrb[0].mxu0
  %3885 = vmatprep.mubr.bf16.mxu0 0
  %3886 = vmatmul.mubr.bf16.gmra.mrb[0].mxu0 %v3720
  %v3887 = vpop.f32.mrb[0].mxu0
  %v3888 = vadd.f32 %v3359, %v3887
  %v3889 = vpop.f32.mrb[0].mxu0
  %v3890 = vpop.f32.mrb[0].mxu0
  %v3891 = vadd.f32 %v3362, %v3890
  %v3892 = vpop.f32.mrb[0].mxu0
  %3893 = vmatprep.mubr.bf16.mxu0 0
  %3894 = vmatmul.mubr.bf16.gmra.mrb[0].mxu0 %v3721
  %v3895 = vpop.f32.mrb[0].mxu0
  %v3896 = vadd.f32 %v3367, %v3895
  %v3897 = vpop.f32.mrb[0].mxu0
  %v3898 = vpop.f32.mrb[0].mxu0
  %v3899 = vadd.f32 %v3370, %v3898
  %v3900 = vpop.f32.mrb[0].mxu0
  %3901 = vmatprep.mubr.bf16.mxu0 0
  %3902 = vmatmul.mubr.bf16.gmra.mrb[0].mxu0 %v3722
  %v3903 = vpop.f32.mrb[0].mxu0
  %v3904 = vadd.f32 %v3375, %v3903
  %v3905 = vpop.f32.mrb[0].mxu0
  %v3906 = vpop.f32.mrb[0].mxu0
  %v3907 = vadd.f32 %v3378, %v3906
  %v3908 = vpop.f32.mrb[0].mxu0
  %3909 = vmatprep.mubr.bf16.mxu0 0
  %3910 = vmatmul.mubr.bf16.gmra.mrb[0].mxu0 %v3723
  %v3911 = vpop.f32.mrb[0].mxu0
  %v3912 = vadd.f32 %v3383, %v3911
  %v3913 = vpop.f32.mrb[0].mxu0
  %v3914 = vpop.f32.mrb[0].mxu0
  %v3915 = vadd.f32 %v3386, %v3914
  %v3916 = vpop.f32.mrb[0].mxu0
  %3917 = vmatprep.mubr.bf16.mxu0 0
  %3918 = vmatmul.mubr.bf16.gmra.mrb[0].mxu0 %v3724
  %v3919 = vpop.f32.mrb[0].mxu0
  %v3920 = vadd.f32 %v3391, %v3919
  %v3921 = vpop.f32.mrb[0].mxu0
  %v3922 = vpop.f32.mrb[0].mxu0
  %v3923 = vadd.f32 %v3394, %v3922
  %v3924 = vpop.f32.mrb[0].mxu0
  %3925 = vmatprep.mubr.bf16.mxu0 0
  %3926 = vmatmul.mubr.bf16.gmra.mrb[0].mxu0 %v3725
  %v3927 = vpop.f32.mrb[0].mxu0
  %v3928 = vadd.f32 %v3399, %v3927
  %v3929 = vpop.f32.mrb[0].mxu0
  %v3930 = vpop.f32.mrb[0].mxu0
  %v3931 = vadd.f32 %v3402, %v3930
  %v3932 = vpop.f32.mrb[0].mxu0
  %3933 = vmatprep.mubr.bf16.mxu0 0
  %3934 = vmatmul.mubr.bf16.gmra.mrb[0].mxu0 %v3726
  %v3935 = vpop.f32.mrb[0].mxu0
  %v3936 = vadd.f32 %v3407, %v3935
  %v3937 = vpop.f32.mrb[0].mxu0
  %v3938 = vpop.f32.mrb[0].mxu0
  %v3939 = vadd.f32 %v3410, %v3938
  %v3940 = vpop.f32.mrb[0].mxu0
  %3941 = vmatprep.mubr.bf16.mxu0 0
  %3942 = vmatmul.mubr.bf16.gmra.mrb[0].mxu0 %v3727
  %v3943 = vpop.f32.mrb[0].mxu0
  %v3944 = vadd.f32 %v3415, %v3943
  %v3945 = vpop.f32.mrb[0].mxu0
  %v3946 = vpop.f32.mrb[0].mxu0
  %v3947 = vadd.f32 %v3418, %v3946
  %v3948 = vpop.f32.mrb[0].mxu0
  %3949 = vmatprep.mubr.bf16.mxu0 0
  %3950 = vmatmul.mubr.bf16.gmra.mrb[0].mxu0 %v3728
  %v3951 = vpop.f32.mrb[0].mxu0
  %v3952 = vadd.f32 %v3423, %v3951
  %v3953 = vpop.f32.mrb[0].mxu0
  %v3954 = vpop.f32.mrb[0].mxu0
  %v3955 = vadd.f32 %v3426, %v3954
  %v3956 = vpop.f32.mrb[0].mxu0
  %3957 = vmatprep.mubr.bf16.mxu0 0
  %3958 = vmatmul.mubr.bf16.gmra.mrb[0].mxu0 %v3729
  %v3959 = vpop.f32.mrb[0].mxu0
  %v3960 = vadd.f32 %v3431, %v3959
  %v3961 = vpop.f32.mrb[0].mxu0
  %v3962 = vpop.f32.mrb[0].mxu0
  %v3963 = vadd.f32 %v3434, %v3962
  %v3964 = vpop.f32.mrb[0].mxu0
  %3965 = vmatprep.mubr.bf16.mxu0 0
  %3966 = vmatmul.mubr.bf16.gmra.mrb[0].mxu0 %v3730
  %v3967 = vpop.f32.mrb[0].mxu0
  %v3968 = vadd.f32 %v3439, %v3967
  %v3969 = vpop.f32.mrb[0].mxu0
  %v3970 = vpop.f32.mrb[0].mxu0
  %v3971 = vadd.f32 %v3442, %v3970
  %v3972 = vpop.f32.mrb[0].mxu0
  %3973 = vmatprep.mubr.bf16.mxu0 0
  %3974 = vmatmul.mubr.bf16.gmra.mrb[0].mxu0 %v3731
  %v3975 = vpop.f32.mrb[0].mxu0
  %v3976 = vadd.f32 %v3447, %v3975
  %v3977 = vpop.f32.mrb[0].mxu0
  %v3978 = vpop.f32.mrb[0].mxu0
  %v3979 = vadd.f32 %v3450, %v3978
  %v3980 = vpop.f32.mrb[0].mxu0
  %3981 = vmatprep.mubr.bf16.mxu0 0
  %3982 = vmatmul.mubr.bf16.gmra.mrb[0].mxu0 %v3732
  %v3983 = vpop.f32.mrb[0].mxu0
  %v3984 = vadd.f32 %v3455, %v3983
  %v3985 = vpop.f32.mrb[0].mxu0
  %v3986 = vpop.f32.mrb[0].mxu0
  %v3987 = vadd.f32 %v3458, %v3986
  %v3988 = vpop.f32.mrb[0].mxu0
  %3989 = vmatprep.mubr.bf16.mxu0 0
  %3990 = vmatmul.mubr.bf16.gmra.mrb[0].mxu0 %v3733
  %v3991 = vpop.f32.mrb[0].mxu0
  %v3992 = vadd.f32 %v3463, %v3991
  %v3993 = vpop.f32.mrb[0].mxu0
  %v3994 = vpop.f32.mrb[0].mxu0
  %v3995 = vadd.f32 %v3466, %v3994
  %v3996 = vpop.f32.mrb[0].mxu0
  %3997 = vmatprep.mubr.bf16.mxu0 0
  %3998 = vmatmul.mubr.bf16.gmra.mrb[0].mxu0 %v3734
  %v3999 = vpop.f32.mrb[0].mxu0
  %v4000 = vadd.f32 %v3471, %v3999
  %v4001 = vpop.f32.mrb[0].mxu0
  %v4002 = vpop.f32.mrb[0].mxu0
  %v4003 = vadd.f32 %v3474, %v4002
  %v4004 = vpop.f32.mrb[0].mxu0
  %4005 = vmatprep.mubr.bf16.mxu0 0
  %4006 = vmatmul.mubr.bf16.gmra.mrb[0].mxu0 %v3735
  %v4007 = vpop.f32.mrb[0].mxu0
  %v4008 = vadd.f32 %v3479, %v4007
  %v4009 = vpop.f32.mrb[0].mxu0
  %v4010 = vpop.f32.mrb[0].mxu0
  %v4011 = vadd.f32 %v3482, %v4010
  %v4012 = vpop.f32.mrb[0].mxu0
  %4013 = vmatprep.mubr.bf16.mxu0 0
  %4014 = vmatmul.mubr.bf16.gmra.mrb[0].mxu0 %v3736
  %v4015 = vpop.f32.mrb[0].mxu0
  %v4016 = vadd.f32 %v3487, %v4015
  %v4017 = vpop.f32.mrb[0].mxu0
  %v4018 = vpop.f32.mrb[0].mxu0
  %v4019 = vadd.f32 %v3490, %v4018
  %v4020 = vpop.f32.mrb[0].mxu0
  %4021 = vmatprep.mubr.bf16.mxu0 0
  %4022 = vmatmul.mubr.bf16.gmra.mrb[0].mxu0 %v3737
  %v4023 = vpop.f32.mrb[0].mxu0
  %v4024 = vadd.f32 %v3495, %v4023
  %v4025 = vpop.f32.mrb[0].mxu0
  %v4026 = vpop.f32.mrb[0].mxu0
  %v4027 = vadd.f32 %v3498, %v4026
  %v4028 = vpop.f32.mrb[0].mxu0
  %4029 = vmatprep.mubr.bf16.mxu0 0
  %4030 = vmatmul.mubr.bf16.gmra.mrb[0].mxu0 %v3738
  %v4031 = vpop.f32.mrb[0].mxu0
  %v4032 = vadd.f32 %v3503, %v4031
  %v4033 = vpop.f32.mrb[0].mxu0
  %v4034 = vpop.f32.mrb[0].mxu0
  %v4035 = vadd.f32 %v3506, %v4034
  %v4036 = vpop.f32.mrb[0].mxu0
  %4037 = vmatprep.mubr.bf16.mxu0 0
  %4038 = vmatmul.mubr.bf16.gmra.mrb[0].mxu0 %v3739
  %v4039 = vpop.f32.mrb[0].mxu0
  %v4040 = vadd.f32 %v3511, %v4039
  %v4041 = vpop.f32.mrb[0].mxu0
  %v4042 = vpop.f32.mrb[0].mxu0
  %v4043 = vadd.f32 %v3514, %v4042
  %v4044 = vpop.f32.mrb[0].mxu0
  %4045 = vmatprep.mubr.bf16.mxu0 0
  %4046 = vmatmul.mubr.bf16.gmra.mrb[0].mxu0 %v3740
  %v4047 = vpop.f32.mrb[0].mxu0
  %v4048 = vadd.f32 %v3519, %v4047
  %v4049 = vpop.f32.mrb[0].mxu0
  %v4050 = vpop.f32.mrb[0].mxu0
  %v4051 = vadd.f32 %v3522, %v4050
  %v4052 = vpop.f32.mrb[0].mxu0
  %4053 = vmatprep.mubr.bf16.mxu0 0
  %4054 = vmatmul.mubr.bf16.gmra.mrb[0].mxu0 %v3741
  %v4055 = vpop.f32.mrb[0].mxu0
  %v4056 = vadd.f32 %v3527, %v4055
  %v4057 = vpop.f32.mrb[0].mxu0
  %v4058 = vpop.f32.mrb[0].mxu0
  %v4059 = vadd.f32 %v3530, %v4058
  %v4060 = vpop.f32.mrb[0].mxu0
  %4061 = vmatprep.mubr.bf16.mxu0 0
  %4062 = vmatmul.mubr.bf16.gmra.mrb[0].mxu0 %v3742
  %v4063 = vpop.f32.mrb[0].mxu0
  %v4064 = vadd.f32 %v3535, %v4063
  %v4065 = vpop.f32.mrb[0].mxu0
  %v4066 = vpop.f32.mrb[0].mxu0
  %v4067 = vadd.f32 %v3538, %v4066
  %v4068 = vpop.f32.mrb[0].mxu0
  %4069 = vmatprep.mubr.bf16.mxu0 0
  %4070 = vmatmul.mubr.bf16.gmra.mrb[0].mxu0 %v3743
  %v4071 = vpop.f32.mrb[0].mxu0
  %v4072 = vadd.f32 %v3543, %v4071
  %v4073 = vpop.f32.mrb[0].mxu0
  %v4074 = vpop.f32.mrb[0].mxu0
  %v4075 = vadd.f32 %v3546, %v4074
  %v4076 = vpop.f32.mrb[0].mxu0
  %4077 = vmatprep.mubr.bf16.mxu0 0
  %4078 = vmatmul.mubr.bf16.gmra.mrb[0].mxu0 %v3744
  %v4079 = vpop.f32.mrb[0].mxu0
  %v4080 = vadd.f32 %v3551, %v4079
  %v4081 = vpop.f32.mrb[0].mxu0
  %v4082 = vpop.f32.mrb[0].mxu0
  %v4083 = vadd.f32 %v3554, %v4082
  %v4084 = vpop.f32.mrb[0].mxu0
  %4085 = vmatprep.mubr.bf16.mxu0 0
  %4086 = vmatmul.mubr.bf16.gmra.mrb[0].mxu0 %v3745
  %v4087 = vpop.f32.mrb[0].mxu0
  %v4088 = vadd.f32 %v3559, %v4087
  %v4089 = vpop.f32.mrb[0].mxu0
  %v4090 = vpop.f32.mrb[0].mxu0
  %v4091 = vadd.f32 %v3562, %v4090
  %v4092 = vpop.f32.mrb[0].mxu0
  %4093 = vmatprep.mubr.bf16.mxu0 0
  %4094 = vmatmul.mubr.bf16.gmra.mrb[0].mxu0 %v3746
  %v4095 = vpop.f32.mrb[0].mxu0
  %v4096 = vadd.f32 %v3567, %v4095
  %v4097 = vpop.f32.mrb[0].mxu0
  %v4098 = vpop.f32.mrb[0].mxu0
  %v4099 = vadd.f32 %v3570, %v4098
  %v4100 = vpop.f32.mrb[0].mxu0
  %4101 = vmatprep.mubr.bf16.mxu0 0
  %4102 = vmatmul.mubr.bf16.gmra.mrb[0].mxu0 %v3747
  %v4103 = vpop.f32.mrb[0].mxu0
  %v4104 = vadd.f32 %v3575, %v4103
  %v4105 = vpop.f32.mrb[0].mxu0
  %v4106 = vpop.f32.mrb[0].mxu0
  %v4107 = vadd.f32 %v3578, %v4106
  %v4108 = vpop.f32.mrb[0].mxu0
  %4109 = vmatprep.mubr.bf16.mxu0 0
  %4110 = vmatmul.mubr.bf16.gmra.mrb[0].mxu0 %v3748
  %v4111 = vpop.f32.mrb[0].mxu0
  %v4112 = vadd.f32 %v3583, %v4111
  %v4113 = vpop.f32.mrb[0].mxu0
  %v4114 = vpop.f32.mrb[0].mxu0
  %v4115 = vadd.f32 %v3586, %v4114
  %v4116 = vpop.f32.mrb[0].mxu0
  %4117 = vdwg.mxu0
  %v4118 = vld [vmem:[#allocation2] sm:$0xe]
  %v4119 = vld [vmem:[#allocation2 + $0xc] sm:$0xe]
  %v4120 = vld [vmem:[#allocation2 + $0x18] sm:$0xe]
  %v4121 = vld [vmem:[#allocation2 + $0x24] sm:$0xe]
  %v4122 = vld [vmem:[#allocation2 + $0x30] sm:$0xe]
  %v4123 = vld [vmem:[#allocation2 + $0x3c] sm:$0xe]
  %v4124 = vld [vmem:[#allocation2 + $0x48] sm:$0xe]
  %v4125 = vld [vmem:[#allocation2 + $0x54] sm:$0xe]
  %v4126 = vld [vmem:[#allocation2 + $0x60] sm:$0xe]
  %v4127 = vld [vmem:[#allocation2 + $0x6c] sm:$0xe]
  %v4128 = vld [vmem:[#allocation2 + $0x78] sm:$0xe]
  %v4129 = vld [vmem:[#allocation2 + $0x84] sm:$0xe]
  %v4130 = vld [vmem:[#allocation2 + $0x90] sm:$0xe]
  %v4131 = vld [vmem:[#allocation2 + $0x9c] sm:$0xe]
  %v4132 = vld [vmem:[#allocation2 + $0xa8] sm:$0xe]
  %v4133 = vld [vmem:[#allocation2 + $0xb4] sm:$0xe]
  %v4134 = vld [vmem:[#allocation2 + $0xd8] sm:$0xe]
  %v4135 = vld [vmem:[#allocation2 + $0xe4] sm:$0xe]
  %v4136 = vld [vmem:[#allocation2 + $0xf0] sm:$0xe]
  %v4137 = vld [vmem:[#allocation2 + $0xfc] sm:$0xe]
  %v4138 = vld [vmem:[#allocation2 + $0x108] sm:$0xe]
  %v4139 = vld [vmem:[#allocation2 + $0x114] sm:$0xe]
  %v4140 = vld [vmem:[#allocation2 + $0x120] sm:$0xe]
  %v4141 = vld [vmem:[#allocation2 + $0x12c] sm:$0xe]
  %v4142 = vld [vmem:[#allocation2 + $0x138] sm:$0xe]
  %v4143 = vld [vmem:[#allocation2 + $0x144] sm:$0xe]
  %v4144 = vld [vmem:[#allocation2 + $0x150] sm:$0xe]
  %v4145 = vld [vmem:[#allocation2 + $0x15c] sm:$0xe]
  %v4146 = vld [vmem:[#allocation2 + $0x168] sm:$0xe]
  %v4147 = vld [vmem:[#allocation2 + $0x174] sm:$0xe]
  %v4148 = vld [vmem:[#allocation2 + $0x180] sm:$0xe]
  %v4149 = vld [vmem:[#allocation2 + $0x18c] sm:$0xe]
  %vm4214 = vcmask 1042432
  %vm4215 = vcmask 1046532
  %vm4216 = vmor %vm4214, %vm4215
  %v4217 = vrot.slane %v4118, 5
  %v4218 = vrot.slane %v4217, 4
  %v4219 = vrot.slane %v2226, 5
  %v4220 = vsel %vm4216, %v4218, %v4219
  %v4221 = vrot.slane %v4219, 4
  %v4222 = vrot.slane %v2305, 5
  %v4223 = vsel %vm4216, %v4221, %v4222
  %v4224 = vrot.slane %v4119, 5
  %v4225 = vrot.slane %v4224, 4
  %v4226 = vrot.slane %v2228, 5
  %v4227 = vsel %vm4216, %v4225, %v4226
  %v4228 = vrot.slane %v4226, 4
  %v4229 = vrot.slane %v2306, 5
  %v4230 = vsel %vm4216, %v4228, %v4229
  %v4231 = vrot.slane %v4120, 5
  %v4232 = vrot.slane %v4231, 4
  %v4233 = vrot.slane %v2230, 5
  %v4234 = vsel %vm4216, %v4232, %v4233
  %v4235 = vrot.slane %v4233, 4
  %v4236 = vrot.slane %v2307, 5
  %v4237 = vsel %vm4216, %v4235, %v4236
  %v4238 = vrot.slane %v4121, 5
  %v4239 = vrot.slane %v4238, 4
  %v4240 = vrot.slane %v2232, 5
  %v4241 = vsel %vm4216, %v4239, %v4240
  %v4242 = vrot.slane %v4240, 4
  %v4243 = vrot.slane %v2308, 5
  %v4244 = vsel %vm4216, %v4242, %v4243
  %v4245 = vrot.slane %v4122, 5
  %v4246 = vrot.slane %v4245, 4
  %v4247 = vrot.slane %v2234, 5
  %v4248 = vsel %vm4216, %v4246, %v4247
  %v4249 = vrot.slane %v4247, 4
  %v4250 = vrot.slane %v2309, 5
  %v4251 = vsel %vm4216, %v4249, %v4250
  %v4252 = vrot.slane %v4123, 5
  %v4253 = vrot.slane %v4252, 4
  %v4254 = vrot.slane %v2236, 5
  %v4255 = vsel %vm4216, %v4253, %v4254
  %v4256 = vrot.slane %v4254, 4
  %v4257 = vrot.slane %v2310, 5
  %v4258 = vsel %vm4216, %v4256, %v4257
  %v4259 = vrot.slane %v4124, 5
  %v4260 = vrot.slane %v4259, 4
  %v4261 = vrot.slane %v2238, 5
  %v4262 = vsel %vm4216, %v4260, %v4261
  %v4263 = vrot.slane %v4261, 4
  %v4264 = vrot.slane %v2311, 5
  %v4265 = vsel %vm4216, %v4263, %v4264
  %v4266 = vrot.slane %v4125, 5
  %v4267 = vrot.slane %v4266, 4
  %v4268 = vrot.slane %v2240, 5
  %v4269 = vsel %vm4216, %v4267, %v4268
  %v4270 = vrot.slane %v4268, 4
  %v4271 = vrot.slane %v2312, 5
  %v4272 = vsel %vm4216, %v4270, %v4271
  %v4273 = vrot.slane %v4126, 5
  %v4274 = vrot.slane %v4273, 4
  %v4275 = vrot.slane %v2242, 5
  %v4276 = vsel %vm4216, %v4274, %v4275
  %v4277 = vrot.slane %v4275, 4
  %v4278 = vrot.slane %v2313, 5
  %v4279 = vsel %vm4216, %v4277, %v4278
  %v4280 = vrot.slane %v4127, 5
  %v4281 = vrot.slane %v4280, 4
  %v4282 = vrot.slane %v2244, 5
  %v4283 = vsel %vm4216, %v4281, %v4282
  %v4284 = vrot.slane %v4282, 4
  %v4285 = vrot.slane %v2314, 5
  %v4286 = vsel %vm4216, %v4284, %v4285
  %v4287 = vrot.slane %v4128, 5
  %v4288 = vrot.slane %v4287, 4
  %v4289 = vrot.slane %v2246, 5
  %v4290 = vsel %vm4216, %v4288, %v4289
  %v4291 = vrot.slane %v4289, 4
  %v4292 = vrot.slane %v2315, 5
  %v4293 = vsel %vm4216, %v4291, %v4292
  %v4294 = vrot.slane %v4129, 5
  %v4295 = vrot.slane %v4294, 4
  %v4296 = vrot.slane %v2248, 5
  %v4297 = vsel %vm4216, %v4295, %v4296
  %v4298 = vrot.slane %v4296, 4
  %v4299 = vrot.slane %v2316, 5
  %v4300 = vsel %vm4216, %v4298, %v4299
  %v4301 = vrot.slane %v4130, 5
  %v4302 = vrot.slane %v4301, 4
  %v4303 = vrot.slane %v2250, 5
  %v4304 = vsel %vm4216, %v4302, %v4303
  %v4305 = vrot.slane %v4303, 4
  %v4306 = vrot.slane %v2317, 5
  %v4307 = vsel %vm4216, %v4305, %v4306
  %v4308 = vrot.slane %v4131, 5
  %v4309 = vrot.slane %v4308, 4
  %v4310 = vrot.slane %v2252, 5
  %v4311 = vsel %vm4216, %v4309, %v4310
  %v4312 = vrot.slane %v4310, 4
  %v4313 = vrot.slane %v2318, 5
  %v4314 = vsel %vm4216, %v4312, %v4313
  %v4315 = vrot.slane %v4132, 5
  %v4316 = vrot.slane %v4315, 4
  %v4317 = vrot.slane %v2254, 5
  %v4318 = vsel %vm4216, %v4316, %v4317
  %v4319 = vrot.slane %v4317, 4
  %v4320 = vrot.slane %v2319, 5
  %v4321 = vsel %vm4216, %v4319, %v4320
  %v4322 = vrot.slane %v4133, 5
  %v4323 = vrot.slane %v4322, 4
  %v4324 = vrot.slane %v2256, 5
  %v4325 = vsel %vm4216, %v4323, %v4324
  %v4326 = vrot.slane %v4324, 4
  %v4327 = vrot.slane %v2320, 5
  %v4328 = vsel %vm4216, %v4326, %v4327
  %v4329 = vrot.slane %v4134, 5
  %v4330 = vrot.slane %v4329, 4
  %v4331 = vrot.slane %v2258, 5
  %v4332 = vsel %vm4216, %v4330, %v4331
  %v4333 = vrot.slane %v4331, 4
  %v4334 = vrot.slane %v2321, 5
  %v4335 = vsel %vm4216, %v4333, %v4334
  %v4336 = vrot.slane %v4135, 5
  %v4337 = vrot.slane %v4336, 4
  %v4338 = vrot.slane %v2260, 5
  %v4339 = vsel %vm4216, %v4337, %v4338
  %v4340 = vrot.slane %v4338, 4
  %v4341 = vrot.slane %v2322, 5
  %v4342 = vsel %vm4216, %v4340, %v4341
  %v4343 = vrot.slane %v4136, 5
  %v4344 = vrot.slane %v4343, 4
  %v4345 = vrot.slane %v2262, 5
  %v4346 = vsel %vm4216, %v4344, %v4345
  %v4347 = vrot.slane %v4345, 4
  %v4348 = vrot.slane %v2323, 5
  %v4349 = vsel %vm4216, %v4347, %v4348
  %v4350 = vrot.slane %v4137, 5
  %v4351 = vrot.slane %v4350, 4
  %v4352 = vrot.slane %v2264, 5
  %v4353 = vsel %vm4216, %v4351, %v4352
  %v4354 = vrot.slane %v4352, 4
  %v4355 = vrot.slane %v2324, 5
  %v4356 = vsel %vm4216, %v4354, %v4355
  %v4357 = vrot.slane %v4138, 5
  %v4358 = vrot.slane %v4357, 4
  %v4359 = vrot.slane %v2266, 5
  %v4360 = vsel %vm4216, %v4358, %v4359
  %v4361 = vrot.slane %v4359, 4
  %v4362 = vrot.slane %v2325, 5
  %v4363 = vsel %vm4216, %v4361, %v4362
  %v4364 = vrot.slane %v4139, 5
  %v4365 = vrot.slane %v4364, 4
  %v4366 = vrot.slane %v2268, 5
  %v4367 = vsel %vm4216, %v4365, %v4366
  %v4368 = vrot.slane %v4366, 4
  %v4369 = vrot.slane %v2326, 5
  %v4370 = vsel %vm4216, %v4368, %v4369
  %v4371 = vrot.slane %v4140, 5
  %v4372 = vrot.slane %v4371, 4
  %v4373 = vrot.slane %v2270, 5
  %v4374 = vsel %vm4216, %v4372, %v4373
  %v4375 = vrot.slane %v4373, 4
  %v4376 = vrot.slane %v2327, 5
  %v4377 = vsel %vm4216, %v4375, %v4376
  %v4378 = vrot.slane %v4141, 5
  %v4379 = vrot.slane %v4378, 4
  %v4380 = vrot.slane %v2272, 5
  %v4381 = vsel %vm4216, %v4379, %v4380
  %v4382 = vrot.slane %v4380, 4
  %v4383 = vrot.slane %v2328, 5
  %v4384 = vsel %vm4216, %v4382, %v4383
  %v4385 = vrot.slane %v4142, 5
  %v4386 = vrot.slane %v4385, 4
  %v4387 = vrot.slane %v2274, 5
  %v4388 = vsel %vm4216, %v4386, %v4387
  %v4389 = vrot.slane %v4387, 4
  %v4390 = vrot.slane %v2329, 5
  %v4391 = vsel %vm4216, %v4389, %v4390
  %v4392 = vrot.slane %v4143, 5
  %v4393 = vrot.slane %v4392, 4
  %v4394 = vrot.slane %v2276, 5
  %v4395 = vsel %vm4216, %v4393, %v4394
  %v4396 = vrot.slane %v4394, 4
  %v4397 = vrot.slane %v2330, 5
  %v4398 = vsel %vm4216, %v4396, %v4397
  %v4399 = vrot.slane %v4144, 5
  %v4400 = vrot.slane %v4399, 4
  %v4401 = vrot.slane %v2278, 5
  %v4402 = vsel %vm4216, %v4400, %v4401
  %v4403 = vrot.slane %v4401, 4
  %v4404 = vrot.slane %v2331, 5
  %v4405 = vsel %vm4216, %v4403, %v4404
  %v4406 = vrot.slane %v4145, 5
  %v4407 = vrot.slane %v4406, 4
  %v4408 = vrot.slane %v2280, 5
  %v4409 = vsel %vm4216, %v4407, %v4408
  %v4410 = vrot.slane %v4408, 4
  %v4411 = vrot.slane %v2332, 5
  %v4412 = vsel %vm4216, %v4410, %v4411
  %v4413 = vrot.slane %v4146, 5
  %v4414 = vrot.slane %v4413, 4
  %v4415 = vrot.slane %v2282, 5
  %v4416 = vsel %vm4216, %v4414, %v4415
  %v4417 = vrot.slane %v4415, 4
  %v4418 = vrot.slane %v2333, 5
  %v4419 = vsel %vm4216, %v4417, %v4418
  %v4420 = vrot.slane %v4147, 5
  %v4421 = vrot.slane %v4420, 4
  %v4422 = vrot.slane %v2284, 5
  %v4423 = vsel %vm4216, %v4421, %v4422
  %v4424 = vrot.slane %v4422, 4
  %v4425 = vrot.slane %v2334, 5
  %v4426 = vsel %vm4216, %v4424, %v4425
  %v4427 = vrot.slane %v4148, 5
  %v4428 = vrot.slane %v4427, 4
  %v4429 = vrot.slane %v2286, 5
  %v4430 = vsel %vm4216, %v4428, %v4429
  %v4431 = vrot.slane %v4429, 4
  %v4432 = vrot.slane %v2335, 5
  %v4433 = vsel %vm4216, %v4431, %v4432
  %v4434 = vrot.slane %v4149, 5
  %v4435 = vrot.slane %v4434, 4
  %v4436 = vrot.slane %v2288, 5
  %v4437 = vsel %vm4216, %v4435, %v4436
  %v4438 = vrot.slane %v4436, 4
  %v4439 = vrot.slane %v2336, 5
  %v4440 = vsel %vm4216, %v4438, %v4439
  %v4441 = vld [vmem:[%s4 + $0x80] sm:$0xf]
  %v4442 = vld [vmem:[%s4 + $0x84] sm:$0xf]
  %v4443 = vld [vmem:[%s4 + $0x88] sm:$0xf]
  %v4444 = vld [vmem:[%s4 + $0x8c] sm:$0xf]
  %v4445 = vld [vmem:[%s4 + $0x90] sm:$0xf]
  %v4446 = vld [vmem:[%s4 + $0x94] sm:$0xf]
  %v4447 = vld [vmem:[%s4 + $0x98] sm:$0xf]
  %v4448 = vld [vmem:[%s4 + $0x9c] sm:$0xf]
  %v4449 = vld [vmem:[%s4 + $0xa0] sm:$0xf]
  %v4450 = vld [vmem:[%s4 + $0xa4] sm:$0xf]
  %v4451 = vld [vmem:[%s4 + $0xa8] sm:$0xf]
  %v4452 = vld [vmem:[%s4 + $0xac] sm:$0xf]
  %v4453 = vld [vmem:[%s4 + $0xb0] sm:$0xf]
  %v4454 = vld [vmem:[%s4 + $0xb4] sm:$0xf]
  %v4455 = vld [vmem:[%s4 + $0xb8] sm:$0xf]
  %v4456 = vld [vmem:[%s4 + $0xbc] sm:$0xf]
  %v4457 = vunpack.c.l.b16 %v4220
  %v4458 = vunpack.c.l.b16 %v4223
  %v4459 = vunpack.c.l.b16 %v4227
  %v4460 = vunpack.c.l.b16 %v4230
  %v4461 = vunpack.c.l.b16 %v4234
  %v4462 = vunpack.c.l.b16 %v4237
  %v4463 = vunpack.c.l.b16 %v4241
  %v4464 = vunpack.c.l.b16 %v4244
  %v4465 = vunpack.c.l.b16 %v4248
  %v4466 = vunpack.c.l.b16 %v4251
  %v4467 = vunpack.c.l.b16 %v4255
  %v4468 = vunpack.c.l.b16 %v4258
  %v4469 = vunpack.c.l.b16 %v4262
  %v4470 = vunpack.c.l.b16 %v4265
  %v4471 = vunpack.c.l.b16 %v4269
  %v4472 = vunpack.c.l.b16 %v4272
  %v4473 = vunpack.c.l.b16 %v4276
  %v4474 = vunpack.c.l.b16 %v4279
  %v4475 = vunpack.c.l.b16 %v4283
  %v4476 = vunpack.c.l.b16 %v4286
  %v4477 = vunpack.c.l.b16 %v4290
  %v4478 = vunpack.c.l.b16 %v4293
  %v4479 = vunpack.c.l.b16 %v4297
  %v4480 = vunpack.c.l.b16 %v4300
  %v4481 = vunpack.c.l.b16 %v4304
  %v4482 = vunpack.c.l.b16 %v4307
  %v4483 = vunpack.c.l.b16 %v4311
  %v4484 = vunpack.c.l.b16 %v4314
  %v4485 = vunpack.c.l.b16 %v4318
  %v4486 = vunpack.c.l.b16 %v4321
  %v4487 = vunpack.c.l.b16 %v4325
  %v4488 = vunpack.c.l.b16 %v4328
  %v4489 = vunpack.c.l.b16 %v4332
  %v4490 = vunpack.c.l.b16 %v4335
  %v4491 = vunpack.c.l.b16 %v4339
  %v4492 = vunpack.c.l.b16 %v4342
  %v4493 = vunpack.c.l.b16 %v4346
  %v4494 = vunpack.c.l.b16 %v4349
  %v4495 = vunpack.c.l.b16 %v4353
  %v4496 = vunpack.c.l.b16 %v4356
  %v4497 = vunpack.c.l.b16 %v4360
  %v4498 = vunpack.c.l.b16 %v4363
  %v4499 = vunpack.c.l.b16 %v4367
  %v4500 = vunpack.c.l.b16 %v4370
  %v4501 = vunpack.c.l.b16 %v4374
  %v4502 = vunpack.c.l.b16 %v4377
  %v4503 = vunpack.c.l.b16 %v4381
  %v4504 = vunpack.c.l.b16 %v4384
  %v4505 = vunpack.c.l.b16 %v4388
  %v4506 = vunpack.c.l.b16 %v4391
  %v4507 = vunpack.c.l.b16 %v4395
  %v4508 = vunpack.c.l.b16 %v4398
  %v4509 = vunpack.c.l.b16 %v4402
  %v4510 = vunpack.c.l.b16 %v4405
  %v4511 = vunpack.c.l.b16 %v4409
  %v4512 = vunpack.c.l.b16 %v4412
  %v4513 = vunpack.c.l.b16 %v4416
  %v4514 = vunpack.c.l.b16 %v4419
  %v4515 = vunpack.c.l.b16 %v4423
  %v4516 = vunpack.c.l.b16 %v4426
  %v4517 = vunpack.c.l.b16 %v4430
  %v4518 = vunpack.c.l.b16 %v4433
  %v4519 = vunpack.c.l.b16 %v4437
  %v4520 = vunpack.c.l.b16 %v4440
  %v4521 = vpack.c.b16 %v4458, %v4457
  %v4522 = vpack.c.b16 %v4460, %v4459
  %v4523 = vpack.c.b16 %v4462, %v4461
  %v4524 = vpack.c.b16 %v4464, %v4463
  %v4525 = vpack.c.b16 %v4466, %v4465
  %v4526 = vpack.c.b16 %v4468, %v4467
  %v4527 = vpack.c.b16 %v4470, %v4469
  %v4528 = vpack.c.b16 %v4472, %v4471
  %v4529 = vpack.c.b16 %v4474, %v4473
  %v4530 = vpack.c.b16 %v4476, %v4475
  %v4531 = vpack.c.b16 %v4478, %v4477
  %v4532 = vpack.c.b16 %v4480, %v4479
  %v4533 = vpack.c.b16 %v4482, %v4481
  %v4534 = vpack.c.b16 %v4484, %v4483
  %v4535 = vpack.c.b16 %v4486, %v4485
  %v4536 = vpack.c.b16 %v4488, %v4487
  %v4537 = vpack.c.b16 %v4490, %v4489
  %v4538 = vpack.c.b16 %v4492, %v4491
  %v4539 = vpack.c.b16 %v4494, %v4493
  %v4540 = vpack.c.b16 %v4496, %v4495
  %v4541 = vpack.c.b16 %v4498, %v4497
  %v4542 = vpack.c.b16 %v4500, %v4499
  %v4543 = vpack.c.b16 %v4502, %v4501
  %v4544 = vpack.c.b16 %v4504, %v4503
  %v4545 = vpack.c.b16 %v4506, %v4505
  %v4546 = vpack.c.b16 %v4508, %v4507
  %v4547 = vpack.c.b16 %v4510, %v4509
  %v4548 = vpack.c.b16 %v4512, %v4511
  %v4549 = vpack.c.b16 %v4514, %v4513
  %v4550 = vpack.c.b16 %v4516, %v4515
  %v4551 = vpack.c.b16 %v4518, %v4517
  %v4552 = vpack.c.b16 %v4520, %v4519
  %v4601 = vunpack.c.l.b16 %v4441
  %v4602 = vunpack.c.l.b16 %v4442
  %v4603 = vunpack.c.l.b16 %v4443
  %v4604 = vunpack.c.l.b16 %v4444
  %v4605 = vunpack.c.l.b16 %v4445
  %v4606 = vunpack.c.l.b16 %v4446
  %v4607 = vunpack.c.l.b16 %v4447
  %v4608 = vunpack.c.l.b16 %v4448
  %v4609 = vunpack.c.l.b16 %v4449
  %v4610 = vunpack.c.l.b16 %v4450
  %v4611 = vunpack.c.l.b16 %v4451
  %v4612 = vunpack.c.l.b16 %v4452
  %v4613 = vunpack.c.l.b16 %v4453
  %v4614 = vunpack.c.l.b16 %v4454
  %v4615 = vunpack.c.l.b16 %v4455
  %v4616 = vunpack.c.l.b16 %v4456
  %v4617 = vpack.c.b16 %v4602, %v4601
  %v4618 = vpack.c.b16 %v4604, %v4603
  %v4619 = vpack.c.b16 %v4606, %v4605
  %v4620 = vpack.c.b16 %v4608, %v4607
  %v4621 = vpack.c.b16 %v4610, %v4609
  %v4622 = vpack.c.b16 %v4612, %v4611
  %v4623 = vpack.c.b16 %v4614, %v4613
  %v4624 = vpack.c.b16 %v4616, %v4615
  %4633 = vmatprep.subr.bf16.mxu0 0
  %4634 = vmatpush1.bf16.msra.mxu0 %v4617
  %4635 = vmatprep.subr.bf16.mxu0 0
  %4636 = vmatpush1.bf16.msra.mxu0 %v4618
  %4637 = vmatprep.subr.bf16.mxu0 0
  %4638 = vmatpush1.bf16.msra.mxu0 %v4619
  %4639 = vmatprep.subr.bf16.mxu0 0
  %4640 = vmatpush1.bf16.msra.mxu0 %v4620
  %4641 = vmatprep.subr.bf16.mxu0 0
  %4642 = vmatpush1.bf16.msra.mxu0 %v4621
  %4643 = vmatprep.subr.bf16.mxu0 0
  %4644 = vmatpush1.bf16.msra.mxu0 %v4622
  %4645 = vmatprep.subr.bf16.mxu0 0
  %4646 = vmatpush1.bf16.msra.mxu0 %v4623
  %4647 = vmatprep.subr.bf16.mxu0 0
  %4648 = vmatpush1.bf16.msra.mxu0 %v4624
  %4649 = vmatprep.subr.bf16.mxu0 0
  %4650 = vmatpush1.bf16.msra.mxu0 0
  %4651 = vmatprep.subr.bf16.mxu0 0
  %4652 = vmatpush1.bf16.msra.mxu0 0
  %4653 = vmatprep.subr.bf16.mxu0 0
  %4654 = vmatpush1.bf16.msra.mxu0 0
  %4655 = vmatprep.subr.bf16.mxu0 0
  %4656 = vmatpush1.bf16.msra.mxu0 0
  %4657 = vmatprep.subr.bf16.mxu0 0
  %4658 = vmatpush1.bf16.msra.mxu0 0
  %4659 = vmatprep.subr.bf16.mxu0 0
  %4660 = vmatpush1.bf16.msra.mxu0 0
  %4661 = vmatprep.subr.bf16.mxu0 0
  %4662 = vmatpush1.bf16.msra.mxu0 0
  %4663 = vmatprep.subr.bf16.mxu0 0
  %4664 = vmatpush1.bf16.msra.mxu0 0
  %4665 = vmatprep.mubr.bf16.mxu0 0
  %4666 = vmatmul.mubr.bf16.gmra.mrb[0].mxu0 %v4521
  %v4667 = vpop.f32.mrb[0].mxu0
  %v4668 = vadd.f32 0.0, %v4667
  %v4669 = vpop.f32.mrb[0].mxu0
  %v4670 = vpop.f32.mrb[0].mxu0
  %v4671 = vadd.f32 0.0, %v4670
  %v4672 = vpop.f32.mrb[0].mxu0
  %4673 = vmatprep.mubr.bf16.mxu0 0
  %4674 = vmatmul.mubr.bf16.gmra.mrb[0].mxu0 %v4522
  %v4675 = vpop.f32.mrb[0].mxu0
  %v4676 = vadd.f32 0.0, %v4675
  %v4677 = vpop.f32.mrb[0].mxu0
  %v4678 = vpop.f32.mrb[0].mxu0
  %v4679 = vadd.f32 0.0, %v4678
  %v4680 = vpop.f32.mrb[0].mxu0
  %4681 = vmatprep.mubr.bf16.mxu0 0
  %4682 = vmatmul.mubr.bf16.gmra.mrb[0].mxu0 %v4523
  %v4683 = vpop.f32.mrb[0].mxu0
  %v4684 = vadd.f32 0.0, %v4683
  %v4685 = vpop.f32.mrb[0].mxu0
  %v4686 = vpop.f32.mrb[0].mxu0
  %v4687 = vadd.f32 0.0, %v4686
  %v4688 = vpop.f32.mrb[0].mxu0
  %4689 = vmatprep.mubr.bf16.mxu0 0
  %4690 = vmatmul.mubr.bf16.gmra.mrb[0].mxu0 %v4524
  %v4691 = vpop.f32.mrb[0].mxu0
  %v4692 = vadd.f32 0.0, %v4691
  %v4693 = vpop.f32.mrb[0].mxu0
  %v4694 = vpop.f32.mrb[0].mxu0
  %v4695 = vadd.f32 0.0, %v4694
  %v4696 = vpop.f32.mrb[0].mxu0
  %4697 = vmatprep.mubr.bf16.mxu0 0
  %4698 = vmatmul.mubr.bf16.gmra.mrb[0].mxu0 %v4525
  %v4699 = vpop.f32.mrb[0].mxu0
  %v4700 = vadd.f32 0.0, %v4699
  %v4701 = vpop.f32.mrb[0].mxu0
  %v4702 = vpop.f32.mrb[0].mxu0
  %v4703 = vadd.f32 0.0, %v4702
  %v4704 = vpop.f32.mrb[0].mxu0
  %4705 = vmatprep.mubr.bf16.mxu0 0
  %4706 = vmatmul.mubr.bf16.gmra.mrb[0].mxu0 %v4526
  %v4707 = vpop.f32.mrb[0].mxu0
  %v4708 = vadd.f32 0.0, %v4707
  %v4709 = vpop.f32.mrb[0].mxu0
  %v4710 = vpop.f32.mrb[0].mxu0
  %v4711 = vadd.f32 0.0, %v4710
  %v4712 = vpop.f32.mrb[0].mxu0
  %4713 = vmatprep.mubr.bf16.mxu0 0
  %4714 = vmatmul.mubr.bf16.gmra.mrb[0].mxu0 %v4527
  %v4715 = vpop.f32.mrb[0].mxu0
  %v4716 = vadd.f32 0.0, %v4715
  %v4717 = vpop.f32.mrb[0].mxu0
  %v4718 = vpop.f32.mrb[0].mxu0
  %v4719 = vadd.f32 0.0, %v4718
  %v4720 = vpop.f32.mrb[0].mxu0
  %4721 = vmatprep.mubr.bf16.mxu0 0
  %4722 = vmatmul.mubr.bf16.gmra.mrb[0].mxu0 %v4528
  %v4723 = vpop.f32.mrb[0].mxu0
  %v4724 = vadd.f32 0.0, %v4723
  %v4725 = vpop.f32.mrb[0].mxu0
  %v4726 = vpop.f32.mrb[0].mxu0
  %v4727 = vadd.f32 0.0, %v4726
  %v4728 = vpop.f32.mrb[0].mxu0
  %4729 = vmatprep.mubr.bf16.mxu0 0
  %4730 = vmatmul.mubr.bf16.gmra.mrb[0].mxu0 %v4529
  %v4731 = vpop.f32.mrb[0].mxu0
  %v4732 = vadd.f32 0.0, %v4731
  %v4733 = vpop.f32.mrb[0].mxu0
  %v4734 = vpop.f32.mrb[0].mxu0
  %v4735 = vadd.f32 0.0, %v4734
  %v4736 = vpop.f32.mrb[0].mxu0
  %4737 = vmatprep.mubr.bf16.mxu0 0
  %4738 = vmatmul.mubr.bf16.gmra.mrb[0].mxu0 %v4530
  %v4739 = vpop.f32.mrb[0].mxu0
  %v4740 = vadd.f32 0.0, %v4739
  %v4741 = vpop.f32.mrb[0].mxu0
  %v4742 = vpop.f32.mrb[0].mxu0
  %v4743 = vadd.f32 0.0, %v4742
  %v4744 = vpop.f32.mrb[0].mxu0
  %4745 = vmatprep.mubr.bf16.mxu0 0
  %4746 = vmatmul.mubr.bf16.gmra.mrb[0].mxu0 %v4531
  %v4747 = vpop.f32.mrb[0].mxu0
  %v4748 = vadd.f32 0.0, %v4747
  %v4749 = vpop.f32.mrb[0].mxu0
  %v4750 = vpop.f32.mrb[0].mxu0
  %v4751 = vadd.f32 0.0, %v4750
  %v4752 = vpop.f32.mrb[0].mxu0
  %4753 = vmatprep.mubr.bf16.mxu0 0
  %4754 = vmatmul.mubr.bf16.gmra.mrb[0].mxu0 %v4532
  %v4755 = vpop.f32.mrb[0].mxu0
  %v4756 = vadd.f32 0.0, %v4755
  %v4757 = vpop.f32.mrb[0].mxu0
  %v4758 = vpop.f32.mrb[0].mxu0
  %v4759 = vadd.f32 0.0, %v4758
  %v4760 = vpop.f32.mrb[0].mxu0
  %4761 = vmatprep.mubr.bf16.mxu0 0
  %4762 = vmatmul.mubr.bf16.gmra.mrb[0].mxu0 %v4533
  %v4763 = vpop.f32.mrb[0].mxu0
  %v4764 = vadd.f32 0.0, %v4763
  %v4765 = vpop.f32.mrb[0].mxu0
  %v4766 = vpop.f32.mrb[0].mxu0
  %v4767 = vadd.f32 0.0, %v4766
  %v4768 = vpop.f32.mrb[0].mxu0
  %4769 = vmatprep.mubr.bf16.mxu0 0
  %4770 = vmatmul.mubr.bf16.gmra.mrb[0].mxu0 %v4534
  %v4771 = vpop.f32.mrb[0].mxu0
  %v4772 = vadd.f32 0.0, %v4771
  %v4773 = vpop.f32.mrb[0].mxu0
  %v4774 = vpop.f32.mrb[0].mxu0
  %v4775 = vadd.f32 0.0, %v4774
  %v4776 = vpop.f32.mrb[0].mxu0
  %4777 = vmatprep.mubr.bf16.mxu0 0
  %4778 = vmatmul.mubr.bf16.gmra.mrb[0].mxu0 %v4535
  %v4779 = vpop.f32.mrb[0].mxu0
  %v4780 = vadd.f32 0.0, %v4779
  %v4781 = vpop.f32.mrb[0].mxu0
  %v4782 = vpop.f32.mrb[0].mxu0
  %v4783 = vadd.f32 0.0, %v4782
  %v4784 = vpop.f32.mrb[0].mxu0
  %4785 = vmatprep.mubr.bf16.mxu0 0
  %4786 = vmatmul.mubr.bf16.gmra.mrb[0].mxu0 %v4536
  %v4787 = vpop.f32.mrb[0].mxu0
  %v4788 = vadd.f32 0.0, %v4787
  %v4789 = vpop.f32.mrb[0].mxu0
  %v4790 = vpop.f32.mrb[0].mxu0
  %v4791 = vadd.f32 0.0, %v4790
  %v4792 = vpop.f32.mrb[0].mxu0
  %4793 = vmatprep.mubr.bf16.mxu0 0
  %4794 = vmatmul.mubr.bf16.gmra.mrb[0].mxu0 %v4537
  %v4795 = vpop.f32.mrb[0].mxu0
  %v4796 = vadd.f32 0.0, %v4795
  %v4797 = vpop.f32.mrb[0].mxu0
  %v4798 = vpop.f32.mrb[0].mxu0
  %v4799 = vadd.f32 0.0, %v4798
  %v4800 = vpop.f32.mrb[0].mxu0
  %4801 = vmatprep.mubr.bf16.mxu0 0
  %4802 = vmatmul.mubr.bf16.gmra.mrb[0].mxu0 %v4538
  %v4803 = vpop.f32.mrb[0].mxu0
  %v4804 = vadd.f32 0.0, %v4803
  %v4805 = vpop.f32.mrb[0].mxu0
  %v4806 = vpop.f32.mrb[0].mxu0
  %v4807 = vadd.f32 0.0, %v4806
  %v4808 = vpop.f32.mrb[0].mxu0
  %4809 = vmatprep.mubr.bf16.mxu0 0
  %4810 = vmatmul.mubr.bf16.gmra.mrb[0].mxu0 %v4539
  %v4811 = vpop.f32.mrb[0].mxu0
  %v4812 = vadd.f32 0.0, %v4811
  %v4813 = vpop.f32.mrb[0].mxu0
  %v4814 = vpop.f32.mrb[0].mxu0
  %v4815 = vadd.f32 0.0, %v4814
  %v4816 = vpop.f32.mrb[0].mxu0
  %4817 = vmatprep.mubr.bf16.mxu0 0
  %4818 = vmatmul.mubr.bf16.gmra.mrb[0].mxu0 %v4540
  %v4819 = vpop.f32.mrb[0].mxu0
  %v4820 = vadd.f32 0.0, %v4819
  %v4821 = vpop.f32.mrb[0].mxu0
  %v4822 = vpop.f32.mrb[0].mxu0
  %v4823 = vadd.f32 0.0, %v4822
  %v4824 = vpop.f32.mrb[0].mxu0
  %4825 = vmatprep.mubr.bf16.mxu0 0
  %4826 = vmatmul.mubr.bf16.gmra.mrb[0].mxu0 %v4541
  %v4827 = vpop.f32.mrb[0].mxu0
  %v4828 = vadd.f32 0.0, %v4827
  %v4829 = vpop.f32.mrb[0].mxu0
  %v4830 = vpop.f32.mrb[0].mxu0
  %v4831 = vadd.f32 0.0, %v4830
  %v4832 = vpop.f32.mrb[0].mxu0
  %4833 = vmatprep.mubr.bf16.mxu0 0
  %4834 = vmatmul.mubr.bf16.gmra.mrb[0].mxu0 %v4542
  %v4835 = vpop.f32.mrb[0].mxu0
  %v4836 = vadd.f32 0.0, %v4835
  %v4837 = vpop.f32.mrb[0].mxu0
  %v4838 = vpop.f32.mrb[0].mxu0
  %v4839 = vadd.f32 0.0, %v4838
  %v4840 = vpop.f32.mrb[0].mxu0
  %4841 = vmatprep.mubr.bf16.mxu0 0
  %4842 = vmatmul.mubr.bf16.gmra.mrb[0].mxu0 %v4543
  %v4843 = vpop.f32.mrb[0].mxu0
  %v4844 = vadd.f32 0.0, %v4843
  %v4845 = vpop.f32.mrb[0].mxu0
  %v4846 = vpop.f32.mrb[0].mxu0
  %v4847 = vadd.f32 0.0, %v4846
  %v4848 = vpop.f32.mrb[0].mxu0
  %4849 = vmatprep.mubr.bf16.mxu0 0
  %4850 = vmatmul.mubr.bf16.gmra.mrb[0].mxu0 %v4544
  %v4851 = vpop.f32.mrb[0].mxu0
  %v4852 = vadd.f32 0.0, %v4851
  %v4853 = vpop.f32.mrb[0].mxu0
  %v4854 = vpop.f32.mrb[0].mxu0
  %v4855 = vadd.f32 0.0, %v4854
  %v4856 = vpop.f32.mrb[0].mxu0
  %4857 = vmatprep.mubr.bf16.mxu0 0
  %4858 = vmatmul.mubr.bf16.gmra.mrb[0].mxu0 %v4545
  %v4859 = vpop.f32.mrb[0].mxu0
  %v4860 = vadd.f32 0.0, %v4859
  %v4861 = vpop.f32.mrb[0].mxu0
  %v4862 = vpop.f32.mrb[0].mxu0
  %v4863 = vadd.f32 0.0, %v4862
  %v4864 = vpop.f32.mrb[0].mxu0
  %4865 = vmatprep.mubr.bf16.mxu0 0
  %4866 = vmatmul.mubr.bf16.gmra.mrb[0].mxu0 %v4546
  %v4867 = vpop.f32.mrb[0].mxu0
  %v4868 = vadd.f32 0.0, %v4867
  %v4869 = vpop.f32.mrb[0].mxu0
  %v4870 = vpop.f32.mrb[0].mxu0
  %v4871 = vadd.f32 0.0, %v4870
  %v4872 = vpop.f32.mrb[0].mxu0
  %4873 = vmatprep.mubr.bf16.mxu0 0
  %4874 = vmatmul.mubr.bf16.gmra.mrb[0].mxu0 %v4547
  %v4875 = vpop.f32.mrb[0].mxu0
  %v4876 = vadd.f32 0.0, %v4875
  %v4877 = vpop.f32.mrb[0].mxu0
  %v4878 = vpop.f32.mrb[0].mxu0
  %v4879 = vadd.f32 0.0, %v4878
  %v4880 = vpop.f32.mrb[0].mxu0
  %4881 = vmatprep.mubr.bf16.mxu0 0
  %4882 = vmatmul.mubr.bf16.gmra.mrb[0].mxu0 %v4548
  %v4883 = vpop.f32.mrb[0].mxu0
  %v4884 = vadd.f32 0.0, %v4883
  %v4885 = vpop.f32.mrb[0].mxu0
  %v4886 = vpop.f32.mrb[0].mxu0
  %v4887 = vadd.f32 0.0, %v4886
  %v4888 = vpop.f32.mrb[0].mxu0
  %4889 = vmatprep.mubr.bf16.mxu0 0
  %4890 = vmatmul.mubr.bf16.gmra.mrb[0].mxu0 %v4549
  %v4891 = vpop.f32.mrb[0].mxu0
  %v4892 = vadd.f32 0.0, %v4891
  %v4893 = vpop.f32.mrb[0].mxu0
  %v4894 = vpop.f32.mrb[0].mxu0
  %v4895 = vadd.f32 0.0, %v4894
  %v4896 = vpop.f32.mrb[0].mxu0
  %4897 = vmatprep.mubr.bf16.mxu0 0
  %4898 = vmatmul.mubr.bf16.gmra.mrb[0].mxu0 %v4550
  %v4899 = vpop.f32.mrb[0].mxu0
  %v4900 = vadd.f32 0.0, %v4899
  %v4901 = vpop.f32.mrb[0].mxu0
  %v4902 = vpop.f32.mrb[0].mxu0
  %v4903 = vadd.f32 0.0, %v4902
  %v4904 = vpop.f32.mrb[0].mxu0
  %4905 = vmatprep.mubr.bf16.mxu0 0
  %4906 = vmatmul.mubr.bf16.gmra.mrb[0].mxu0 %v4551
  %v4907 = vpop.f32.mrb[0].mxu0
  %v4908 = vadd.f32 0.0, %v4907
  %v4909 = vpop.f32.mrb[0].mxu0
  %v4910 = vpop.f32.mrb[0].mxu0
  %v4911 = vadd.f32 0.0, %v4910
  %v4912 = vpop.f32.mrb[0].mxu0
  %4913 = vmatprep.mubr.bf16.mxu0 0
  %4914 = vmatmul.mubr.bf16.gmra.mrb[0].mxu0 %v4552
  %v4915 = vpop.f32.mrb[0].mxu0
  %v4916 = vadd.f32 0.0, %v4915
  %v4917 = vpop.f32.mrb[0].mxu0
  %v4918 = vpop.f32.mrb[0].mxu0
  %v4919 = vadd.f32 0.0, %v4918
  %v4920 = vpop.f32.mrb[0].mxu0
  %4921 = vdwg.mxu0
  %v4922 = vadd.f32 %v3864, %v4668
  %v4923 = vadd.f32 %v3867, %v4671
  %v4924 = vadd.f32 %v3872, %v4676
  %v4925 = vadd.f32 %v3875, %v4679
  %v4926 = vadd.f32 %v3880, %v4684
  %v4927 = vadd.f32 %v3883, %v4687
  %v4928 = vadd.f32 %v3888, %v4692
  %v4929 = vadd.f32 %v3891, %v4695
  %v4930 = vadd.f32 %v3896, %v4700
  %v4931 = vadd.f32 %v3899, %v4703
  %v4932 = vadd.f32 %v3904, %v4708
  %v4933 = vadd.f32 %v3907, %v4711
  %v4934 = vadd.f32 %v3912, %v4716
  %v4935 = vadd.f32 %v3915, %v4719
  %v4936 = vadd.f32 %v3920, %v4724
  %v4937 = vadd.f32 %v3923, %v4727
  %v4938 = vadd.f32 %v3928, %v4732
  %v4939 = vadd.f32 %v3931, %v4735
  %v4940 = vadd.f32 %v3936, %v4740
  %v4941 = vadd.f32 %v3939, %v4743
  %v4942 = vadd.f32 %v3944, %v4748
  %v4943 = vadd.f32 %v3947, %v4751
  %v4944 = vadd.f32 %v3952, %v4756
  %v4945 = vadd.f32 %v3955, %v4759
  %v4946 = vadd.f32 %v3960, %v4764
  %v4947 = vadd.f32 %v3963, %v4767
  %v4948 = vadd.f32 %v3968, %v4772
  %v4949 = vadd.f32 %v3971, %v4775
  %v4950 = vadd.f32 %v3976, %v4780
  %v4951 = vadd.f32 %v3979, %v4783
  %v4952 = vadd.f32 %v3984, %v4788
  %v4953 = vadd.f32 %v3987, %v4791
  %v4954 = vadd.f32 %v3992, %v4796
  %v4955 = vadd.f32 %v3995, %v4799
  %v4956 = vadd.f32 %v4000, %v4804
  %v4957 = vadd.f32 %v4003, %v4807
  %v4958 = vadd.f32 %v4008, %v4812
  %v4959 = vadd.f32 %v4011, %v4815
  %v4960 = vadd.f32 %v4016, %v4820
  %v4961 = vadd.f32 %v4019, %v4823
  %v4962 = vadd.f32 %v4024, %v4828
  %v4963 = vadd.f32 %v4027, %v4831
  %v4964 = vadd.f32 %v4032, %v4836
  %v4965 = vadd.f32 %v4035, %v4839
  %v4966 = vadd.f32 %v4040, %v4844
  %v4967 = vadd.f32 %v4043, %v4847
  %v4968 = vadd.f32 %v4048, %v4852
  %v4969 = vadd.f32 %v4051, %v4855
  %v4970 = vadd.f32 %v4056, %v4860
  %v4971 = vadd.f32 %v4059, %v4863
  %v4972 = vadd.f32 %v4064, %v4868
  %v4973 = vadd.f32 %v4067, %v4871
  %v4974 = vadd.f32 %v4072, %v4876
  %v4975 = vadd.f32 %v4075, %v4879
  %v4976 = vadd.f32 %v4080, %v4884
  %v4977 = vadd.f32 %v4083, %v4887
  %v4978 = vadd.f32 %v4088, %v4892
  %v4979 = vadd.f32 %v4091, %v4895
  %v4980 = vadd.f32 %v4096, %v4900
  %v4981 = vadd.f32 %v4099, %v4903
  %v4982 = vadd.f32 %v4104, %v4908
  %v4983 = vadd.f32 %v4107, %v4911
  %v4984 = vadd.f32 %v4112, %v4916
  %v4985 = vadd.f32 %v4115, %v4919
  %v4986 = vld [vmem:[%s1995] sm:$0xf]
  %v4987 = vld [vmem:[%s1995 + $0x4] sm:$0xf]
  %v4988 = vld [vmem:[%s1995 + $0xc] sm:$0xf]
  %v4989 = vld [vmem:[%s1995 + $0x10] sm:$0xf]
  %v4990 = vld [vmem:[%s1995 + $0x18] sm:$0xf]
  %v4991 = vld [vmem:[%s1995 + $0x1c] sm:$0xf]
  %v4992 = vld [vmem:[%s1995 + $0x24] sm:$0xf]
  %v4993 = vld [vmem:[%s1995 + $0x28] sm:$0xf]
  %v4994 = vld [vmem:[%s1995 + $0x30] sm:$0xf]
  %v4995 = vld [vmem:[%s1995 + $0x34] sm:$0xf]
  %v4996 = vld [vmem:[%s1995 + $0x3c] sm:$0xf]
  %v4997 = vld [vmem:[%s1995 + $0x40] sm:$0xf]
  %v4998 = vld [vmem:[%s1995 + $0x48] sm:$0xf]
  %v4999 = vld [vmem:[%s1995 + $0x4c] sm:$0xf]
  %v5000 = vld [vmem:[%s1995 + $0x54] sm:$0xf]
  %v5001 = vld [vmem:[%s1995 + $0x58] sm:$0xf]
  %v5002 = vld [vmem:[%s1995 + $0x60] sm:$0xf]
  %v5003 = vld [vmem:[%s1995 + $0x64] sm:$0xf]
  %v5004 = vld [vmem:[%s1995 + $0x6c] sm:$0xf]
  %v5005 = vld [vmem:[%s1995 + $0x70] sm:$0xf]
  %v5006 = vld [vmem:[%s1995 + $0x78] sm:$0xf]
  %v5007 = vld [vmem:[%s1995 + $0x7c] sm:$0xf]
  %v5008 = vld [vmem:[%s1995 + $0x84] sm:$0xf]
  %v5009 = vld [vmem:[%s1995 + $0x88] sm:$0xf]
  %v5010 = vld [vmem:[%s1995 + $0x90] sm:$0xf]
  %v5011 = vld [vmem:[%s1995 + $0x94] sm:$0xf]
  %v5012 = vld [vmem:[%s1995 + $0x9c] sm:$0xf]
  %v5013 = vld [vmem:[%s1995 + $0xa0] sm:$0xf]
  %v5014 = vld [vmem:[%s1995 + $0xa8] sm:$0xf]
  %v5015 = vld [vmem:[%s1995 + $0xac] sm:$0xf]
  %v5016 = vld [vmem:[%s1995 + $0xb4] sm:$0xf]
  %v5017 = vld [vmem:[%s1995 + $0xb8] sm:$0xf]
  %v5018 = vld [vmem:[%s1995 + $0xd8] sm:$0xf]
  %v5019 = vld [vmem:[%s1995 + $0xdc] sm:$0xf]
  %v5020 = vld [vmem:[%s1995 + $0xe4] sm:$0xf]
  %v5021 = vld [vmem:[%s1995 + $0xe8] sm:$0xf]
  %v5022 = vld [vmem:[%s1995 + $0xf0] sm:$0xf]
  %v5023 = vld [vmem:[%s1995 + $0xf4] sm:$0xf]
  %v5024 = vld [vmem:[%s1995 + $0xfc] sm:$0xf]
  %v5025 = vld [vmem:[%s1995 + $0x100] sm:$0xf]
  %v5026 = vld [vmem:[%s1995 + $0x108] sm:$0xf]
  %v5027 = vld [vmem:[%s1995 + $0x10c] sm:$0xf]
  %v5028 = vld [vmem:[%s1995 + $0x114] sm:$0xf]
  %v5029 = vld [vmem:[%s1995 + $0x118] sm:$0xf]
  %v5030 = vld [vmem:[%s1995 + $0x120] sm:$0xf]
  %v5031 = vld [vmem:[%s1995 + $0x124] sm:$0xf]
  %v5032 = vld [vmem:[%s1995 + $0x12c] sm:$0xf]
  %v5033 = vld [vmem:[%s1995 + $0x130] sm:$0xf]
  %v5034 = vld [vmem:[%s1995 + $0x138] sm:$0xf]
  %v5035 = vld [vmem:[%s1995 + $0x13c] sm:$0xf]
  %v5036 = vld [vmem:[%s1995 + $0x144] sm:$0xf]
  %v5037 = vld [vmem:[%s1995 + $0x148] sm:$0xf]
  %v5038 = vld [vmem:[%s1995 + $0x150] sm:$0xf]
  %v5039 = vld [vmem:[%s1995 + $0x154] sm:$0xf]
  %v5040 = vld [vmem:[%s1995 + $0x15c] sm:$0xf]
  %v5041 = vld [vmem:[%s1995 + $0x160] sm:$0xf]
  %v5042 = vld [vmem:[%s1995 + $0x168] sm:$0xf]
  %v5043 = vld [vmem:[%s1995 + $0x16c] sm:$0xf]
  %v5044 = vld [vmem:[%s1995 + $0x174] sm:$0xf]
  %v5045 = vld [vmem:[%s1995 + $0x178] sm:$0xf]
  %v5046 = vld [vmem:[%s1995 + $0x180] sm:$0xf]
  %v5047 = vld [vmem:[%s1995 + $0x184] sm:$0xf]
  %v5048 = vld [vmem:[%s1995 + $0x18c] sm:$0xf]
  %v5049 = vld [vmem:[%s1995 + $0x190] sm:$0xf]
  %v5050 = vld [vmem:[%s4 + $0xc0] sm:$0xf]
  %v5051 = vld [vmem:[%s4 + $0xc4] sm:$0xf]
  %v5052 = vld [vmem:[%s4 + $0xc8] sm:$0xf]
  %v5053 = vld [vmem:[%s4 + $0xcc] sm:$0xf]
  %v5054 = vld [vmem:[%s4 + $0xd0] sm:$0xf]
  %v5055 = vld [vmem:[%s4 + $0xd4] sm:$0xf]
  %v5056 = vld [vmem:[%s4 + $0xd8] sm:$0xf]
  %v5057 = vld [vmem:[%s4 + $0xdc] sm:$0xf]
  %v5058 = vld [vmem:[%s4 + $0xe0] sm:$0xf]
  %v5059 = vld [vmem:[%s4 + $0xe4] sm:$0xf]
  %v5060 = vld [vmem:[%s4 + $0xe8] sm:$0xf]
  %v5061 = vld [vmem:[%s4 + $0xec] sm:$0xf]
  %v5062 = vld [vmem:[%s4 + $0xf0] sm:$0xf]
  %v5063 = vld [vmem:[%s4 + $0xf4] sm:$0xf]
  %v5064 = vld [vmem:[%s4 + $0xf8] sm:$0xf]
  %v5065 = vld [vmem:[%s4 + $0xfc] sm:$0xf]
  %v5130 = vunpack.c.l.b16 %v4986
  %v5131 = vunpack.c.l.b16 %v4987
  %v5132 = vunpack.c.l.b16 %v4988
  %v5133 = vunpack.c.l.b16 %v4989
  %v5134 = vunpack.c.l.b16 %v4990
  %v5135 = vunpack.c.l.b16 %v4991
  %v5136 = vunpack.c.l.b16 %v4992
  %v5137 = vunpack.c.l.b16 %v4993
  %v5138 = vunpack.c.l.b16 %v4994
  %v5139 = vunpack.c.l.b16 %v4995
  %v5140 = vunpack.c.l.b16 %v4996
  %v5141 = vunpack.c.l.b16 %v4997
  %v5142 = vunpack.c.l.b16 %v4998
  %v5143 = vunpack.c.l.b16 %v4999
  %v5144 = vunpack.c.l.b16 %v5000
  %v5145 = vunpack.c.l.b16 %v5001
  %v5146 = vunpack.c.l.b16 %v5002
  %v5147 = vunpack.c.l.b16 %v5003
  %v5148 = vunpack.c.l.b16 %v5004
  %v5149 = vunpack.c.l.b16 %v5005
  %v5150 = vunpack.c.l.b16 %v5006
  %v5151 = vunpack.c.l.b16 %v5007
  %v5152 = vunpack.c.l.b16 %v5008
  %v5153 = vunpack.c.l.b16 %v5009
  %v5154 = vunpack.c.l.b16 %v5010
  %v5155 = vunpack.c.l.b16 %v5011
  %v5156 = vunpack.c.l.b16 %v5012
  %v5157 = vunpack.c.l.b16 %v5013
  %v5158 = vunpack.c.l.b16 %v5014
  %v5159 = vunpack.c.l.b16 %v5015
  %v5160 = vunpack.c.l.b16 %v5016
  %v5161 = vunpack.c.l.b16 %v5017
  %v5162 = vunpack.c.l.b16 %v5018
  %v5163 = vunpack.c.l.b16 %v5019
  %v5164 = vunpack.c.l.b16 %v5020
  %v5165 = vunpack.c.l.b16 %v5021
  %v5166 = vunpack.c.l.b16 %v5022
  %v5167 = vunpack.c.l.b16 %v5023
  %v5168 = vunpack.c.l.b16 %v5024
  %v5169 = vunpack.c.l.b16 %v5025
  %v5170 = vunpack.c.l.b16 %v5026
  %v5171 = vunpack.c.l.b16 %v5027
  %v5172 = vunpack.c.l.b16 %v5028
  %v5173 = vunpack.c.l.b16 %v5029
  %v5174 = vunpack.c.l.b16 %v5030
  %v5175 = vunpack.c.l.b16 %v5031
  %v5176 = vunpack.c.l.b16 %v5032
  %v5177 = vunpack.c.l.b16 %v5033
  %v5178 = vunpack.c.l.b16 %v5034
  %v5179 = vunpack.c.l.b16 %v5035
  %v5180 = vunpack.c.l.b16 %v5036
  %v5181 = vunpack.c.l.b16 %v5037
  %v5182 = vunpack.c.l.b16 %v5038
  %v5183 = vunpack.c.l.b16 %v5039
  %v5184 = vunpack.c.l.b16 %v5040
  %v5185 = vunpack.c.l.b16 %v5041
  %v5186 = vunpack.c.l.b16 %v5042
  %v5187 = vunpack.c.l.b16 %v5043
  %v5188 = vunpack.c.l.b16 %v5044
  %v5189 = vunpack.c.l.b16 %v5045
  %v5190 = vunpack.c.l.b16 %v5046
  %v5191 = vunpack.c.l.b16 %v5047
  %v5192 = vunpack.c.l.b16 %v5048
  %v5193 = vunpack.c.l.b16 %v5049
  %v5194 = vpack.c.b16 %v5131, %v5130
  %v5195 = vpack.c.b16 %v5133, %v5132
  %v5196 = vpack.c.b16 %v5135, %v5134
  %v5197 = vpack.c.b16 %v5137, %v5136
  %v5198 = vpack.c.b16 %v5139, %v5138
  %v5199 = vpack.c.b16 %v5141, %v5140
  %v5200 = vpack.c.b16 %v5143, %v5142
  %v5201 = vpack.c.b16 %v5145, %v5144
  %v5202 = vpack.c.b16 %v5147, %v5146
  %v5203 = vpack.c.b16 %v5149, %v5148
  %v5204 = vpack.c.b16 %v5151, %v5150
  %v5205 = vpack.c.b16 %v5153, %v5152
  %v5206 = vpack.c.b16 %v5155, %v5154
  %v5207 = vpack.c.b16 %v5157, %v5156
  %v5208 = vpack.c.b16 %v5159, %v5158
  %v5209 = vpack.c.b16 %v5161, %v5160
  %v5210 = vpack.c.b16 %v5163, %v5162
  %v5211 = vpack.c.b16 %v5165, %v5164
  %v5212 = vpack.c.b16 %v5167, %v5166
  %v5213 = vpack.c.b16 %v5169, %v5168
  %v5214 = vpack.c.b16 %v5171, %v5170
  %v5215 = vpack.c.b16 %v5173, %v5172
  %v5216 = vpack.c.b16 %v5175, %v5174
  %v5217 = vpack.c.b16 %v5177, %v5176
  %v5218 = vpack.c.b16 %v5179, %v5178
  %v5219 = vpack.c.b16 %v5181, %v5180
  %v5220 = vpack.c.b16 %v5183, %v5182
  %v5221 = vpack.c.b16 %v5185, %v5184
  %v5222 = vpack.c.b16 %v5187, %v5186
  %v5223 = vpack.c.b16 %v5189, %v5188
  %v5224 = vpack.c.b16 %v5191, %v5190
  %v5225 = vpack.c.b16 %v5193, %v5192
  %v5274 = vunpack.c.l.b16 %v5050
  %v5275 = vunpack.c.l.b16 %v5051
  %v5276 = vunpack.c.l.b16 %v5052
  %v5277 = vunpack.c.l.b16 %v5053
  %v5278 = vunpack.c.l.b16 %v5054
  %v5279 = vunpack.c.l.b16 %v5055
  %v5280 = vunpack.c.l.b16 %v5056
  %v5281 = vunpack.c.l.b16 %v5057
  %v5282 = vunpack.c.l.b16 %v5058
  %v5283 = vunpack.c.l.b16 %v5059
  %v5284 = vunpack.c.l.b16 %v5060
  %v5285 = vunpack.c.l.b16 %v5061
  %v5286 = vunpack.c.l.b16 %v5062
  %v5287 = vunpack.c.l.b16 %v5063
  %v5288 = vunpack.c.l.b16 %v5064
  %v5289 = vunpack.c.l.b16 %v5065
  %v5290 = vpack.c.b16 %v5275, %v5274
  %v5291 = vpack.c.b16 %v5277, %v5276
  %v5292 = vpack.c.b16 %v5279, %v5278
  %v5293 = vpack.c.b16 %v5281, %v5280
  %v5294 = vpack.c.b16 %v5283, %v5282
  %v5295 = vpack.c.b16 %v5285, %v5284
  %v5296 = vpack.c.b16 %v5287, %v5286
  %v5297 = vpack.c.b16 %v5289, %v5288
  %5306 = vmatprep.subr.bf16.mxu0 0
  %5307 = vmatpush1.bf16.msra.mxu0 %v5290
  %5308 = vmatprep.subr.bf16.mxu0 0
  %5309 = vmatpush1.bf16.msra.mxu0 %v5291
  %5310 = vmatprep.subr.bf16.mxu0 0
  %5311 = vmatpush1.bf16.msra.mxu0 %v5292
  %5312 = vmatprep.subr.bf16.mxu0 0
  %5313 = vmatpush1.bf16.msra.mxu0 %v5293
  %5314 = vmatprep.subr.bf16.mxu0 0
  %5315 = vmatpush1.bf16.msra.mxu0 %v5294
  %5316 = vmatprep.subr.bf16.mxu0 0
  %5317 = vmatpush1.bf16.msra.mxu0 %v5295
  %5318 = vmatprep.subr.bf16.mxu0 0
  %5319 = vmatpush1.bf16.msra.mxu0 %v5296
  %5320 = vmatprep.subr.bf16.mxu0 0
  %5321 = vmatpush1.bf16.msra.mxu0 %v5297
  %5322 = vmatprep.subr.bf16.mxu0 0
  %5323 = vmatpush1.bf16.msra.mxu0 0
  %5324 = vmatprep.subr.bf16.mxu0 0
  %5325 = vmatpush1.bf16.msra.mxu0 0
  %5326 = vmatprep.subr.bf16.mxu0 0
  %5327 = vmatpush1.bf16.msra.mxu0 0
  %5328 = vmatprep.subr.bf16.mxu0 0
  %5329 = vmatpush1.bf16.msra.mxu0 0
  %5330 = vmatprep.subr.bf16.mxu0 0
  %5331 = vmatpush1.bf16.msra.mxu0 0
  %5332 = vmatprep.subr.bf16.mxu0 0
  %5333 = vmatpush1.bf16.msra.mxu0 0
  %5334 = vmatprep.subr.bf16.mxu0 0
  %5335 = vmatpush1.bf16.msra.mxu0 0
  %5336 = vmatprep.subr.bf16.mxu0 0
  %5337 = vmatpush1.bf16.msra.mxu0 0
  %5338 = vmatprep.mubr.bf16.mxu0 0
  %5339 = vmatmul.mubr.bf16.gmra.mrb[0].mxu0 %v5194
  %v5340 = vpop.f32.mrb[0].mxu0
  %v5341 = vadd.f32 0.0, %v5340
  %v5342 = vpop.f32.mrb[0].mxu0
  %v5343 = vpop.f32.mrb[0].mxu0
  %v5344 = vadd.f32 0.0, %v5343
  %v5345 = vpop.f32.mrb[0].mxu0
  %5346 = vmatprep.mubr.bf16.mxu0 0
  %5347 = vmatmul.mubr.bf16.gmra.mrb[0].mxu0 %v5195
  %v5348 = vpop.f32.mrb[0].mxu0
  %v5349 = vadd.f32 0.0, %v5348
  %v5350 = vpop.f32.mrb[0].mxu0
  %v5351 = vpop.f32.mrb[0].mxu0
  %v5352 = vadd.f32 0.0, %v5351
  %v5353 = vpop.f32.mrb[0].mxu0
  %5354 = vmatprep.mubr.bf16.mxu0 0
  %5355 = vmatmul.mubr.bf16.gmra.mrb[0].mxu0 %v5196
  %v5356 = vpop.f32.mrb[0].mxu0
  %v5357 = vadd.f32 0.0, %v5356
  %v5358 = vpop.f32.mrb[0].mxu0
  %v5359 = vpop.f32.mrb[0].mxu0
  %v5360 = vadd.f32 0.0, %v5359
  %v5361 = vpop.f32.mrb[0].mxu0
  %5362 = vmatprep.mubr.bf16.mxu0 0
  %5363 = vmatmul.mubr.bf16.gmra.mrb[0].mxu0 %v5197
  %v5364 = vpop.f32.mrb[0].mxu0
  %v5365 = vadd.f32 0.0, %v5364
  %v5366 = vpop.f32.mrb[0].mxu0
  %v5367 = vpop.f32.mrb[0].mxu0
  %v5368 = vadd.f32 0.0, %v5367
  %v5369 = vpop.f32.mrb[0].mxu0
  %5370 = vmatprep.mubr.bf16.mxu0 0
  %5371 = vmatmul.mubr.bf16.gmra.mrb[0].mxu0 %v5198
  %v5372 = vpop.f32.mrb[0].mxu0
  %v5373 = vadd.f32 0.0, %v5372
  %v5374 = vpop.f32.mrb[0].mxu0
  %v5375 = vpop.f32.mrb[0].mxu0
  %v5376 = vadd.f32 0.0, %v5375
  %v5377 = vpop.f32.mrb[0].mxu0
  %5378 = vmatprep.mubr.bf16.mxu0 0
  %5379 = vmatmul.mubr.bf16.gmra.mrb[0].mxu0 %v5199
  %v5380 = vpop.f32.mrb[0].mxu0
  %v5381 = vadd.f32 0.0, %v5380
  %v5382 = vpop.f32.mrb[0].mxu0
  %v5383 = vpop.f32.mrb[0].mxu0
  %v5384 = vadd.f32 0.0, %v5383
  %v5385 = vpop.f32.mrb[0].mxu0
  %5386 = vmatprep.mubr.bf16.mxu0 0
  %5387 = vmatmul.mubr.bf16.gmra.mrb[0].mxu0 %v5200
  %v5388 = vpop.f32.mrb[0].mxu0
  %v5389 = vadd.f32 0.0, %v5388
  %v5390 = vpop.f32.mrb[0].mxu0
  %v5391 = vpop.f32.mrb[0].mxu0
  %v5392 = vadd.f32 0.0, %v5391
  %v5393 = vpop.f32.mrb[0].mxu0
  %5394 = vmatprep.mubr.bf16.mxu0 0
  %5395 = vmatmul.mubr.bf16.gmra.mrb[0].mxu0 %v5201
  %v5396 = vpop.f32.mrb[0].mxu0
  %v5397 = vadd.f32 0.0, %v5396
  %v5398 = vpop.f32.mrb[0].mxu0
  %v5399 = vpop.f32.mrb[0].mxu0
  %v5400 = vadd.f32 0.0, %v5399
  %v5401 = vpop.f32.mrb[0].mxu0
  %5402 = vmatprep.mubr.bf16.mxu0 0
  %5403 = vmatmul.mubr.bf16.gmra.mrb[0].mxu0 %v5202
  %v5404 = vpop.f32.mrb[0].mxu0
  %v5405 = vadd.f32 0.0, %v5404
  %v5406 = vpop.f32.mrb[0].mxu0
  %v5407 = vpop.f32.mrb[0].mxu0
  %v5408 = vadd.f32 0.0, %v5407
  %v5409 = vpop.f32.mrb[0].mxu0
  %5410 = vmatprep.mubr.bf16.mxu0 0
  %5411 = vmatmul.mubr.bf16.gmra.mrb[0].mxu0 %v5203
  %v5412 = vpop.f32.mrb[0].mxu0
  %v5413 = vadd.f32 0.0, %v5412
  %v5414 = vpop.f32.mrb[0].mxu0
  %v5415 = vpop.f32.mrb[0].mxu0
  %v5416 = vadd.f32 0.0, %v5415
  %v5417 = vpop.f32.mrb[0].mxu0
  %5418 = vmatprep.mubr.bf16.mxu0 0
  %5419 = vmatmul.mubr.bf16.gmra.mrb[0].mxu0 %v5204
  %v5420 = vpop.f32.mrb[0].mxu0
  %v5421 = vadd.f32 0.0, %v5420
  %v5422 = vpop.f32.mrb[0].mxu0
  %v5423 = vpop.f32.mrb[0].mxu0
  %v5424 = vadd.f32 0.0, %v5423
  %v5425 = vpop.f32.mrb[0].mxu0
  %5426 = vmatprep.mubr.bf16.mxu0 0
  %5427 = vmatmul.mubr.bf16.gmra.mrb[0].mxu0 %v5205
  %v5428 = vpop.f32.mrb[0].mxu0
  %v5429 = vadd.f32 0.0, %v5428
  %v5430 = vpop.f32.mrb[0].mxu0
  %v5431 = vpop.f32.mrb[0].mxu0
  %v5432 = vadd.f32 0.0, %v5431
  %v5433 = vpop.f32.mrb[0].mxu0
  %5434 = vmatprep.mubr.bf16.mxu0 0
  %5435 = vmatmul.mubr.bf16.gmra.mrb[0].mxu0 %v5206
  %v5436 = vpop.f32.mrb[0].mxu0
  %v5437 = vadd.f32 0.0, %v5436
  %v5438 = vpop.f32.mrb[0].mxu0
  %v5439 = vpop.f32.mrb[0].mxu0
  %v5440 = vadd.f32 0.0, %v5439
  %v5441 = vpop.f32.mrb[0].mxu0
  %5442 = vmatprep.mubr.bf16.mxu0 0
  %5443 = vmatmul.mubr.bf16.gmra.mrb[0].mxu0 %v5207
  %v5444 = vpop.f32.mrb[0].mxu0
  %v5445 = vadd.f32 0.0, %v5444
  %v5446 = vpop.f32.mrb[0].mxu0
  %v5447 = vpop.f32.mrb[0].mxu0
  %v5448 = vadd.f32 0.0, %v5447
  %v5449 = vpop.f32.mrb[0].mxu0
  %5450 = vmatprep.mubr.bf16.mxu0 0
  %5451 = vmatmul.mubr.bf16.gmra.mrb[0].mxu0 %v5208
  %v5452 = vpop.f32.mrb[0].mxu0
  %v5453 = vadd.f32 0.0, %v5452
  %v5454 = vpop.f32.mrb[0].mxu0
  %v5455 = vpop.f32.mrb[0].mxu0
  %v5456 = vadd.f32 0.0, %v5455
  %v5457 = vpop.f32.mrb[0].mxu0
  %5458 = vmatprep.mubr.bf16.mxu0 0
  %5459 = vmatmul.mubr.bf16.gmra.mrb[0].mxu0 %v5209
  %v5460 = vpop.f32.mrb[0].mxu0
  %v5461 = vadd.f32 0.0, %v5460
  %v5462 = vpop.f32.mrb[0].mxu0
  %v5463 = vpop.f32.mrb[0].mxu0
  %v5464 = vadd.f32 0.0, %v5463
  %v5465 = vpop.f32.mrb[0].mxu0
  %5466 = vmatprep.mubr.bf16.mxu0 0
  %5467 = vmatmul.mubr.bf16.gmra.mrb[0].mxu0 %v5210
  %v5468 = vpop.f32.mrb[0].mxu0
  %v5469 = vadd.f32 0.0, %v5468
  %v5470 = vpop.f32.mrb[0].mxu0
  %v5471 = vpop.f32.mrb[0].mxu0
  %v5472 = vadd.f32 0.0, %v5471
  %v5473 = vpop.f32.mrb[0].mxu0
  %5474 = vmatprep.mubr.bf16.mxu0 0
  %5475 = vmatmul.mubr.bf16.gmra.mrb[0].mxu0 %v5211
  %v5476 = vpop.f32.mrb[0].mxu0
  %v5477 = vadd.f32 0.0, %v5476
  %v5478 = vpop.f32.mrb[0].mxu0
  %v5479 = vpop.f32.mrb[0].mxu0
  %v5480 = vadd.f32 0.0, %v5479
  %v5481 = vpop.f32.mrb[0].mxu0
  %5482 = vmatprep.mubr.bf16.mxu0 0
  %5483 = vmatmul.mubr.bf16.gmra.mrb[0].mxu0 %v5212
  %v5484 = vpop.f32.mrb[0].mxu0
  %v5485 = vadd.f32 0.0, %v5484
  %v5486 = vpop.f32.mrb[0].mxu0
  %v5487 = vpop.f32.mrb[0].mxu0
  %v5488 = vadd.f32 0.0, %v5487
  %v5489 = vpop.f32.mrb[0].mxu0
  %5490 = vmatprep.mubr.bf16.mxu0 0
  %5491 = vmatmul.mubr.bf16.gmra.mrb[0].mxu0 %v5213
  %v5492 = vpop.f32.mrb[0].mxu0
  %v5493 = vadd.f32 0.0, %v5492
  %v5494 = vpop.f32.mrb[0].mxu0
  %v5495 = vpop.f32.mrb[0].mxu0
  %v5496 = vadd.f32 0.0, %v5495
  %v5497 = vpop.f32.mrb[0].mxu0
  %5498 = vmatprep.mubr.bf16.mxu0 0
  %5499 = vmatmul.mubr.bf16.gmra.mrb[0].mxu0 %v5214
  %v5500 = vpop.f32.mrb[0].mxu0
  %v5501 = vadd.f32 0.0, %v5500
  %v5502 = vpop.f32.mrb[0].mxu0
  %v5503 = vpop.f32.mrb[0].mxu0
  %v5504 = vadd.f32 0.0, %v5503
  %v5505 = vpop.f32.mrb[0].mxu0
  %5506 = vmatprep.mubr.bf16.mxu0 0
  %5507 = vmatmul.mubr.bf16.gmra.mrb[0].mxu0 %v5215
  %v5508 = vpop.f32.mrb[0].mxu0
  %v5509 = vadd.f32 0.0, %v5508
  %v5510 = vpop.f32.mrb[0].mxu0
  %v5511 = vpop.f32.mrb[0].mxu0
  %v5512 = vadd.f32 0.0, %v5511
  %v5513 = vpop.f32.mrb[0].mxu0
  %5514 = vmatprep.mubr.bf16.mxu0 0
  %5515 = vmatmul.mubr.bf16.gmra.mrb[0].mxu0 %v5216
  %v5516 = vpop.f32.mrb[0].mxu0
  %v5517 = vadd.f32 0.0, %v5516
  %v5518 = vpop.f32.mrb[0].mxu0
  %v5519 = vpop.f32.mrb[0].mxu0
  %v5520 = vadd.f32 0.0, %v5519
  %v5521 = vpop.f32.mrb[0].mxu0
  %5522 = vmatprep.mubr.bf16.mxu0 0
  %5523 = vmatmul.mubr.bf16.gmra.mrb[0].mxu0 %v5217
  %v5524 = vpop.f32.mrb[0].mxu0
  %v5525 = vadd.f32 0.0, %v5524
  %v5526 = vpop.f32.mrb[0].mxu0
  %v5527 = vpop.f32.mrb[0].mxu0
  %v5528 = vadd.f32 0.0, %v5527
  %v5529 = vpop.f32.mrb[0].mxu0
  %5530 = vmatprep.mubr.bf16.mxu0 0
  %5531 = vmatmul.mubr.bf16.gmra.mrb[0].mxu0 %v5218
  %v5532 = vpop.f32.mrb[0].mxu0
  %v5533 = vadd.f32 0.0, %v5532
  %v5534 = vpop.f32.mrb[0].mxu0
  %v5535 = vpop.f32.mrb[0].mxu0
  %v5536 = vadd.f32 0.0, %v5535
  %v5537 = vpop.f32.mrb[0].mxu0
  %5538 = vmatprep.mubr.bf16.mxu0 0
  %5539 = vmatmul.mubr.bf16.gmra.mrb[0].mxu0 %v5219
  %v5540 = vpop.f32.mrb[0].mxu0
  %v5541 = vadd.f32 0.0, %v5540
  %v5542 = vpop.f32.mrb[0].mxu0
  %v5543 = vpop.f32.mrb[0].mxu0
  %v5544 = vadd.f32 0.0, %v5543
  %v5545 = vpop.f32.mrb[0].mxu0
  %5546 = vmatprep.mubr.bf16.mxu0 0
  %5547 = vmatmul.mubr.bf16.gmra.mrb[0].mxu0 %v5220
  %v5548 = vpop.f32.mrb[0].mxu0
  %v5549 = vadd.f32 0.0, %v5548
  %v5550 = vpop.f32.mrb[0].mxu0
  %v5551 = vpop.f32.mrb[0].mxu0
  %v5552 = vadd.f32 0.0, %v5551
  %v5553 = vpop.f32.mrb[0].mxu0
  %5554 = vmatprep.mubr.bf16.mxu0 0
  %5555 = vmatmul.mubr.bf16.gmra.mrb[0].mxu0 %v5221
  %v5556 = vpop.f32.mrb[0].mxu0
  %v5557 = vadd.f32 0.0, %v5556
  %v5558 = vpop.f32.mrb[0].mxu0
  %v5559 = vpop.f32.mrb[0].mxu0
  %v5560 = vadd.f32 0.0, %v5559
  %v5561 = vpop.f32.mrb[0].mxu0
  %5562 = vmatprep.mubr.bf16.mxu0 0
  %5563 = vmatmul.mubr.bf16.gmra.mrb[0].mxu0 %v5222
  %v5564 = vpop.f32.mrb[0].mxu0
  %v5565 = vadd.f32 0.0, %v5564
  %v5566 = vpop.f32.mrb[0].mxu0
  %v5567 = vpop.f32.mrb[0].mxu0
  %v5568 = vadd.f32 0.0, %v5567
  %v5569 = vpop.f32.mrb[0].mxu0
  %5570 = vmatprep.mubr.bf16.mxu0 0
  %5571 = vmatmul.mubr.bf16.gmra.mrb[0].mxu0 %v5223
  %v5572 = vpop.f32.mrb[0].mxu0
  %v5573 = vadd.f32 0.0, %v5572
  %v5574 = vpop.f32.mrb[0].mxu0
  %v5575 = vpop.f32.mrb[0].mxu0
  %v5576 = vadd.f32 0.0, %v5575
  %v5577 = vpop.f32.mrb[0].mxu0
  %5578 = vmatprep.mubr.bf16.mxu0 0
  %5579 = vmatmul.mubr.bf16.gmra.mrb[0].mxu0 %v5224
  %v5580 = vpop.f32.mrb[0].mxu0
  %v5581 = vadd.f32 0.0, %v5580
  %v5582 = vpop.f32.mrb[0].mxu0
  %v5583 = vpop.f32.mrb[0].mxu0
  %v5584 = vadd.f32 0.0, %v5583
  %v5585 = vpop.f32.mrb[0].mxu0
  %5586 = vmatprep.mubr.bf16.mxu0 0
  %5587 = vmatmul.mubr.bf16.gmra.mrb[0].mxu0 %v5225
  %v5588 = vpop.f32.mrb[0].mxu0
  %v5589 = vadd.f32 0.0, %v5588
  %v5590 = vpop.f32.mrb[0].mxu0
  %v5591 = vpop.f32.mrb[0].mxu0
  %v5592 = vadd.f32 0.0, %v5591
  %v5593 = vpop.f32.mrb[0].mxu0
  %5594 = vdwg.mxu0
  %v5595 = vadd.f32 %v4922, %v5341
  %v5596 = vadd.f32 %v4923, %v5344
  %v5597 = vadd.f32 %v4924, %v5349
  %v5598 = vadd.f32 %v4925, %v5352
  %v5599 = vadd.f32 %v4926, %v5357
  %v5600 = vadd.f32 %v4927, %v5360
  %v5601 = vadd.f32 %v4928, %v5365
  %v5602 = vadd.f32 %v4929, %v5368
  %v5603 = vadd.f32 %v4930, %v5373
  %v5604 = vadd.f32 %v4931, %v5376
  %v5605 = vadd.f32 %v4932, %v5381
  %v5606 = vadd.f32 %v4933, %v5384
  %v5607 = vadd.f32 %v4934, %v5389
  %v5608 = vadd.f32 %v4935, %v5392
  %v5609 = vadd.f32 %v4936, %v5397
  %v5610 = vadd.f32 %v4937, %v5400
  %v5611 = vadd.f32 %v4938, %v5405
  %v5612 = vadd.f32 %v4939, %v5408
  %v5613 = vadd.f32 %v4940, %v5413
  %v5614 = vadd.f32 %v4941, %v5416
  %v5615 = vadd.f32 %v4942, %v5421
  %v5616 = vadd.f32 %v4943, %v5424
  %v5617 = vadd.f32 %v4944, %v5429
  %v5618 = vadd.f32 %v4945, %v5432
  %v5619 = vadd.f32 %v4946, %v5437
  %v5620 = vadd.f32 %v4947, %v5440
  %v5621 = vadd.f32 %v4948, %v5445
  %v5622 = vadd.f32 %v4949, %v5448
  %v5623 = vadd.f32 %v4950, %v5453
  %v5624 = vadd.f32 %v4951, %v5456
  %v5625 = vadd.f32 %v4952, %v5461
  %v5626 = vadd.f32 %v4953, %v5464
  %v5627 = vadd.f32 %v4954, %v5469
  %v5628 = vadd.f32 %v4955, %v5472
  %v5629 = vadd.f32 %v4956, %v5477
  %v5630 = vadd.f32 %v4957, %v5480
  %v5631 = vadd.f32 %v4958, %v5485
  %v5632 = vadd.f32 %v4959, %v5488
  %v5633 = vadd.f32 %v4960, %v5493
  %v5634 = vadd.f32 %v4961, %v5496
  %v5635 = vadd.f32 %v4962, %v5501
  %v5636 = vadd.f32 %v4963, %v5504
  %v5637 = vadd.f32 %v4964, %v5509
  %v5638 = vadd.f32 %v4965, %v5512
  %v5639 = vadd.f32 %v4966, %v5517
  %v5640 = vadd.f32 %v4967, %v5520
  %v5641 = vadd.f32 %v4968, %v5525
  %v5642 = vadd.f32 %v4969, %v5528
  %v5643 = vadd.f32 %v4970, %v5533
  %v5644 = vadd.f32 %v4971, %v5536
  %v5645 = vadd.f32 %v4972, %v5541
  %v5646 = vadd.f32 %v4973, %v5544
  %v5647 = vadd.f32 %v4974, %v5549
  %v5648 = vadd.f32 %v4975, %v5552
  %v5649 = vadd.f32 %v4976, %v5557
  %v5650 = vadd.f32 %v4977, %v5560
  %v5651 = vadd.f32 %v4978, %v5565
  %v5652 = vadd.f32 %v4979, %v5568
  %v5653 = vadd.f32 %v4980, %v5573
  %v5654 = vadd.f32 %v4981, %v5576
  %v5655 = vadd.f32 %v4982, %v5581
  %v5656 = vadd.f32 %v4983, %v5584
  %v5657 = vadd.f32 %v4984, %v5589
  %v5658 = vadd.f32 %v4985, %v5592
  %v5659 = vld [vmem:[%s1995] sm:$0xf]
  %v5660 = vld [vmem:[%s1995 + $0x4] sm:$0xf]
  %v5661 = vld [vmem:[%s1995 + $0x8] sm:$0x1]
  %v5662 = vld [vmem:[%s1995 + $0xc] sm:$0xf]
  %v5663 = vld [vmem:[%s1995 + $0x10] sm:$0xf]
  %v5664 = vld [vmem:[%s1995 + $0x14] sm:$0x1]
  %v5665 = vld [vmem:[%s1995 + $0x18] sm:$0xf]
  %v5666 = vld [vmem:[%s1995 + $0x1c] sm:$0xf]
  %v5667 = vld [vmem:[%s1995 + $0x20] sm:$0x1]
  %v5668 = vld [vmem:[%s1995 + $0x24] sm:$0xf]
  %v5669 = vld [vmem:[%s1995 + $0x28] sm:$0xf]
  %v5670 = vld [vmem:[%s1995 + $0x2c] sm:$0x1]
  %v5671 = vld [vmem:[%s1995 + $0x30] sm:$0xf]
  %v5672 = vld [vmem:[%s1995 + $0x34] sm:$0xf]
  %v5673 = vld [vmem:[%s1995 + $0x38] sm:$0x1]
  %v5674 = vld [vmem:[%s1995 + $0x3c] sm:$0xf]
  %v5675 = vld [vmem:[%s1995 + $0x40] sm:$0xf]
  %v5676 = vld [vmem:[%s1995 + $0x44] sm:$0x1]
  %v5677 = vld [vmem:[%s1995 + $0x48] sm:$0xf]
  %v5678 = vld [vmem:[%s1995 + $0x4c] sm:$0xf]
  %v5679 = vld [vmem:[%s1995 + $0x50] sm:$0x1]
  %v5680 = vld [vmem:[%s1995 + $0x54] sm:$0xf]
  %v5681 = vld [vmem:[%s1995 + $0x58] sm:$0xf]
  %v5682 = vld [vmem:[%s1995 + $0x5c] sm:$0x1]
  %v5683 = vld [vmem:[%s1995 + $0x60] sm:$0xf]
  %v5684 = vld [vmem:[%s1995 + $0x64] sm:$0xf]
  %v5685 = vld [vmem:[%s1995 + $0x68] sm:$0x1]
  %v5686 = vld [vmem:[%s1995 + $0x6c] sm:$0xf]
  %v5687 = vld [vmem:[%s1995 + $0x70] sm:$0xf]
  %v5688 = vld [vmem:[%s1995 + $0x74] sm:$0x1]
  %v5689 = vld [vmem:[%s1995 + $0x78] sm:$0xf]
  %v5690 = vld [vmem:[%s1995 + $0x7c] sm:$0xf]
  %v5691 = vld [vmem:[%s1995 + $0x80] sm:$0x1]
  %v5692 = vld [vmem:[%s1995 + $0x84] sm:$0xf]
  %v5693 = vld [vmem:[%s1995 + $0x88] sm:$0xf]
  %v5694 = vld [vmem:[%s1995 + $0x8c] sm:$0x1]
  %v5695 = vld [vmem:[%s1995 + $0x90] sm:$0xf]
  %v5696 = vld [vmem:[%s1995 + $0x94] sm:$0xf]
  %v5697 = vld [vmem:[%s1995 + $0x98] sm:$0x1]
  %v5698 = vld [vmem:[%s1995 + $0x9c] sm:$0xf]
  %v5699 = vld [vmem:[%s1995 + $0xa0] sm:$0xf]
  %v5700 = vld [vmem:[%s1995 + $0xa4] sm:$0x1]
  %v5701 = vld [vmem:[%s1995 + $0xa8] sm:$0xf]
  %v5702 = vld [vmem:[%s1995 + $0xac] sm:$0xf]
  %v5703 = vld [vmem:[%s1995 + $0xb0] sm:$0x1]
  %v5704 = vld [vmem:[%s1995 + $0xb4] sm:$0xf]
  %v5705 = vld [vmem:[%s1995 + $0xb8] sm:$0xf]
  %v5706 = vld [vmem:[%s1995 + $0xbc] sm:$0x1]
  %v5707 = vld [vmem:[%s1995 + $0xd8] sm:$0xf]
  %v5708 = vld [vmem:[%s1995 + $0xdc] sm:$0xf]
  %v5709 = vld [vmem:[%s1995 + $0xe0] sm:$0x1]
  %v5710 = vld [vmem:[%s1995 + $0xe4] sm:$0xf]
  %v5711 = vld [vmem:[%s1995 + $0xe8] sm:$0xf]
  %v5712 = vld [vmem:[%s1995 + $0xec] sm:$0x1]
  %v5713 = vld [vmem:[%s1995 + $0xf0] sm:$0xf]
  %v5714 = vld [vmem:[%s1995 + $0xf4] sm:$0xf]
  %v5715 = vld [vmem:[%s1995 + $0xf8] sm:$0x1]
  %v5716 = vld [vmem:[%s1995 + $0xfc] sm:$0xf]
  %v5717 = vld [vmem:[%s1995 + $0x100] sm:$0xf]
  %v5718 = vld [vmem:[%s1995 + $0x104] sm:$0x1]
  %v5719 = vld [vmem:[%s1995 + $0x108] sm:$0xf]
  %v5720 = vld [vmem:[%s1995 + $0x10c] sm:$0xf]
  %v5721 = vld [vmem:[%s1995 + $0x110] sm:$0x1]
  %v5722 = vld [vmem:[%s1995 + $0x114] sm:$0xf]
  %v5723 = vld [vmem:[%s1995 + $0x118] sm:$0xf]
  %v5724 = vld [vmem:[%s1995 + $0x11c] sm:$0x1]
  %v5725 = vld [vmem:[%s1995 + $0x120] sm:$0xf]
  %v5726 = vld [vmem:[%s1995 + $0x124] sm:$0xf]
  %v5727 = vld [vmem:[%s1995 + $0x128] sm:$0x1]
  %v5728 = vld [vmem:[%s1995 + $0x12c] sm:$0xf]
  %v5729 = vld [vmem:[%s1995 + $0x130] sm:$0xf]
  %v5730 = vld [vmem:[%s1995 + $0x134] sm:$0x1]
  %v5731 = vld [vmem:[%s1995 + $0x138] sm:$0xf]
  %v5732 = vld [vmem:[%s1995 + $0x13c] sm:$0xf]
  %v5733 = vld [vmem:[%s1995 + $0x140] sm:$0x1]
  %v5734 = vld [vmem:[%s1995 + $0x144] sm:$0xf]
  %v5735 = vld [vmem:[%s1995 + $0x148] sm:$0xf]
  %v5736 = vld [vmem:[%s1995 + $0x14c] sm:$0x1]
  %v5737 = vld [vmem:[%s1995 + $0x150] sm:$0xf]
  %v5738 = vld [vmem:[%s1995 + $0x154] sm:$0xf]
  %v5739 = vld [vmem:[%s1995 + $0x158] sm:$0x1]
  %v5740 = vld [vmem:[%s1995 + $0x15c] sm:$0xf]
  %v5741 = vld [vmem:[%s1995 + $0x160] sm:$0xf]
  %v5742 = vld [vmem:[%s1995 + $0x164] sm:$0x1]
  %v5743 = vld [vmem:[%s1995 + $0x168] sm:$0xf]
  %v5744 = vld [vmem:[%s1995 + $0x16c] sm:$0xf]
  %v5745 = vld [vmem:[%s1995 + $0x170] sm:$0x1]
  %v5746 = vld [vmem:[%s1995 + $0x174] sm:$0xf]
  %v5747 = vld [vmem:[%s1995 + $0x178] sm:$0xf]
  %v5748 = vld [vmem:[%s1995 + $0x17c] sm:$0x1]
  %v5749 = vld [vmem:[%s1995 + $0x180] sm:$0xf]
  %v5750 = vld [vmem:[%s1995 + $0x184] sm:$0xf]
  %v5751 = vld [vmem:[%s1995 + $0x188] sm:$0x1]
  %v5752 = vld [vmem:[%s1995 + $0x18c] sm:$0xf]
  %v5753 = vld [vmem:[%s1995 + $0x190] sm:$0xf]
  %v5754 = vld [vmem:[%s1995 + $0x194] sm:$0x1]
  %v5756 = vshrl.u32 %v5659, 16
  %v5758 = vrot.slane %v5756, 4
  %v5759 = vshll.u32 %v5659, 16
  %v5761 = vrot.slane %v5759, 5
  %v5762 = vor.u32 %v5758, %v5761
  %v5763 = vrot.slane %v5762, 4
  %v5765 = vshll.u32 %v5660, 16
  %v5767 = vrot.slane %v5765, 5
  %v5768 = vsel %vm2339, %v5763, %v5767
  %v5769 = vshrl.u32 %v5660, 16
  %v5771 = vrot.slane %v5769, 4
  %v5772 = vor.u32 %v5771, %v5767
  %v5773 = vrot.slane %v5772, 4
  %v5775 = vshll.u32 %v5661, 16
  %v5777 = vrot.slane %v5775, 5
  %v5778 = vsel %vm2339, %v5773, %v5777
  %v5780 = vshrl.u32 %v5662, 16
  %v5782 = vrot.slane %v5780, 4
  %v5783 = vshll.u32 %v5662, 16
  %v5785 = vrot.slane %v5783, 5
  %v5786 = vor.u32 %v5782, %v5785
  %v5787 = vrot.slane %v5786, 4
  %v5789 = vshll.u32 %v5663, 16
  %v5791 = vrot.slane %v5789, 5
  %v5792 = vsel %vm2339, %v5787, %v5791
  %v5793 = vshrl.u32 %v5663, 16
  %v5795 = vrot.slane %v5793, 4
  %v5796 = vor.u32 %v5795, %v5791
  %v5797 = vrot.slane %v5796, 4
  %v5799 = vshll.u32 %v5664, 16
  %v5801 = vrot.slane %v5799, 5
  %v5802 = vsel %vm2339, %v5797, %v5801
  %v5804 = vshrl.u32 %v5665, 16
  %v5806 = vrot.slane %v5804, 4
  %v5807 = vshll.u32 %v5665, 16
  %v5809 = vrot.slane %v5807, 5
  %v5810 = vor.u32 %v5806, %v5809
  %v5811 = vrot.slane %v5810, 4
  %v5813 = vshll.u32 %v5666, 16
  %v5815 = vrot.slane %v5813, 5
  %v5816 = vsel %vm2339, %v5811, %v5815
  %v5817 = vshrl.u32 %v5666, 16
  %v5819 = vrot.slane %v5817, 4
  %v5820 = vor.u32 %v5819, %v5815
  %v5821 = vrot.slane %v5820, 4
  %v5823 = vshll.u32 %v5667, 16
  %v5825 = vrot.slane %v5823, 5
  %v5826 = vsel %vm2339, %v5821, %v5825
  %v5828 = vshrl.u32 %v5668, 16
  %v5830 = vrot.slane %v5828, 4
  %v5831 = vshll.u32 %v5668, 16
  %v5833 = vrot.slane %v5831, 5
  %v5834 = vor.u32 %v5830, %v5833
  %v5835 = vrot.slane %v5834, 4
  %v5837 = vshll.u32 %v5669, 16
  %v5839 = vrot.slane %v5837, 5
  %v5840 = vsel %vm2339, %v5835, %v5839
  %v5841 = vshrl.u32 %v5669, 16
  %v5843 = vrot.slane %v5841, 4
  %v5844 = vor.u32 %v5843, %v5839
  %v5845 = vrot.slane %v5844, 4
  %v5847 = vshll.u32 %v5670, 16
  %v5849 = vrot.slane %v5847, 5
  %v5850 = vsel %vm2339, %v5845, %v5849
  %v5852 = vshrl.u32 %v5671, 16
  %v5854 = vrot.slane %v5852, 4
  %v5855 = vshll.u32 %v5671, 16
  %v5857 = vrot.slane %v5855, 5
  %v5858 = vor.u32 %v5854, %v5857
  %v5859 = vrot.slane %v5858, 4
  %v5861 = vshll.u32 %v5672, 16
  %v5863 = vrot.slane %v5861, 5
  %v5864 = vsel %vm2339, %v5859, %v5863
  %v5865 = vshrl.u32 %v5672, 16
  %v5867 = vrot.slane %v5865, 4
  %v5868 = vor.u32 %v5867, %v5863
  %v5869 = vrot.slane %v5868, 4
  %v5871 = vshll.u32 %v5673, 16
  %v5873 = vrot.slane %v5871, 5
  %v5874 = vsel %vm2339, %v5869, %v5873
  %v5876 = vshrl.u32 %v5674, 16
  %v5878 = vrot.slane %v5876, 4
  %v5879 = vshll.u32 %v5674, 16
  %v5881 = vrot.slane %v5879, 5
  %v5882 = vor.u32 %v5878, %v5881
  %v5883 = vrot.slane %v5882, 4
  %v5885 = vshll.u32 %v5675, 16
  %v5887 = vrot.slane %v5885, 5
  %v5888 = vsel %vm2339, %v5883, %v5887
  %v5889 = vshrl.u32 %v5675, 16
  %v5891 = vrot.slane %v5889, 4
  %v5892 = vor.u32 %v5891, %v5887
  %v5893 = vrot.slane %v5892, 4
  %v5895 = vshll.u32 %v5676, 16
  %v5897 = vrot.slane %v5895, 5
  %v5898 = vsel %vm2339, %v5893, %v5897
  %v5900 = vshrl.u32 %v5677, 16
  %v5902 = vrot.slane %v5900, 4
  %v5903 = vshll.u32 %v5677, 16
  %v5905 = vrot.slane %v5903, 5
  %v5906 = vor.u32 %v5902, %v5905
  %v5907 = vrot.slane %v5906, 4
  %v5909 = vshll.u32 %v5678, 16
  %v5911 = vrot.slane %v5909, 5
  %v5912 = vsel %vm2339, %v5907, %v5911
  %v5913 = vshrl.u32 %v5678, 16
  %v5915 = vrot.slane %v5913, 4
  %v5916 = vor.u32 %v5915, %v5911
  %v5917 = vrot.slane %v5916, 4
  %v5919 = vshll.u32 %v5679, 16
  %v5921 = vrot.slane %v5919, 5
  %v5922 = vsel %vm2339, %v5917, %v5921
  %v5924 = vshrl.u32 %v5680, 16
  %v5926 = vrot.slane %v5924, 4
  %v5927 = vshll.u32 %v5680, 16
  %v5929 = vrot.slane %v5927, 5
  %v5930 = vor.u32 %v5926, %v5929
  %v5931 = vrot.slane %v5930, 4
  %v5933 = vshll.u32 %v5681, 16
  %v5935 = vrot.slane %v5933, 5
  %v5936 = vsel %vm2339, %v5931, %v5935
  %v5937 = vshrl.u32 %v5681, 16
  %v5939 = vrot.slane %v5937, 4
  %v5940 = vor.u32 %v5939, %v5935
  %v5941 = vrot.slane %v5940, 4
  %v5943 = vshll.u32 %v5682, 16
  %v5945 = vrot.slane %v5943, 5
  %v5946 = vsel %vm2339, %v5941, %v5945
  %v5948 = vshrl.u32 %v5683, 16
  %v5950 = vrot.slane %v5948, 4
  %v5951 = vshll.u32 %v5683, 16
  %v5953 = vrot.slane %v5951, 5
  %v5954 = vor.u32 %v5950, %v5953
  %v5955 = vrot.slane %v5954, 4
  %v5957 = vshll.u32 %v5684, 16
  %v5959 = vrot.slane %v5957, 5
  %v5960 = vsel %vm2339, %v5955, %v5959
  %v5961 = vshrl.u32 %v5684, 16
  %v5963 = vrot.slane %v5961, 4
  %v5964 = vor.u32 %v5963, %v5959
  %v5965 = vrot.slane %v5964, 4
  %v5967 = vshll.u32 %v5685, 16
  %v5969 = vrot.slane %v5967, 5
  %v5970 = vsel %vm2339, %v5965, %v5969
  %v5972 = vshrl.u32 %v5686, 16
  %v5974 = vrot.slane %v5972, 4
  %v5975 = vshll.u32 %v5686, 16
  %v5977 = vrot.slane %v5975, 5
  %v5978 = vor.u32 %v5974, %v5977
  %v5979 = vrot.slane %v5978, 4
  %v5981 = vshll.u32 %v5687, 16
  %v5983 = vrot.slane %v5981, 5
  %v5984 = vsel %vm2339, %v5979, %v5983
  %v5985 = vshrl.u32 %v5687, 16
  %v5987 = vrot.slane %v5985, 4
  %v5988 = vor.u32 %v5987, %v5983
  %v5989 = vrot.slane %v5988, 4
  %v5991 = vshll.u32 %v5688, 16
  %v5993 = vrot.slane %v5991, 5
  %v5994 = vsel %vm2339, %v5989, %v5993
  %v5996 = vshrl.u32 %v5689, 16
  %v5998 = vrot.slane %v5996, 4
  %v5999 = vshll.u32 %v5689, 16
  %v6001 = vrot.slane %v5999, 5
  %v6002 = vor.u32 %v5998, %v6001
  %v6003 = vrot.slane %v6002, 4
  %v6005 = vshll.u32 %v5690, 16
  %v6007 = vrot.slane %v6005, 5
  %v6008 = vsel %vm2339, %v6003, %v6007
  %v6009 = vshrl.u32 %v5690, 16
  %v6011 = vrot.slane %v6009, 4
  %v6012 = vor.u32 %v6011, %v6007
  %v6013 = vrot.slane %v6012, 4
  %v6015 = vshll.u32 %v5691, 16
  %v6017 = vrot.slane %v6015, 5
  %v6018 = vsel %vm2339, %v6013, %v6017
  %v6020 = vshrl.u32 %v5692, 16
  %v6022 = vrot.slane %v6020, 4
  %v6023 = vshll.u32 %v5692, 16
  %v6025 = vrot.slane %v6023, 5
  %v6026 = vor.u32 %v6022, %v6025
  %v6027 = vrot.slane %v6026, 4
  %v6029 = vshll.u32 %v5693, 16
  %v6031 = vrot.slane %v6029, 5
  %v6032 = vsel %vm2339, %v6027, %v6031
  %v6033 = vshrl.u32 %v5693, 16
  %v6035 = vrot.slane %v6033, 4
  %v6036 = vor.u32 %v6035, %v6031
  %v6037 = vrot.slane %v6036, 4
  %v6039 = vshll.u32 %v5694, 16
  %v6041 = vrot.slane %v6039, 5
  %v6042 = vsel %vm2339, %v6037, %v6041
  %v6044 = vshrl.u32 %v5695, 16
  %v6046 = vrot.slane %v6044, 4
  %v6047 = vshll.u32 %v5695, 16
  %v6049 = vrot.slane %v6047, 5
  %v6050 = vor.u32 %v6046, %v6049
  %v6051 = vrot.slane %v6050, 4
  %v6053 = vshll.u32 %v5696, 16
  %v6055 = vrot.slane %v6053, 5
  %v6056 = vsel %vm2339, %v6051, %v6055
  %v6057 = vshrl.u32 %v5696, 16
  %v6059 = vrot.slane %v6057, 4
  %v6060 = vor.u32 %v6059, %v6055
  %v6061 = vrot.slane %v6060, 4
  %v6063 = vshll.u32 %v5697, 16
  %v6065 = vrot.slane %v6063, 5
  %v6066 = vsel %vm2339, %v6061, %v6065
  %v6068 = vshrl.u32 %v5698, 16
  %v6070 = vrot.slane %v6068, 4
  %v6071 = vshll.u32 %v5698, 16
  %v6073 = vrot.slane %v6071, 5
  %v6074 = vor.u32 %v6070, %v6073
  %v6075 = vrot.slane %v6074, 4
  %v6077 = vshll.u32 %v5699, 16
  %v6079 = vrot.slane %v6077, 5
  %v6080 = vsel %vm2339, %v6075, %v6079
  %v6081 = vshrl.u32 %v5699, 16
  %v6083 = vrot.slane %v6081, 4
  %v6084 = vor.u32 %v6083, %v6079
  %v6085 = vrot.slane %v6084, 4
  %v6087 = vshll.u32 %v5700, 16
  %v6089 = vrot.slane %v6087, 5
  %v6090 = vsel %vm2339, %v6085, %v6089
  %v6092 = vshrl.u32 %v5701, 16
  %v6094 = vrot.slane %v6092, 4
  %v6095 = vshll.u32 %v5701, 16
  %v6097 = vrot.slane %v6095, 5
  %v6098 = vor.u32 %v6094, %v6097
  %v6099 = vrot.slane %v6098, 4
  %v6101 = vshll.u32 %v5702, 16
  %v6103 = vrot.slane %v6101, 5
  %v6104 = vsel %vm2339, %v6099, %v6103
  %v6105 = vshrl.u32 %v5702, 16
  %v6107 = vrot.slane %v6105, 4
  %v6108 = vor.u32 %v6107, %v6103
  %v6109 = vrot.slane %v6108, 4
  %v6111 = vshll.u32 %v5703, 16
  %v6113 = vrot.slane %v6111, 5
  %v6114 = vsel %vm2339, %v6109, %v6113
  %v6116 = vshrl.u32 %v5704, 16
  %v6118 = vrot.slane %v6116, 4
  %v6119 = vshll.u32 %v5704, 16
  %v6121 = vrot.slane %v6119, 5
  %v6122 = vor.u32 %v6118, %v6121
  %v6123 = vrot.slane %v6122, 4
  %v6125 = vshll.u32 %v5705, 16
  %v6127 = vrot.slane %v6125, 5
  %v6128 = vsel %vm2339, %v6123, %v6127
  %v6129 = vshrl.u32 %v5705, 16
  %v6131 = vrot.slane %v6129, 4
  %v6132 = vor.u32 %v6131, %v6127
  %v6133 = vrot.slane %v6132, 4
  %v6135 = vshll.u32 %v5706, 16
  %v6137 = vrot.slane %v6135, 5
  %v6138 = vsel %vm2339, %v6133, %v6137
  %v6140 = vshrl.u32 %v5707, 16
  %v6142 = vrot.slane %v6140, 4
  %v6143 = vshll.u32 %v5707, 16
  %v6145 = vrot.slane %v6143, 5
  %v6146 = vor.u32 %v6142, %v6145
  %v6147 = vrot.slane %v6146, 4
  %v6149 = vshll.u32 %v5708, 16
  %v6151 = vrot.slane %v6149, 5
  %v6152 = vsel %vm2339, %v6147, %v6151
  %v6153 = vshrl.u32 %v5708, 16
  %v6155 = vrot.slane %v6153, 4
  %v6156 = vor.u32 %v6155, %v6151
  %v6157 = vrot.slane %v6156, 4
  %v6159 = vshll.u32 %v5709, 16
  %v6161 = vrot.slane %v6159, 5
  %v6162 = vsel %vm2339, %v6157, %v6161
  %v6164 = vshrl.u32 %v5710, 16
  %v6166 = vrot.slane %v6164, 4
  %v6167 = vshll.u32 %v5710, 16
  %v6169 = vrot.slane %v6167, 5
  %v6170 = vor.u32 %v6166, %v6169
  %v6171 = vrot.slane %v6170, 4
  %v6173 = vshll.u32 %v5711, 16
  %v6175 = vrot.slane %v6173, 5
  %v6176 = vsel %vm2339, %v6171, %v6175
  %v6177 = vshrl.u32 %v5711, 16
  %v6179 = vrot.slane %v6177, 4
  %v6180 = vor.u32 %v6179, %v6175
  %v6181 = vrot.slane %v6180, 4
  %v6183 = vshll.u32 %v5712, 16
  %v6185 = vrot.slane %v6183, 5
  %v6186 = vsel %vm2339, %v6181, %v6185
  %v6188 = vshrl.u32 %v5713, 16
  %v6190 = vrot.slane %v6188, 4
  %v6191 = vshll.u32 %v5713, 16
  %v6193 = vrot.slane %v6191, 5
  %v6194 = vor.u32 %v6190, %v6193
  %v6195 = vrot.slane %v6194, 4
  %v6197 = vshll.u32 %v5714, 16
  %v6199 = vrot.slane %v6197, 5
  %v6200 = vsel %vm2339, %v6195, %v6199
  %v6201 = vshrl.u32 %v5714, 16
  %v6203 = vrot.slane %v6201, 4
  %v6204 = vor.u32 %v6203, %v6199
  %v6205 = vrot.slane %v6204, 4
  %v6207 = vshll.u32 %v5715, 16
  %v6209 = vrot.slane %v6207, 5
  %v6210 = vsel %vm2339, %v6205, %v6209
  %v6212 = vshrl.u32 %v5716, 16
  %v6214 = vrot.slane %v6212, 4
  %v6215 = vshll.u32 %v5716, 16
  %v6217 = vrot.slane %v6215, 5
  %v6218 = vor.u32 %v6214, %v6217
  %v6219 = vrot.slane %v6218, 4
  %v6221 = vshll.u32 %v5717, 16
  %v6223 = vrot.slane %v6221, 5
  %v6224 = vsel %vm2339, %v6219, %v6223
  %v6225 = vshrl.u32 %v5717, 16
  %v6227 = vrot.slane %v6225, 4
  %v6228 = vor.u32 %v6227, %v6223
  %v6229 = vrot.slane %v6228, 4
  %v6231 = vshll.u32 %v5718, 16
  %v6233 = vrot.slane %v6231, 5
  %v6234 = vsel %vm2339, %v6229, %v6233
  %v6236 = vshrl.u32 %v5719, 16
  %v6238 = vrot.slane %v6236, 4
  %v6239 = vshll.u32 %v5719, 16
  %v6241 = vrot.slane %v6239, 5
  %v6242 = vor.u32 %v6238, %v6241
  %v6243 = vrot.slane %v6242, 4
  %v6245 = vshll.u32 %v5720, 16
  %v6247 = vrot.slane %v6245, 5
  %v6248 = vsel %vm2339, %v6243, %v6247
  %v6249 = vshrl.u32 %v5720, 16
  %v6251 = vrot.slane %v6249, 4
  %v6252 = vor.u32 %v6251, %v6247
  %v6253 = vrot.slane %v6252, 4
  %v6255 = vshll.u32 %v5721, 16
  %v6257 = vrot.slane %v6255, 5
  %v6258 = vsel %vm2339, %v6253, %v6257
  %v6260 = vshrl.u32 %v5722, 16
  %v6262 = vrot.slane %v6260, 4
  %v6263 = vshll.u32 %v5722, 16
  %v6265 = vrot.slane %v6263, 5
  %v6266 = vor.u32 %v6262, %v6265
  %v6267 = vrot.slane %v6266, 4
  %v6269 = vshll.u32 %v5723, 16
  %v6271 = vrot.slane %v6269, 5
  %v6272 = vsel %vm2339, %v6267, %v6271
  %v6273 = vshrl.u32 %v5723, 16
  %v6275 = vrot.slane %v6273, 4
  %v6276 = vor.u32 %v6275, %v6271
  %v6277 = vrot.slane %v6276, 4
  %v6279 = vshll.u32 %v5724, 16
  %v6281 = vrot.slane %v6279, 5
  %v6282 = vsel %vm2339, %v6277, %v6281
  %v6284 = vshrl.u32 %v5725, 16
  %v6286 = vrot.slane %v6284, 4
  %v6287 = vshll.u32 %v5725, 16
  %v6289 = vrot.slane %v6287, 5
  %v6290 = vor.u32 %v6286, %v6289
  %v6291 = vrot.slane %v6290, 4
  %v6293 = vshll.u32 %v5726, 16
  %v6295 = vrot.slane %v6293, 5
  %v6296 = vsel %vm2339, %v6291, %v6295
  %v6297 = vshrl.u32 %v5726, 16
  %v6299 = vrot.slane %v6297, 4
  %v6300 = vor.u32 %v6299, %v6295
  %v6301 = vrot.slane %v6300, 4
  %v6303 = vshll.u32 %v5727, 16
  %v6305 = vrot.slane %v6303, 5
  %v6306 = vsel %vm2339, %v6301, %v6305
  %v6308 = vshrl.u32 %v5728, 16
  %v6310 = vrot.slane %v6308, 4
  %v6311 = vshll.u32 %v5728, 16
  %v6313 = vrot.slane %v6311, 5
  %v6314 = vor.u32 %v6310, %v6313
  %v6315 = vrot.slane %v6314, 4
  %v6317 = vshll.u32 %v5729, 16
  %v6319 = vrot.slane %v6317, 5
  %v6320 = vsel %vm2339, %v6315, %v6319
  %v6321 = vshrl.u32 %v5729, 16
  %v6323 = vrot.slane %v6321, 4
  %v6324 = vor.u32 %v6323, %v6319
  %v6325 = vrot.slane %v6324, 4
  %v6327 = vshll.u32 %v5730, 16
  %v6329 = vrot.slane %v6327, 5
  %v6330 = vsel %vm2339, %v6325, %v6329
  %v6332 = vshrl.u32 %v5731, 16
  %v6334 = vrot.slane %v6332, 4
  %v6335 = vshll.u32 %v5731, 16
  %v6337 = vrot.slane %v6335, 5
  %v6338 = vor.u32 %v6334, %v6337
  %v6339 = vrot.slane %v6338, 4
  %v6341 = vshll.u32 %v5732, 16
  %v6343 = vrot.slane %v6341, 5
  %v6344 = vsel %vm2339, %v6339, %v6343
  %v6345 = vshrl.u32 %v5732, 16
  %v6347 = vrot.slane %v6345, 4
  %v6348 = vor.u32 %v6347, %v6343
  %v6349 = vrot.slane %v6348, 4
  %v6351 = vshll.u32 %v5733, 16
  %v6353 = vrot.slane %v6351, 5
  %v6354 = vsel %vm2339, %v6349, %v6353
  %v6356 = vshrl.u32 %v5734, 16
  %v6358 = vrot.slane %v6356, 4
  %v6359 = vshll.u32 %v5734, 16
  %v6361 = vrot.slane %v6359, 5
  %v6362 = vor.u32 %v6358, %v6361
  %v6363 = vrot.slane %v6362, 4
  %v6365 = vshll.u32 %v5735, 16
  %v6367 = vrot.slane %v6365, 5
  %v6368 = vsel %vm2339, %v6363, %v6367
  %v6369 = vshrl.u32 %v5735, 16
  %v6371 = vrot.slane %v6369, 4
  %v6372 = vor.u32 %v6371, %v6367
  %v6373 = vrot.slane %v6372, 4
  %v6375 = vshll.u32 %v5736, 16
  %v6377 = vrot.slane %v6375, 5
  %v6378 = vsel %vm2339, %v6373, %v6377
  %v6380 = vshrl.u32 %v5737, 16
  %v6382 = vrot.slane %v6380, 4
  %v6383 = vshll.u32 %v5737, 16
  %v6385 = vrot.slane %v6383, 5
  %v6386 = vor.u32 %v6382, %v6385
  %v6387 = vrot.slane %v6386, 4
  %v6389 = vshll.u32 %v5738, 16
  %v6391 = vrot.slane %v6389, 5
  %v6392 = vsel %vm2339, %v6387, %v6391
  %v6393 = vshrl.u32 %v5738, 16
  %v6395 = vrot.slane %v6393, 4
  %v6396 = vor.u32 %v6395, %v6391
  %v6397 = vrot.slane %v6396, 4
  %v6399 = vshll.u32 %v5739, 16
  %v6401 = vrot.slane %v6399, 5
  %v6402 = vsel %vm2339, %v6397, %v6401
  %v6404 = vshrl.u32 %v5740, 16
  %v6406 = vrot.slane %v6404, 4
  %v6407 = vshll.u32 %v5740, 16
  %v6409 = vrot.slane %v6407, 5
  %v6410 = vor.u32 %v6406, %v6409
  %v6411 = vrot.slane %v6410, 4
  %v6413 = vshll.u32 %v5741, 16
  %v6415 = vrot.slane %v6413, 5
  %v6416 = vsel %vm2339, %v6411, %v6415
  %v6417 = vshrl.u32 %v5741, 16
  %v6419 = vrot.slane %v6417, 4
  %v6420 = vor.u32 %v6419, %v6415
  %v6421 = vrot.slane %v6420, 4
  %v6423 = vshll.u32 %v5742, 16
  %v6425 = vrot.slane %v6423, 5
  %v6426 = vsel %vm2339, %v6421, %v6425
  %v6428 = vshrl.u32 %v5743, 16
  %v6430 = vrot.slane %v6428, 4
  %v6431 = vshll.u32 %v5743, 16
  %v6433 = vrot.slane %v6431, 5
  %v6434 = vor.u32 %v6430, %v6433
  %v6435 = vrot.slane %v6434, 4
  %v6437 = vshll.u32 %v5744, 16
  %v6439 = vrot.slane %v6437, 5
  %v6440 = vsel %vm2339, %v6435, %v6439
  %v6441 = vshrl.u32 %v5744, 16
  %v6443 = vrot.slane %v6441, 4
  %v6444 = vor.u32 %v6443, %v6439
  %v6445 = vrot.slane %v6444, 4
  %v6447 = vshll.u32 %v5745, 16
  %v6449 = vrot.slane %v6447, 5
  %v6450 = vsel %vm2339, %v6445, %v6449
  %v6452 = vshrl.u32 %v5746, 16
  %v6454 = vrot.slane %v6452, 4
  %v6455 = vshll.u32 %v5746, 16
  %v6457 = vrot.slane %v6455, 5
  %v6458 = vor.u32 %v6454, %v6457
  %v6459 = vrot.slane %v6458, 4
  %v6461 = vshll.u32 %v5747, 16
  %v6463 = vrot.slane %v6461, 5
  %v6464 = vsel %vm2339, %v6459, %v6463
  %v6465 = vshrl.u32 %v5747, 16
  %v6467 = vrot.slane %v6465, 4
  %v6468 = vor.u32 %v6467, %v6463
  %v6469 = vrot.slane %v6468, 4
  %v6471 = vshll.u32 %v5748, 16
  %v6473 = vrot.slane %v6471, 5
  %v6474 = vsel %vm2339, %v6469, %v6473
  %v6476 = vshrl.u32 %v5749, 16
  %v6478 = vrot.slane %v6476, 4
  %v6479 = vshll.u32 %v5749, 16
  %v6481 = vrot.slane %v6479, 5
  %v6482 = vor.u32 %v6478, %v6481
  %v6483 = vrot.slane %v6482, 4
  %v6485 = vshll.u32 %v5750, 16
  %v6487 = vrot.slane %v6485, 5
  %v6488 = vsel %vm2339, %v6483, %v6487
  %v6489 = vshrl.u32 %v5750, 16
  %v6491 = vrot.slane %v6489, 4
  %v6492 = vor.u32 %v6491, %v6487
  %v6493 = vrot.slane %v6492, 4
  %v6495 = vshll.u32 %v5751, 16
  %v6497 = vrot.slane %v6495, 5
  %v6498 = vsel %vm2339, %v6493, %v6497
  %v6500 = vshrl.u32 %v5752, 16
  %v6502 = vrot.slane %v6500, 4
  %v6503 = vshll.u32 %v5752, 16
  %v6505 = vrot.slane %v6503, 5
  %v6506 = vor.u32 %v6502, %v6505
  %v6507 = vrot.slane %v6506, 4
  %v6509 = vshll.u32 %v5753, 16
  %v6511 = vrot.slane %v6509, 5
  %v6512 = vsel %vm2339, %v6507, %v6511
  %v6513 = vshrl.u32 %v5753, 16
  %v6515 = vrot.slane %v6513, 4
  %v6516 = vor.u32 %v6515, %v6511
  %v6517 = vrot.slane %v6516, 4
  %v6519 = vshll.u32 %v5754, 16
  %v6521 = vrot.slane %v6519, 5
  %v6522 = vsel %vm2339, %v6517, %v6521
  %v6523 = vld [vmem:[%s4 + $0x100] sm:$0xf]
  %v6524 = vld [vmem:[%s4 + $0x104] sm:$0xf]
  %v6525 = vld [vmem:[%s4 + $0x108] sm:$0xf]
  %v6526 = vld [vmem:[%s4 + $0x10c] sm:$0xf]
  %v6527 = vld [vmem:[%s4 + $0x110] sm:$0xf]
  %v6528 = vld [vmem:[%s4 + $0x114] sm:$0xf]
  %v6529 = vld [vmem:[%s4 + $0x118] sm:$0xf]
  %v6530 = vld [vmem:[%s4 + $0x11c] sm:$0xf]
  %v6531 = vld [vmem:[%s4 + $0x120] sm:$0xf]
  %v6532 = vld [vmem:[%s4 + $0x124] sm:$0xf]
  %v6533 = vld [vmem:[%s4 + $0x128] sm:$0xf]
  %v6534 = vld [vmem:[%s4 + $0x12c] sm:$0xf]
  %v6535 = vld [vmem:[%s4 + $0x130] sm:$0xf]
  %v6536 = vld [vmem:[%s4 + $0x134] sm:$0xf]
  %v6537 = vld [vmem:[%s4 + $0x138] sm:$0xf]
  %v6538 = vld [vmem:[%s4 + $0x13c] sm:$0xf]
  %v6539 = vunpack.c.l.b16 %v5768
  %v6540 = vunpack.c.l.b16 %v5778
  %v6541 = vunpack.c.l.b16 %v5792
  %v6542 = vunpack.c.l.b16 %v5802
  %v6543 = vunpack.c.l.b16 %v5816
  %v6544 = vunpack.c.l.b16 %v5826
  %v6545 = vunpack.c.l.b16 %v5840
  %v6546 = vunpack.c.l.b16 %v5850
  %v6547 = vunpack.c.l.b16 %v5864
  %v6548 = vunpack.c.l.b16 %v5874
  %v6549 = vunpack.c.l.b16 %v5888
  %v6550 = vunpack.c.l.b16 %v5898
  %v6551 = vunpack.c.l.b16 %v5912
  %v6552 = vunpack.c.l.b16 %v5922
  %v6553 = vunpack.c.l.b16 %v5936
  %v6554 = vunpack.c.l.b16 %v5946
  %v6555 = vunpack.c.l.b16 %v5960
  %v6556 = vunpack.c.l.b16 %v5970
  %v6557 = vunpack.c.l.b16 %v5984
  %v6558 = vunpack.c.l.b16 %v5994
  %v6559 = vunpack.c.l.b16 %v6008
  %v6560 = vunpack.c.l.b16 %v6018
  %v6561 = vunpack.c.l.b16 %v6032
  %v6562 = vunpack.c.l.b16 %v6042
  %v6563 = vunpack.c.l.b16 %v6056
  %v6564 = vunpack.c.l.b16 %v6066
  %v6565 = vunpack.c.l.b16 %v6080
  %v6566 = vunpack.c.l.b16 %v6090
  %v6567 = vunpack.c.l.b16 %v6104
  %v6568 = vunpack.c.l.b16 %v6114
  %v6569 = vunpack.c.l.b16 %v6128
  %v6570 = vunpack.c.l.b16 %v6138
  %v6571 = vunpack.c.l.b16 %v6152
  %v6572 = vunpack.c.l.b16 %v6162
  %v6573 = vunpack.c.l.b16 %v6176
  %v6574 = vunpack.c.l.b16 %v6186
  %v6575 = vunpack.c.l.b16 %v6200
  %v6576 = vunpack.c.l.b16 %v6210
  %v6577 = vunpack.c.l.b16 %v6224
  %v6578 = vunpack.c.l.b16 %v6234
  %v6579 = vunpack.c.l.b16 %v6248
  %v6580 = vunpack.c.l.b16 %v6258
  %v6581 = vunpack.c.l.b16 %v6272
  %v6582 = vunpack.c.l.b16 %v6282
  %v6583 = vunpack.c.l.b16 %v6296
  %v6584 = vunpack.c.l.b16 %v6306
  %v6585 = vunpack.c.l.b16 %v6320
  %v6586 = vunpack.c.l.b16 %v6330
  %v6587 = vunpack.c.l.b16 %v6344
  %v6588 = vunpack.c.l.b16 %v6354
  %v6589 = vunpack.c.l.b16 %v6368
  %v6590 = vunpack.c.l.b16 %v6378
  %v6591 = vunpack.c.l.b16 %v6392
  %v6592 = vunpack.c.l.b16 %v6402
  %v6593 = vunpack.c.l.b16 %v6416
  %v6594 = vunpack.c.l.b16 %v6426
  %v6595 = vunpack.c.l.b16 %v6440
  %v6596 = vunpack.c.l.b16 %v6450
  %v6597 = vunpack.c.l.b16 %v6464
  %v6598 = vunpack.c.l.b16 %v6474
  %v6599 = vunpack.c.l.b16 %v6488
  %v6600 = vunpack.c.l.b16 %v6498
  %v6601 = vunpack.c.l.b16 %v6512
  %v6602 = vunpack.c.l.b16 %v6522
  %v6603 = vpack.c.b16 %v6540, %v6539
  %v6604 = vpack.c.b16 %v6542, %v6541
  %v6605 = vpack.c.b16 %v6544, %v6543
  %v6606 = vpack.c.b16 %v6546, %v6545
  %v6607 = vpack.c.b16 %v6548, %v6547
  %v6608 = vpack.c.b16 %v6550, %v6549
  %v6609 = vpack.c.b16 %v6552, %v6551
  %v6610 = vpack.c.b16 %v6554, %v6553
  %v6611 = vpack.c.b16 %v6556, %v6555
  %v6612 = vpack.c.b16 %v6558, %v6557
  %v6613 = vpack.c.b16 %v6560, %v6559
  %v6614 = vpack.c.b16 %v6562, %v6561
  %v6615 = vpack.c.b16 %v6564, %v6563
  %v6616 = vpack.c.b16 %v6566, %v6565
  %v6617 = vpack.c.b16 %v6568, %v6567
  %v6618 = vpack.c.b16 %v6570, %v6569
  %v6619 = vpack.c.b16 %v6572, %v6571
  %v6620 = vpack.c.b16 %v6574, %v6573
  %v6621 = vpack.c.b16 %v6576, %v6575
  %v6622 = vpack.c.b16 %v6578, %v6577
  %v6623 = vpack.c.b16 %v6580, %v6579
  %v6624 = vpack.c.b16 %v6582, %v6581
  %v6625 = vpack.c.b16 %v6584, %v6583
  %v6626 = vpack.c.b16 %v6586, %v6585
  %v6627 = vpack.c.b16 %v6588, %v6587
  %v6628 = vpack.c.b16 %v6590, %v6589
  %v6629 = vpack.c.b16 %v6592, %v6591
  %v6630 = vpack.c.b16 %v6594, %v6593
  %v6631 = vpack.c.b16 %v6596, %v6595
  %v6632 = vpack.c.b16 %v6598, %v6597
  %v6633 = vpack.c.b16 %v6600, %v6599
  %v6634 = vpack.c.b16 %v6602, %v6601
  %v6683 = vunpack.c.l.b16 %v6523
  %v6684 = vunpack.c.l.b16 %v6524
  %v6685 = vunpack.c.l.b16 %v6525
  %v6686 = vunpack.c.l.b16 %v6526
  %v6687 = vunpack.c.l.b16 %v6527
  %v6688 = vunpack.c.l.b16 %v6528
  %v6689 = vunpack.c.l.b16 %v6529
  %v6690 = vunpack.c.l.b16 %v6530
  %v6691 = vunpack.c.l.b16 %v6531
  %v6692 = vunpack.c.l.b16 %v6532
  %v6693 = vunpack.c.l.b16 %v6533
  %v6694 = vunpack.c.l.b16 %v6534
  %v6695 = vunpack.c.l.b16 %v6535
  %v6696 = vunpack.c.l.b16 %v6536
  %v6697 = vunpack.c.l.b16 %v6537
  %v6698 = vunpack.c.l.b16 %v6538
  %v6699 = vpack.c.b16 %v6684, %v6683
  %v6700 = vpack.c.b16 %v6686, %v6685
  %v6701 = vpack.c.b16 %v6688, %v6687
  %v6702 = vpack.c.b16 %v6690, %v6689
  %v6703 = vpack.c.b16 %v6692, %v6691
  %v6704 = vpack.c.b16 %v6694, %v6693
  %v6705 = vpack.c.b16 %v6696, %v6695
  %v6706 = vpack.c.b16 %v6698, %v6697
  %6715 = vmatprep.subr.bf16.mxu0 0
  %6716 = vmatpush1.bf16.msra.mxu0 %v6699
  %6717 = vmatprep.subr.bf16.mxu0 0
  %6718 = vmatpush1.bf16.msra.mxu0 %v6700
  %6719 = vmatprep.subr.bf16.mxu0 0
  %6720 = vmatpush1.bf16.msra.mxu0 %v6701
  %6721 = vmatprep.subr.bf16.mxu0 0
  %6722 = vmatpush1.bf16.msra.mxu0 %v6702
  %6723 = vmatprep.subr.bf16.mxu0 0
  %6724 = vmatpush1.bf16.msra.mxu0 %v6703
  %6725 = vmatprep.subr.bf16.mxu0 0
  %6726 = vmatpush1.bf16.msra.mxu0 %v6704
  %6727 = vmatprep.subr.bf16.mxu0 0
  %6728 = vmatpush1.bf16.msra.mxu0 %v6705
  %6729 = vmatprep.subr.bf16.mxu0 0
  %6730 = vmatpush1.bf16.msra.mxu0 %v6706
  %6731 = vmatprep.subr.bf16.mxu0 0
  %6732 = vmatpush1.bf16.msra.mxu0 0
  %6733 = vmatprep.subr.bf16.mxu0 0
  %6734 = vmatpush1.bf16.msra.mxu0 0
  %6735 = vmatprep.subr.bf16.mxu0 0
  %6736 = vmatpush1.bf16.msra.mxu0 0
  %6737 = vmatprep.subr.bf16.mxu0 0
  %6738 = vmatpush1.bf16.msra.mxu0 0
  %6739 = vmatprep.subr.bf16.mxu0 0
  %6740 = vmatpush1.bf16.msra.mxu0 0
  %6741 = vmatprep.subr.bf16.mxu0 0
  %6742 = vmatpush1.bf16.msra.mxu0 0
  %6743 = vmatprep.subr.bf16.mxu0 0
  %6744 = vmatpush1.bf16.msra.mxu0 0
  %6745 = vmatprep.subr.bf16.mxu0 0
  %6746 = vmatpush1.bf16.msra.mxu0 0
  %6747 = vmatprep.mubr.bf16.mxu0 0
  %6748 = vmatmul.mubr.bf16.gmra.mrb[0].mxu0 %v6603
  %v6749 = vpop.f32.mrb[0].mxu0
  %v6750 = vadd.f32 0.0, %v6749
  %v6751 = vpop.f32.mrb[0].mxu0
  %v6752 = vpop.f32.mrb[0].mxu0
  %v6753 = vadd.f32 0.0, %v6752
  %v6754 = vpop.f32.mrb[0].mxu0
  %6755 = vmatprep.mubr.bf16.mxu0 0
  %6756 = vmatmul.mubr.bf16.gmra.mrb[0].mxu0 %v6604
  %v6757 = vpop.f32.mrb[0].mxu0
  %v6758 = vadd.f32 0.0, %v6757
  %v6759 = vpop.f32.mrb[0].mxu0
  %v6760 = vpop.f32.mrb[0].mxu0
  %v6761 = vadd.f32 0.0, %v6760
  %v6762 = vpop.f32.mrb[0].mxu0
  %6763 = vmatprep.mubr.bf16.mxu0 0
  %6764 = vmatmul.mubr.bf16.gmra.mrb[0].mxu0 %v6605
  %v6765 = vpop.f32.mrb[0].mxu0
  %v6766 = vadd.f32 0.0, %v6765
  %v6767 = vpop.f32.mrb[0].mxu0
  %v6768 = vpop.f32.mrb[0].mxu0
  %v6769 = vadd.f32 0.0, %v6768
  %v6770 = vpop.f32.mrb[0].mxu0
  %6771 = vmatprep.mubr.bf16.mxu0 0
  %6772 = vmatmul.mubr.bf16.gmra.mrb[0].mxu0 %v6606
  %v6773 = vpop.f32.mrb[0].mxu0
  %v6774 = vadd.f32 0.0, %v6773
  %v6775 = vpop.f32.mrb[0].mxu0
  %v6776 = vpop.f32.mrb[0].mxu0
  %v6777 = vadd.f32 0.0, %v6776
  %v6778 = vpop.f32.mrb[0].mxu0
  %6779 = vmatprep.mubr.bf16.mxu0 0
  %6780 = vmatmul.mubr.bf16.gmra.mrb[0].mxu0 %v6607
  %v6781 = vpop.f32.mrb[0].mxu0
  %v6782 = vadd.f32 0.0, %v6781
  %v6783 = vpop.f32.mrb[0].mxu0
  %v6784 = vpop.f32.mrb[0].mxu0
  %v6785 = vadd.f32 0.0, %v6784
  %v6786 = vpop.f32.mrb[0].mxu0
  %6787 = vmatprep.mubr.bf16.mxu0 0
  %6788 = vmatmul.mubr.bf16.gmra.mrb[0].mxu0 %v6608
  %v6789 = vpop.f32.mrb[0].mxu0
  %v6790 = vadd.f32 0.0, %v6789
  %v6791 = vpop.f32.mrb[0].mxu0
  %v6792 = vpop.f32.mrb[0].mxu0
  %v6793 = vadd.f32 0.0, %v6792
  %v6794 = vpop.f32.mrb[0].mxu0
  %6795 = vmatprep.mubr.bf16.mxu0 0
  %6796 = vmatmul.mubr.bf16.gmra.mrb[0].mxu0 %v6609
  %v6797 = vpop.f32.mrb[0].mxu0
  %v6798 = vadd.f32 0.0, %v6797
  %v6799 = vpop.f32.mrb[0].mxu0
  %v6800 = vpop.f32.mrb[0].mxu0
  %v6801 = vadd.f32 0.0, %v6800
  %v6802 = vpop.f32.mrb[0].mxu0
  %6803 = vmatprep.mubr.bf16.mxu0 0
  %6804 = vmatmul.mubr.bf16.gmra.mrb[0].mxu0 %v6610
  %v6805 = vpop.f32.mrb[0].mxu0
  %v6806 = vadd.f32 0.0, %v6805
  %v6807 = vpop.f32.mrb[0].mxu0
  %v6808 = vpop.f32.mrb[0].mxu0
  %v6809 = vadd.f32 0.0, %v6808
  %v6810 = vpop.f32.mrb[0].mxu0
  %6811 = vmatprep.mubr.bf16.mxu0 0
  %6812 = vmatmul.mubr.bf16.gmra.mrb[0].mxu0 %v6611
  %v6813 = vpop.f32.mrb[0].mxu0
  %v6814 = vadd.f32 0.0, %v6813
  %v6815 = vpop.f32.mrb[0].mxu0
  %v6816 = vpop.f32.mrb[0].mxu0
  %v6817 = vadd.f32 0.0, %v6816
  %v6818 = vpop.f32.mrb[0].mxu0
  %6819 = vmatprep.mubr.bf16.mxu0 0
  %6820 = vmatmul.mubr.bf16.gmra.mrb[0].mxu0 %v6612
  %v6821 = vpop.f32.mrb[0].mxu0
  %v6822 = vadd.f32 0.0, %v6821
  %v6823 = vpop.f32.mrb[0].mxu0
  %v6824 = vpop.f32.mrb[0].mxu0
  %v6825 = vadd.f32 0.0, %v6824
  %v6826 = vpop.f32.mrb[0].mxu0
  %6827 = vmatprep.mubr.bf16.mxu0 0
  %6828 = vmatmul.mubr.bf16.gmra.mrb[0].mxu0 %v6613
  %v6829 = vpop.f32.mrb[0].mxu0
  %v6830 = vadd.f32 0.0, %v6829
  %v6831 = vpop.f32.mrb[0].mxu0
  %v6832 = vpop.f32.mrb[0].mxu0
  %v6833 = vadd.f32 0.0, %v6832
  %v6834 = vpop.f32.mrb[0].mxu0
  %6835 = vmatprep.mubr.bf16.mxu0 0
  %6836 = vmatmul.mubr.bf16.gmra.mrb[0].mxu0 %v6614
  %v6837 = vpop.f32.mrb[0].mxu0
  %v6838 = vadd.f32 0.0, %v6837
  %v6839 = vpop.f32.mrb[0].mxu0
  %v6840 = vpop.f32.mrb[0].mxu0
  %v6841 = vadd.f32 0.0, %v6840
  %v6842 = vpop.f32.mrb[0].mxu0
  %6843 = vmatprep.mubr.bf16.mxu0 0
  %6844 = vmatmul.mubr.bf16.gmra.mrb[0].mxu0 %v6615
  %v6845 = vpop.f32.mrb[0].mxu0
  %v6846 = vadd.f32 0.0, %v6845
  %v6847 = vpop.f32.mrb[0].mxu0
  %v6848 = vpop.f32.mrb[0].mxu0
  %v6849 = vadd.f32 0.0, %v6848
  %v6850 = vpop.f32.mrb[0].mxu0
  %6851 = vmatprep.mubr.bf16.mxu0 0
  %6852 = vmatmul.mubr.bf16.gmra.mrb[0].mxu0 %v6616
  %v6853 = vpop.f32.mrb[0].mxu0
  %v6854 = vadd.f32 0.0, %v6853
  %v6855 = vpop.f32.mrb[0].mxu0
  %v6856 = vpop.f32.mrb[0].mxu0
  %v6857 = vadd.f32 0.0, %v6856
  %v6858 = vpop.f32.mrb[0].mxu0
  %6859 = vmatprep.mubr.bf16.mxu0 0
  %6860 = vmatmul.mubr.bf16.gmra.mrb[0].mxu0 %v6617
  %v6861 = vpop.f32.mrb[0].mxu0
  %v6862 = vadd.f32 0.0, %v6861
  %v6863 = vpop.f32.mrb[0].mxu0
  %v6864 = vpop.f32.mrb[0].mxu0
  %v6865 = vadd.f32 0.0, %v6864
  %v6866 = vpop.f32.mrb[0].mxu0
  %6867 = vmatprep.mubr.bf16.mxu0 0
  %6868 = vmatmul.mubr.bf16.gmra.mrb[0].mxu0 %v6618
  %v6869 = vpop.f32.mrb[0].mxu0
  %v6870 = vadd.f32 0.0, %v6869
  %v6871 = vpop.f32.mrb[0].mxu0
  %v6872 = vpop.f32.mrb[0].mxu0
  %v6873 = vadd.f32 0.0, %v6872
  %v6874 = vpop.f32.mrb[0].mxu0
  %6875 = vmatprep.mubr.bf16.mxu0 0
  %6876 = vmatmul.mubr.bf16.gmra.mrb[0].mxu0 %v6619
  %v6877 = vpop.f32.mrb[0].mxu0
  %v6878 = vadd.f32 0.0, %v6877
  %v6879 = vpop.f32.mrb[0].mxu0
  %v6880 = vpop.f32.mrb[0].mxu0
  %v6881 = vadd.f32 0.0, %v6880
  %v6882 = vpop.f32.mrb[0].mxu0
  %6883 = vmatprep.mubr.bf16.mxu0 0
  %6884 = vmatmul.mubr.bf16.gmra.mrb[0].mxu0 %v6620
  %v6885 = vpop.f32.mrb[0].mxu0
  %v6886 = vadd.f32 0.0, %v6885
  %v6887 = vpop.f32.mrb[0].mxu0
  %v6888 = vpop.f32.mrb[0].mxu0
  %v6889 = vadd.f32 0.0, %v6888
  %v6890 = vpop.f32.mrb[0].mxu0
  %6891 = vmatprep.mubr.bf16.mxu0 0
  %6892 = vmatmul.mubr.bf16.gmra.mrb[0].mxu0 %v6621
  %v6893 = vpop.f32.mrb[0].mxu0
  %v6894 = vadd.f32 0.0, %v6893
  %v6895 = vpop.f32.mrb[0].mxu0
  %v6896 = vpop.f32.mrb[0].mxu0
  %v6897 = vadd.f32 0.0, %v6896
  %v6898 = vpop.f32.mrb[0].mxu0
  %6899 = vmatprep.mubr.bf16.mxu0 0
  %6900 = vmatmul.mubr.bf16.gmra.mrb[0].mxu0 %v6622
  %v6901 = vpop.f32.mrb[0].mxu0
  %v6902 = vadd.f32 0.0, %v6901
  %v6903 = vpop.f32.mrb[0].mxu0
  %v6904 = vpop.f32.mrb[0].mxu0
  %v6905 = vadd.f32 0.0, %v6904
  %v6906 = vpop.f32.mrb[0].mxu0
  %6907 = vmatprep.mubr.bf16.mxu0 0
  %6908 = vmatmul.mubr.bf16.gmra.mrb[0].mxu0 %v6623
  %v6909 = vpop.f32.mrb[0].mxu0
  %v6910 = vadd.f32 0.0, %v6909
  %v6911 = vpop.f32.mrb[0].mxu0
  %v6912 = vpop.f32.mrb[0].mxu0
  %v6913 = vadd.f32 0.0, %v6912
  %v6914 = vpop.f32.mrb[0].mxu0
  %6915 = vmatprep.mubr.bf16.mxu0 0
  %6916 = vmatmul.mubr.bf16.gmra.mrb[0].mxu0 %v6624
  %v6917 = vpop.f32.mrb[0].mxu0
  %v6918 = vadd.f32 0.0, %v6917
  %v6919 = vpop.f32.mrb[0].mxu0
  %v6920 = vpop.f32.mrb[0].mxu0
  %v6921 = vadd.f32 0.0, %v6920
  %v6922 = vpop.f32.mrb[0].mxu0
  %6923 = vmatprep.mubr.bf16.mxu0 0
  %6924 = vmatmul.mubr.bf16.gmra.mrb[0].mxu0 %v6625
  %v6925 = vpop.f32.mrb[0].mxu0
  %v6926 = vadd.f32 0.0, %v6925
  %v6927 = vpop.f32.mrb[0].mxu0
  %v6928 = vpop.f32.mrb[0].mxu0
  %v6929 = vadd.f32 0.0, %v6928
  %v6930 = vpop.f32.mrb[0].mxu0
  %6931 = vmatprep.mubr.bf16.mxu0 0
  %6932 = vmatmul.mubr.bf16.gmra.mrb[0].mxu0 %v6626
  %v6933 = vpop.f32.mrb[0].mxu0
  %v6934 = vadd.f32 0.0, %v6933
  %v6935 = vpop.f32.mrb[0].mxu0
  %v6936 = vpop.f32.mrb[0].mxu0
  %v6937 = vadd.f32 0.0, %v6936
  %v6938 = vpop.f32.mrb[0].mxu0
  %6939 = vmatprep.mubr.bf16.mxu0 0
  %6940 = vmatmul.mubr.bf16.gmra.mrb[0].mxu0 %v6627
  %v6941 = vpop.f32.mrb[0].mxu0
  %v6942 = vadd.f32 0.0, %v6941
  %v6943 = vpop.f32.mrb[0].mxu0
  %v6944 = vpop.f32.mrb[0].mxu0
  %v6945 = vadd.f32 0.0, %v6944
  %v6946 = vpop.f32.mrb[0].mxu0
  %6947 = vmatprep.mubr.bf16.mxu0 0
  %6948 = vmatmul.mubr.bf16.gmra.mrb[0].mxu0 %v6628
  %v6949 = vpop.f32.mrb[0].mxu0
  %v6950 = vadd.f32 0.0, %v6949
  %v6951 = vpop.f32.mrb[0].mxu0
  %v6952 = vpop.f32.mrb[0].mxu0
  %v6953 = vadd.f32 0.0, %v6952
  %v6954 = vpop.f32.mrb[0].mxu0
  %6955 = vmatprep.mubr.bf16.mxu0 0
  %6956 = vmatmul.mubr.bf16.gmra.mrb[0].mxu0 %v6629
  %v6957 = vpop.f32.mrb[0].mxu0
  %v6958 = vadd.f32 0.0, %v6957
  %v6959 = vpop.f32.mrb[0].mxu0
  %v6960 = vpop.f32.mrb[0].mxu0
  %v6961 = vadd.f32 0.0, %v6960
  %v6962 = vpop.f32.mrb[0].mxu0
  %6963 = vmatprep.mubr.bf16.mxu0 0
  %6964 = vmatmul.mubr.bf16.gmra.mrb[0].mxu0 %v6630
  %v6965 = vpop.f32.mrb[0].mxu0
  %v6966 = vadd.f32 0.0, %v6965
  %v6967 = vpop.f32.mrb[0].mxu0
  %v6968 = vpop.f32.mrb[0].mxu0
  %v6969 = vadd.f32 0.0, %v6968
  %v6970 = vpop.f32.mrb[0].mxu0
  %6971 = vmatprep.mubr.bf16.mxu0 0
  %6972 = vmatmul.mubr.bf16.gmra.mrb[0].mxu0 %v6631
  %v6973 = vpop.f32.mrb[0].mxu0
  %v6974 = vadd.f32 0.0, %v6973
  %v6975 = vpop.f32.mrb[0].mxu0
  %v6976 = vpop.f32.mrb[0].mxu0
  %v6977 = vadd.f32 0.0, %v6976
  %v6978 = vpop.f32.mrb[0].mxu0
  %6979 = vmatprep.mubr.bf16.mxu0 0
  %6980 = vmatmul.mubr.bf16.gmra.mrb[0].mxu0 %v6632
  %v6981 = vpop.f32.mrb[0].mxu0
  %v6982 = vadd.f32 0.0, %v6981
  %v6983 = vpop.f32.mrb[0].mxu0
  %v6984 = vpop.f32.mrb[0].mxu0
  %v6985 = vadd.f32 0.0, %v6984
  %v6986 = vpop.f32.mrb[0].mxu0
  %6987 = vmatprep.mubr.bf16.mxu0 0
  %6988 = vmatmul.mubr.bf16.gmra.mrb[0].mxu0 %v6633
  %v6989 = vpop.f32.mrb[0].mxu0
  %v6990 = vadd.f32 0.0, %v6989
  %v6991 = vpop.f32.mrb[0].mxu0
  %v6992 = vpop.f32.mrb[0].mxu0
  %v6993 = vadd.f32 0.0, %v6992
  %v6994 = vpop.f32.mrb[0].mxu0
  %6995 = vmatprep.mubr.bf16.mxu0 0
  %6996 = vmatmul.mubr.bf16.gmra.mrb[0].mxu0 %v6634
  %v6997 = vpop.f32.mrb[0].mxu0
  %v6998 = vadd.f32 0.0, %v6997
  %v6999 = vpop.f32.mrb[0].mxu0
  %v7000 = vpop.f32.mrb[0].mxu0
  %v7001 = vadd.f32 0.0, %v7000
  %v7002 = vpop.f32.mrb[0].mxu0
  %7003 = vdwg.mxu0
  %v7004 = vadd.f32 %v5595, %v6750
  %v7005 = vadd.f32 %v5596, %v6753
  %v7006 = vadd.f32 %v5597, %v6758
  %v7007 = vadd.f32 %v5598, %v6761
  %v7008 = vadd.f32 %v5599, %v6766
  %v7009 = vadd.f32 %v5600, %v6769
  %v7010 = vadd.f32 %v5601, %v6774
  %v7011 = vadd.f32 %v5602, %v6777
  %v7012 = vadd.f32 %v5603, %v6782
  %v7013 = vadd.f32 %v5604, %v6785
  %v7014 = vadd.f32 %v5605, %v6790
  %v7015 = vadd.f32 %v5606, %v6793
  %v7016 = vadd.f32 %v5607, %v6798
  %v7017 = vadd.f32 %v5608, %v6801
  %v7018 = vadd.f32 %v5609, %v6806
  %v7019 = vadd.f32 %v5610, %v6809
  %v7020 = vadd.f32 %v5611, %v6814
  %v7021 = vadd.f32 %v5612, %v6817
  %v7022 = vadd.f32 %v5613, %v6822
  %v7023 = vadd.f32 %v5614, %v6825
  %v7024 = vadd.f32 %v5615, %v6830
  %v7025 = vadd.f32 %v5616, %v6833
  %v7026 = vadd.f32 %v5617, %v6838
  %v7027 = vadd.f32 %v5618, %v6841
  %v7028 = vadd.f32 %v5619, %v6846
  %v7029 = vadd.f32 %v5620, %v6849
  %v7030 = vadd.f32 %v5621, %v6854
  %v7031 = vadd.f32 %v5622, %v6857
  %v7032 = vadd.f32 %v5623, %v6862
  %v7033 = vadd.f32 %v5624, %v6865
  %v7034 = vadd.f32 %v5625, %v6870
  %v7035 = vadd.f32 %v5626, %v6873
  %v7036 = vadd.f32 %v5627, %v6878
  %v7037 = vadd.f32 %v5628, %v6881
  %v7038 = vadd.f32 %v5629, %v6886
  %v7039 = vadd.f32 %v5630, %v6889
  %v7040 = vadd.f32 %v5631, %v6894
  %v7041 = vadd.f32 %v5632, %v6897
  %v7042 = vadd.f32 %v5633, %v6902
  %v7043 = vadd.f32 %v5634, %v6905
  %v7044 = vadd.f32 %v5635, %v6910
  %v7045 = vadd.f32 %v5636, %v6913
  %v7046 = vadd.f32 %v5637, %v6918
  %v7047 = vadd.f32 %v5638, %v6921
  %v7048 = vadd.f32 %v5639, %v6926
  %v7049 = vadd.f32 %v5640, %v6929
  %v7050 = vadd.f32 %v5641, %v6934
  %v7051 = vadd.f32 %v5642, %v6937
  %v7052 = vadd.f32 %v5643, %v6942
  %v7053 = vadd.f32 %v5644, %v6945
  %v7054 = vadd.f32 %v5645, %v6950
  %v7055 = vadd.f32 %v5646, %v6953
  %v7056 = vadd.f32 %v5647, %v6958
  %v7057 = vadd.f32 %v5648, %v6961
  %v7058 = vadd.f32 %v5649, %v6966
  %v7059 = vadd.f32 %v5650, %v6969
  %v7060 = vadd.f32 %v5651, %v6974
  %v7061 = vadd.f32 %v5652, %v6977
  %v7062 = vadd.f32 %v5653, %v6982
  %v7063 = vadd.f32 %v5654, %v6985
  %v7064 = vadd.f32 %v5655, %v6990
  %v7065 = vadd.f32 %v5656, %v6993
  %v7066 = vadd.f32 %v5657, %v6998
  %v7067 = vadd.f32 %v5658, %v7001
  %v7068 = vld [vmem:[%s1995] sm:$0xe]
  %v7069 = vld [vmem:[%s1995 + $0xc] sm:$0xe]
  %v7070 = vld [vmem:[%s1995 + $0x18] sm:$0xe]
  %v7071 = vld [vmem:[%s1995 + $0x24] sm:$0xe]
  %v7072 = vld [vmem:[%s1995 + $0x30] sm:$0xe]
  %v7073 = vld [vmem:[%s1995 + $0x3c] sm:$0xe]
  %v7074 = vld [vmem:[%s1995 + $0x48] sm:$0xe]
  %v7075 = vld [vmem:[%s1995 + $0x54] sm:$0xe]
  %v7076 = vld [vmem:[%s1995 + $0x60] sm:$0xe]
  %v7077 = vld [vmem:[%s1995 + $0x6c] sm:$0xe]
  %v7078 = vld [vmem:[%s1995 + $0x78] sm:$0xe]
  %v7079 = vld [vmem:[%s1995 + $0x84] sm:$0xe]
  %v7080 = vld [vmem:[%s1995 + $0x90] sm:$0xe]
  %v7081 = vld [vmem:[%s1995 + $0x9c] sm:$0xe]
  %v7082 = vld [vmem:[%s1995 + $0xa8] sm:$0xe]
  %v7083 = vld [vmem:[%s1995 + $0xb4] sm:$0xe]
  %v7084 = vld [vmem:[%s1995 + $0xd8] sm:$0xe]
  %v7085 = vld [vmem:[%s1995 + $0xe4] sm:$0xe]
  %v7086 = vld [vmem:[%s1995 + $0xf0] sm:$0xe]
  %v7087 = vld [vmem:[%s1995 + $0xfc] sm:$0xe]
  %v7088 = vld [vmem:[%s1995 + $0x108] sm:$0xe]
  %v7089 = vld [vmem:[%s1995 + $0x114] sm:$0xe]
  %v7090 = vld [vmem:[%s1995 + $0x120] sm:$0xe]
  %v7091 = vld [vmem:[%s1995 + $0x12c] sm:$0xe]
  %v7092 = vld [vmem:[%s1995 + $0x138] sm:$0xe]
  %v7093 = vld [vmem:[%s1995 + $0x144] sm:$0xe]
  %v7094 = vld [vmem:[%s1995 + $0x150] sm:$0xe]
  %v7095 = vld [vmem:[%s1995 + $0x15c] sm:$0xe]
  %v7096 = vld [vmem:[%s1995 + $0x168] sm:$0xe]
  %v7097 = vld [vmem:[%s1995 + $0x174] sm:$0xe]
  %v7098 = vld [vmem:[%s1995 + $0x180] sm:$0xe]
  %v7099 = vld [vmem:[%s1995 + $0x18c] sm:$0xe]
  %v7196 = vrot.slane %v7068, 5
  %v7197 = vrot.slane %v7196, 4
  %v7198 = vrot.slane %v5660, 5
  %v7199 = vsel %vm4216, %v7197, %v7198
  %v7200 = vrot.slane %v7198, 4
  %v7201 = vrot.slane %v5661, 5
  %v7202 = vsel %vm4216, %v7200, %v7201
  %v7203 = vrot.slane %v7069, 5
  %v7204 = vrot.slane %v7203, 4
  %v7205 = vrot.slane %v5663, 5
  %v7206 = vsel %vm4216, %v7204, %v7205
  %v7207 = vrot.slane %v7205, 4
  %v7208 = vrot.slane %v5664, 5
  %v7209 = vsel %vm4216, %v7207, %v7208
  %v7210 = vrot.slane %v7070, 5
  %v7211 = vrot.slane %v7210, 4
  %v7212 = vrot.slane %v5666, 5
  %v7213 = vsel %vm4216, %v7211, %v7212
  %v7214 = vrot.slane %v7212, 4
  %v7215 = vrot.slane %v5667, 5
  %v7216 = vsel %vm4216, %v7214, %v7215
  %v7217 = vrot.slane %v7071, 5
  %v7218 = vrot.slane %v7217, 4
  %v7219 = vrot.slane %v5669, 5
  %v7220 = vsel %vm4216, %v7218, %v7219
  %v7221 = vrot.slane %v7219, 4
  %v7222 = vrot.slane %v5670, 5
  %v7223 = vsel %vm4216, %v7221, %v7222
  %v7224 = vrot.slane %v7072, 5
  %v7225 = vrot.slane %v7224, 4
  %v7226 = vrot.slane %v5672, 5
  %v7227 = vsel %vm4216, %v7225, %v7226
  %v7228 = vrot.slane %v7226, 4
  %v7229 = vrot.slane %v5673, 5
  %v7230 = vsel %vm4216, %v7228, %v7229
  %v7231 = vrot.slane %v7073, 5
  %v7232 = vrot.slane %v7231, 4
  %v7233 = vrot.slane %v5675, 5
  %v7234 = vsel %vm4216, %v7232, %v7233
  %v7235 = vrot.slane %v7233, 4
  %v7236 = vrot.slane %v5676, 5
  %v7237 = vsel %vm4216, %v7235, %v7236
  %v7238 = vrot.slane %v7074, 5
  %v7239 = vrot.slane %v7238, 4
  %v7240 = vrot.slane %v5678, 5
  %v7241 = vsel %vm4216, %v7239, %v7240
  %v7242 = vrot.slane %v7240, 4
  %v7243 = vrot.slane %v5679, 5
  %v7244 = vsel %vm4216, %v7242, %v7243
  %v7245 = vrot.slane %v7075, 5
  %v7246 = vrot.slane %v7245, 4
  %v7247 = vrot.slane %v5681, 5
  %v7248 = vsel %vm4216, %v7246, %v7247
  %v7249 = vrot.slane %v7247, 4
  %v7250 = vrot.slane %v5682, 5
  %v7251 = vsel %vm4216, %v7249, %v7250
  %v7252 = vrot.slane %v7076, 5
  %v7253 = vrot.slane %v7252, 4
  %v7254 = vrot.slane %v5684, 5
  %v7255 = vsel %vm4216, %v7253, %v7254
  %v7256 = vrot.slane %v7254, 4
  %v7257 = vrot.slane %v5685, 5
  %v7258 = vsel %vm4216, %v7256, %v7257
  %v7259 = vrot.slane %v7077, 5
  %v7260 = vrot.slane %v7259, 4
  %v7261 = vrot.slane %v5687, 5
  %v7262 = vsel %vm4216, %v7260, %v7261
  %v7263 = vrot.slane %v7261, 4
  %v7264 = vrot.slane %v5688, 5
  %v7265 = vsel %vm4216, %v7263, %v7264
  %v7266 = vrot.slane %v7078, 5
  %v7267 = vrot.slane %v7266, 4
  %v7268 = vrot.slane %v5690, 5
  %v7269 = vsel %vm4216, %v7267, %v7268
  %v7270 = vrot.slane %v7268, 4
  %v7271 = vrot.slane %v5691, 5
  %v7272 = vsel %vm4216, %v7270, %v7271
  %v7273 = vrot.slane %v7079, 5
  %v7274 = vrot.slane %v7273, 4
  %v7275 = vrot.slane %v5693, 5
  %v7276 = vsel %vm4216, %v7274, %v7275
  %v7277 = vrot.slane %v7275, 4
  %v7278 = vrot.slane %v5694, 5
  %v7279 = vsel %vm4216, %v7277, %v7278
  %v7280 = vrot.slane %v7080, 5
  %v7281 = vrot.slane %v7280, 4
  %v7282 = vrot.slane %v5696, 5
  %v7283 = vsel %vm4216, %v7281, %v7282
  %v7284 = vrot.slane %v7282, 4
  %v7285 = vrot.slane %v5697, 5
  %v7286 = vsel %vm4216, %v7284, %v7285
  %v7287 = vrot.slane %v7081, 5
  %v7288 = vrot.slane %v7287, 4
  %v7289 = vrot.slane %v5699, 5
  %v7290 = vsel %vm4216, %v7288, %v7289
  %v7291 = vrot.slane %v7289, 4
  %v7292 = vrot.slane %v5700, 5
  %v7293 = vsel %vm4216, %v7291, %v7292
  %v7294 = vrot.slane %v7082, 5
  %v7295 = vrot.slane %v7294, 4
  %v7296 = vrot.slane %v5702, 5
  %v7297 = vsel %vm4216, %v7295, %v7296
  %v7298 = vrot.slane %v7296, 4
  %v7299 = vrot.slane %v5703, 5
  %v7300 = vsel %vm4216, %v7298, %v7299
  %v7301 = vrot.slane %v7083, 5
  %v7302 = vrot.slane %v7301, 4
  %v7303 = vrot.slane %v5705, 5
  %v7304 = vsel %vm4216, %v7302, %v7303
  %v7305 = vrot.slane %v7303, 4
  %v7306 = vrot.slane %v5706, 5
  %v7307 = vsel %vm4216, %v7305, %v7306
  %v7308 = vrot.slane %v7084, 5
  %v7309 = vrot.slane %v7308, 4
  %v7310 = vrot.slane %v5708, 5
  %v7311 = vsel %vm4216, %v7309, %v7310
  %v7312 = vrot.slane %v7310, 4
  %v7313 = vrot.slane %v5709, 5
  %v7314 = vsel %vm4216, %v7312, %v7313
  %v7315 = vrot.slane %v7085, 5
  %v7316 = vrot.slane %v7315, 4
  %v7317 = vrot.slane %v5711, 5
  %v7318 = vsel %vm4216, %v7316, %v7317
  %v7319 = vrot.slane %v7317, 4
  %v7320 = vrot.slane %v5712, 5
  %v7321 = vsel %vm4216, %v7319, %v7320
  %v7322 = vrot.slane %v7086, 5
  %v7323 = vrot.slane %v7322, 4
  %v7324 = vrot.slane %v5714, 5
  %v7325 = vsel %vm4216, %v7323, %v7324
  %v7326 = vrot.slane %v7324, 4
  %v7327 = vrot.slane %v5715, 5
  %v7328 = vsel %vm4216, %v7326, %v7327
  %v7329 = vrot.slane %v7087, 5
  %v7330 = vrot.slane %v7329, 4
  %v7331 = vrot.slane %v5717, 5
  %v7332 = vsel %vm4216, %v7330, %v7331
  %v7333 = vrot.slane %v7331, 4
  %v7334 = vrot.slane %v5718, 5
  %v7335 = vsel %vm4216, %v7333, %v7334
  %v7336 = vrot.slane %v7088, 5
  %v7337 = vrot.slane %v7336, 4
  %v7338 = vrot.slane %v5720, 5
  %v7339 = vsel %vm4216, %v7337, %v7338
  %v7340 = vrot.slane %v7338, 4
  %v7341 = vrot.slane %v5721, 5
  %v7342 = vsel %vm4216, %v7340, %v7341
  %v7343 = vrot.slane %v7089, 5
  %v7344 = vrot.slane %v7343, 4
  %v7345 = vrot.slane %v5723, 5
  %v7346 = vsel %vm4216, %v7344, %v7345
  %v7347 = vrot.slane %v7345, 4
  %v7348 = vrot.slane %v5724, 5
  %v7349 = vsel %vm4216, %v7347, %v7348
  %v7350 = vrot.slane %v7090, 5
  %v7351 = vrot.slane %v7350, 4
  %v7352 = vrot.slane %v5726, 5
  %v7353 = vsel %vm4216, %v7351, %v7352
  %v7354 = vrot.slane %v7352, 4
  %v7355 = vrot.slane %v5727, 5
  %v7356 = vsel %vm4216, %v7354, %v7355
  %v7357 = vrot.slane %v7091, 5
  %v7358 = vrot.slane %v7357, 4
  %v7359 = vrot.slane %v5729, 5
  %v7360 = vsel %vm4216, %v7358, %v7359
  %v7361 = vrot.slane %v7359, 4
  %v7362 = vrot.slane %v5730, 5
  %v7363 = vsel %vm4216, %v7361, %v7362
  %v7364 = vrot.slane %v7092, 5
  %v7365 = vrot.slane %v7364, 4
  %v7366 = vrot.slane %v5732, 5
  %v7367 = vsel %vm4216, %v7365, %v7366
  %v7368 = vrot.slane %v7366, 4
  %v7369 = vrot.slane %v5733, 5
  %v7370 = vsel %vm4216, %v7368, %v7369
  %v7371 = vrot.slane %v7093, 5
  %v7372 = vrot.slane %v7371, 4
  %v7373 = vrot.slane %v5735, 5
  %v7374 = vsel %vm4216, %v7372, %v7373
  %v7375 = vrot.slane %v7373, 4
  %v7376 = vrot.slane %v5736, 5
  %v7377 = vsel %vm4216, %v7375, %v7376
  %v7378 = vrot.slane %v7094, 5
  %v7379 = vrot.slane %v7378, 4
  %v7380 = vrot.slane %v5738, 5
  %v7381 = vsel %vm4216, %v7379, %v7380
  %v7382 = vrot.slane %v7380, 4
  %v7383 = vrot.slane %v5739, 5
  %v7384 = vsel %vm4216, %v7382, %v7383
  %v7385 = vrot.slane %v7095, 5
  %v7386 = vrot.slane %v7385, 4
  %v7387 = vrot.slane %v5741, 5
  %v7388 = vsel %vm4216, %v7386, %v7387
  %v7389 = vrot.slane %v7387, 4
  %v7390 = vrot.slane %v5742, 5
  %v7391 = vsel %vm4216, %v7389, %v7390
  %v7392 = vrot.slane %v7096, 5
  %v7393 = vrot.slane %v7392, 4
  %v7394 = vrot.slane %v5744, 5
  %v7395 = vsel %vm4216, %v7393, %v7394
  %v7396 = vrot.slane %v7394, 4
  %v7397 = vrot.slane %v5745, 5
  %v7398 = vsel %vm4216, %v7396, %v7397
  %v7399 = vrot.slane %v7097, 5
  %v7400 = vrot.slane %v7399, 4
  %v7401 = vrot.slane %v5747, 5
  %v7402 = vsel %vm4216, %v7400, %v7401
  %v7403 = vrot.slane %v7401, 4
  %v7404 = vrot.slane %v5748, 5
  %v7405 = vsel %vm4216, %v7403, %v7404
  %v7406 = vrot.slane %v7098, 5
  %v7407 = vrot.slane %v7406, 4
  %v7408 = vrot.slane %v5750, 5
  %v7409 = vsel %vm4216, %v7407, %v7408
  %v7410 = vrot.slane %v7408, 4
  %v7411 = vrot.slane %v5751, 5
  %v7412 = vsel %vm4216, %v7410, %v7411
  %v7413 = vrot.slane %v7099, 5
  %v7414 = vrot.slane %v7413, 4
  %v7415 = vrot.slane %v5753, 5
  %v7416 = vsel %vm4216, %v7414, %v7415
  %v7417 = vrot.slane %v7415, 4
  %v7418 = vrot.slane %v5754, 5
  %v7419 = vsel %vm4216, %v7417, %v7418
  %v7420 = vld [vmem:[%s4 + $0x140] sm:$0xf]
  %v7421 = vld [vmem:[%s4 + $0x144] sm:$0xf]
  %v7422 = vld [vmem:[%s4 + $0x148] sm:$0xf]
  %v7423 = vld [vmem:[%s4 + $0x14c] sm:$0xf]
  %v7424 = vld [vmem:[%s4 + $0x150] sm:$0xf]
  %v7425 = vld [vmem:[%s4 + $0x154] sm:$0xf]
  %v7426 = vld [vmem:[%s4 + $0x158] sm:$0xf]
  %v7427 = vld [vmem:[%s4 + $0x15c] sm:$0xf]
  %v7428 = vld [vmem:[%s4 + $0x160] sm:$0xf]
  %v7429 = vld [vmem:[%s4 + $0x164] sm:$0xf]
  %v7430 = vld [vmem:[%s4 + $0x168] sm:$0xf]
  %v7431 = vld [vmem:[%s4 + $0x16c] sm:$0xf]
  %v7432 = vld [vmem:[%s4 + $0x170] sm:$0xf]
  %v7433 = vld [vmem:[%s4 + $0x174] sm:$0xf]
  %v7434 = vld [vmem:[%s4 + $0x178] sm:$0xf]
  %v7435 = vld [vmem:[%s4 + $0x17c] sm:$0xf]
  %v7436 = vunpack.c.l.b16 %v7199
  %v7437 = vunpack.c.l.b16 %v7202
  %v7438 = vunpack.c.l.b16 %v7206
  %v7439 = vunpack.c.l.b16 %v7209
  %v7440 = vunpack.c.l.b16 %v7213
  %v7441 = vunpack.c.l.b16 %v7216
  %v7442 = vunpack.c.l.b16 %v7220
  %v7443 = vunpack.c.l.b16 %v7223
  %v7444 = vunpack.c.l.b16 %v7227
  %v7445 = vunpack.c.l.b16 %v7230
  %v7446 = vunpack.c.l.b16 %v7234
  %v7447 = vunpack.c.l.b16 %v7237
  %v7448 = vunpack.c.l.b16 %v7241
  %v7449 = vunpack.c.l.b16 %v7244
  %v7450 = vunpack.c.l.b16 %v7248
  %v7451 = vunpack.c.l.b16 %v7251
  %v7452 = vunpack.c.l.b16 %v7255
  %v7453 = vunpack.c.l.b16 %v7258
  %v7454 = vunpack.c.l.b16 %v7262
  %v7455 = vunpack.c.l.b16 %v7265
  %v7456 = vunpack.c.l.b16 %v7269
  %v7457 = vunpack.c.l.b16 %v7272
  %v7458 = vunpack.c.l.b16 %v7276
  %v7459 = vunpack.c.l.b16 %v7279
  %v7460 = vunpack.c.l.b16 %v7283
  %v7461 = vunpack.c.l.b16 %v7286
  %v7462 = vunpack.c.l.b16 %v7290
  %v7463 = vunpack.c.l.b16 %v7293
  %v7464 = vunpack.c.l.b16 %v7297
  %v7465 = vunpack.c.l.b16 %v7300
  %v7466 = vunpack.c.l.b16 %v7304
  %v7467 = vunpack.c.l.b16 %v7307
  %v7468 = vunpack.c.l.b16 %v7311
  %v7469 = vunpack.c.l.b16 %v7314
  %v7470 = vunpack.c.l.b16 %v7318
  %v7471 = vunpack.c.l.b16 %v7321
  %v7472 = vunpack.c.l.b16 %v7325
  %v7473 = vunpack.c.l.b16 %v7328
  %v7474 = vunpack.c.l.b16 %v7332
  %v7475 = vunpack.c.l.b16 %v7335
  %v7476 = vunpack.c.l.b16 %v7339
  %v7477 = vunpack.c.l.b16 %v7342
  %v7478 = vunpack.c.l.b16 %v7346
  %v7479 = vunpack.c.l.b16 %v7349
  %v7480 = vunpack.c.l.b16 %v7353
  %v7481 = vunpack.c.l.b16 %v7356
  %v7482 = vunpack.c.l.b16 %v7360
  %v7483 = vunpack.c.l.b16 %v7363
  %v7484 = vunpack.c.l.b16 %v7367
  %v7485 = vunpack.c.l.b16 %v7370
  %v7486 = vunpack.c.l.b16 %v7374
  %v7487 = vunpack.c.l.b16 %v7377
  %v7488 = vunpack.c.l.b16 %v7381
  %v7489 = vunpack.c.l.b16 %v7384
  %v7490 = vunpack.c.l.b16 %v7388
  %v7491 = vunpack.c.l.b16 %v7391
  %v7492 = vunpack.c.l.b16 %v7395
  %v7493 = vunpack.c.l.b16 %v7398
  %v7494 = vunpack.c.l.b16 %v7402
  %v7495 = vunpack.c.l.b16 %v7405
  %v7496 = vunpack.c.l.b16 %v7409
  %v7497 = vunpack.c.l.b16 %v7412
  %v7498 = vunpack.c.l.b16 %v7416
  %v7499 = vunpack.c.l.b16 %v7419
  %v7500 = vpack.c.b16 %v7437, %v7436
  %v7501 = vpack.c.b16 %v7439, %v7438
  %v7502 = vpack.c.b16 %v7441, %v7440
  %v7503 = vpack.c.b16 %v7443, %v7442
  %v7504 = vpack.c.b16 %v7445, %v7444
  %v7505 = vpack.c.b16 %v7447, %v7446
  %v7506 = vpack.c.b16 %v7449, %v7448
  %v7507 = vpack.c.b16 %v7451, %v7450
  %v7508 = vpack.c.b16 %v7453, %v7452
  %v7509 = vpack.c.b16 %v7455, %v7454
  %v7510 = vpack.c.b16 %v7457, %v7456
  %v7511 = vpack.c.b16 %v7459, %v7458
  %v7512 = vpack.c.b16 %v7461, %v7460
  %v7513 = vpack.c.b16 %v7463, %v7462
  %v7514 = vpack.c.b16 %v7465, %v7464
  %v7515 = vpack.c.b16 %v7467, %v7466
  %v7516 = vpack.c.b16 %v7469, %v7468
  %v7517 = vpack.c.b16 %v7471, %v7470
  %v7518 = vpack.c.b16 %v7473, %v7472
  %v7519 = vpack.c.b16 %v7475, %v7474
  %v7520 = vpack.c.b16 %v7477, %v7476
  %v7521 = vpack.c.b16 %v7479, %v7478
  %v7522 = vpack.c.b16 %v7481, %v7480
  %v7523 = vpack.c.b16 %v7483, %v7482
  %v7524 = vpack.c.b16 %v7485, %v7484
  %v7525 = vpack.c.b16 %v7487, %v7486
  %v7526 = vpack.c.b16 %v7489, %v7488
  %v7527 = vpack.c.b16 %v7491, %v7490
  %v7528 = vpack.c.b16 %v7493, %v7492
  %v7529 = vpack.c.b16 %v7495, %v7494
  %v7530 = vpack.c.b16 %v7497, %v7496
  %v7531 = vpack.c.b16 %v7499, %v7498
  %v7580 = vunpack.c.l.b16 %v7420
  %v7581 = vunpack.c.l.b16 %v7421
  %v7582 = vunpack.c.l.b16 %v7422
  %v7583 = vunpack.c.l.b16 %v7423
  %v7584 = vunpack.c.l.b16 %v7424
  %v7585 = vunpack.c.l.b16 %v7425
  %v7586 = vunpack.c.l.b16 %v7426
  %v7587 = vunpack.c.l.b16 %v7427
  %v7588 = vunpack.c.l.b16 %v7428
  %v7589 = vunpack.c.l.b16 %v7429
  %v7590 = vunpack.c.l.b16 %v7430
  %v7591 = vunpack.c.l.b16 %v7431
  %v7592 = vunpack.c.l.b16 %v7432
  %v7593 = vunpack.c.l.b16 %v7433
  %v7594 = vunpack.c.l.b16 %v7434
  %v7595 = vunpack.c.l.b16 %v7435
  %v7596 = vpack.c.b16 %v7581, %v7580
  %v7597 = vpack.c.b16 %v7583, %v7582
  %v7598 = vpack.c.b16 %v7585, %v7584
  %v7599 = vpack.c.b16 %v7587, %v7586
  %v7600 = vpack.c.b16 %v7589, %v7588
  %v7601 = vpack.c.b16 %v7591, %v7590
  %v7602 = vpack.c.b16 %v7593, %v7592
  %v7603 = vpack.c.b16 %v7595, %v7594
  %7612 = vmatprep.subr.bf16.mxu0 0
  %7613 = vmatpush1.bf16.msra.mxu0 %v7596
  %7614 = vmatprep.subr.bf16.mxu0 0
  %7615 = vmatpush1.bf16.msra.mxu0 %v7597
  %7616 = vmatprep.subr.bf16.mxu0 0
  %7617 = vmatpush1.bf16.msra.mxu0 %v7598
  %7618 = vmatprep.subr.bf16.mxu0 0
  %7619 = vmatpush1.bf16.msra.mxu0 %v7599
  %7620 = vmatprep.subr.bf16.mxu0 0
  %7621 = vmatpush1.bf16.msra.mxu0 %v7600
  %7622 = vmatprep.subr.bf16.mxu0 0
  %7623 = vmatpush1.bf16.msra.mxu0 %v7601
  %7624 = vmatprep.subr.bf16.mxu0 0
  %7625 = vmatpush1.bf16.msra.mxu0 %v7602
  %7626 = vmatprep.subr.bf16.mxu0 0
  %7627 = vmatpush1.bf16.msra.mxu0 %v7603
  %7628 = vmatprep.subr.bf16.mxu0 0
  %7629 = vmatpush1.bf16.msra.mxu0 0
  %7630 = vmatprep.subr.bf16.mxu0 0
  %7631 = vmatpush1.bf16.msra.mxu0 0
  %7632 = vmatprep.subr.bf16.mxu0 0
  %7633 = vmatpush1.bf16.msra.mxu0 0
  %7634 = vmatprep.subr.bf16.mxu0 0
  %7635 = vmatpush1.bf16.msra.mxu0 0
  %7636 = vmatprep.subr.bf16.mxu0 0
  %7637 = vmatpush1.bf16.msra.mxu0 0
  %7638 = vmatprep.subr.bf16.mxu0 0
  %7639 = vmatpush1.bf16.msra.mxu0 0
  %7640 = vmatprep.subr.bf16.mxu0 0
  %7641 = vmatpush1.bf16.msra.mxu0 0
  %7642 = vmatprep.subr.bf16.mxu0 0
  %7643 = vmatpush1.bf16.msra.mxu0 0
  %7644 = vmatprep.mubr.bf16.mxu0 0
  %7645 = vmatmul.mubr.bf16.gmra.mrb[0].mxu0 %v7500
  %v7646 = vpop.f32.mrb[0].mxu0
  %v7647 = vadd.f32 0.0, %v7646
  %v7648 = vpop.f32.mrb[0].mxu0
  %v7649 = vpop.f32.mrb[0].mxu0
  %v7650 = vadd.f32 0.0, %v7649
  %v7651 = vpop.f32.mrb[0].mxu0
  %7652 = vmatprep.mubr.bf16.mxu0 0
  %7653 = vmatmul.mubr.bf16.gmra.mrb[0].mxu0 %v7501
  %v7654 = vpop.f32.mrb[0].mxu0
  %v7655 = vadd.f32 0.0, %v7654
  %v7656 = vpop.f32.mrb[0].mxu0
  %v7657 = vpop.f32.mrb[0].mxu0
  %v7658 = vadd.f32 0.0, %v7657
  %v7659 = vpop.f32.mrb[0].mxu0
  %7660 = vmatprep.mubr.bf16.mxu0 0
  %7661 = vmatmul.mubr.bf16.gmra.mrb[0].mxu0 %v7502
  %v7662 = vpop.f32.mrb[0].mxu0
  %v7663 = vadd.f32 0.0, %v7662
  %v7664 = vpop.f32.mrb[0].mxu0
  %v7665 = vpop.f32.mrb[0].mxu0
  %v7666 = vadd.f32 0.0, %v7665
  %v7667 = vpop.f32.mrb[0].mxu0
  %7668 = vmatprep.mubr.bf16.mxu0 0
  %7669 = vmatmul.mubr.bf16.gmra.mrb[0].mxu0 %v7503
  %v7670 = vpop.f32.mrb[0].mxu0
  %v7671 = vadd.f32 0.0, %v7670
  %v7672 = vpop.f32.mrb[0].mxu0
  %v7673 = vpop.f32.mrb[0].mxu0
  %v7674 = vadd.f32 0.0, %v7673
  %v7675 = vpop.f32.mrb[0].mxu0
  %7676 = vmatprep.mubr.bf16.mxu0 0
  %7677 = vmatmul.mubr.bf16.gmra.mrb[0].mxu0 %v7504
  %v7678 = vpop.f32.mrb[0].mxu0
  %v7679 = vadd.f32 0.0, %v7678
  %v7680 = vpop.f32.mrb[0].mxu0
  %v7681 = vpop.f32.mrb[0].mxu0
  %v7682 = vadd.f32 0.0, %v7681
  %v7683 = vpop.f32.mrb[0].mxu0
  %7684 = vmatprep.mubr.bf16.mxu0 0
  %7685 = vmatmul.mubr.bf16.gmra.mrb[0].mxu0 %v7505
  %v7686 = vpop.f32.mrb[0].mxu0
  %v7687 = vadd.f32 0.0, %v7686
  %v7688 = vpop.f32.mrb[0].mxu0
  %v7689 = vpop.f32.mrb[0].mxu0
  %v7690 = vadd.f32 0.0, %v7689
  %v7691 = vpop.f32.mrb[0].mxu0
  %7692 = vmatprep.mubr.bf16.mxu0 0
  %7693 = vmatmul.mubr.bf16.gmra.mrb[0].mxu0 %v7506
  %v7694 = vpop.f32.mrb[0].mxu0
  %v7695 = vadd.f32 0.0, %v7694
  %v7696 = vpop.f32.mrb[0].mxu0
  %v7697 = vpop.f32.mrb[0].mxu0
  %v7698 = vadd.f32 0.0, %v7697
  %v7699 = vpop.f32.mrb[0].mxu0
  %7700 = vmatprep.mubr.bf16.mxu0 0
  %7701 = vmatmul.mubr.bf16.gmra.mrb[0].mxu0 %v7507
  %v7702 = vpop.f32.mrb[0].mxu0
  %v7703 = vadd.f32 0.0, %v7702
  %v7704 = vpop.f32.mrb[0].mxu0
  %v7705 = vpop.f32.mrb[0].mxu0
  %v7706 = vadd.f32 0.0, %v7705
  %v7707 = vpop.f32.mrb[0].mxu0
  %7708 = vmatprep.mubr.bf16.mxu0 0
  %7709 = vmatmul.mubr.bf16.gmra.mrb[0].mxu0 %v7508
  %v7710 = vpop.f32.mrb[0].mxu0
  %v7711 = vadd.f32 0.0, %v7710
  %v7712 = vpop.f32.mrb[0].mxu0
  %v7713 = vpop.f32.mrb[0].mxu0
  %v7714 = vadd.f32 0.0, %v7713
  %v7715 = vpop.f32.mrb[0].mxu0
  %7716 = vmatprep.mubr.bf16.mxu0 0
  %7717 = vmatmul.mubr.bf16.gmra.mrb[0].mxu0 %v7509
  %v7718 = vpop.f32.mrb[0].mxu0
  %v7719 = vadd.f32 0.0, %v7718
  %v7720 = vpop.f32.mrb[0].mxu0
  %v7721 = vpop.f32.mrb[0].mxu0
  %v7722 = vadd.f32 0.0, %v7721
  %v7723 = vpop.f32.mrb[0].mxu0
  %7724 = vmatprep.mubr.bf16.mxu0 0
  %7725 = vmatmul.mubr.bf16.gmra.mrb[0].mxu0 %v7510
  %v7726 = vpop.f32.mrb[0].mxu0
  %v7727 = vadd.f32 0.0, %v7726
  %v7728 = vpop.f32.mrb[0].mxu0
  %v7729 = vpop.f32.mrb[0].mxu0
  %v7730 = vadd.f32 0.0, %v7729
  %v7731 = vpop.f32.mrb[0].mxu0
  %7732 = vmatprep.mubr.bf16.mxu0 0
  %7733 = vmatmul.mubr.bf16.gmra.mrb[0].mxu0 %v7511
  %v7734 = vpop.f32.mrb[0].mxu0
  %v7735 = vadd.f32 0.0, %v7734
  %v7736 = vpop.f32.mrb[0].mxu0
  %v7737 = vpop.f32.mrb[0].mxu0
  %v7738 = vadd.f32 0.0, %v7737
  %v7739 = vpop.f32.mrb[0].mxu0
  %7740 = vmatprep.mubr.bf16.mxu0 0
  %7741 = vmatmul.mubr.bf16.gmra.mrb[0].mxu0 %v7512
  %v7742 = vpop.f32.mrb[0].mxu0
  %v7743 = vadd.f32 0.0, %v7742
  %v7744 = vpop.f32.mrb[0].mxu0
  %v7745 = vpop.f32.mrb[0].mxu0
  %v7746 = vadd.f32 0.0, %v7745
  %v7747 = vpop.f32.mrb[0].mxu0
  %7748 = vmatprep.mubr.bf16.mxu0 0
  %7749 = vmatmul.mubr.bf16.gmra.mrb[0].mxu0 %v7513
  %v7750 = vpop.f32.mrb[0].mxu0
  %v7751 = vadd.f32 0.0, %v7750
  %v7752 = vpop.f32.mrb[0].mxu0
  %v7753 = vpop.f32.mrb[0].mxu0
  %v7754 = vadd.f32 0.0, %v7753
  %v7755 = vpop.f32.mrb[0].mxu0
  %7756 = vmatprep.mubr.bf16.mxu0 0
  %7757 = vmatmul.mubr.bf16.gmra.mrb[0].mxu0 %v7514
  %v7758 = vpop.f32.mrb[0].mxu0
  %v7759 = vadd.f32 0.0, %v7758
  %v7760 = vpop.f32.mrb[0].mxu0
  %v7761 = vpop.f32.mrb[0].mxu0
  %v7762 = vadd.f32 0.0, %v7761
  %v7763 = vpop.f32.mrb[0].mxu0
  %7764 = vmatprep.mubr.bf16.mxu0 0
  %7765 = vmatmul.mubr.bf16.gmra.mrb[0].mxu0 %v7515
  %v7766 = vpop.f32.mrb[0].mxu0
  %v7767 = vadd.f32 0.0, %v7766
  %v7768 = vpop.f32.mrb[0].mxu0
  %v7769 = vpop.f32.mrb[0].mxu0
  %v7770 = vadd.f32 0.0, %v7769
  %v7771 = vpop.f32.mrb[0].mxu0
  %7772 = vmatprep.mubr.bf16.mxu0 0
  %7773 = vmatmul.mubr.bf16.gmra.mrb[0].mxu0 %v7516
  %v7774 = vpop.f32.mrb[0].mxu0
  %v7775 = vadd.f32 0.0, %v7774
  %v7776 = vpop.f32.mrb[0].mxu0
  %v7777 = vpop.f32.mrb[0].mxu0
  %v7778 = vadd.f32 0.0, %v7777
  %v7779 = vpop.f32.mrb[0].mxu0
  %7780 = vmatprep.mubr.bf16.mxu0 0
  %7781 = vmatmul.mubr.bf16.gmra.mrb[0].mxu0 %v7517
  %v7782 = vpop.f32.mrb[0].mxu0
  %v7783 = vadd.f32 0.0, %v7782
  %v7784 = vpop.f32.mrb[0].mxu0
  %v7785 = vpop.f32.mrb[0].mxu0
  %v7786 = vadd.f32 0.0, %v7785
  %v7787 = vpop.f32.mrb[0].mxu0
  %7788 = vmatprep.mubr.bf16.mxu0 0
  %7789 = vmatmul.mubr.bf16.gmra.mrb[0].mxu0 %v7518
  %v7790 = vpop.f32.mrb[0].mxu0
  %v7791 = vadd.f32 0.0, %v7790
  %v7792 = vpop.f32.mrb[0].mxu0
  %v7793 = vpop.f32.mrb[0].mxu0
  %v7794 = vadd.f32 0.0, %v7793
  %v7795 = vpop.f32.mrb[0].mxu0
  %7796 = vmatprep.mubr.bf16.mxu0 0
  %7797 = vmatmul.mubr.bf16.gmra.mrb[0].mxu0 %v7519
  %v7798 = vpop.f32.mrb[0].mxu0
  %v7799 = vadd.f32 0.0, %v7798
  %v7800 = vpop.f32.mrb[0].mxu0
  %v7801 = vpop.f32.mrb[0].mxu0
  %v7802 = vadd.f32 0.0, %v7801
  %v7803 = vpop.f32.mrb[0].mxu0
  %7804 = vmatprep.mubr.bf16.mxu0 0
  %7805 = vmatmul.mubr.bf16.gmra.mrb[0].mxu0 %v7520
  %v7806 = vpop.f32.mrb[0].mxu0
  %v7807 = vadd.f32 0.0, %v7806
  %v7808 = vpop.f32.mrb[0].mxu0
  %v7809 = vpop.f32.mrb[0].mxu0
  %v7810 = vadd.f32 0.0, %v7809
  %v7811 = vpop.f32.mrb[0].mxu0
  %7812 = vmatprep.mubr.bf16.mxu0 0
  %7813 = vmatmul.mubr.bf16.gmra.mrb[0].mxu0 %v7521
  %v7814 = vpop.f32.mrb[0].mxu0
  %v7815 = vadd.f32 0.0, %v7814
  %v7816 = vpop.f32.mrb[0].mxu0
  %v7817 = vpop.f32.mrb[0].mxu0
  %v7818 = vadd.f32 0.0, %v7817
  %v7819 = vpop.f32.mrb[0].mxu0
  %7820 = vmatprep.mubr.bf16.mxu0 0
  %7821 = vmatmul.mubr.bf16.gmra.mrb[0].mxu0 %v7522
  %v7822 = vpop.f32.mrb[0].mxu0
  %v7823 = vadd.f32 0.0, %v7822
  %v7824 = vpop.f32.mrb[0].mxu0
  %v7825 = vpop.f32.mrb[0].mxu0
  %v7826 = vadd.f32 0.0, %v7825
  %v7827 = vpop.f32.mrb[0].mxu0
  %7828 = vmatprep.mubr.bf16.mxu0 0
  %7829 = vmatmul.mubr.bf16.gmra.mrb[0].mxu0 %v7523
  %v7830 = vpop.f32.mrb[0].mxu0
  %v7831 = vadd.f32 0.0, %v7830
  %v7832 = vpop.f32.mrb[0].mxu0
  %v7833 = vpop.f32.mrb[0].mxu0
  %v7834 = vadd.f32 0.0, %v7833
  %v7835 = vpop.f32.mrb[0].mxu0
  %7836 = vmatprep.mubr.bf16.mxu0 0
  %7837 = vmatmul.mubr.bf16.gmra.mrb[0].mxu0 %v7524
  %v7838 = vpop.f32.mrb[0].mxu0
  %v7839 = vadd.f32 0.0, %v7838
  %v7840 = vpop.f32.mrb[0].mxu0
  %v7841 = vpop.f32.mrb[0].mxu0
  %v7842 = vadd.f32 0.0, %v7841
  %v7843 = vpop.f32.mrb[0].mxu0
  %7844 = vmatprep.mubr.bf16.mxu0 0
  %7845 = vmatmul.mubr.bf16.gmra.mrb[0].mxu0 %v7525
  %v7846 = vpop.f32.mrb[0].mxu0
  %v7847 = vadd.f32 0.0, %v7846
  %v7848 = vpop.f32.mrb[0].mxu0
  %v7849 = vpop.f32.mrb[0].mxu0
  %v7850 = vadd.f32 0.0, %v7849
  %v7851 = vpop.f32.mrb[0].mxu0
  %7852 = vmatprep.mubr.bf16.mxu0 0
  %7853 = vmatmul.mubr.bf16.gmra.mrb[0].mxu0 %v7526
  %v7854 = vpop.f32.mrb[0].mxu0
  %v7855 = vadd.f32 0.0, %v7854
  %v7856 = vpop.f32.mrb[0].mxu0
  %v7857 = vpop.f32.mrb[0].mxu0
  %v7858 = vadd.f32 0.0, %v7857
  %v7859 = vpop.f32.mrb[0].mxu0
  %7860 = vmatprep.mubr.bf16.mxu0 0
  %7861 = vmatmul.mubr.bf16.gmra.mrb[0].mxu0 %v7527
  %v7862 = vpop.f32.mrb[0].mxu0
  %v7863 = vadd.f32 0.0, %v7862
  %v7864 = vpop.f32.mrb[0].mxu0
  %v7865 = vpop.f32.mrb[0].mxu0
  %v7866 = vadd.f32 0.0, %v7865
  %v7867 = vpop.f32.mrb[0].mxu0
  %7868 = vmatprep.mubr.bf16.mxu0 0
  %7869 = vmatmul.mubr.bf16.gmra.mrb[0].mxu0 %v7528
  %v7870 = vpop.f32.mrb[0].mxu0
  %v7871 = vadd.f32 0.0, %v7870
  %v7872 = vpop.f32.mrb[0].mxu0
  %v7873 = vpop.f32.mrb[0].mxu0
  %v7874 = vadd.f32 0.0, %v7873
  %v7875 = vpop.f32.mrb[0].mxu0
  %7876 = vmatprep.mubr.bf16.mxu0 0
  %7877 = vmatmul.mubr.bf16.gmra.mrb[0].mxu0 %v7529
  %v7878 = vpop.f32.mrb[0].mxu0
  %v7879 = vadd.f32 0.0, %v7878
  %v7880 = vpop.f32.mrb[0].mxu0
  %v7881 = vpop.f32.mrb[0].mxu0
  %v7882 = vadd.f32 0.0, %v7881
  %v7883 = vpop.f32.mrb[0].mxu0
  %7884 = vmatprep.mubr.bf16.mxu0 0
  %7885 = vmatmul.mubr.bf16.gmra.mrb[0].mxu0 %v7530
  %v7886 = vpop.f32.mrb[0].mxu0
  %v7887 = vadd.f32 0.0, %v7886
  %v7888 = vpop.f32.mrb[0].mxu0
  %v7889 = vpop.f32.mrb[0].mxu0
  %v7890 = vadd.f32 0.0, %v7889
  %v7891 = vpop.f32.mrb[0].mxu0
  %7892 = vmatprep.mubr.bf16.mxu0 0
  %7893 = vmatmul.mubr.bf16.gmra.mrb[0].mxu0 %v7531
  %v7894 = vpop.f32.mrb[0].mxu0
  %v7895 = vadd.f32 0.0, %v7894
  %v7896 = vpop.f32.mrb[0].mxu0
  %v7897 = vpop.f32.mrb[0].mxu0
  %v7898 = vadd.f32 0.0, %v7897
  %v7899 = vpop.f32.mrb[0].mxu0
  %7900 = vdwg.mxu0
  %v7901 = vadd.f32 %v7004, %v7647
  %v7902 = vadd.f32 %v7005, %v7650
  %v7903 = vadd.f32 %v7006, %v7655
  %v7904 = vadd.f32 %v7007, %v7658
  %v7905 = vadd.f32 %v7008, %v7663
  %v7906 = vadd.f32 %v7009, %v7666
  %v7907 = vadd.f32 %v7010, %v7671
  %v7908 = vadd.f32 %v7011, %v7674
  %v7909 = vadd.f32 %v7012, %v7679
  %v7910 = vadd.f32 %v7013, %v7682
  %v7911 = vadd.f32 %v7014, %v7687
  %v7912 = vadd.f32 %v7015, %v7690
  %v7913 = vadd.f32 %v7016, %v7695
  %v7914 = vadd.f32 %v7017, %v7698
  %v7915 = vadd.f32 %v7018, %v7703
  %v7916 = vadd.f32 %v7019, %v7706
  %v7917 = vadd.f32 %v7020, %v7711
  %v7918 = vadd.f32 %v7021, %v7714
  %v7919 = vadd.f32 %v7022, %v7719
  %v7920 = vadd.f32 %v7023, %v7722
  %v7921 = vadd.f32 %v7024, %v7727
  %v7922 = vadd.f32 %v7025, %v7730
  %v7923 = vadd.f32 %v7026, %v7735
  %v7924 = vadd.f32 %v7027, %v7738
  %v7925 = vadd.f32 %v7028, %v7743
  %v7926 = vadd.f32 %v7029, %v7746
  %v7927 = vadd.f32 %v7030, %v7751
  %v7928 = vadd.f32 %v7031, %v7754
  %v7929 = vadd.f32 %v7032, %v7759
  %v7930 = vadd.f32 %v7033, %v7762
  %v7931 = vadd.f32 %v7034, %v7767
  %v7932 = vadd.f32 %v7035, %v7770
  %v7933 = vadd.f32 %v7036, %v7775
  %v7934 = vadd.f32 %v7037, %v7778
  %v7935 = vadd.f32 %v7038, %v7783
  %v7936 = vadd.f32 %v7039, %v7786
  %v7937 = vadd.f32 %v7040, %v7791
  %v7938 = vadd.f32 %v7041, %v7794
  %v7939 = vadd.f32 %v7042, %v7799
  %v7940 = vadd.f32 %v7043, %v7802
  %v7941 = vadd.f32 %v7044, %v7807
  %v7942 = vadd.f32 %v7045, %v7810
  %v7943 = vadd.f32 %v7046, %v7815
  %v7944 = vadd.f32 %v7047, %v7818
  %v7945 = vadd.f32 %v7048, %v7823
  %v7946 = vadd.f32 %v7049, %v7826
  %v7947 = vadd.f32 %v7050, %v7831
  %v7948 = vadd.f32 %v7051, %v7834
  %v7949 = vadd.f32 %v7052, %v7839
  %v7950 = vadd.f32 %v7053, %v7842
  %v7951 = vadd.f32 %v7054, %v7847
  %v7952 = vadd.f32 %v7055, %v7850
  %v7953 = vadd.f32 %v7056, %v7855
  %v7954 = vadd.f32 %v7057, %v7858
  %v7955 = vadd.f32 %v7058, %v7863
  %v7956 = vadd.f32 %v7059, %v7866
  %v7957 = vadd.f32 %v7060, %v7871
  %v7958 = vadd.f32 %v7061, %v7874
  %v7959 = vadd.f32 %v7062, %v7879
  %v7960 = vadd.f32 %v7063, %v7882
  %v7961 = vadd.f32 %v7064, %v7887
  %v7962 = vadd.f32 %v7065, %v7890
  %v7963 = vadd.f32 %v7066, %v7895
  %v7964 = vadd.f32 %v7067, %v7898
  %s7965 = scalar_lea.vmem [#allocation2], 24
  %v7966 = vld [vmem:[%s7965] sm:$0xf]
  %v7967 = vld [vmem:[%s7965 + $0x4] sm:$0xf]
  %v7968 = vld [vmem:[%s7965 + $0xc] sm:$0xf]
  %v7969 = vld [vmem:[%s7965 + $0x10] sm:$0xf]
  %v7970 = vld [vmem:[%s7965 + $0x18] sm:$0xf]
  %v7971 = vld [vmem:[%s7965 + $0x1c] sm:$0xf]
  %v7972 = vld [vmem:[%s7965 + $0x24] sm:$0xf]
  %v7973 = vld [vmem:[%s7965 + $0x28] sm:$0xf]
  %v7974 = vld [vmem:[%s7965 + $0x30] sm:$0xf]
  %v7975 = vld [vmem:[%s7965 + $0x34] sm:$0xf]
  %v7976 = vld [vmem:[%s7965 + $0x3c] sm:$0xf]
  %v7977 = vld [vmem:[%s7965 + $0x40] sm:$0xf]
  %v7978 = vld [vmem:[%s7965 + $0x48] sm:$0xf]
  %v7979 = vld [vmem:[%s7965 + $0x4c] sm:$0xf]
  %v7980 = vld [vmem:[%s7965 + $0x54] sm:$0xf]
  %v7981 = vld [vmem:[%s7965 + $0x58] sm:$0xf]
  %v7982 = vld [vmem:[%s7965 + $0x60] sm:$0xf]
  %v7983 = vld [vmem:[%s7965 + $0x64] sm:$0xf]
  %v7984 = vld [vmem:[%s7965 + $0x6c] sm:$0xf]
  %v7985 = vld [vmem:[%s7965 + $0x70] sm:$0xf]
  %v7986 = vld [vmem:[%s7965 + $0x78] sm:$0xf]
  %v7987 = vld [vmem:[%s7965 + $0x7c] sm:$0xf]
  %v7988 = vld [vmem:[%s7965 + $0x84] sm:$0xf]
  %v7989 = vld [vmem:[%s7965 + $0x88] sm:$0xf]
  %v7990 = vld [vmem:[%s7965 + $0x90] sm:$0xf]
  %v7991 = vld [vmem:[%s7965 + $0x94] sm:$0xf]
  %v7992 = vld [vmem:[%s7965 + $0x9c] sm:$0xf]
  %v7993 = vld [vmem:[%s7965 + $0xa0] sm:$0xf]
  %v7994 = vld [vmem:[%s7965 + $0xa8] sm:$0xf]
  %v7995 = vld [vmem:[%s7965 + $0xac] sm:$0xf]
  %v7996 = vld [vmem:[%s7965 + $0xb4] sm:$0xf]
  %v7997 = vld [vmem:[%s7965 + $0xb8] sm:$0xf]
  %v7998 = vld [vmem:[%s7965 + $0xd8] sm:$0xf]
  %v7999 = vld [vmem:[%s7965 + $0xdc] sm:$0xf]
  %v8000 = vld [vmem:[%s7965 + $0xe4] sm:$0xf]
  %v8001 = vld [vmem:[%s7965 + $0xe8] sm:$0xf]
  %v8002 = vld [vmem:[%s7965 + $0xf0] sm:$0xf]
  %v8003 = vld [vmem:[%s7965 + $0xf4] sm:$0xf]
  %v8004 = vld [vmem:[%s7965 + $0xfc] sm:$0xf]
  %v8005 = vld [vmem:[%s7965 + $0x100] sm:$0xf]
  %v8006 = vld [vmem:[%s7965 + $0x108] sm:$0xf]
  %v8007 = vld [vmem:[%s7965 + $0x10c] sm:$0xf]
  %v8008 = vld [vmem:[%s7965 + $0x114] sm:$0xf]
  %v8009 = vld [vmem:[%s7965 + $0x118] sm:$0xf]
  %v8010 = vld [vmem:[%s7965 + $0x120] sm:$0xf]
  %v8011 = vld [vmem:[%s7965 + $0x124] sm:$0xf]
  %v8012 = vld [vmem:[%s7965 + $0x12c] sm:$0xf]
  %v8013 = vld [vmem:[%s7965 + $0x130] sm:$0xf]
  %v8014 = vld [vmem:[%s7965 + $0x138] sm:$0xf]
  %v8015 = vld [vmem:[%s7965 + $0x13c] sm:$0xf]
  %v8016 = vld [vmem:[%s7965 + $0x144] sm:$0xf]
  %v8017 = vld [vmem:[%s7965 + $0x148] sm:$0xf]
  %v8018 = vld [vmem:[%s7965 + $0x150] sm:$0xf]
  %v8019 = vld [vmem:[%s7965 + $0x154] sm:$0xf]
  %v8020 = vld [vmem:[%s7965 + $0x15c] sm:$0xf]
  %v8021 = vld [vmem:[%s7965 + $0x160] sm:$0xf]
  %v8022 = vld [vmem:[%s7965 + $0x168] sm:$0xf]
  %v8023 = vld [vmem:[%s7965 + $0x16c] sm:$0xf]
  %v8024 = vld [vmem:[%s7965 + $0x174] sm:$0xf]
  %v8025 = vld [vmem:[%s7965 + $0x178] sm:$0xf]
  %v8026 = vld [vmem:[%s7965 + $0x180] sm:$0xf]
  %v8027 = vld [vmem:[%s7965 + $0x184] sm:$0xf]
  %v8028 = vld [vmem:[%s7965 + $0x18c] sm:$0xf]
  %v8029 = vld [vmem:[%s7965 + $0x190] sm:$0xf]
  %v8030 = vld [vmem:[%s4 + $0x180] sm:$0xf]
  %v8031 = vld [vmem:[%s4 + $0x184] sm:$0xf]
  %v8032 = vld [vmem:[%s4 + $0x188] sm:$0xf]
  %v8033 = vld [vmem:[%s4 + $0x18c] sm:$0xf]
  %v8034 = vld [vmem:[%s4 + $0x190] sm:$0xf]
  %v8035 = vld [vmem:[%s4 + $0x194] sm:$0xf]
  %v8036 = vld [vmem:[%s4 + $0x198] sm:$0xf]
  %v8037 = vld [vmem:[%s4 + $0x19c] sm:$0xf]
  %v8038 = vld [vmem:[%s4 + $0x1a0] sm:$0xf]
  %v8039 = vld [vmem:[%s4 + $0x1a4] sm:$0xf]
  %v8040 = vld [vmem:[%s4 + $0x1a8] sm:$0xf]
  %v8041 = vld [vmem:[%s4 + $0x1ac] sm:$0xf]
  %v8042 = vld [vmem:[%s4 + $0x1b0] sm:$0xf]
  %v8043 = vld [vmem:[%s4 + $0x1b4] sm:$0xf]
  %v8044 = vld [vmem:[%s4 + $0x1b8] sm:$0xf]
  %v8045 = vld [vmem:[%s4 + $0x1bc] sm:$0xf]
  %v8110 = vunpack.c.l.b16 %v7966
  %v8111 = vunpack.c.l.b16 %v7967
  %v8112 = vunpack.c.l.b16 %v7968
  %v8113 = vunpack.c.l.b16 %v7969
  %v8114 = vunpack.c.l.b16 %v7970
  %v8115 = vunpack.c.l.b16 %v7971
  %v8116 = vunpack.c.l.b16 %v7972
  %v8117 = vunpack.c.l.b16 %v7973
  %v8118 = vunpack.c.l.b16 %v7974
  %v8119 = vunpack.c.l.b16 %v7975
  %v8120 = vunpack.c.l.b16 %v7976
  %v8121 = vunpack.c.l.b16 %v7977
  %v8122 = vunpack.c.l.b16 %v7978
  %v8123 = vunpack.c.l.b16 %v7979
  %v8124 = vunpack.c.l.b16 %v7980
  %v8125 = vunpack.c.l.b16 %v7981
  %v8126 = vunpack.c.l.b16 %v7982
  %v8127 = vunpack.c.l.b16 %v7983
  %v8128 = vunpack.c.l.b16 %v7984
  %v8129 = vunpack.c.l.b16 %v7985
  %v8130 = vunpack.c.l.b16 %v7986
  %v8131 = vunpack.c.l.b16 %v7987
  %v8132 = vunpack.c.l.b16 %v7988
  %v8133 = vunpack.c.l.b16 %v7989
  %v8134 = vunpack.c.l.b16 %v7990
  %v8135 = vunpack.c.l.b16 %v7991
  %v8136 = vunpack.c.l.b16 %v7992
  %v8137 = vunpack.c.l.b16 %v7993
  %v8138 = vunpack.c.l.b16 %v7994
  %v8139 = vunpack.c.l.b16 %v7995
  %v8140 = vunpack.c.l.b16 %v7996
  %v8141 = vunpack.c.l.b16 %v7997
  %v8142 = vunpack.c.l.b16 %v7998
  %v8143 = vunpack.c.l.b16 %v7999
  %v8144 = vunpack.c.l.b16 %v8000
  %v8145 = vunpack.c.l.b16 %v8001
  %v8146 = vunpack.c.l.b16 %v8002
  %v8147 = vunpack.c.l.b16 %v8003
  %v8148 = vunpack.c.l.b16 %v8004
  %v8149 = vunpack.c.l.b16 %v8005
  %v8150 = vunpack.c.l.b16 %v8006
  %v8151 = vunpack.c.l.b16 %v8007
  %v8152 = vunpack.c.l.b16 %v8008
  %v8153 = vunpack.c.l.b16 %v8009
  %v8154 = vunpack.c.l.b16 %v8010
  %v8155 = vunpack.c.l.b16 %v8011
  %v8156 = vunpack.c.l.b16 %v8012
  %v8157 = vunpack.c.l.b16 %v8013
  %v8158 = vunpack.c.l.b16 %v8014
  %v8159 = vunpack.c.l.b16 %v8015
  %v8160 = vunpack.c.l.b16 %v8016
  %v8161 = vunpack.c.l.b16 %v8017
  %v8162 = vunpack.c.l.b16 %v8018
  %v8163 = vunpack.c.l.b16 %v8019
  %v8164 = vunpack.c.l.b16 %v8020
  %v8165 = vunpack.c.l.b16 %v8021
  %v8166 = vunpack.c.l.b16 %v8022
  %v8167 = vunpack.c.l.b16 %v8023
  %v8168 = vunpack.c.l.b16 %v8024
  %v8169 = vunpack.c.l.b16 %v8025
  %v8170 = vunpack.c.l.b16 %v8026
  %v8171 = vunpack.c.l.b16 %v8027
  %v8172 = vunpack.c.l.b16 %v8028
  %v8173 = vunpack.c.l.b16 %v8029
  %v8174 = vpack.c.b16 %v8111, %v8110
  %v8175 = vpack.c.b16 %v8113, %v8112
  %v8176 = vpack.c.b16 %v8115, %v8114
  %v8177 = vpack.c.b16 %v8117, %v8116
  %v8178 = vpack.c.b16 %v8119, %v8118
  %v8179 = vpack.c.b16 %v8121, %v8120
  %v8180 = vpack.c.b16 %v8123, %v8122
  %v8181 = vpack.c.b16 %v8125, %v8124
  %v8182 = vpack.c.b16 %v8127, %v8126
  %v8183 = vpack.c.b16 %v8129, %v8128
  %v8184 = vpack.c.b16 %v8131, %v8130
  %v8185 = vpack.c.b16 %v8133, %v8132
  %v8186 = vpack.c.b16 %v8135, %v8134
  %v8187 = vpack.c.b16 %v8137, %v8136
  %v8188 = vpack.c.b16 %v8139, %v8138
  %v8189 = vpack.c.b16 %v8141, %v8140
  %v8190 = vpack.c.b16 %v8143, %v8142
  %v8191 = vpack.c.b16 %v8145, %v8144
  %v8192 = vpack.c.b16 %v8147, %v8146
  %v8193 = vpack.c.b16 %v8149, %v8148
  %v8194 = vpack.c.b16 %v8151, %v8150
  %v8195 = vpack.c.b16 %v8153, %v8152
  %v8196 = vpack.c.b16 %v8155, %v8154
  %v8197 = vpack.c.b16 %v8157, %v8156
  %v8198 = vpack.c.b16 %v8159, %v8158
  %v8199 = vpack.c.b16 %v8161, %v8160
  %v8200 = vpack.c.b16 %v8163, %v8162
  %v8201 = vpack.c.b16 %v8165, %v8164
  %v8202 = vpack.c.b16 %v8167, %v8166
  %v8203 = vpack.c.b16 %v8169, %v8168
  %v8204 = vpack.c.b16 %v8171, %v8170
  %v8205 = vpack.c.b16 %v8173, %v8172
  %v8254 = vunpack.c.l.b16 %v8030
  %v8255 = vunpack.c.l.b16 %v8031
  %v8256 = vunpack.c.l.b16 %v8032
  %v8257 = vunpack.c.l.b16 %v8033
  %v8258 = vunpack.c.l.b16 %v8034
  %v8259 = vunpack.c.l.b16 %v8035
  %v8260 = vunpack.c.l.b16 %v8036
  %v8261 = vunpack.c.l.b16 %v8037
  %v8262 = vunpack.c.l.b16 %v8038
  %v8263 = vunpack.c.l.b16 %v8039
  %v8264 = vunpack.c.l.b16 %v8040
  %v8265 = vunpack.c.l.b16 %v8041
  %v8266 = vunpack.c.l.b16 %v8042
  %v8267 = vunpack.c.l.b16 %v8043
  %v8268 = vunpack.c.l.b16 %v8044
  %v8269 = vunpack.c.l.b16 %v8045
  %v8270 = vpack.c.b16 %v8255, %v8254
  %v8271 = vpack.c.b16 %v8257, %v8256
  %v8272 = vpack.c.b16 %v8259, %v8258
  %v8273 = vpack.c.b16 %v8261, %v8260
  %v8274 = vpack.c.b16 %v8263, %v8262
  %v8275 = vpack.c.b16 %v8265, %v8264
  %v8276 = vpack.c.b16 %v8267, %v8266
  %v8277 = vpack.c.b16 %v8269, %v8268
  %8286 = vmatprep.subr.bf16.mxu0 0
  %8287 = vmatpush1.bf16.msra.mxu0 %v8270
  %8288 = vmatprep.subr.bf16.mxu0 0
  %8289 = vmatpush1.bf16.msra.mxu0 %v8271
  %8290 = vmatprep.subr.bf16.mxu0 0
  %8291 = vmatpush1.bf16.msra.mxu0 %v8272
  %8292 = vmatprep.subr.bf16.mxu0 0
  %8293 = vmatpush1.bf16.msra.mxu0 %v8273
  %8294 = vmatprep.subr.bf16.mxu0 0
  %8295 = vmatpush1.bf16.msra.mxu0 %v8274
  %8296 = vmatprep.subr.bf16.mxu0 0
  %8297 = vmatpush1.bf16.msra.mxu0 %v8275
  %8298 = vmatprep.subr.bf16.mxu0 0
  %8299 = vmatpush1.bf16.msra.mxu0 %v8276
  %8300 = vmatprep.subr.bf16.mxu0 0
  %8301 = vmatpush1.bf16.msra.mxu0 %v8277
  %8302 = vmatprep.subr.bf16.mxu0 0
  %8303 = vmatpush1.bf16.msra.mxu0 0
  %8304 = vmatprep.subr.bf16.mxu0 0
  %8305 = vmatpush1.bf16.msra.mxu0 0
  %8306 = vmatprep.subr.bf16.mxu0 0
  %8307 = vmatpush1.bf16.msra.mxu0 0
  %8308 = vmatprep.subr.bf16.mxu0 0
  %8309 = vmatpush1.bf16.msra.mxu0 0
  %8310 = vmatprep.subr.bf16.mxu0 0
  %8311 = vmatpush1.bf16.msra.mxu0 0
  %8312 = vmatprep.subr.bf16.mxu0 0
  %8313 = vmatpush1.bf16.msra.mxu0 0
  %8314 = vmatprep.subr.bf16.mxu0 0
  %8315 = vmatpush1.bf16.msra.mxu0 0
  %8316 = vmatprep.subr.bf16.mxu0 0
  %8317 = vmatpush1.bf16.msra.mxu0 0
  %8318 = vmatprep.mubr.bf16.mxu0 0
  %8319 = vmatmul.mubr.bf16.gmra.mrb[0].mxu0 %v8174
  %v8320 = vpop.f32.mrb[0].mxu0
  %v8321 = vadd.f32 0.0, %v8320
  %v8322 = vpop.f32.mrb[0].mxu0
  %v8323 = vpop.f32.mrb[0].mxu0
  %v8324 = vadd.f32 0.0, %v8323
  %v8325 = vpop.f32.mrb[0].mxu0
  %8326 = vmatprep.mubr.bf16.mxu0 0
  %8327 = vmatmul.mubr.bf16.gmra.mrb[0].mxu0 %v8175
  %v8328 = vpop.f32.mrb[0].mxu0
  %v8329 = vadd.f32 0.0, %v8328
  %v8330 = vpop.f32.mrb[0].mxu0
  %v8331 = vpop.f32.mrb[0].mxu0
  %v8332 = vadd.f32 0.0, %v8331
  %v8333 = vpop.f32.mrb[0].mxu0
  %8334 = vmatprep.mubr.bf16.mxu0 0
  %8335 = vmatmul.mubr.bf16.gmra.mrb[0].mxu0 %v8176
  %v8336 = vpop.f32.mrb[0].mxu0
  %v8337 = vadd.f32 0.0, %v8336
  %v8338 = vpop.f32.mrb[0].mxu0
  %v8339 = vpop.f32.mrb[0].mxu0
  %v8340 = vadd.f32 0.0, %v8339
  %v8341 = vpop.f32.mrb[0].mxu0
  %8342 = vmatprep.mubr.bf16.mxu0 0
  %8343 = vmatmul.mubr.bf16.gmra.mrb[0].mxu0 %v8177
  %v8344 = vpop.f32.mrb[0].mxu0
  %v8345 = vadd.f32 0.0, %v8344
  %v8346 = vpop.f32.mrb[0].mxu0
  %v8347 = vpop.f32.mrb[0].mxu0
  %v8348 = vadd.f32 0.0, %v8347
  %v8349 = vpop.f32.mrb[0].mxu0
  %8350 = vmatprep.mubr.bf16.mxu0 0
  %8351 = vmatmul.mubr.bf16.gmra.mrb[0].mxu0 %v8178
  %v8352 = vpop.f32.mrb[0].mxu0
  %v8353 = vadd.f32 0.0, %v8352
  %v8354 = vpop.f32.mrb[0].mxu0
  %v8355 = vpop.f32.mrb[0].mxu0
  %v8356 = vadd.f32 0.0, %v8355
  %v8357 = vpop.f32.mrb[0].mxu0
  %8358 = vmatprep.mubr.bf16.mxu0 0
  %8359 = vmatmul.mubr.bf16.gmra.mrb[0].mxu0 %v8179
  %v8360 = vpop.f32.mrb[0].mxu0
  %v8361 = vadd.f32 0.0, %v8360
  %v8362 = vpop.f32.mrb[0].mxu0
  %v8363 = vpop.f32.mrb[0].mxu0
  %v8364 = vadd.f32 0.0, %v8363
  %v8365 = vpop.f32.mrb[0].mxu0
  %8366 = vmatprep.mubr.bf16.mxu0 0
  %8367 = vmatmul.mubr.bf16.gmra.mrb[0].mxu0 %v8180
  %v8368 = vpop.f32.mrb[0].mxu0
  %v8369 = vadd.f32 0.0, %v8368
  %v8370 = vpop.f32.mrb[0].mxu0
  %v8371 = vpop.f32.mrb[0].mxu0
  %v8372 = vadd.f32 0.0, %v8371
  %v8373 = vpop.f32.mrb[0].mxu0
  %8374 = vmatprep.mubr.bf16.mxu0 0
  %8375 = vmatmul.mubr.bf16.gmra.mrb[0].mxu0 %v8181
  %v8376 = vpop.f32.mrb[0].mxu0
  %v8377 = vadd.f32 0.0, %v8376
  %v8378 = vpop.f32.mrb[0].mxu0
  %v8379 = vpop.f32.mrb[0].mxu0
  %v8380 = vadd.f32 0.0, %v8379
  %v8381 = vpop.f32.mrb[0].mxu0
  %8382 = vmatprep.mubr.bf16.mxu0 0
  %8383 = vmatmul.mubr.bf16.gmra.mrb[0].mxu0 %v8182
  %v8384 = vpop.f32.mrb[0].mxu0
  %v8385 = vadd.f32 0.0, %v8384
  %v8386 = vpop.f32.mrb[0].mxu0
  %v8387 = vpop.f32.mrb[0].mxu0
  %v8388 = vadd.f32 0.0, %v8387
  %v8389 = vpop.f32.mrb[0].mxu0
  %8390 = vmatprep.mubr.bf16.mxu0 0
  %8391 = vmatmul.mubr.bf16.gmra.mrb[0].mxu0 %v8183
  %v8392 = vpop.f32.mrb[0].mxu0
  %v8393 = vadd.f32 0.0, %v8392
  %v8394 = vpop.f32.mrb[0].mxu0
  %v8395 = vpop.f32.mrb[0].mxu0
  %v8396 = vadd.f32 0.0, %v8395
  %v8397 = vpop.f32.mrb[0].mxu0
  %8398 = vmatprep.mubr.bf16.mxu0 0
  %8399 = vmatmul.mubr.bf16.gmra.mrb[0].mxu0 %v8184
  %v8400 = vpop.f32.mrb[0].mxu0
  %v8401 = vadd.f32 0.0, %v8400
  %v8402 = vpop.f32.mrb[0].mxu0
  %v8403 = vpop.f32.mrb[0].mxu0
  %v8404 = vadd.f32 0.0, %v8403
  %v8405 = vpop.f32.mrb[0].mxu0
  %8406 = vmatprep.mubr.bf16.mxu0 0
  %8407 = vmatmul.mubr.bf16.gmra.mrb[0].mxu0 %v8185
  %v8408 = vpop.f32.mrb[0].mxu0
  %v8409 = vadd.f32 0.0, %v8408
  %v8410 = vpop.f32.mrb[0].mxu0
  %v8411 = vpop.f32.mrb[0].mxu0
  %v8412 = vadd.f32 0.0, %v8411
  %v8413 = vpop.f32.mrb[0].mxu0
  %8414 = vmatprep.mubr.bf16.mxu0 0
  %8415 = vmatmul.mubr.bf16.gmra.mrb[0].mxu0 %v8186
  %v8416 = vpop.f32.mrb[0].mxu0
  %v8417 = vadd.f32 0.0, %v8416
  %v8418 = vpop.f32.mrb[0].mxu0
  %v8419 = vpop.f32.mrb[0].mxu0
  %v8420 = vadd.f32 0.0, %v8419
  %v8421 = vpop.f32.mrb[0].mxu0
  %8422 = vmatprep.mubr.bf16.mxu0 0
  %8423 = vmatmul.mubr.bf16.gmra.mrb[0].mxu0 %v8187
  %v8424 = vpop.f32.mrb[0].mxu0
  %v8425 = vadd.f32 0.0, %v8424
  %v8426 = vpop.f32.mrb[0].mxu0
  %v8427 = vpop.f32.mrb[0].mxu0
  %v8428 = vadd.f32 0.0, %v8427
  %v8429 = vpop.f32.mrb[0].mxu0
  %8430 = vmatprep.mubr.bf16.mxu0 0
  %8431 = vmatmul.mubr.bf16.gmra.mrb[0].mxu0 %v8188
  %v8432 = vpop.f32.mrb[0].mxu0
  %v8433 = vadd.f32 0.0, %v8432
  %v8434 = vpop.f32.mrb[0].mxu0
  %v8435 = vpop.f32.mrb[0].mxu0
  %v8436 = vadd.f32 0.0, %v8435
  %v8437 = vpop.f32.mrb[0].mxu0
  %8438 = vmatprep.mubr.bf16.mxu0 0
  %8439 = vmatmul.mubr.bf16.gmra.mrb[0].mxu0 %v8189
  %v8440 = vpop.f32.mrb[0].mxu0
  %v8441 = vadd.f32 0.0, %v8440
  %v8442 = vpop.f32.mrb[0].mxu0
  %v8443 = vpop.f32.mrb[0].mxu0
  %v8444 = vadd.f32 0.0, %v8443
  %v8445 = vpop.f32.mrb[0].mxu0
  %8446 = vmatprep.mubr.bf16.mxu0 0
  %8447 = vmatmul.mubr.bf16.gmra.mrb[0].mxu0 %v8190
  %v8448 = vpop.f32.mrb[0].mxu0
  %v8449 = vadd.f32 0.0, %v8448
  %v8450 = vpop.f32.mrb[0].mxu0
  %v8451 = vpop.f32.mrb[0].mxu0
  %v8452 = vadd.f32 0.0, %v8451
  %v8453 = vpop.f32.mrb[0].mxu0
  %8454 = vmatprep.mubr.bf16.mxu0 0
  %8455 = vmatmul.mubr.bf16.gmra.mrb[0].mxu0 %v8191
  %v8456 = vpop.f32.mrb[0].mxu0
  %v8457 = vadd.f32 0.0, %v8456
  %v8458 = vpop.f32.mrb[0].mxu0
  %v8459 = vpop.f32.mrb[0].mxu0
  %v8460 = vadd.f32 0.0, %v8459
  %v8461 = vpop.f32.mrb[0].mxu0
  %8462 = vmatprep.mubr.bf16.mxu0 0
  %8463 = vmatmul.mubr.bf16.gmra.mrb[0].mxu0 %v8192
  %v8464 = vpop.f32.mrb[0].mxu0
  %v8465 = vadd.f32 0.0, %v8464
  %v8466 = vpop.f32.mrb[0].mxu0
  %v8467 = vpop.f32.mrb[0].mxu0
  %v8468 = vadd.f32 0.0, %v8467
  %v8469 = vpop.f32.mrb[0].mxu0
  %8470 = vmatprep.mubr.bf16.mxu0 0
  %8471 = vmatmul.mubr.bf16.gmra.mrb[0].mxu0 %v8193
  %v8472 = vpop.f32.mrb[0].mxu0
  %v8473 = vadd.f32 0.0, %v8472
  %v8474 = vpop.f32.mrb[0].mxu0
  %v8475 = vpop.f32.mrb[0].mxu0
  %v8476 = vadd.f32 0.0, %v8475
  %v8477 = vpop.f32.mrb[0].mxu0
  %8478 = vmatprep.mubr.bf16.mxu0 0
  %8479 = vmatmul.mubr.bf16.gmra.mrb[0].mxu0 %v8194
  %v8480 = vpop.f32.mrb[0].mxu0
  %v8481 = vadd.f32 0.0, %v8480
  %v8482 = vpop.f32.mrb[0].mxu0
  %v8483 = vpop.f32.mrb[0].mxu0
  %v8484 = vadd.f32 0.0, %v8483
  %v8485 = vpop.f32.mrb[0].mxu0
  %8486 = vmatprep.mubr.bf16.mxu0 0
  %8487 = vmatmul.mubr.bf16.gmra.mrb[0].mxu0 %v8195
  %v8488 = vpop.f32.mrb[0].mxu0
  %v8489 = vadd.f32 0.0, %v8488
  %v8490 = vpop.f32.mrb[0].mxu0
  %v8491 = vpop.f32.mrb[0].mxu0
  %v8492 = vadd.f32 0.0, %v8491
  %v8493 = vpop.f32.mrb[0].mxu0
  %8494 = vmatprep.mubr.bf16.mxu0 0
  %8495 = vmatmul.mubr.bf16.gmra.mrb[0].mxu0 %v8196
  %v8496 = vpop.f32.mrb[0].mxu0
  %v8497 = vadd.f32 0.0, %v8496
  %v8498 = vpop.f32.mrb[0].mxu0
  %v8499 = vpop.f32.mrb[0].mxu0
  %v8500 = vadd.f32 0.0, %v8499
  %v8501 = vpop.f32.mrb[0].mxu0
  %8502 = vmatprep.mubr.bf16.mxu0 0
  %8503 = vmatmul.mubr.bf16.gmra.mrb[0].mxu0 %v8197
  %v8504 = vpop.f32.mrb[0].mxu0
  %v8505 = vadd.f32 0.0, %v8504
  %v8506 = vpop.f32.mrb[0].mxu0
  %v8507 = vpop.f32.mrb[0].mxu0
  %v8508 = vadd.f32 0.0, %v8507
  %v8509 = vpop.f32.mrb[0].mxu0
  %8510 = vmatprep.mubr.bf16.mxu0 0
  %8511 = vmatmul.mubr.bf16.gmra.mrb[0].mxu0 %v8198
  %v8512 = vpop.f32.mrb[0].mxu0
  %v8513 = vadd.f32 0.0, %v8512
  %v8514 = vpop.f32.mrb[0].mxu0
  %v8515 = vpop.f32.mrb[0].mxu0
  %v8516 = vadd.f32 0.0, %v8515
  %v8517 = vpop.f32.mrb[0].mxu0
  %8518 = vmatprep.mubr.bf16.mxu0 0
  %8519 = vmatmul.mubr.bf16.gmra.mrb[0].mxu0 %v8199
  %v8520 = vpop.f32.mrb[0].mxu0
  %v8521 = vadd.f32 0.0, %v8520
  %v8522 = vpop.f32.mrb[0].mxu0
  %v8523 = vpop.f32.mrb[0].mxu0
  %v8524 = vadd.f32 0.0, %v8523
  %v8525 = vpop.f32.mrb[0].mxu0
  %8526 = vmatprep.mubr.bf16.mxu0 0
  %8527 = vmatmul.mubr.bf16.gmra.mrb[0].mxu0 %v8200
  %v8528 = vpop.f32.mrb[0].mxu0
  %v8529 = vadd.f32 0.0, %v8528
  %v8530 = vpop.f32.mrb[0].mxu0
  %v8531 = vpop.f32.mrb[0].mxu0
  %v8532 = vadd.f32 0.0, %v8531
  %v8533 = vpop.f32.mrb[0].mxu0
  %8534 = vmatprep.mubr.bf16.mxu0 0
  %8535 = vmatmul.mubr.bf16.gmra.mrb[0].mxu0 %v8201
  %v8536 = vpop.f32.mrb[0].mxu0
  %v8537 = vadd.f32 0.0, %v8536
  %v8538 = vpop.f32.mrb[0].mxu0
  %v8539 = vpop.f32.mrb[0].mxu0
  %v8540 = vadd.f32 0.0, %v8539
  %v8541 = vpop.f32.mrb[0].mxu0
  %8542 = vmatprep.mubr.bf16.mxu0 0
  %8543 = vmatmul.mubr.bf16.gmra.mrb[0].mxu0 %v8202
  %v8544 = vpop.f32.mrb[0].mxu0
  %v8545 = vadd.f32 0.0, %v8544
  %v8546 = vpop.f32.mrb[0].mxu0
  %v8547 = vpop.f32.mrb[0].mxu0
  %v8548 = vadd.f32 0.0, %v8547
  %v8549 = vpop.f32.mrb[0].mxu0
  %8550 = vmatprep.mubr.bf16.mxu0 0
  %8551 = vmatmul.mubr.bf16.gmra.mrb[0].mxu0 %v8203
  %v8552 = vpop.f32.mrb[0].mxu0
  %v8553 = vadd.f32 0.0, %v8552
  %v8554 = vpop.f32.mrb[0].mxu0
  %v8555 = vpop.f32.mrb[0].mxu0
  %v8556 = vadd.f32 0.0, %v8555
  %v8557 = vpop.f32.mrb[0].mxu0
  %8558 = vmatprep.mubr.bf16.mxu0 0
  %8559 = vmatmul.mubr.bf16.gmra.mrb[0].mxu0 %v8204
  %v8560 = vpop.f32.mrb[0].mxu0
  %v8561 = vadd.f32 0.0, %v8560
  %v8562 = vpop.f32.mrb[0].mxu0
  %v8563 = vpop.f32.mrb[0].mxu0
  %v8564 = vadd.f32 0.0, %v8563
  %v8565 = vpop.f32.mrb[0].mxu0
  %8566 = vmatprep.mubr.bf16.mxu0 0
  %8567 = vmatmul.mubr.bf16.gmra.mrb[0].mxu0 %v8205
  %v8568 = vpop.f32.mrb[0].mxu0
  %v8569 = vadd.f32 0.0, %v8568
  %v8570 = vpop.f32.mrb[0].mxu0
  %v8571 = vpop.f32.mrb[0].mxu0
  %v8572 = vadd.f32 0.0, %v8571
  %v8573 = vpop.f32.mrb[0].mxu0
  %8574 = vdwg.mxu0
  %v8575 = vadd.f32 %v7901, %v8321
  %v8576 = vadd.f32 %v7902, %v8324
  %v8577 = vadd.f32 %v7903, %v8329
  %v8578 = vadd.f32 %v7904, %v8332
  %v8579 = vadd.f32 %v7905, %v8337
  %v8580 = vadd.f32 %v7906, %v8340
  %v8581 = vadd.f32 %v7907, %v8345
  %v8582 = vadd.f32 %v7908, %v8348
  %v8583 = vadd.f32 %v7909, %v8353
  %v8584 = vadd.f32 %v7910, %v8356
  %v8585 = vadd.f32 %v7911, %v8361
  %v8586 = vadd.f32 %v7912, %v8364
  %v8587 = vadd.f32 %v7913, %v8369
  %v8588 = vadd.f32 %v7914, %v8372
  %v8589 = vadd.f32 %v7915, %v8377
  %v8590 = vadd.f32 %v7916, %v8380
  %v8591 = vadd.f32 %v7917, %v8385
  %v8592 = vadd.f32 %v7918, %v8388
  %v8593 = vadd.f32 %v7919, %v8393
  %v8594 = vadd.f32 %v7920, %v8396
  %v8595 = vadd.f32 %v7921, %v8401
  %v8596 = vadd.f32 %v7922, %v8404
  %v8597 = vadd.f32 %v7923, %v8409
  %v8598 = vadd.f32 %v7924, %v8412
  %v8599 = vadd.f32 %v7925, %v8417
  %v8600 = vadd.f32 %v7926, %v8420
  %v8601 = vadd.f32 %v7927, %v8425
  %v8602 = vadd.f32 %v7928, %v8428
  %v8603 = vadd.f32 %v7929, %v8433
  %v8604 = vadd.f32 %v7930, %v8436
  %v8605 = vadd.f32 %v7931, %v8441
  %v8606 = vadd.f32 %v7932, %v8444
  %v8607 = vadd.f32 %v7933, %v8449
  %v8608 = vadd.f32 %v7934, %v8452
  %v8609 = vadd.f32 %v7935, %v8457
  %v8610 = vadd.f32 %v7936, %v8460
  %v8611 = vadd.f32 %v7937, %v8465
  %v8612 = vadd.f32 %v7938, %v8468
  %v8613 = vadd.f32 %v7939, %v8473
  %v8614 = vadd.f32 %v7940, %v8476
  %v8615 = vadd.f32 %v7941, %v8481
  %v8616 = vadd.f32 %v7942, %v8484
  %v8617 = vadd.f32 %v7943, %v8489
  %v8618 = vadd.f32 %v7944, %v8492
  %v8619 = vadd.f32 %v7945, %v8497
  %v8620 = vadd.f32 %v7946, %v8500
  %v8621 = vadd.f32 %v7947, %v8505
  %v8622 = vadd.f32 %v7948, %v8508
  %v8623 = vadd.f32 %v7949, %v8513
  %v8624 = vadd.f32 %v7950, %v8516
  %v8625 = vadd.f32 %v7951, %v8521
  %v8626 = vadd.f32 %v7952, %v8524
  %v8627 = vadd.f32 %v7953, %v8529
  %v8628 = vadd.f32 %v7954, %v8532
  %v8629 = vadd.f32 %v7955, %v8537
  %v8630 = vadd.f32 %v7956, %v8540
  %v8631 = vadd.f32 %v7957, %v8545
  %v8632 = vadd.f32 %v7958, %v8548
  %v8633 = vadd.f32 %v7959, %v8553
  %v8634 = vadd.f32 %v7960, %v8556
  %v8635 = vadd.f32 %v7961, %v8561
  %v8636 = vadd.f32 %v7962, %v8564
  %v8637 = vadd.f32 %v7963, %v8569
  %v8638 = vadd.f32 %v7964, %v8572
  %v8639 = vld [vmem:[%s7965] sm:$0xf]
  %v8640 = vld [vmem:[%s7965 + $0x4] sm:$0xf]
  %v8641 = vld [vmem:[%s7965 + $0x8] sm:$0x1]
  %v8642 = vld [vmem:[%s7965 + $0xc] sm:$0xf]
  %v8643 = vld [vmem:[%s7965 + $0x10] sm:$0xf]
  %v8644 = vld [vmem:[%s7965 + $0x14] sm:$0x1]
  %v8645 = vld [vmem:[%s7965 + $0x18] sm:$0xf]
  %v8646 = vld [vmem:[%s7965 + $0x1c] sm:$0xf]
  %v8647 = vld [vmem:[%s7965 + $0x20] sm:$0x1]
  %v8648 = vld [vmem:[%s7965 + $0x24] sm:$0xf]
  %v8649 = vld [vmem:[%s7965 + $0x28] sm:$0xf]
  %v8650 = vld [vmem:[%s7965 + $0x2c] sm:$0x1]
  %v8651 = vld [vmem:[%s7965 + $0x30] sm:$0xf]
  %v8652 = vld [vmem:[%s7965 + $0x34] sm:$0xf]
  %v8653 = vld [vmem:[%s7965 + $0x38] sm:$0x1]
  %v8654 = vld [vmem:[%s7965 + $0x3c] sm:$0xf]
  %v8655 = vld [vmem:[%s7965 + $0x40] sm:$0xf]
  %v8656 = vld [vmem:[%s7965 + $0x44] sm:$0x1]
  %v8657 = vld [vmem:[%s7965 + $0x48] sm:$0xf]
  %v8658 = vld [vmem:[%s7965 + $0x4c] sm:$0xf]
  %v8659 = vld [vmem:[%s7965 + $0x50] sm:$0x1]
  %v8660 = vld [vmem:[%s7965 + $0x54] sm:$0xf]
  %v8661 = vld [vmem:[%s7965 + $0x58] sm:$0xf]
  %v8662 = vld [vmem:[%s7965 + $0x5c] sm:$0x1]
  %v8663 = vld [vmem:[%s7965 + $0x60] sm:$0xf]
  %v8664 = vld [vmem:[%s7965 + $0x64] sm:$0xf]
  %v8665 = vld [vmem:[%s7965 + $0x68] sm:$0x1]
  %v8666 = vld [vmem:[%s7965 + $0x6c] sm:$0xf]
  %v8667 = vld [vmem:[%s7965 + $0x70] sm:$0xf]
  %v8668 = vld [vmem:[%s7965 + $0x74] sm:$0x1]
  %v8669 = vld [vmem:[%s7965 + $0x78] sm:$0xf]
  %v8670 = vld [vmem:[%s7965 + $0x7c] sm:$0xf]
  %v8671 = vld [vmem:[%s7965 + $0x80] sm:$0x1]
  %v8672 = vld [vmem:[%s7965 + $0x84] sm:$0xf]
  %v8673 = vld [vmem:[%s7965 + $0x88] sm:$0xf]
  %v8674 = vld [vmem:[%s7965 + $0x8c] sm:$0x1]
  %v8675 = vld [vmem:[%s7965 + $0x90] sm:$0xf]
  %v8676 = vld [vmem:[%s7965 + $0x94] sm:$0xf]
  %v8677 = vld [vmem:[%s7965 + $0x98] sm:$0x1]
  %v8678 = vld [vmem:[%s7965 + $0x9c] sm:$0xf]
  %v8679 = vld [vmem:[%s7965 + $0xa0] sm:$0xf]
  %v8680 = vld [vmem:[%s7965 + $0xa4] sm:$0x1]
  %v8681 = vld [vmem:[%s7965 + $0xa8] sm:$0xf]
  %v8682 = vld [vmem:[%s7965 + $0xac] sm:$0xf]
  %v8683 = vld [vmem:[%s7965 + $0xb0] sm:$0x1]
  %v8684 = vld [vmem:[%s7965 + $0xb4] sm:$0xf]
  %v8685 = vld [vmem:[%s7965 + $0xb8] sm:$0xf]
  %v8686 = vld [vmem:[%s7965 + $0xbc] sm:$0x1]
  %v8687 = vld [vmem:[%s7965 + $0xd8] sm:$0xf]
  %v8688 = vld [vmem:[%s7965 + $0xdc] sm:$0xf]
  %v8689 = vld [vmem:[%s7965 + $0xe0] sm:$0x1]
  %v8690 = vld [vmem:[%s7965 + $0xe4] sm:$0xf]
  %v8691 = vld [vmem:[%s7965 + $0xe8] sm:$0xf]
  %v8692 = vld [vmem:[%s7965 + $0xec] sm:$0x1]
  %v8693 = vld [vmem:[%s7965 + $0xf0] sm:$0xf]
  %v8694 = vld [vmem:[%s7965 + $0xf4] sm:$0xf]
  %v8695 = vld [vmem:[%s7965 + $0xf8] sm:$0x1]
  %v8696 = vld [vmem:[%s7965 + $0xfc] sm:$0xf]
  %v8697 = vld [vmem:[%s7965 + $0x100] sm:$0xf]
  %v8698 = vld [vmem:[%s7965 + $0x104] sm:$0x1]
  %v8699 = vld [vmem:[%s7965 + $0x108] sm:$0xf]
  %v8700 = vld [vmem:[%s7965 + $0x10c] sm:$0xf]
  %v8701 = vld [vmem:[%s7965 + $0x110] sm:$0x1]
  %v8702 = vld [vmem:[%s7965 + $0x114] sm:$0xf]
  %v8703 = vld [vmem:[%s7965 + $0x118] sm:$0xf]
  %v8704 = vld [vmem:[%s7965 + $0x11c] sm:$0x1]
  %v8705 = vld [vmem:[%s7965 + $0x120] sm:$0xf]
  %v8706 = vld [vmem:[%s7965 + $0x124] sm:$0xf]
  %v8707 = vld [vmem:[%s7965 + $0x128] sm:$0x1]
  %v8708 = vld [vmem:[%s7965 + $0x12c] sm:$0xf]
  %v8709 = vld [vmem:[%s7965 + $0x130] sm:$0xf]
  %v8710 = vld [vmem:[%s7965 + $0x134] sm:$0x1]
  %v8711 = vld [vmem:[%s7965 + $0x138] sm:$0xf]
  %v8712 = vld [vmem:[%s7965 + $0x13c] sm:$0xf]
  %v8713 = vld [vmem:[%s7965 + $0x140] sm:$0x1]
  %v8714 = vld [vmem:[%s7965 + $0x144] sm:$0xf]
  %v8715 = vld [vmem:[%s7965 + $0x148] sm:$0xf]
  %v8716 = vld [vmem:[%s7965 + $0x14c] sm:$0x1]
  %v8717 = vld [vmem:[%s7965 + $0x150] sm:$0xf]
  %v8718 = vld [vmem:[%s7965 + $0x154] sm:$0xf]
  %v8719 = vld [vmem:[%s7965 + $0x158] sm:$0x1]
  %v8720 = vld [vmem:[%s7965 + $0x15c] sm:$0xf]
  %v8721 = vld [vmem:[%s7965 + $0x160] sm:$0xf]
  %v8722 = vld [vmem:[%s7965 + $0x164] sm:$0x1]
  %v8723 = vld [vmem:[%s7965 + $0x168] sm:$0xf]
  %v8724 = vld [vmem:[%s7965 + $0x16c] sm:$0xf]
  %v8725 = vld [vmem:[%s7965 + $0x170] sm:$0x1]
  %v8726 = vld [vmem:[%s7965 + $0x174] sm:$0xf]
  %v8727 = vld [vmem:[%s7965 + $0x178] sm:$0xf]
  %v8728 = vld [vmem:[%s7965 + $0x17c] sm:$0x1]
  %v8729 = vld [vmem:[%s7965 + $0x180] sm:$0xf]
  %v8730 = vld [vmem:[%s7965 + $0x184] sm:$0xf]
  %v8731 = vld [vmem:[%s7965 + $0x188] sm:$0x1]
  %v8732 = vld [vmem:[%s7965 + $0x18c] sm:$0xf]
  %v8733 = vld [vmem:[%s7965 + $0x190] sm:$0xf]
  %v8734 = vld [vmem:[%s7965 + $0x194] sm:$0x1]
  %v8736 = vshrl.u32 %v8639, 16
  %v8738 = vrot.slane %v8736, 4
  %v8739 = vshll.u32 %v8639, 16
  %v8741 = vrot.slane %v8739, 5
  %v8742 = vor.u32 %v8738, %v8741
  %v8743 = vrot.slane %v8742, 4
  %v8745 = vshll.u32 %v8640, 16
  %v8747 = vrot.slane %v8745, 5
  %v8748 = vsel %vm2339, %v8743, %v8747
  %v8749 = vshrl.u32 %v8640, 16
  %v8751 = vrot.slane %v8749, 4
  %v8752 = vor.u32 %v8751, %v8747
  %v8753 = vrot.slane %v8752, 4
  %v8755 = vshll.u32 %v8641, 16
  %v8757 = vrot.slane %v8755, 5
  %v8758 = vsel %vm2339, %v8753, %v8757
  %v8760 = vshrl.u32 %v8642, 16
  %v8762 = vrot.slane %v8760, 4
  %v8763 = vshll.u32 %v8642, 16
  %v8765 = vrot.slane %v8763, 5
  %v8766 = vor.u32 %v8762, %v8765
  %v8767 = vrot.slane %v8766, 4
  %v8769 = vshll.u32 %v8643, 16
  %v8771 = vrot.slane %v8769, 5
  %v8772 = vsel %vm2339, %v8767, %v8771
  %v8773 = vshrl.u32 %v8643, 16
  %v8775 = vrot.slane %v8773, 4
  %v8776 = vor.u32 %v8775, %v8771
  %v8777 = vrot.slane %v8776, 4
  %v8779 = vshll.u32 %v8644, 16
  %v8781 = vrot.slane %v8779, 5
  %v8782 = vsel %vm2339, %v8777, %v8781
  %v8784 = vshrl.u32 %v8645, 16
  %v8786 = vrot.slane %v8784, 4
  %v8787 = vshll.u32 %v8645, 16
  %v8789 = vrot.slane %v8787, 5
  %v8790 = vor.u32 %v8786, %v8789
  %v8791 = vrot.slane %v8790, 4
  %v8793 = vshll.u32 %v8646, 16
  %v8795 = vrot.slane %v8793, 5
  %v8796 = vsel %vm2339, %v8791, %v8795
  %v8797 = vshrl.u32 %v8646, 16
  %v8799 = vrot.slane %v8797, 4
  %v8800 = vor.u32 %v8799, %v8795
  %v8801 = vrot.slane %v8800, 4
  %v8803 = vshll.u32 %v8647, 16
  %v8805 = vrot.slane %v8803, 5
  %v8806 = vsel %vm2339, %v8801, %v8805
  %v8808 = vshrl.u32 %v8648, 16
  %v8810 = vrot.slane %v8808, 4
  %v8811 = vshll.u32 %v8648, 16
  %v8813 = vrot.slane %v8811, 5
  %v8814 = vor.u32 %v8810, %v8813
  %v8815 = vrot.slane %v8814, 4
  %v8817 = vshll.u32 %v8649, 16
  %v8819 = vrot.slane %v8817, 5
  %v8820 = vsel %vm2339, %v8815, %v8819
  %v8821 = vshrl.u32 %v8649, 16
  %v8823 = vrot.slane %v8821, 4
  %v8824 = vor.u32 %v8823, %v8819
  %v8825 = vrot.slane %v8824, 4
  %v8827 = vshll.u32 %v8650, 16
  %v8829 = vrot.slane %v8827, 5
  %v8830 = vsel %vm2339, %v8825, %v8829
  %v8832 = vshrl.u32 %v8651, 16
  %v8834 = vrot.slane %v8832, 4
  %v8835 = vshll.u32 %v8651, 16
  %v8837 = vrot.slane %v8835, 5
  %v8838 = vor.u32 %v8834, %v8837
  %v8839 = vrot.slane %v8838, 4
  %v8841 = vshll.u32 %v8652, 16
  %v8843 = vrot.slane %v8841, 5
  %v8844 = vsel %vm2339, %v8839, %v8843
  %v8845 = vshrl.u32 %v8652, 16
  %v8847 = vrot.slane %v8845, 4
  %v8848 = vor.u32 %v8847, %v8843
  %v8849 = vrot.slane %v8848, 4
  %v8851 = vshll.u32 %v8653, 16
  %v8853 = vrot.slane %v8851, 5
  %v8854 = vsel %vm2339, %v8849, %v8853
  %v8856 = vshrl.u32 %v8654, 16
  %v8858 = vrot.slane %v8856, 4
  %v8859 = vshll.u32 %v8654, 16
  %v8861 = vrot.slane %v8859, 5
  %v8862 = vor.u32 %v8858, %v8861
  %v8863 = vrot.slane %v8862, 4
  %v8865 = vshll.u32 %v8655, 16
  %v8867 = vrot.slane %v8865, 5
  %v8868 = vsel %vm2339, %v8863, %v8867
  %v8869 = vshrl.u32 %v8655, 16
  %v8871 = vrot.slane %v8869, 4
  %v8872 = vor.u32 %v8871, %v8867
  %v8873 = vrot.slane %v8872, 4
  %v8875 = vshll.u32 %v8656, 16
  %v8877 = vrot.slane %v8875, 5
  %v8878 = vsel %vm2339, %v8873, %v8877
  %v8880 = vshrl.u32 %v8657, 16
  %v8882 = vrot.slane %v8880, 4
  %v8883 = vshll.u32 %v8657, 16
  %v8885 = vrot.slane %v8883, 5
  %v8886 = vor.u32 %v8882, %v8885
  %v8887 = vrot.slane %v8886, 4
  %v8889 = vshll.u32 %v8658, 16
  %v8891 = vrot.slane %v8889, 5
  %v8892 = vsel %vm2339, %v8887, %v8891
  %v8893 = vshrl.u32 %v8658, 16
  %v8895 = vrot.slane %v8893, 4
  %v8896 = vor.u32 %v8895, %v8891
  %v8897 = vrot.slane %v8896, 4
  %v8899 = vshll.u32 %v8659, 16
  %v8901 = vrot.slane %v8899, 5
  %v8902 = vsel %vm2339, %v8897, %v8901
  %v8904 = vshrl.u32 %v8660, 16
  %v8906 = vrot.slane %v8904, 4
  %v8907 = vshll.u32 %v8660, 16
  %v8909 = vrot.slane %v8907, 5
  %v8910 = vor.u32 %v8906, %v8909
  %v8911 = vrot.slane %v8910, 4
  %v8913 = vshll.u32 %v8661, 16
  %v8915 = vrot.slane %v8913, 5
  %v8916 = vsel %vm2339, %v8911, %v8915
  %v8917 = vshrl.u32 %v8661, 16
  %v8919 = vrot.slane %v8917, 4
  %v8920 = vor.u32 %v8919, %v8915
  %v8921 = vrot.slane %v8920, 4
  %v8923 = vshll.u32 %v8662, 16
  %v8925 = vrot.slane %v8923, 5
  %v8926 = vsel %vm2339, %v8921, %v8925
  %v8928 = vshrl.u32 %v8663, 16
  %v8930 = vrot.slane %v8928, 4
  %v8931 = vshll.u32 %v8663, 16
  %v8933 = vrot.slane %v8931, 5
  %v8934 = vor.u32 %v8930, %v8933
  %v8935 = vrot.slane %v8934, 4
  %v8937 = vshll.u32 %v8664, 16
  %v8939 = vrot.slane %v8937, 5
  %v8940 = vsel %vm2339, %v8935, %v8939
  %v8941 = vshrl.u32 %v8664, 16
  %v8943 = vrot.slane %v8941, 4
  %v8944 = vor.u32 %v8943, %v8939
  %v8945 = vrot.slane %v8944, 4
  %v8947 = vshll.u32 %v8665, 16
  %v8949 = vrot.slane %v8947, 5
  %v8950 = vsel %vm2339, %v8945, %v8949
  %v8952 = vshrl.u32 %v8666, 16
  %v8954 = vrot.slane %v8952, 4
  %v8955 = vshll.u32 %v8666, 16
  %v8957 = vrot.slane %v8955, 5
  %v8958 = vor.u32 %v8954, %v8957
  %v8959 = vrot.slane %v8958, 4
  %v8961 = vshll.u32 %v8667, 16
  %v8963 = vrot.slane %v8961, 5
  %v8964 = vsel %vm2339, %v8959, %v8963
  %v8965 = vshrl.u32 %v8667, 16
  %v8967 = vrot.slane %v8965, 4
  %v8968 = vor.u32 %v8967, %v8963
  %v8969 = vrot.slane %v8968, 4
  %v8971 = vshll.u32 %v8668, 16
  %v8973 = vrot.slane %v8971, 5
  %v8974 = vsel %vm2339, %v8969, %v8973
  %v8976 = vshrl.u32 %v8669, 16
  %v8978 = vrot.slane %v8976, 4
  %v8979 = vshll.u32 %v8669, 16
  %v8981 = vrot.slane %v8979, 5
  %v8982 = vor.u32 %v8978, %v8981
  %v8983 = vrot.slane %v8982, 4
  %v8985 = vshll.u32 %v8670, 16
  %v8987 = vrot.slane %v8985, 5
  %v8988 = vsel %vm2339, %v8983, %v8987
  %v8989 = vshrl.u32 %v8670, 16
  %v8991 = vrot.slane %v8989, 4
  %v8992 = vor.u32 %v8991, %v8987
  %v8993 = vrot.slane %v8992, 4
  %v8995 = vshll.u32 %v8671, 16
  %v8997 = vrot.slane %v8995, 5
  %v8998 = vsel %vm2339, %v8993, %v8997
  %v9000 = vshrl.u32 %v8672, 16
  %v9002 = vrot.slane %v9000, 4
  %v9003 = vshll.u32 %v8672, 16
  %v9005 = vrot.slane %v9003, 5
  %v9006 = vor.u32 %v9002, %v9005
  %v9007 = vrot.slane %v9006, 4
  %v9009 = vshll.u32 %v8673, 16
  %v9011 = vrot.slane %v9009, 5
  %v9012 = vsel %vm2339, %v9007, %v9011
  %v9013 = vshrl.u32 %v8673, 16
  %v9015 = vrot.slane %v9013, 4
  %v9016 = vor.u32 %v9015, %v9011
  %v9017 = vrot.slane %v9016, 4
  %v9019 = vshll.u32 %v8674, 16
  %v9021 = vrot.slane %v9019, 5
  %v9022 = vsel %vm2339, %v9017, %v9021
  %v9024 = vshrl.u32 %v8675, 16
  %v9026 = vrot.slane %v9024, 4
  %v9027 = vshll.u32 %v8675, 16
  %v9029 = vrot.slane %v9027, 5
  %v9030 = vor.u32 %v9026, %v9029
  %v9031 = vrot.slane %v9030, 4
  %v9033 = vshll.u32 %v8676, 16
  %v9035 = vrot.slane %v9033, 5
  %v9036 = vsel %vm2339, %v9031, %v9035
  %v9037 = vshrl.u32 %v8676, 16
  %v9039 = vrot.slane %v9037, 4
  %v9040 = vor.u32 %v9039, %v9035
  %v9041 = vrot.slane %v9040, 4
  %v9043 = vshll.u32 %v8677, 16
  %v9045 = vrot.slane %v9043, 5
  %v9046 = vsel %vm2339, %v9041, %v9045
  %v9048 = vshrl.u32 %v8678, 16
  %v9050 = vrot.slane %v9048, 4
  %v9051 = vshll.u32 %v8678, 16
  %v9053 = vrot.slane %v9051, 5
  %v9054 = vor.u32 %v9050, %v9053
  %v9055 = vrot.slane %v9054, 4
  %v9057 = vshll.u32 %v8679, 16
  %v9059 = vrot.slane %v9057, 5
  %v9060 = vsel %vm2339, %v9055, %v9059
  %v9061 = vshrl.u32 %v8679, 16
  %v9063 = vrot.slane %v9061, 4
  %v9064 = vor.u32 %v9063, %v9059
  %v9065 = vrot.slane %v9064, 4
  %v9067 = vshll.u32 %v8680, 16
  %v9069 = vrot.slane %v9067, 5
  %v9070 = vsel %vm2339, %v9065, %v9069
  %v9072 = vshrl.u32 %v8681, 16
  %v9074 = vrot.slane %v9072, 4
  %v9075 = vshll.u32 %v8681, 16
  %v9077 = vrot.slane %v9075, 5
  %v9078 = vor.u32 %v9074, %v9077
  %v9079 = vrot.slane %v9078, 4
  %v9081 = vshll.u32 %v8682, 16
  %v9083 = vrot.slane %v9081, 5
  %v9084 = vsel %vm2339, %v9079, %v9083
  %v9085 = vshrl.u32 %v8682, 16
  %v9087 = vrot.slane %v9085, 4
  %v9088 = vor.u32 %v9087, %v9083
  %v9089 = vrot.slane %v9088, 4
  %v9091 = vshll.u32 %v8683, 16
  %v9093 = vrot.slane %v9091, 5
  %v9094 = vsel %vm2339, %v9089, %v9093
  %v9096 = vshrl.u32 %v8684, 16
  %v9098 = vrot.slane %v9096, 4
  %v9099 = vshll.u32 %v8684, 16
  %v9101 = vrot.slane %v9099, 5
  %v9102 = vor.u32 %v9098, %v9101
  %v9103 = vrot.slane %v9102, 4
  %v9105 = vshll.u32 %v8685, 16
  %v9107 = vrot.slane %v9105, 5
  %v9108 = vsel %vm2339, %v9103, %v9107
  %v9109 = vshrl.u32 %v8685, 16
  %v9111 = vrot.slane %v9109, 4
  %v9112 = vor.u32 %v9111, %v9107
  %v9113 = vrot.slane %v9112, 4
  %v9115 = vshll.u32 %v8686, 16
  %v9117 = vrot.slane %v9115, 5
  %v9118 = vsel %vm2339, %v9113, %v9117
  %v9120 = vshrl.u32 %v8687, 16
  %v9122 = vrot.slane %v9120, 4
  %v9123 = vshll.u32 %v8687, 16
  %v9125 = vrot.slane %v9123, 5
  %v9126 = vor.u32 %v9122, %v9125
  %v9127 = vrot.slane %v9126, 4
  %v9129 = vshll.u32 %v8688, 16
  %v9131 = vrot.slane %v9129, 5
  %v9132 = vsel %vm2339, %v9127, %v9131
  %v9133 = vshrl.u32 %v8688, 16
  %v9135 = vrot.slane %v9133, 4
  %v9136 = vor.u32 %v9135, %v9131
  %v9137 = vrot.slane %v9136, 4
  %v9139 = vshll.u32 %v8689, 16
  %v9141 = vrot.slane %v9139, 5
  %v9142 = vsel %vm2339, %v9137, %v9141
  %v9144 = vshrl.u32 %v8690, 16
  %v9146 = vrot.slane %v9144, 4
  %v9147 = vshll.u32 %v8690, 16
  %v9149 = vrot.slane %v9147, 5
  %v9150 = vor.u32 %v9146, %v9149
  %v9151 = vrot.slane %v9150, 4
  %v9153 = vshll.u32 %v8691, 16
  %v9155 = vrot.slane %v9153, 5
  %v9156 = vsel %vm2339, %v9151, %v9155
  %v9157 = vshrl.u32 %v8691, 16
  %v9159 = vrot.slane %v9157, 4
  %v9160 = vor.u32 %v9159, %v9155
  %v9161 = vrot.slane %v9160, 4
  %v9163 = vshll.u32 %v8692, 16
  %v9165 = vrot.slane %v9163, 5
  %v9166 = vsel %vm2339, %v9161, %v9165
  %v9168 = vshrl.u32 %v8693, 16
  %v9170 = vrot.slane %v9168, 4
  %v9171 = vshll.u32 %v8693, 16
  %v9173 = vrot.slane %v9171, 5
  %v9174 = vor.u32 %v9170, %v9173
  %v9175 = vrot.slane %v9174, 4
  %v9177 = vshll.u32 %v8694, 16
  %v9179 = vrot.slane %v9177, 5
  %v9180 = vsel %vm2339, %v9175, %v9179
  %v9181 = vshrl.u32 %v8694, 16
  %v9183 = vrot.slane %v9181, 4
  %v9184 = vor.u32 %v9183, %v9179
  %v9185 = vrot.slane %v9184, 4
  %v9187 = vshll.u32 %v8695, 16
  %v9189 = vrot.slane %v9187, 5
  %v9190 = vsel %vm2339, %v9185, %v9189
  %v9192 = vshrl.u32 %v8696, 16
  %v9194 = vrot.slane %v9192, 4
  %v9195 = vshll.u32 %v8696, 16
  %v9197 = vrot.slane %v9195, 5
  %v9198 = vor.u32 %v9194, %v9197
  %v9199 = vrot.slane %v9198, 4
  %v9201 = vshll.u32 %v8697, 16
  %v9203 = vrot.slane %v9201, 5
  %v9204 = vsel %vm2339, %v9199, %v9203
  %v9205 = vshrl.u32 %v8697, 16
  %v9207 = vrot.slane %v9205, 4
  %v9208 = vor.u32 %v9207, %v9203
  %v9209 = vrot.slane %v9208, 4
  %v9211 = vshll.u32 %v8698, 16
  %v9213 = vrot.slane %v9211, 5
  %v9214 = vsel %vm2339, %v9209, %v9213
  %v9216 = vshrl.u32 %v8699, 16
  %v9218 = vrot.slane %v9216, 4
  %v9219 = vshll.u32 %v8699, 16
  %v9221 = vrot.slane %v9219, 5
  %v9222 = vor.u32 %v9218, %v9221
  %v9223 = vrot.slane %v9222, 4
  %v9225 = vshll.u32 %v8700, 16
  %v9227 = vrot.slane %v9225, 5
  %v9228 = vsel %vm2339, %v9223, %v9227
  %v9229 = vshrl.u32 %v8700, 16
  %v9231 = vrot.slane %v9229, 4
  %v9232 = vor.u32 %v9231, %v9227
  %v9233 = vrot.slane %v9232, 4
  %v9235 = vshll.u32 %v8701, 16
  %v9237 = vrot.slane %v9235, 5
  %v9238 = vsel %vm2339, %v9233, %v9237
  %v9240 = vshrl.u32 %v8702, 16
  %v9242 = vrot.slane %v9240, 4
  %v9243 = vshll.u32 %v8702, 16
  %v9245 = vrot.slane %v9243, 5
  %v9246 = vor.u32 %v9242, %v9245
  %v9247 = vrot.slane %v9246, 4
  %v9249 = vshll.u32 %v8703, 16
  %v9251 = vrot.slane %v9249, 5
  %v9252 = vsel %vm2339, %v9247, %v9251
  %v9253 = vshrl.u32 %v8703, 16
  %v9255 = vrot.slane %v9253, 4
  %v9256 = vor.u32 %v9255, %v9251
  %v9257 = vrot.slane %v9256, 4
  %v9259 = vshll.u32 %v8704, 16
  %v9261 = vrot.slane %v9259, 5
  %v9262 = vsel %vm2339, %v9257, %v9261
  %v9264 = vshrl.u32 %v8705, 16
  %v9266 = vrot.slane %v9264, 4
  %v9267 = vshll.u32 %v8705, 16
  %v9269 = vrot.slane %v9267, 5
  %v9270 = vor.u32 %v9266, %v9269
  %v9271 = vrot.slane %v9270, 4
  %v9273 = vshll.u32 %v8706, 16
  %v9275 = vrot.slane %v9273, 5
  %v9276 = vsel %vm2339, %v9271, %v9275
  %v9277 = vshrl.u32 %v8706, 16
  %v9279 = vrot.slane %v9277, 4
  %v9280 = vor.u32 %v9279, %v9275
  %v9281 = vrot.slane %v9280, 4
  %v9283 = vshll.u32 %v8707, 16
  %v9285 = vrot.slane %v9283, 5
  %v9286 = vsel %vm2339, %v9281, %v9285
  %v9288 = vshrl.u32 %v8708, 16
  %v9290 = vrot.slane %v9288, 4
  %v9291 = vshll.u32 %v8708, 16
  %v9293 = vrot.slane %v9291, 5
  %v9294 = vor.u32 %v9290, %v9293
  %v9295 = vrot.slane %v9294, 4
  %v9297 = vshll.u32 %v8709, 16
  %v9299 = vrot.slane %v9297, 5
  %v9300 = vsel %vm2339, %v9295, %v9299
  %v9301 = vshrl.u32 %v8709, 16
  %v9303 = vrot.slane %v9301, 4
  %v9304 = vor.u32 %v9303, %v9299
  %v9305 = vrot.slane %v9304, 4
  %v9307 = vshll.u32 %v8710, 16
  %v9309 = vrot.slane %v9307, 5
  %v9310 = vsel %vm2339, %v9305, %v9309
  %v9312 = vshrl.u32 %v8711, 16
  %v9314 = vrot.slane %v9312, 4
  %v9315 = vshll.u32 %v8711, 16
  %v9317 = vrot.slane %v9315, 5
  %v9318 = vor.u32 %v9314, %v9317
  %v9319 = vrot.slane %v9318, 4
  %v9321 = vshll.u32 %v8712, 16
  %v9323 = vrot.slane %v9321, 5
  %v9324 = vsel %vm2339, %v9319, %v9323
  %v9325 = vshrl.u32 %v8712, 16
  %v9327 = vrot.slane %v9325, 4
  %v9328 = vor.u32 %v9327, %v9323
  %v9329 = vrot.slane %v9328, 4
  %v9331 = vshll.u32 %v8713, 16
  %v9333 = vrot.slane %v9331, 5
  %v9334 = vsel %vm2339, %v9329, %v9333
  %v9336 = vshrl.u32 %v8714, 16
  %v9338 = vrot.slane %v9336, 4
  %v9339 = vshll.u32 %v8714, 16
  %v9341 = vrot.slane %v9339, 5
  %v9342 = vor.u32 %v9338, %v9341
  %v9343 = vrot.slane %v9342, 4
  %v9345 = vshll.u32 %v8715, 16
  %v9347 = vrot.slane %v9345, 5
  %v9348 = vsel %vm2339, %v9343, %v9347
  %v9349 = vshrl.u32 %v8715, 16
  %v9351 = vrot.slane %v9349, 4
  %v9352 = vor.u32 %v9351, %v9347
  %v9353 = vrot.slane %v9352, 4
  %v9355 = vshll.u32 %v8716, 16
  %v9357 = vrot.slane %v9355, 5
  %v9358 = vsel %vm2339, %v9353, %v9357
  %v9360 = vshrl.u32 %v8717, 16
  %v9362 = vrot.slane %v9360, 4
  %v9363 = vshll.u32 %v8717, 16
  %v9365 = vrot.slane %v9363, 5
  %v9366 = vor.u32 %v9362, %v9365
  %v9367 = vrot.slane %v9366, 4
  %v9369 = vshll.u32 %v8718, 16
  %v9371 = vrot.slane %v9369, 5
  %v9372 = vsel %vm2339, %v9367, %v9371
  %v9373 = vshrl.u32 %v8718, 16
  %v9375 = vrot.slane %v9373, 4
  %v9376 = vor.u32 %v9375, %v9371
  %v9377 = vrot.slane %v9376, 4
  %v9379 = vshll.u32 %v8719, 16
  %v9381 = vrot.slane %v9379, 5
  %v9382 = vsel %vm2339, %v9377, %v9381
  %v9384 = vshrl.u32 %v8720, 16
  %v9386 = vrot.slane %v9384, 4
  %v9387 = vshll.u32 %v8720, 16
  %v9389 = vrot.slane %v9387, 5
  %v9390 = vor.u32 %v9386, %v9389
  %v9391 = vrot.slane %v9390, 4
  %v9393 = vshll.u32 %v8721, 16
  %v9395 = vrot.slane %v9393, 5
  %v9396 = vsel %vm2339, %v9391, %v9395
  %v9397 = vshrl.u32 %v8721, 16
  %v9399 = vrot.slane %v9397, 4
  %v9400 = vor.u32 %v9399, %v9395
  %v9401 = vrot.slane %v9400, 4
  %v9403 = vshll.u32 %v8722, 16
  %v9405 = vrot.slane %v9403, 5
  %v9406 = vsel %vm2339, %v9401, %v9405
  %v9408 = vshrl.u32 %v8723, 16
  %v9410 = vrot.slane %v9408, 4
  %v9411 = vshll.u32 %v8723, 16
  %v9413 = vrot.slane %v9411, 5
  %v9414 = vor.u32 %v9410, %v9413
  %v9415 = vrot.slane %v9414, 4
  %v9417 = vshll.u32 %v8724, 16
  %v9419 = vrot.slane %v9417, 5
  %v9420 = vsel %vm2339, %v9415, %v9419
  %v9421 = vshrl.u32 %v8724, 16
  %v9423 = vrot.slane %v9421, 4
  %v9424 = vor.u32 %v9423, %v9419
  %v9425 = vrot.slane %v9424, 4
  %v9427 = vshll.u32 %v8725, 16
  %v9429 = vrot.slane %v9427, 5
  %v9430 = vsel %vm2339, %v9425, %v9429
  %v9432 = vshrl.u32 %v8726, 16
  %v9434 = vrot.slane %v9432, 4
  %v9435 = vshll.u32 %v8726, 16
  %v9437 = vrot.slane %v9435, 5
  %v9438 = vor.u32 %v9434, %v9437
  %v9439 = vrot.slane %v9438, 4
  %v9441 = vshll.u32 %v8727, 16
  %v9443 = vrot.slane %v9441, 5
  %v9444 = vsel %vm2339, %v9439, %v9443
  %v9445 = vshrl.u32 %v8727, 16
  %v9447 = vrot.slane %v9445, 4
  %v9448 = vor.u32 %v9447, %v9443
  %v9449 = vrot.slane %v9448, 4
  %v9451 = vshll.u32 %v8728, 16
  %v9453 = vrot.slane %v9451, 5
  %v9454 = vsel %vm2339, %v9449, %v9453
  %v9456 = vshrl.u32 %v8729, 16
  %v9458 = vrot.slane %v9456, 4
  %v9459 = vshll.u32 %v8729, 16
  %v9461 = vrot.slane %v9459, 5
  %v9462 = vor.u32 %v9458, %v9461
  %v9463 = vrot.slane %v9462, 4
  %v9465 = vshll.u32 %v8730, 16
  %v9467 = vrot.slane %v9465, 5
  %v9468 = vsel %vm2339, %v9463, %v9467
  %v9469 = vshrl.u32 %v8730, 16
  %v9471 = vrot.slane %v9469, 4
  %v9472 = vor.u32 %v9471, %v9467
  %v9473 = vrot.slane %v9472, 4
  %v9475 = vshll.u32 %v8731, 16
  %v9477 = vrot.slane %v9475, 5
  %v9478 = vsel %vm2339, %v9473, %v9477
  %v9480 = vshrl.u32 %v8732, 16
  %v9482 = vrot.slane %v9480, 4
  %v9483 = vshll.u32 %v8732, 16
  %v9485 = vrot.slane %v9483, 5
  %v9486 = vor.u32 %v9482, %v9485
  %v9487 = vrot.slane %v9486, 4
  %v9489 = vshll.u32 %v8733, 16
  %v9491 = vrot.slane %v9489, 5
  %v9492 = vsel %vm2339, %v9487, %v9491
  %v9493 = vshrl.u32 %v8733, 16
  %v9495 = vrot.slane %v9493, 4
  %v9496 = vor.u32 %v9495, %v9491
  %v9497 = vrot.slane %v9496, 4
  %v9499 = vshll.u32 %v8734, 16
  %v9501 = vrot.slane %v9499, 5
  %v9502 = vsel %vm2339, %v9497, %v9501
  %v9503 = vld [vmem:[%s4 + $0x1c0] sm:$0xf]
  %v9504 = vld [vmem:[%s4 + $0x1c4] sm:$0xf]
  %v9505 = vld [vmem:[%s4 + $0x1c8] sm:$0xf]
  %v9506 = vld [vmem:[%s4 + $0x1cc] sm:$0xf]
  %v9507 = vld [vmem:[%s4 + $0x1d0] sm:$0xf]
  %v9508 = vld [vmem:[%s4 + $0x1d4] sm:$0xf]
  %v9509 = vld [vmem:[%s4 + $0x1d8] sm:$0xf]
  %v9510 = vld [vmem:[%s4 + $0x1dc] sm:$0xf]
  %v9511 = vld [vmem:[%s4 + $0x1e0] sm:$0xf]
  %v9512 = vld [vmem:[%s4 + $0x1e4] sm:$0xf]
  %v9513 = vld [vmem:[%s4 + $0x1e8] sm:$0xf]
  %v9514 = vld [vmem:[%s4 + $0x1ec] sm:$0xf]
  %v9515 = vld [vmem:[%s4 + $0x1f0] sm:$0xf]
  %v9516 = vld [vmem:[%s4 + $0x1f4] sm:$0xf]
  %v9517 = vld [vmem:[%s4 + $0x1f8] sm:$0xf]
  %v9518 = vld [vmem:[%s4 + $0x1fc] sm:$0xf]
  %v9519 = vunpack.c.l.b16 %v8748
  %v9520 = vunpack.c.l.b16 %v8758
  %v9521 = vunpack.c.l.b16 %v8772
  %v9522 = vunpack.c.l.b16 %v8782
  %v9523 = vunpack.c.l.b16 %v8796
  %v9524 = vunpack.c.l.b16 %v8806
  %v9525 = vunpack.c.l.b16 %v8820
  %v9526 = vunpack.c.l.b16 %v8830
  %v9527 = vunpack.c.l.b16 %v8844
  %v9528 = vunpack.c.l.b16 %v8854
  %v9529 = vunpack.c.l.b16 %v8868
  %v9530 = vunpack.c.l.b16 %v8878
  %v9531 = vunpack.c.l.b16 %v8892
  %v9532 = vunpack.c.l.b16 %v8902
  %v9533 = vunpack.c.l.b16 %v8916
  %v9534 = vunpack.c.l.b16 %v8926
  %v9535 = vunpack.c.l.b16 %v8940
  %v9536 = vunpack.c.l.b16 %v8950
  %v9537 = vunpack.c.l.b16 %v8964
  %v9538 = vunpack.c.l.b16 %v8974
  %v9539 = vunpack.c.l.b16 %v8988
  %v9540 = vunpack.c.l.b16 %v8998
  %v9541 = vunpack.c.l.b16 %v9012
  %v9542 = vunpack.c.l.b16 %v9022
  %v9543 = vunpack.c.l.b16 %v9036
  %v9544 = vunpack.c.l.b16 %v9046
  %v9545 = vunpack.c.l.b16 %v9060
  %v9546 = vunpack.c.l.b16 %v9070
  %v9547 = vunpack.c.l.b16 %v9084
  %v9548 = vunpack.c.l.b16 %v9094
  %v9549 = vunpack.c.l.b16 %v9108
  %v9550 = vunpack.c.l.b16 %v9118
  %v9551 = vunpack.c.l.b16 %v9132
  %v9552 = vunpack.c.l.b16 %v9142
  %v9553 = vunpack.c.l.b16 %v9156
  %v9554 = vunpack.c.l.b16 %v9166
  %v9555 = vunpack.c.l.b16 %v9180
  %v9556 = vunpack.c.l.b16 %v9190
  %v9557 = vunpack.c.l.b16 %v9204
  %v9558 = vunpack.c.l.b16 %v9214
  %v9559 = vunpack.c.l.b16 %v9228
  %v9560 = vunpack.c.l.b16 %v9238
  %v9561 = vunpack.c.l.b16 %v9252
  %v9562 = vunpack.c.l.b16 %v9262
  %v9563 = vunpack.c.l.b16 %v9276
  %v9564 = vunpack.c.l.b16 %v9286
  %v9565 = vunpack.c.l.b16 %v9300
  %v9566 = vunpack.c.l.b16 %v9310
  %v9567 = vunpack.c.l.b16 %v9324
  %v9568 = vunpack.c.l.b16 %v9334
  %v9569 = vunpack.c.l.b16 %v9348
  %v9570 = vunpack.c.l.b16 %v9358
  %v9571 = vunpack.c.l.b16 %v9372
  %v9572 = vunpack.c.l.b16 %v9382
  %v9573 = vunpack.c.l.b16 %v9396
  %v9574 = vunpack.c.l.b16 %v9406
  %v9575 = vunpack.c.l.b16 %v9420
  %v9576 = vunpack.c.l.b16 %v9430
  %v9577 = vunpack.c.l.b16 %v9444
  %v9578 = vunpack.c.l.b16 %v9454
  %v9579 = vunpack.c.l.b16 %v9468
  %v9580 = vunpack.c.l.b16 %v9478
  %v9581 = vunpack.c.l.b16 %v9492
  %v9582 = vunpack.c.l.b16 %v9502
  %v9583 = vpack.c.b16 %v9520, %v9519
  %v9584 = vpack.c.b16 %v9522, %v9521
  %v9585 = vpack.c.b16 %v9524, %v9523
  %v9586 = vpack.c.b16 %v9526, %v9525
  %v9587 = vpack.c.b16 %v9528, %v9527
  %v9588 = vpack.c.b16 %v9530, %v9529
  %v9589 = vpack.c.b16 %v9532, %v9531
  %v9590 = vpack.c.b16 %v9534, %v9533
  %v9591 = vpack.c.b16 %v9536, %v9535
  %v9592 = vpack.c.b16 %v9538, %v9537
  %v9593 = vpack.c.b16 %v9540, %v9539
  %v9594 = vpack.c.b16 %v9542, %v9541
  %v9595 = vpack.c.b16 %v9544, %v9543
  %v9596 = vpack.c.b16 %v9546, %v9545
  %v9597 = vpack.c.b16 %v9548, %v9547
  %v9598 = vpack.c.b16 %v9550, %v9549
  %v9599 = vpack.c.b16 %v9552, %v9551
  %v9600 = vpack.c.b16 %v9554, %v9553
  %v9601 = vpack.c.b16 %v9556, %v9555
  %v9602 = vpack.c.b16 %v9558, %v9557
  %v9603 = vpack.c.b16 %v9560, %v9559
  %v9604 = vpack.c.b16 %v9562, %v9561
  %v9605 = vpack.c.b16 %v9564, %v9563
  %v9606 = vpack.c.b16 %v9566, %v9565
  %v9607 = vpack.c.b16 %v9568, %v9567
  %v9608 = vpack.c.b16 %v9570, %v9569
  %v9609 = vpack.c.b16 %v9572, %v9571
  %v9610 = vpack.c.b16 %v9574, %v9573
  %v9611 = vpack.c.b16 %v9576, %v9575
  %v9612 = vpack.c.b16 %v9578, %v9577
  %v9613 = vpack.c.b16 %v9580, %v9579
  %v9614 = vpack.c.b16 %v9582, %v9581
  %v9663 = vunpack.c.l.b16 %v9503
  %v9664 = vunpack.c.l.b16 %v9504
  %v9665 = vunpack.c.l.b16 %v9505
  %v9666 = vunpack.c.l.b16 %v9506
  %v9667 = vunpack.c.l.b16 %v9507
  %v9668 = vunpack.c.l.b16 %v9508
  %v9669 = vunpack.c.l.b16 %v9509
  %v9670 = vunpack.c.l.b16 %v9510
  %v9671 = vunpack.c.l.b16 %v9511
  %v9672 = vunpack.c.l.b16 %v9512
  %v9673 = vunpack.c.l.b16 %v9513
  %v9674 = vunpack.c.l.b16 %v9514
  %v9675 = vunpack.c.l.b16 %v9515
  %v9676 = vunpack.c.l.b16 %v9516
  %v9677 = vunpack.c.l.b16 %v9517
  %v9678 = vunpack.c.l.b16 %v9518
  %v9679 = vpack.c.b16 %v9664, %v9663
  %v9680 = vpack.c.b16 %v9666, %v9665
  %v9681 = vpack.c.b16 %v9668, %v9667
  %v9682 = vpack.c.b16 %v9670, %v9669
  %v9683 = vpack.c.b16 %v9672, %v9671
  %v9684 = vpack.c.b16 %v9674, %v9673
  %v9685 = vpack.c.b16 %v9676, %v9675
  %v9686 = vpack.c.b16 %v9678, %v9677
  %9695 = vmatprep.subr.bf16.mxu0 0
  %9696 = vmatpush1.bf16.msra.mxu0 %v9679
  %9697 = vmatprep.subr.bf16.mxu0 0
  %9698 = vmatpush1.bf16.msra.mxu0 %v9680
  %9699 = vmatprep.subr.bf16.mxu0 0
  %9700 = vmatpush1.bf16.msra.mxu0 %v9681
  %9701 = vmatprep.subr.bf16.mxu0 0
  %9702 = vmatpush1.bf16.msra.mxu0 %v9682
  %9703 = vmatprep.subr.bf16.mxu0 0
  %9704 = vmatpush1.bf16.msra.mxu0 %v9683
  %9705 = vmatprep.subr.bf16.mxu0 0
  %9706 = vmatpush1.bf16.msra.mxu0 %v9684
  %9707 = vmatprep.subr.bf16.mxu0 0
  %9708 = vmatpush1.bf16.msra.mxu0 %v9685
  %9709 = vmatprep.subr.bf16.mxu0 0
  %9710 = vmatpush1.bf16.msra.mxu0 %v9686
  %9711 = vmatprep.subr.bf16.mxu0 0
  %9712 = vmatpush1.bf16.msra.mxu0 0
  %9713 = vmatprep.subr.bf16.mxu0 0
  %9714 = vmatpush1.bf16.msra.mxu0 0
  %9715 = vmatprep.subr.bf16.mxu0 0
  %9716 = vmatpush1.bf16.msra.mxu0 0
  %9717 = vmatprep.subr.bf16.mxu0 0
  %9718 = vmatpush1.bf16.msra.mxu0 0
  %9719 = vmatprep.subr.bf16.mxu0 0
  %9720 = vmatpush1.bf16.msra.mxu0 0
  %9721 = vmatprep.subr.bf16.mxu0 0
  %9722 = vmatpush1.bf16.msra.mxu0 0
  %9723 = vmatprep.subr.bf16.mxu0 0
  %9724 = vmatpush1.bf16.msra.mxu0 0
  %9725 = vmatprep.subr.bf16.mxu0 0
  %9726 = vmatpush1.bf16.msra.mxu0 0
  %9727 = vmatprep.mubr.bf16.mxu0 0
  %9728 = vmatmul.mubr.bf16.gmra.mrb[0].mxu0 %v9583
  %v9729 = vpop.f32.mrb[0].mxu0
  %v9730 = vadd.f32 0.0, %v9729
  %v9731 = vpop.f32.mrb[0].mxu0
  %v9732 = vpop.f32.mrb[0].mxu0
  %v9733 = vadd.f32 0.0, %v9732
  %v9734 = vpop.f32.mrb[0].mxu0
  %9735 = vmatprep.mubr.bf16.mxu0 0
  %9736 = vmatmul.mubr.bf16.gmra.mrb[0].mxu0 %v9584
  %v9737 = vpop.f32.mrb[0].mxu0
  %v9738 = vadd.f32 0.0, %v9737
  %v9739 = vpop.f32.mrb[0].mxu0
  %v9740 = vpop.f32.mrb[0].mxu0
  %v9741 = vadd.f32 0.0, %v9740
  %v9742 = vpop.f32.mrb[0].mxu0
  %9743 = vmatprep.mubr.bf16.mxu0 0
  %9744 = vmatmul.mubr.bf16.gmra.mrb[0].mxu0 %v9585
  %v9745 = vpop.f32.mrb[0].mxu0
  %v9746 = vadd.f32 0.0, %v9745
  %v9747 = vpop.f32.mrb[0].mxu0
  %v9748 = vpop.f32.mrb[0].mxu0
  %v9749 = vadd.f32 0.0, %v9748
  %v9750 = vpop.f32.mrb[0].mxu0
  %9751 = vmatprep.mubr.bf16.mxu0 0
  %9752 = vmatmul.mubr.bf16.gmra.mrb[0].mxu0 %v9586
  %v9753 = vpop.f32.mrb[0].mxu0
  %v9754 = vadd.f32 0.0, %v9753
  %v9755 = vpop.f32.mrb[0].mxu0
  %v9756 = vpop.f32.mrb[0].mxu0
  %v9757 = vadd.f32 0.0, %v9756
  %v9758 = vpop.f32.mrb[0].mxu0
  %9759 = vmatprep.mubr.bf16.mxu0 0
  %9760 = vmatmul.mubr.bf16.gmra.mrb[0].mxu0 %v9587
  %v9761 = vpop.f32.mrb[0].mxu0
  %v9762 = vadd.f32 0.0, %v9761
  %v9763 = vpop.f32.mrb[0].mxu0
  %v9764 = vpop.f32.mrb[0].mxu0
  %v9765 = vadd.f32 0.0, %v9764
  %v9766 = vpop.f32.mrb[0].mxu0
  %9767 = vmatprep.mubr.bf16.mxu0 0
  %9768 = vmatmul.mubr.bf16.gmra.mrb[0].mxu0 %v9588
  %v9769 = vpop.f32.mrb[0].mxu0
  %v9770 = vadd.f32 0.0, %v9769
  %v9771 = vpop.f32.mrb[0].mxu0
  %v9772 = vpop.f32.mrb[0].mxu0
  %v9773 = vadd.f32 0.0, %v9772
  %v9774 = vpop.f32.mrb[0].mxu0
  %9775 = vmatprep.mubr.bf16.mxu0 0
  %9776 = vmatmul.mubr.bf16.gmra.mrb[0].mxu0 %v9589
  %v9777 = vpop.f32.mrb[0].mxu0
  %v9778 = vadd.f32 0.0, %v9777
  %v9779 = vpop.f32.mrb[0].mxu0
  %v9780 = vpop.f32.mrb[0].mxu0
  %v9781 = vadd.f32 0.0, %v9780
  %v9782 = vpop.f32.mrb[0].mxu0
  %9783 = vmatprep.mubr.bf16.mxu0 0
  %9784 = vmatmul.mubr.bf16.gmra.mrb[0].mxu0 %v9590
  %v9785 = vpop.f32.mrb[0].mxu0
  %v9786 = vadd.f32 0.0, %v9785
  %v9787 = vpop.f32.mrb[0].mxu0
  %v9788 = vpop.f32.mrb[0].mxu0
  %v9789 = vadd.f32 0.0, %v9788
  %v9790 = vpop.f32.mrb[0].mxu0
  %9791 = vmatprep.mubr.bf16.mxu0 0
  %9792 = vmatmul.mubr.bf16.gmra.mrb[0].mxu0 %v9591
  %v9793 = vpop.f32.mrb[0].mxu0
  %v9794 = vadd.f32 0.0, %v9793
  %v9795 = vpop.f32.mrb[0].mxu0
  %v9796 = vpop.f32.mrb[0].mxu0
  %v9797 = vadd.f32 0.0, %v9796
  %v9798 = vpop.f32.mrb[0].mxu0
  %9799 = vmatprep.mubr.bf16.mxu0 0
  %9800 = vmatmul.mubr.bf16.gmra.mrb[0].mxu0 %v9592
  %v9801 = vpop.f32.mrb[0].mxu0
  %v9802 = vadd.f32 0.0, %v9801
  %v9803 = vpop.f32.mrb[0].mxu0
  %v9804 = vpop.f32.mrb[0].mxu0
  %v9805 = vadd.f32 0.0, %v9804
  %v9806 = vpop.f32.mrb[0].mxu0
  %9807 = vmatprep.mubr.bf16.mxu0 0
  %9808 = vmatmul.mubr.bf16.gmra.mrb[0].mxu0 %v9593
  %v9809 = vpop.f32.mrb[0].mxu0
  %v9810 = vadd.f32 0.0, %v9809
  %v9811 = vpop.f32.mrb[0].mxu0
  %v9812 = vpop.f32.mrb[0].mxu0
  %v9813 = vadd.f32 0.0, %v9812
  %v9814 = vpop.f32.mrb[0].mxu0
  %9815 = vmatprep.mubr.bf16.mxu0 0
  %9816 = vmatmul.mubr.bf16.gmra.mrb[0].mxu0 %v9594
  %v9817 = vpop.f32.mrb[0].mxu0
  %v9818 = vadd.f32 0.0, %v9817
  %v9819 = vpop.f32.mrb[0].mxu0
  %v9820 = vpop.f32.mrb[0].mxu0
  %v9821 = vadd.f32 0.0, %v9820
  %v9822 = vpop.f32.mrb[0].mxu0
  %9823 = vmatprep.mubr.bf16.mxu0 0
  %9824 = vmatmul.mubr.bf16.gmra.mrb[0].mxu0 %v9595
  %v9825 = vpop.f32.mrb[0].mxu0
  %v9826 = vadd.f32 0.0, %v9825
  %v9827 = vpop.f32.mrb[0].mxu0
  %v9828 = vpop.f32.mrb[0].mxu0
  %v9829 = vadd.f32 0.0, %v9828
  %v9830 = vpop.f32.mrb[0].mxu0
  %9831 = vmatprep.mubr.bf16.mxu0 0
  %9832 = vmatmul.mubr.bf16.gmra.mrb[0].mxu0 %v9596
  %v9833 = vpop.f32.mrb[0].mxu0
  %v9834 = vadd.f32 0.0, %v9833
  %v9835 = vpop.f32.mrb[0].mxu0
  %v9836 = vpop.f32.mrb[0].mxu0
  %v9837 = vadd.f32 0.0, %v9836
  %v9838 = vpop.f32.mrb[0].mxu0
  %9839 = vmatprep.mubr.bf16.mxu0 0
  %9840 = vmatmul.mubr.bf16.gmra.mrb[0].mxu0 %v9597
  %v9841 = vpop.f32.mrb[0].mxu0
  %v9842 = vadd.f32 0.0, %v9841
  %v9843 = vpop.f32.mrb[0].mxu0
  %v9844 = vpop.f32.mrb[0].mxu0
  %v9845 = vadd.f32 0.0, %v9844
  %v9846 = vpop.f32.mrb[0].mxu0
  %9847 = vmatprep.mubr.bf16.mxu0 0
  %9848 = vmatmul.mubr.bf16.gmra.mrb[0].mxu0 %v9598
  %v9849 = vpop.f32.mrb[0].mxu0
  %v9850 = vadd.f32 0.0, %v9849
  %v9851 = vpop.f32.mrb[0].mxu0
  %v9852 = vpop.f32.mrb[0].mxu0
  %v9853 = vadd.f32 0.0, %v9852
  %v9854 = vpop.f32.mrb[0].mxu0
  %9855 = vmatprep.mubr.bf16.mxu0 0
  %9856 = vmatmul.mubr.bf16.gmra.mrb[0].mxu0 %v9599
  %v9857 = vpop.f32.mrb[0].mxu0
  %v9858 = vadd.f32 0.0, %v9857
  %v9859 = vpop.f32.mrb[0].mxu0
  %v9860 = vpop.f32.mrb[0].mxu0
  %v9861 = vadd.f32 0.0, %v9860
  %v9862 = vpop.f32.mrb[0].mxu0
  %9863 = vmatprep.mubr.bf16.mxu0 0
  %9864 = vmatmul.mubr.bf16.gmra.mrb[0].mxu0 %v9600
  %v9865 = vpop.f32.mrb[0].mxu0
  %v9866 = vadd.f32 0.0, %v9865
  %v9867 = vpop.f32.mrb[0].mxu0
  %v9868 = vpop.f32.mrb[0].mxu0
  %v9869 = vadd.f32 0.0, %v9868
  %v9870 = vpop.f32.mrb[0].mxu0
  %9871 = vmatprep.mubr.bf16.mxu0 0
  %9872 = vmatmul.mubr.bf16.gmra.mrb[0].mxu0 %v9601
  %v9873 = vpop.f32.mrb[0].mxu0
  %v9874 = vadd.f32 0.0, %v9873
  %v9875 = vpop.f32.mrb[0].mxu0
  %v9876 = vpop.f32.mrb[0].mxu0
  %v9877 = vadd.f32 0.0, %v9876
  %v9878 = vpop.f32.mrb[0].mxu0
  %9879 = vmatprep.mubr.bf16.mxu0 0
  %9880 = vmatmul.mubr.bf16.gmra.mrb[0].mxu0 %v9602
  %v9881 = vpop.f32.mrb[0].mxu0
  %v9882 = vadd.f32 0.0, %v9881
  %v9883 = vpop.f32.mrb[0].mxu0
  %v9884 = vpop.f32.mrb[0].mxu0
  %v9885 = vadd.f32 0.0, %v9884
  %v9886 = vpop.f32.mrb[0].mxu0
  %9887 = vmatprep.mubr.bf16.mxu0 0
  %9888 = vmatmul.mubr.bf16.gmra.mrb[0].mxu0 %v9603
  %v9889 = vpop.f32.mrb[0].mxu0
  %v9890 = vadd.f32 0.0, %v9889
  %v9891 = vpop.f32.mrb[0].mxu0
  %v9892 = vpop.f32.mrb[0].mxu0
  %v9893 = vadd.f32 0.0, %v9892
  %v9894 = vpop.f32.mrb[0].mxu0
  %9895 = vmatprep.mubr.bf16.mxu0 0
  %9896 = vmatmul.mubr.bf16.gmra.mrb[0].mxu0 %v9604
  %v9897 = vpop.f32.mrb[0].mxu0
  %v9898 = vadd.f32 0.0, %v9897
  %v9899 = vpop.f32.mrb[0].mxu0
  %v9900 = vpop.f32.mrb[0].mxu0
  %v9901 = vadd.f32 0.0, %v9900
  %v9902 = vpop.f32.mrb[0].mxu0
  %9903 = vmatprep.mubr.bf16.mxu0 0
  %9904 = vmatmul.mubr.bf16.gmra.mrb[0].mxu0 %v9605
  %v9905 = vpop.f32.mrb[0].mxu0
  %v9906 = vadd.f32 0.0, %v9905
  %v9907 = vpop.f32.mrb[0].mxu0
  %v9908 = vpop.f32.mrb[0].mxu0
  %v9909 = vadd.f32 0.0, %v9908
  %v9910 = vpop.f32.mrb[0].mxu0
  %9911 = vmatprep.mubr.bf16.mxu0 0
  %9912 = vmatmul.mubr.bf16.gmra.mrb[0].mxu0 %v9606
  %v9913 = vpop.f32.mrb[0].mxu0
  %v9914 = vadd.f32 0.0, %v9913
  %v9915 = vpop.f32.mrb[0].mxu0
  %v9916 = vpop.f32.mrb[0].mxu0
  %v9917 = vadd.f32 0.0, %v9916
  %v9918 = vpop.f32.mrb[0].mxu0
  %9919 = vmatprep.mubr.bf16.mxu0 0
  %9920 = vmatmul.mubr.bf16.gmra.mrb[0].mxu0 %v9607
  %v9921 = vpop.f32.mrb[0].mxu0
  %v9922 = vadd.f32 0.0, %v9921
  %v9923 = vpop.f32.mrb[0].mxu0
  %v9924 = vpop.f32.mrb[0].mxu0
  %v9925 = vadd.f32 0.0, %v9924
  %v9926 = vpop.f32.mrb[0].mxu0
  %9927 = vmatprep.mubr.bf16.mxu0 0
  %9928 = vmatmul.mubr.bf16.gmra.mrb[0].mxu0 %v9608
  %v9929 = vpop.f32.mrb[0].mxu0
  %v9930 = vadd.f32 0.0, %v9929
  %v9931 = vpop.f32.mrb[0].mxu0
  %v9932 = vpop.f32.mrb[0].mxu0
  %v9933 = vadd.f32 0.0, %v9932
  %v9934 = vpop.f32.mrb[0].mxu0
  %9935 = vmatprep.mubr.bf16.mxu0 0
  %9936 = vmatmul.mubr.bf16.gmra.mrb[0].mxu0 %v9609
  %v9937 = vpop.f32.mrb[0].mxu0
  %v9938 = vadd.f32 0.0, %v9937
  %v9939 = vpop.f32.mrb[0].mxu0
  %v9940 = vpop.f32.mrb[0].mxu0
  %v9941 = vadd.f32 0.0, %v9940
  %v9942 = vpop.f32.mrb[0].mxu0
  %9943 = vmatprep.mubr.bf16.mxu0 0
  %9944 = vmatmul.mubr.bf16.gmra.mrb[0].mxu0 %v9610
  %v9945 = vpop.f32.mrb[0].mxu0
  %v9946 = vadd.f32 0.0, %v9945
  %v9947 = vpop.f32.mrb[0].mxu0
  %v9948 = vpop.f32.mrb[0].mxu0
  %v9949 = vadd.f32 0.0, %v9948
  %v9950 = vpop.f32.mrb[0].mxu0
  %9951 = vmatprep.mubr.bf16.mxu0 0
  %9952 = vmatmul.mubr.bf16.gmra.mrb[0].mxu0 %v9611
  %v9953 = vpop.f32.mrb[0].mxu0
  %v9954 = vadd.f32 0.0, %v9953
  %v9955 = vpop.f32.mrb[0].mxu0
  %v9956 = vpop.f32.mrb[0].mxu0
  %v9957 = vadd.f32 0.0, %v9956
  %v9958 = vpop.f32.mrb[0].mxu0
  %9959 = vmatprep.mubr.bf16.mxu0 0
  %9960 = vmatmul.mubr.bf16.gmra.mrb[0].mxu0 %v9612
  %v9961 = vpop.f32.mrb[0].mxu0
  %v9962 = vadd.f32 0.0, %v9961
  %v9963 = vpop.f32.mrb[0].mxu0
  %v9964 = vpop.f32.mrb[0].mxu0
  %v9965 = vadd.f32 0.0, %v9964
  %v9966 = vpop.f32.mrb[0].mxu0
  %9967 = vmatprep.mubr.bf16.mxu0 0
  %9968 = vmatmul.mubr.bf16.gmra.mrb[0].mxu0 %v9613
  %v9969 = vpop.f32.mrb[0].mxu0
  %v9970 = vadd.f32 0.0, %v9969
  %v9971 = vpop.f32.mrb[0].mxu0
  %v9972 = vpop.f32.mrb[0].mxu0
  %v9973 = vadd.f32 0.0, %v9972
  %v9974 = vpop.f32.mrb[0].mxu0
  %9975 = vmatprep.mubr.bf16.mxu0 0
  %9976 = vmatmul.mubr.bf16.gmra.mrb[0].mxu0 %v9614
  %v9977 = vpop.f32.mrb[0].mxu0
  %v9978 = vadd.f32 0.0, %v9977
  %v9979 = vpop.f32.mrb[0].mxu0
  %v9980 = vpop.f32.mrb[0].mxu0
  %v9981 = vadd.f32 0.0, %v9980
  %v9982 = vpop.f32.mrb[0].mxu0
  %9983 = vdwg.mxu0
  %v9984 = vadd.f32 %v8575, %v9730
  %v9985 = vadd.f32 %v8576, %v9733
  %v9986 = vadd.f32 %v8577, %v9738
  %v9987 = vadd.f32 %v8578, %v9741
  %v9988 = vadd.f32 %v8579, %v9746
  %v9989 = vadd.f32 %v8580, %v9749
  %v9990 = vadd.f32 %v8581, %v9754
  %v9991 = vadd.f32 %v8582, %v9757
  %v9992 = vadd.f32 %v8583, %v9762
  %v9993 = vadd.f32 %v8584, %v9765
  %v9994 = vadd.f32 %v8585, %v9770
  %v9995 = vadd.f32 %v8586, %v9773
  %v9996 = vadd.f32 %v8587, %v9778
  %v9997 = vadd.f32 %v8588, %v9781
  %v9998 = vadd.f32 %v8589, %v9786
  %v9999 = vadd.f32 %v8590, %v9789
  %v10000 = vadd.f32 %v8591, %v9794
  %v10001 = vadd.f32 %v8592, %v9797
  %v10002 = vadd.f32 %v8593, %v9802
  %v10003 = vadd.f32 %v8594, %v9805
  %v10004 = vadd.f32 %v8595, %v9810
  %v10005 = vadd.f32 %v8596, %v9813
  %v10006 = vadd.f32 %v8597, %v9818
  %v10007 = vadd.f32 %v8598, %v9821
  %v10008 = vadd.f32 %v8599, %v9826
  %v10009 = vadd.f32 %v8600, %v9829
  %v10010 = vadd.f32 %v8601, %v9834
  %v10011 = vadd.f32 %v8602, %v9837
  %v10012 = vadd.f32 %v8603, %v9842
  %v10013 = vadd.f32 %v8604, %v9845
  %v10014 = vadd.f32 %v8605, %v9850
  %v10015 = vadd.f32 %v8606, %v9853
  %v10016 = vadd.f32 %v8607, %v9858
  %v10017 = vadd.f32 %v8608, %v9861
  %v10018 = vadd.f32 %v8609, %v9866
  %v10019 = vadd.f32 %v8610, %v9869
  %v10020 = vadd.f32 %v8611, %v9874
  %v10021 = vadd.f32 %v8612, %v9877
  %v10022 = vadd.f32 %v8613, %v9882
  %v10023 = vadd.f32 %v8614, %v9885
  %v10024 = vadd.f32 %v8615, %v9890
  %v10025 = vadd.f32 %v8616, %v9893
  %v10026 = vadd.f32 %v8617, %v9898
  %v10027 = vadd.f32 %v8618, %v9901
  %v10028 = vadd.f32 %v8619, %v9906
  %v10029 = vadd.f32 %v8620, %v9909
  %v10030 = vadd.f32 %v8621, %v9914
  %v10031 = vadd.f32 %v8622, %v9917
  %v10032 = vadd.f32 %v8623, %v9922
  %v10033 = vadd.f32 %v8624, %v9925
  %v10034 = vadd.f32 %v8625, %v9930
  %v10035 = vadd.f32 %v8626, %v9933
  %v10036 = vadd.f32 %v8627, %v9938
  %v10037 = vadd.f32 %v8628, %v9941
  %v10038 = vadd.f32 %v8629, %v9946
  %v10039 = vadd.f32 %v8630, %v9949
  %v10040 = vadd.f32 %v8631, %v9954
  %v10041 = vadd.f32 %v8632, %v9957
  %v10042 = vadd.f32 %v8633, %v9962
  %v10043 = vadd.f32 %v8634, %v9965
  %v10044 = vadd.f32 %v8635, %v9970
  %v10045 = vadd.f32 %v8636, %v9973
  %v10046 = vadd.f32 %v8637, %v9978
  %v10047 = vadd.f32 %v8638, %v9981
  %v10048 = vld [vmem:[%s7965] sm:$0xe]
  %v10049 = vld [vmem:[%s7965 + $0xc] sm:$0xe]
  %v10050 = vld [vmem:[%s7965 + $0x18] sm:$0xe]
  %v10051 = vld [vmem:[%s7965 + $0x24] sm:$0xe]
  %v10052 = vld [vmem:[%s7965 + $0x30] sm:$0xe]
  %v10053 = vld [vmem:[%s7965 + $0x3c] sm:$0xe]
  %v10054 = vld [vmem:[%s7965 + $0x48] sm:$0xe]
  %v10055 = vld [vmem:[%s7965 + $0x54] sm:$0xe]
  %v10056 = vld [vmem:[%s7965 + $0x60] sm:$0xe]
  %v10057 = vld [vmem:[%s7965 + $0x6c] sm:$0xe]
  %v10058 = vld [vmem:[%s7965 + $0x78] sm:$0xe]
  %v10059 = vld [vmem:[%s7965 + $0x84] sm:$0xe]
  %v10060 = vld [vmem:[%s7965 + $0x90] sm:$0xe]
  %v10061 = vld [vmem:[%s7965 + $0x9c] sm:$0xe]
  %v10062 = vld [vmem:[%s7965 + $0xa8] sm:$0xe]
  %v10063 = vld [vmem:[%s7965 + $0xb4] sm:$0xe]
  %v10064 = vld [vmem:[%s7965 + $0xd8] sm:$0xe]
  %v10065 = vld [vmem:[%s7965 + $0xe4] sm:$0xe]
  %v10066 = vld [vmem:[%s7965 + $0xf0] sm:$0xe]
  %v10067 = vld [vmem:[%s7965 + $0xfc] sm:$0xe]
  %v10068 = vld [vmem:[%s7965 + $0x108] sm:$0xe]
  %v10069 = vld [vmem:[%s7965 + $0x114] sm:$0xe]
  %v10070 = vld [vmem:[%s7965 + $0x120] sm:$0xe]
  %v10071 = vld [vmem:[%s7965 + $0x12c] sm:$0xe]
  %v10072 = vld [vmem:[%s7965 + $0x138] sm:$0xe]
  %v10073 = vld [vmem:[%s7965 + $0x144] sm:$0xe]
  %v10074 = vld [vmem:[%s7965 + $0x150] sm:$0xe]
  %v10075 = vld [vmem:[%s7965 + $0x15c] sm:$0xe]
  %v10076 = vld [vmem:[%s7965 + $0x168] sm:$0xe]
  %v10077 = vld [vmem:[%s7965 + $0x174] sm:$0xe]
  %v10078 = vld [vmem:[%s7965 + $0x180] sm:$0xe]
  %v10079 = vld [vmem:[%s7965 + $0x18c] sm:$0xe]
  %v10176 = vrot.slane %v10048, 5
  %v10177 = vrot.slane %v10176, 4
  %v10178 = vrot.slane %v8640, 5
  %v10179 = vsel %vm4216, %v10177, %v10178
  %v10180 = vrot.slane %v10178, 4
  %v10181 = vrot.slane %v8641, 5
  %v10182 = vsel %vm4216, %v10180, %v10181
  %v10183 = vrot.slane %v10049, 5
  %v10184 = vrot.slane %v10183, 4
  %v10185 = vrot.slane %v8643, 5
  %v10186 = vsel %vm4216, %v10184, %v10185
  %v10187 = vrot.slane %v10185, 4
  %v10188 = vrot.slane %v8644, 5
  %v10189 = vsel %vm4216, %v10187, %v10188
  %v10190 = vrot.slane %v10050, 5
  %v10191 = vrot.slane %v10190, 4
  %v10192 = vrot.slane %v8646, 5
  %v10193 = vsel %vm4216, %v10191, %v10192
  %v10194 = vrot.slane %v10192, 4
  %v10195 = vrot.slane %v8647, 5
  %v10196 = vsel %vm4216, %v10194, %v10195
  %v10197 = vrot.slane %v10051, 5
  %v10198 = vrot.slane %v10197, 4
  %v10199 = vrot.slane %v8649, 5
  %v10200 = vsel %vm4216, %v10198, %v10199
  %v10201 = vrot.slane %v10199, 4
  %v10202 = vrot.slane %v8650, 5
  %v10203 = vsel %vm4216, %v10201, %v10202
  %v10204 = vrot.slane %v10052, 5
  %v10205 = vrot.slane %v10204, 4
  %v10206 = vrot.slane %v8652, 5
  %v10207 = vsel %vm4216, %v10205, %v10206
  %v10208 = vrot.slane %v10206, 4
  %v10209 = vrot.slane %v8653, 5
  %v10210 = vsel %vm4216, %v10208, %v10209
  %v10211 = vrot.slane %v10053, 5
  %v10212 = vrot.slane %v10211, 4
  %v10213 = vrot.slane %v8655, 5
  %v10214 = vsel %vm4216, %v10212, %v10213
  %v10215 = vrot.slane %v10213, 4
  %v10216 = vrot.slane %v8656, 5
  %v10217 = vsel %vm4216, %v10215, %v10216
  %v10218 = vrot.slane %v10054, 5
  %v10219 = vrot.slane %v10218, 4
  %v10220 = vrot.slane %v8658, 5
  %v10221 = vsel %vm4216, %v10219, %v10220
  %v10222 = vrot.slane %v10220, 4
  %v10223 = vrot.slane %v8659, 5
  %v10224 = vsel %vm4216, %v10222, %v10223
  %v10225 = vrot.slane %v10055, 5
  %v10226 = vrot.slane %v10225, 4
  %v10227 = vrot.slane %v8661, 5
  %v10228 = vsel %vm4216, %v10226, %v10227
  %v10229 = vrot.slane %v10227, 4
  %v10230 = vrot.slane %v8662, 5
  %v10231 = vsel %vm4216, %v10229, %v10230
  %v10232 = vrot.slane %v10056, 5
  %v10233 = vrot.slane %v10232, 4
  %v10234 = vrot.slane %v8664, 5
  %v10235 = vsel %vm4216, %v10233, %v10234
  %v10236 = vrot.slane %v10234, 4
  %v10237 = vrot.slane %v8665, 5
  %v10238 = vsel %vm4216, %v10236, %v10237
  %v10239 = vrot.slane %v10057, 5
  %v10240 = vrot.slane %v10239, 4
  %v10241 = vrot.slane %v8667, 5
  %v10242 = vsel %vm4216, %v10240, %v10241
  %v10243 = vrot.slane %v10241, 4
  %v10244 = vrot.slane %v8668, 5
  %v10245 = vsel %vm4216, %v10243, %v10244
  %v10246 = vrot.slane %v10058, 5
  %v10247 = vrot.slane %v10246, 4
  %v10248 = vrot.slane %v8670, 5
  %v10249 = vsel %vm4216, %v10247, %v10248
  %v10250 = vrot.slane %v10248, 4
  %v10251 = vrot.slane %v8671, 5
  %v10252 = vsel %vm4216, %v10250, %v10251
  %v10253 = vrot.slane %v10059, 5
  %v10254 = vrot.slane %v10253, 4
  %v10255 = vrot.slane %v8673, 5
  %v10256 = vsel %vm4216, %v10254, %v10255
  %v10257 = vrot.slane %v10255, 4
  %v10258 = vrot.slane %v8674, 5
  %v10259 = vsel %vm4216, %v10257, %v10258
  %v10260 = vrot.slane %v10060, 5
  %v10261 = vrot.slane %v10260, 4
  %v10262 = vrot.slane %v8676, 5
  %v10263 = vsel %vm4216, %v10261, %v10262
  %v10264 = vrot.slane %v10262, 4
  %v10265 = vrot.slane %v8677, 5
  %v10266 = vsel %vm4216, %v10264, %v10265
  %v10267 = vrot.slane %v10061, 5
  %v10268 = vrot.slane %v10267, 4
  %v10269 = vrot.slane %v8679, 5
  %v10270 = vsel %vm4216, %v10268, %v10269
  %v10271 = vrot.slane %v10269, 4
  %v10272 = vrot.slane %v8680, 5
  %v10273 = vsel %vm4216, %v10271, %v10272
  %v10274 = vrot.slane %v10062, 5
  %v10275 = vrot.slane %v10274, 4
  %v10276 = vrot.slane %v8682, 5
  %v10277 = vsel %vm4216, %v10275, %v10276
  %v10278 = vrot.slane %v10276, 4
  %v10279 = vrot.slane %v8683, 5
  %v10280 = vsel %vm4216, %v10278, %v10279
  %v10281 = vrot.slane %v10063, 5
  %v10282 = vrot.slane %v10281, 4
  %v10283 = vrot.slane %v8685, 5
  %v10284 = vsel %vm4216, %v10282, %v10283
  %v10285 = vrot.slane %v10283, 4
  %v10286 = vrot.slane %v8686, 5
  %v10287 = vsel %vm4216, %v10285, %v10286
  %v10288 = vrot.slane %v10064, 5
  %v10289 = vrot.slane %v10288, 4
  %v10290 = vrot.slane %v8688, 5
  %v10291 = vsel %vm4216, %v10289, %v10290
  %v10292 = vrot.slane %v10290, 4
  %v10293 = vrot.slane %v8689, 5
  %v10294 = vsel %vm4216, %v10292, %v10293
  %v10295 = vrot.slane %v10065, 5
  %v10296 = vrot.slane %v10295, 4
  %v10297 = vrot.slane %v8691, 5
  %v10298 = vsel %vm4216, %v10296, %v10297
  %v10299 = vrot.slane %v10297, 4
  %v10300 = vrot.slane %v8692, 5
  %v10301 = vsel %vm4216, %v10299, %v10300
  %v10302 = vrot.slane %v10066, 5
  %v10303 = vrot.slane %v10302, 4
  %v10304 = vrot.slane %v8694, 5
  %v10305 = vsel %vm4216, %v10303, %v10304
  %v10306 = vrot.slane %v10304, 4
  %v10307 = vrot.slane %v8695, 5
  %v10308 = vsel %vm4216, %v10306, %v10307
  %v10309 = vrot.slane %v10067, 5
  %v10310 = vrot.slane %v10309, 4
  %v10311 = vrot.slane %v8697, 5
  %v10312 = vsel %vm4216, %v10310, %v10311
  %v10313 = vrot.slane %v10311, 4
  %v10314 = vrot.slane %v8698, 5
  %v10315 = vsel %vm4216, %v10313, %v10314
  %v10316 = vrot.slane %v10068, 5
  %v10317 = vrot.slane %v10316, 4
  %v10318 = vrot.slane %v8700, 5
  %v10319 = vsel %vm4216, %v10317, %v10318
  %v10320 = vrot.slane %v10318, 4
  %v10321 = vrot.slane %v8701, 5
  %v10322 = vsel %vm4216, %v10320, %v10321
  %v10323 = vrot.slane %v10069, 5
  %v10324 = vrot.slane %v10323, 4
  %v10325 = vrot.slane %v8703, 5
  %v10326 = vsel %vm4216, %v10324, %v10325
  %v10327 = vrot.slane %v10325, 4
  %v10328 = vrot.slane %v8704, 5
  %v10329 = vsel %vm4216, %v10327, %v10328
  %v10330 = vrot.slane %v10070, 5
  %v10331 = vrot.slane %v10330, 4
  %v10332 = vrot.slane %v8706, 5
  %v10333 = vsel %vm4216, %v10331, %v10332
  %v10334 = vrot.slane %v10332, 4
  %v10335 = vrot.slane %v8707, 5
  %v10336 = vsel %vm4216, %v10334, %v10335
  %v10337 = vrot.slane %v10071, 5
  %v10338 = vrot.slane %v10337, 4
  %v10339 = vrot.slane %v8709, 5
  %v10340 = vsel %vm4216, %v10338, %v10339
  %v10341 = vrot.slane %v10339, 4
  %v10342 = vrot.slane %v8710, 5
  %v10343 = vsel %vm4216, %v10341, %v10342
  %v10344 = vrot.slane %v10072, 5
  %v10345 = vrot.slane %v10344, 4
  %v10346 = vrot.slane %v8712, 5
  %v10347 = vsel %vm4216, %v10345, %v10346
  %v10348 = vrot.slane %v10346, 4
  %v10349 = vrot.slane %v8713, 5
  %v10350 = vsel %vm4216, %v10348, %v10349
  %v10351 = vrot.slane %v10073, 5
  %v10352 = vrot.slane %v10351, 4
  %v10353 = vrot.slane %v8715, 5
  %v10354 = vsel %vm4216, %v10352, %v10353
  %v10355 = vrot.slane %v10353, 4
  %v10356 = vrot.slane %v8716, 5
  %v10357 = vsel %vm4216, %v10355, %v10356
  %v10358 = vrot.slane %v10074, 5
  %v10359 = vrot.slane %v10358, 4
  %v10360 = vrot.slane %v8718, 5
  %v10361 = vsel %vm4216, %v10359, %v10360
  %v10362 = vrot.slane %v10360, 4
  %v10363 = vrot.slane %v8719, 5
  %v10364 = vsel %vm4216, %v10362, %v10363
  %v10365 = vrot.slane %v10075, 5
  %v10366 = vrot.slane %v10365, 4
  %v10367 = vrot.slane %v8721, 5
  %v10368 = vsel %vm4216, %v10366, %v10367
  %v10369 = vrot.slane %v10367, 4
  %v10370 = vrot.slane %v8722, 5
  %v10371 = vsel %vm4216, %v10369, %v10370
  %v10372 = vrot.slane %v10076, 5
  %v10373 = vrot.slane %v10372, 4
  %v10374 = vrot.slane %v8724, 5
  %v10375 = vsel %vm4216, %v10373, %v10374
  %v10376 = vrot.slane %v10374, 4
  %v10377 = vrot.slane %v8725, 5
  %v10378 = vsel %vm4216, %v10376, %v10377
  %v10379 = vrot.slane %v10077, 5
  %v10380 = vrot.slane %v10379, 4
  %v10381 = vrot.slane %v8727, 5
  %v10382 = vsel %vm4216, %v10380, %v10381
  %v10383 = vrot.slane %v10381, 4
  %v10384 = vrot.slane %v8728, 5
  %v10385 = vsel %vm4216, %v10383, %v10384
  %v10386 = vrot.slane %v10078, 5
  %v10387 = vrot.slane %v10386, 4
  %v10388 = vrot.slane %v8730, 5
  %v10389 = vsel %vm4216, %v10387, %v10388
  %v10390 = vrot.slane %v10388, 4
  %v10391 = vrot.slane %v8731, 5
  %v10392 = vsel %vm4216, %v10390, %v10391
  %v10393 = vrot.slane %v10079, 5
  %v10394 = vrot.slane %v10393, 4
  %v10395 = vrot.slane %v8733, 5
  %v10396 = vsel %vm4216, %v10394, %v10395
  %v10397 = vrot.slane %v10395, 4
  %v10398 = vrot.slane %v8734, 5
  %v10399 = vsel %vm4216, %v10397, %v10398
  %v10400 = vld [vmem:[%s4 + $0x200] sm:$0xf]
  %v10401 = vld [vmem:[%s4 + $0x204] sm:$0xf]
  %v10402 = vld [vmem:[%s4 + $0x208] sm:$0xf]
  %v10403 = vld [vmem:[%s4 + $0x20c] sm:$0xf]
  %v10404 = vld [vmem:[%s4 + $0x210] sm:$0xf]
  %v10405 = vld [vmem:[%s4 + $0x214] sm:$0xf]
  %v10406 = vld [vmem:[%s4 + $0x218] sm:$0xf]
  %v10407 = vld [vmem:[%s4 + $0x21c] sm:$0xf]
  %v10408 = vld [vmem:[%s4 + $0x220] sm:$0xf]
  %v10409 = vld [vmem:[%s4 + $0x224] sm:$0xf]
  %v10410 = vld [vmem:[%s4 + $0x228] sm:$0xf]
  %v10411 = vld [vmem:[%s4 + $0x22c] sm:$0xf]
  %v10412 = vld [vmem:[%s4 + $0x230] sm:$0xf]
  %v10413 = vld [vmem:[%s4 + $0x234] sm:$0xf]
  %v10414 = vld [vmem:[%s4 + $0x238] sm:$0xf]
  %v10415 = vld [vmem:[%s4 + $0x23c] sm:$0xf]
  %v10416 = vunpack.c.l.b16 %v10179
  %v10417 = vunpack.c.l.b16 %v10182
  %v10418 = vunpack.c.l.b16 %v10186
  %v10419 = vunpack.c.l.b16 %v10189
  %v10420 = vunpack.c.l.b16 %v10193
  %v10421 = vunpack.c.l.b16 %v10196
  %v10422 = vunpack.c.l.b16 %v10200
  %v10423 = vunpack.c.l.b16 %v10203
  %v10424 = vunpack.c.l.b16 %v10207
  %v10425 = vunpack.c.l.b16 %v10210
  %v10426 = vunpack.c.l.b16 %v10214
  %v10427 = vunpack.c.l.b16 %v10217
  %v10428 = vunpack.c.l.b16 %v10221
  %v10429 = vunpack.c.l.b16 %v10224
  %v10430 = vunpack.c.l.b16 %v10228
  %v10431 = vunpack.c.l.b16 %v10231
  %v10432 = vunpack.c.l.b16 %v10235
  %v10433 = vunpack.c.l.b16 %v10238
  %v10434 = vunpack.c.l.b16 %v10242
  %v10435 = vunpack.c.l.b16 %v10245
  %v10436 = vunpack.c.l.b16 %v10249
  %v10437 = vunpack.c.l.b16 %v10252
  %v10438 = vunpack.c.l.b16 %v10256
  %v10439 = vunpack.c.l.b16 %v10259
  %v10440 = vunpack.c.l.b16 %v10263
  %v10441 = vunpack.c.l.b16 %v10266
  %v10442 = vunpack.c.l.b16 %v10270
  %v10443 = vunpack.c.l.b16 %v10273
  %v10444 = vunpack.c.l.b16 %v10277
  %v10445 = vunpack.c.l.b16 %v10280
  %v10446 = vunpack.c.l.b16 %v10284
  %v10447 = vunpack.c.l.b16 %v10287
  %v10448 = vunpack.c.l.b16 %v10291
  %v10449 = vunpack.c.l.b16 %v10294
  %v10450 = vunpack.c.l.b16 %v10298
  %v10451 = vunpack.c.l.b16 %v10301
  %v10452 = vunpack.c.l.b16 %v10305
  %v10453 = vunpack.c.l.b16 %v10308
  %v10454 = vunpack.c.l.b16 %v10312
  %v10455 = vunpack.c.l.b16 %v10315
  %v10456 = vunpack.c.l.b16 %v10319
  %v10457 = vunpack.c.l.b16 %v10322
  %v10458 = vunpack.c.l.b16 %v10326
  %v10459 = vunpack.c.l.b16 %v10329
  %v10460 = vunpack.c.l.b16 %v10333
  %v10461 = vunpack.c.l.b16 %v10336
  %v10462 = vunpack.c.l.b16 %v10340
  %v10463 = vunpack.c.l.b16 %v10343
  %v10464 = vunpack.c.l.b16 %v10347
  %v10465 = vunpack.c.l.b16 %v10350
  %v10466 = vunpack.c.l.b16 %v10354
  %v10467 = vunpack.c.l.b16 %v10357
  %v10468 = vunpack.c.l.b16 %v10361
  %v10469 = vunpack.c.l.b16 %v10364
  %v10470 = vunpack.c.l.b16 %v10368
  %v10471 = vunpack.c.l.b16 %v10371
  %v10472 = vunpack.c.l.b16 %v10375
  %v10473 = vunpack.c.l.b16 %v10378
  %v10474 = vunpack.c.l.b16 %v10382
  %v10475 = vunpack.c.l.b16 %v10385
  %v10476 = vunpack.c.l.b16 %v10389
  %v10477 = vunpack.c.l.b16 %v10392
  %v10478 = vunpack.c.l.b16 %v10396
  %v10479 = vunpack.c.l.b16 %v10399
  %v10480 = vpack.c.b16 %v10417, %v10416
  %v10481 = vpack.c.b16 %v10419, %v10418
  %v10482 = vpack.c.b16 %v10421, %v10420
  %v10483 = vpack.c.b16 %v10423, %v10422
  %v10484 = vpack.c.b16 %v10425, %v10424
  %v10485 = vpack.c.b16 %v10427, %v10426
  %v10486 = vpack.c.b16 %v10429, %v10428
  %v10487 = vpack.c.b16 %v10431, %v10430
  %v10488 = vpack.c.b16 %v10433, %v10432
  %v10489 = vpack.c.b16 %v10435, %v10434
  %v10490 = vpack.c.b16 %v10437, %v10436
  %v10491 = vpack.c.b16 %v10439, %v10438
  %v10492 = vpack.c.b16 %v10441, %v10440
  %v10493 = vpack.c.b16 %v10443, %v10442
  %v10494 = vpack.c.b16 %v10445, %v10444
  %v10495 = vpack.c.b16 %v10447, %v10446
  %v10496 = vpack.c.b16 %v10449, %v10448
  %v10497 = vpack.c.b16 %v10451, %v10450
  %v10498 = vpack.c.b16 %v10453, %v10452
  %v10499 = vpack.c.b16 %v10455, %v10454
  %v10500 = vpack.c.b16 %v10457, %v10456
  %v10501 = vpack.c.b16 %v10459, %v10458
  %v10502 = vpack.c.b16 %v10461, %v10460
  %v10503 = vpack.c.b16 %v10463, %v10462
  %v10504 = vpack.c.b16 %v10465, %v10464
  %v10505 = vpack.c.b16 %v10467, %v10466
  %v10506 = vpack.c.b16 %v10469, %v10468
  %v10507 = vpack.c.b16 %v10471, %v10470
  %v10508 = vpack.c.b16 %v10473, %v10472
  %v10509 = vpack.c.b16 %v10475, %v10474
  %v10510 = vpack.c.b16 %v10477, %v10476
  %v10511 = vpack.c.b16 %v10479, %v10478
  %v10560 = vunpack.c.l.b16 %v10400
  %v10561 = vunpack.c.l.b16 %v10401
  %v10562 = vunpack.c.l.b16 %v10402
  %v10563 = vunpack.c.l.b16 %v10403
  %v10564 = vunpack.c.l.b16 %v10404
  %v10565 = vunpack.c.l.b16 %v10405
  %v10566 = vunpack.c.l.b16 %v10406
  %v10567 = vunpack.c.l.b16 %v10407
  %v10568 = vunpack.c.l.b16 %v10408
  %v10569 = vunpack.c.l.b16 %v10409
  %v10570 = vunpack.c.l.b16 %v10410
  %v10571 = vunpack.c.l.b16 %v10411
  %v10572 = vunpack.c.l.b16 %v10412
  %v10573 = vunpack.c.l.b16 %v10413
  %v10574 = vunpack.c.l.b16 %v10414
  %v10575 = vunpack.c.l.b16 %v10415
  %v10576 = vpack.c.b16 %v10561, %v10560
  %v10577 = vpack.c.b16 %v10563, %v10562
  %v10578 = vpack.c.b16 %v10565, %v10564
  %v10579 = vpack.c.b16 %v10567, %v10566
  %v10580 = vpack.c.b16 %v10569, %v10568
  %v10581 = vpack.c.b16 %v10571, %v10570
  %v10582 = vpack.c.b16 %v10573, %v10572
  %v10583 = vpack.c.b16 %v10575, %v10574
  %10592 = vmatprep.subr.bf16.mxu0 0
  %10593 = vmatpush1.bf16.msra.mxu0 %v10576
  %10594 = vmatprep.subr.bf16.mxu0 0
  %10595 = vmatpush1.bf16.msra.mxu0 %v10577
  %10596 = vmatprep.subr.bf16.mxu0 0
  %10597 = vmatpush1.bf16.msra.mxu0 %v10578
  %10598 = vmatprep.subr.bf16.mxu0 0
  %10599 = vmatpush1.bf16.msra.mxu0 %v10579
  %10600 = vmatprep.subr.bf16.mxu0 0
  %10601 = vmatpush1.bf16.msra.mxu0 %v10580
  %10602 = vmatprep.subr.bf16.mxu0 0
  %10603 = vmatpush1.bf16.msra.mxu0 %v10581
  %10604 = vmatprep.subr.bf16.mxu0 0
  %10605 = vmatpush1.bf16.msra.mxu0 %v10582
  %10606 = vmatprep.subr.bf16.mxu0 0
  %10607 = vmatpush1.bf16.msra.mxu0 %v10583
  %10608 = vmatprep.subr.bf16.mxu0 0
  %10609 = vmatpush1.bf16.msra.mxu0 0
  %10610 = vmatprep.subr.bf16.mxu0 0
  %10611 = vmatpush1.bf16.msra.mxu0 0
  %10612 = vmatprep.subr.bf16.mxu0 0
  %10613 = vmatpush1.bf16.msra.mxu0 0
  %10614 = vmatprep.subr.bf16.mxu0 0
  %10615 = vmatpush1.bf16.msra.mxu0 0
  %10616 = vmatprep.subr.bf16.mxu0 0
  %10617 = vmatpush1.bf16.msra.mxu0 0
  %10618 = vmatprep.subr.bf16.mxu0 0
  %10619 = vmatpush1.bf16.msra.mxu0 0
  %10620 = vmatprep.subr.bf16.mxu0 0
  %10621 = vmatpush1.bf16.msra.mxu0 0
  %10622 = vmatprep.subr.bf16.mxu0 0
  %10623 = vmatpush1.bf16.msra.mxu0 0
  %10624 = vmatprep.mubr.bf16.mxu0 0
  %10625 = vmatmul.mubr.bf16.gmra.mrb[0].mxu0 %v10480
  %v10626 = vpop.f32.mrb[0].mxu0
  %v10627 = vadd.f32 0.0, %v10626
  %v10628 = vpop.f32.mrb[0].mxu0
  %v10629 = vpop.f32.mrb[0].mxu0
  %v10630 = vadd.f32 0.0, %v10629
  %v10631 = vpop.f32.mrb[0].mxu0
  %10632 = vmatprep.mubr.bf16.mxu0 0
  %10633 = vmatmul.mubr.bf16.gmra.mrb[0].mxu0 %v10481
  %v10634 = vpop.f32.mrb[0].mxu0
  %v10635 = vadd.f32 0.0, %v10634
  %v10636 = vpop.f32.mrb[0].mxu0
  %v10637 = vpop.f32.mrb[0].mxu0
  %v10638 = vadd.f32 0.0, %v10637
  %v10639 = vpop.f32.mrb[0].mxu0
  %10640 = vmatprep.mubr.bf16.mxu0 0
  %10641 = vmatmul.mubr.bf16.gmra.mrb[0].mxu0 %v10482
  %v10642 = vpop.f32.mrb[0].mxu0
  %v10643 = vadd.f32 0.0, %v10642
  %v10644 = vpop.f32.mrb[0].mxu0
  %v10645 = vpop.f32.mrb[0].mxu0
  %v10646 = vadd.f32 0.0, %v10645
  %v10647 = vpop.f32.mrb[0].mxu0
  %10648 = vmatprep.mubr.bf16.mxu0 0
  %10649 = vmatmul.mubr.bf16.gmra.mrb[0].mxu0 %v10483
  %v10650 = vpop.f32.mrb[0].mxu0
  %v10651 = vadd.f32 0.0, %v10650
  %v10652 = vpop.f32.mrb[0].mxu0
  %v10653 = vpop.f32.mrb[0].mxu0
  %v10654 = vadd.f32 0.0, %v10653
  %v10655 = vpop.f32.mrb[0].mxu0
  %10656 = vmatprep.mubr.bf16.mxu0 0
  %10657 = vmatmul.mubr.bf16.gmra.mrb[0].mxu0 %v10484
  %v10658 = vpop.f32.mrb[0].mxu0
  %v10659 = vadd.f32 0.0, %v10658
  %v10660 = vpop.f32.mrb[0].mxu0
  %v10661 = vpop.f32.mrb[0].mxu0
  %v10662 = vadd.f32 0.0, %v10661
  %v10663 = vpop.f32.mrb[0].mxu0
  %10664 = vmatprep.mubr.bf16.mxu0 0
  %10665 = vmatmul.mubr.bf16.gmra.mrb[0].mxu0 %v10485
  %v10666 = vpop.f32.mrb[0].mxu0
  %v10667 = vadd.f32 0.0, %v10666
  %v10668 = vpop.f32.mrb[0].mxu0
  %v10669 = vpop.f32.mrb[0].mxu0
  %v10670 = vadd.f32 0.0, %v10669
  %v10671 = vpop.f32.mrb[0].mxu0
  %10672 = vmatprep.mubr.bf16.mxu0 0
  %10673 = vmatmul.mubr.bf16.gmra.mrb[0].mxu0 %v10486
  %v10674 = vpop.f32.mrb[0].mxu0
  %v10675 = vadd.f32 0.0, %v10674
  %v10676 = vpop.f32.mrb[0].mxu0
  %v10677 = vpop.f32.mrb[0].mxu0
  %v10678 = vadd.f32 0.0, %v10677
  %v10679 = vpop.f32.mrb[0].mxu0
  %10680 = vmatprep.mubr.bf16.mxu0 0
  %10681 = vmatmul.mubr.bf16.gmra.mrb[0].mxu0 %v10487
  %v10682 = vpop.f32.mrb[0].mxu0
  %v10683 = vadd.f32 0.0, %v10682
  %v10684 = vpop.f32.mrb[0].mxu0
  %v10685 = vpop.f32.mrb[0].mxu0
  %v10686 = vadd.f32 0.0, %v10685
  %v10687 = vpop.f32.mrb[0].mxu0
  %10688 = vmatprep.mubr.bf16.mxu0 0
  %10689 = vmatmul.mubr.bf16.gmra.mrb[0].mxu0 %v10488
  %v10690 = vpop.f32.mrb[0].mxu0
  %v10691 = vadd.f32 0.0, %v10690
  %v10692 = vpop.f32.mrb[0].mxu0
  %v10693 = vpop.f32.mrb[0].mxu0
  %v10694 = vadd.f32 0.0, %v10693
  %v10695 = vpop.f32.mrb[0].mxu0
  %10696 = vmatprep.mubr.bf16.mxu0 0
  %10697 = vmatmul.mubr.bf16.gmra.mrb[0].mxu0 %v10489
  %v10698 = vpop.f32.mrb[0].mxu0
  %v10699 = vadd.f32 0.0, %v10698
  %v10700 = vpop.f32.mrb[0].mxu0
  %v10701 = vpop.f32.mrb[0].mxu0
  %v10702 = vadd.f32 0.0, %v10701
  %v10703 = vpop.f32.mrb[0].mxu0
  %10704 = vmatprep.mubr.bf16.mxu0 0
  %10705 = vmatmul.mubr.bf16.gmra.mrb[0].mxu0 %v10490
  %v10706 = vpop.f32.mrb[0].mxu0
  %v10707 = vadd.f32 0.0, %v10706
  %v10708 = vpop.f32.mrb[0].mxu0
  %v10709 = vpop.f32.mrb[0].mxu0
  %v10710 = vadd.f32 0.0, %v10709
  %v10711 = vpop.f32.mrb[0].mxu0
  %10712 = vmatprep.mubr.bf16.mxu0 0
  %10713 = vmatmul.mubr.bf16.gmra.mrb[0].mxu0 %v10491
  %v10714 = vpop.f32.mrb[0].mxu0
  %v10715 = vadd.f32 0.0, %v10714
  %v10716 = vpop.f32.mrb[0].mxu0
  %v10717 = vpop.f32.mrb[0].mxu0
  %v10718 = vadd.f32 0.0, %v10717
  %v10719 = vpop.f32.mrb[0].mxu0
  %10720 = vmatprep.mubr.bf16.mxu0 0
  %10721 = vmatmul.mubr.bf16.gmra.mrb[0].mxu0 %v10492
  %v10722 = vpop.f32.mrb[0].mxu0
  %v10723 = vadd.f32 0.0, %v10722
  %v10724 = vpop.f32.mrb[0].mxu0
  %v10725 = vpop.f32.mrb[0].mxu0
  %v10726 = vadd.f32 0.0, %v10725
  %v10727 = vpop.f32.mrb[0].mxu0
  %10728 = vmatprep.mubr.bf16.mxu0 0
  %10729 = vmatmul.mubr.bf16.gmra.mrb[0].mxu0 %v10493
  %v10730 = vpop.f32.mrb[0].mxu0
  %v10731 = vadd.f32 0.0, %v10730
  %v10732 = vpop.f32.mrb[0].mxu0
  %v10733 = vpop.f32.mrb[0].mxu0
  %v10734 = vadd.f32 0.0, %v10733
  %v10735 = vpop.f32.mrb[0].mxu0
  %10736 = vmatprep.mubr.bf16.mxu0 0
  %10737 = vmatmul.mubr.bf16.gmra.mrb[0].mxu0 %v10494
  %v10738 = vpop.f32.mrb[0].mxu0
  %v10739 = vadd.f32 0.0, %v10738
  %v10740 = vpop.f32.mrb[0].mxu0
  %v10741 = vpop.f32.mrb[0].mxu0
  %v10742 = vadd.f32 0.0, %v10741
  %v10743 = vpop.f32.mrb[0].mxu0
  %10744 = vmatprep.mubr.bf16.mxu0 0
  %10745 = vmatmul.mubr.bf16.gmra.mrb[0].mxu0 %v10495
  %v10746 = vpop.f32.mrb[0].mxu0
  %v10747 = vadd.f32 0.0, %v10746
  %v10748 = vpop.f32.mrb[0].mxu0
  %v10749 = vpop.f32.mrb[0].mxu0
  %v10750 = vadd.f32 0.0, %v10749
  %v10751 = vpop.f32.mrb[0].mxu0
  %10752 = vmatprep.mubr.bf16.mxu0 0
  %10753 = vmatmul.mubr.bf16.gmra.mrb[0].mxu0 %v10496
  %v10754 = vpop.f32.mrb[0].mxu0
  %v10755 = vadd.f32 0.0, %v10754
  %v10756 = vpop.f32.mrb[0].mxu0
  %v10757 = vpop.f32.mrb[0].mxu0
  %v10758 = vadd.f32 0.0, %v10757
  %v10759 = vpop.f32.mrb[0].mxu0
  %10760 = vmatprep.mubr.bf16.mxu0 0
  %10761 = vmatmul.mubr.bf16.gmra.mrb[0].mxu0 %v10497
  %v10762 = vpop.f32.mrb[0].mxu0
  %v10763 = vadd.f32 0.0, %v10762
  %v10764 = vpop.f32.mrb[0].mxu0
  %v10765 = vpop.f32.mrb[0].mxu0
  %v10766 = vadd.f32 0.0, %v10765
  %v10767 = vpop.f32.mrb[0].mxu0
  %10768 = vmatprep.mubr.bf16.mxu0 0
  %10769 = vmatmul.mubr.bf16.gmra.mrb[0].mxu0 %v10498
  %v10770 = vpop.f32.mrb[0].mxu0
  %v10771 = vadd.f32 0.0, %v10770
  %v10772 = vpop.f32.mrb[0].mxu0
  %v10773 = vpop.f32.mrb[0].mxu0
  %v10774 = vadd.f32 0.0, %v10773
  %v10775 = vpop.f32.mrb[0].mxu0
  %10776 = vmatprep.mubr.bf16.mxu0 0
  %10777 = vmatmul.mubr.bf16.gmra.mrb[0].mxu0 %v10499
  %v10778 = vpop.f32.mrb[0].mxu0
  %v10779 = vadd.f32 0.0, %v10778
  %v10780 = vpop.f32.mrb[0].mxu0
  %v10781 = vpop.f32.mrb[0].mxu0
  %v10782 = vadd.f32 0.0, %v10781
  %v10783 = vpop.f32.mrb[0].mxu0
  %10784 = vmatprep.mubr.bf16.mxu0 0
  %10785 = vmatmul.mubr.bf16.gmra.mrb[0].mxu0 %v10500
  %v10786 = vpop.f32.mrb[0].mxu0
  %v10787 = vadd.f32 0.0, %v10786
  %v10788 = vpop.f32.mrb[0].mxu0
  %v10789 = vpop.f32.mrb[0].mxu0
  %v10790 = vadd.f32 0.0, %v10789
  %v10791 = vpop.f32.mrb[0].mxu0
  %10792 = vmatprep.mubr.bf16.mxu0 0
  %10793 = vmatmul.mubr.bf16.gmra.mrb[0].mxu0 %v10501
  %v10794 = vpop.f32.mrb[0].mxu0
  %v10795 = vadd.f32 0.0, %v10794
  %v10796 = vpop.f32.mrb[0].mxu0
  %v10797 = vpop.f32.mrb[0].mxu0
  %v10798 = vadd.f32 0.0, %v10797
  %v10799 = vpop.f32.mrb[0].mxu0
  %10800 = vmatprep.mubr.bf16.mxu0 0
  %10801 = vmatmul.mubr.bf16.gmra.mrb[0].mxu0 %v10502
  %v10802 = vpop.f32.mrb[0].mxu0
  %v10803 = vadd.f32 0.0, %v10802
  %v10804 = vpop.f32.mrb[0].mxu0
  %v10805 = vpop.f32.mrb[0].mxu0
  %v10806 = vadd.f32 0.0, %v10805
  %v10807 = vpop.f32.mrb[0].mxu0
  %10808 = vmatprep.mubr.bf16.mxu0 0
  %10809 = vmatmul.mubr.bf16.gmra.mrb[0].mxu0 %v10503
  %v10810 = vpop.f32.mrb[0].mxu0
  %v10811 = vadd.f32 0.0, %v10810
  %v10812 = vpop.f32.mrb[0].mxu0
  %v10813 = vpop.f32.mrb[0].mxu0
  %v10814 = vadd.f32 0.0, %v10813
  %v10815 = vpop.f32.mrb[0].mxu0
  %10816 = vmatprep.mubr.bf16.mxu0 0
  %10817 = vmatmul.mubr.bf16.gmra.mrb[0].mxu0 %v10504
  %v10818 = vpop.f32.mrb[0].mxu0
  %v10819 = vadd.f32 0.0, %v10818
  %v10820 = vpop.f32.mrb[0].mxu0
  %v10821 = vpop.f32.mrb[0].mxu0
  %v10822 = vadd.f32 0.0, %v10821
  %v10823 = vpop.f32.mrb[0].mxu0
  %10824 = vmatprep.mubr.bf16.mxu0 0
  %10825 = vmatmul.mubr.bf16.gmra.mrb[0].mxu0 %v10505
  %v10826 = vpop.f32.mrb[0].mxu0
  %v10827 = vadd.f32 0.0, %v10826
  %v10828 = vpop.f32.mrb[0].mxu0
  %v10829 = vpop.f32.mrb[0].mxu0
  %v10830 = vadd.f32 0.0, %v10829
  %v10831 = vpop.f32.mrb[0].mxu0
  %10832 = vmatprep.mubr.bf16.mxu0 0
  %10833 = vmatmul.mubr.bf16.gmra.mrb[0].mxu0 %v10506
  %v10834 = vpop.f32.mrb[0].mxu0
  %v10835 = vadd.f32 0.0, %v10834
  %v10836 = vpop.f32.mrb[0].mxu0
  %v10837 = vpop.f32.mrb[0].mxu0
  %v10838 = vadd.f32 0.0, %v10837
  %v10839 = vpop.f32.mrb[0].mxu0
  %10840 = vmatprep.mubr.bf16.mxu0 0
  %10841 = vmatmul.mubr.bf16.gmra.mrb[0].mxu0 %v10507
  %v10842 = vpop.f32.mrb[0].mxu0
  %v10843 = vadd.f32 0.0, %v10842
  %v10844 = vpop.f32.mrb[0].mxu0
  %v10845 = vpop.f32.mrb[0].mxu0
  %v10846 = vadd.f32 0.0, %v10845
  %v10847 = vpop.f32.mrb[0].mxu0
  %10848 = vmatprep.mubr.bf16.mxu0 0
  %10849 = vmatmul.mubr.bf16.gmra.mrb[0].mxu0 %v10508
  %v10850 = vpop.f32.mrb[0].mxu0
  %v10851 = vadd.f32 0.0, %v10850
  %v10852 = vpop.f32.mrb[0].mxu0
  %v10853 = vpop.f32.mrb[0].mxu0
  %v10854 = vadd.f32 0.0, %v10853
  %v10855 = vpop.f32.mrb[0].mxu0
  %10856 = vmatprep.mubr.bf16.mxu0 0
  %10857 = vmatmul.mubr.bf16.gmra.mrb[0].mxu0 %v10509
  %v10858 = vpop.f32.mrb[0].mxu0
  %v10859 = vadd.f32 0.0, %v10858
  %v10860 = vpop.f32.mrb[0].mxu0
  %v10861 = vpop.f32.mrb[0].mxu0
  %v10862 = vadd.f32 0.0, %v10861
  %v10863 = vpop.f32.mrb[0].mxu0
  %10864 = vmatprep.mubr.bf16.mxu0 0
  %10865 = vmatmul.mubr.bf16.gmra.mrb[0].mxu0 %v10510
  %v10866 = vpop.f32.mrb[0].mxu0
  %v10867 = vadd.f32 0.0, %v10866
  %v10868 = vpop.f32.mrb[0].mxu0
  %v10869 = vpop.f32.mrb[0].mxu0
  %v10870 = vadd.f32 0.0, %v10869
  %v10871 = vpop.f32.mrb[0].mxu0
  %10872 = vmatprep.mubr.bf16.mxu0 0
  %10873 = vmatmul.mubr.bf16.gmra.mrb[0].mxu0 %v10511
  %v10874 = vpop.f32.mrb[0].mxu0
  %v10875 = vadd.f32 0.0, %v10874
  %v10876 = vpop.f32.mrb[0].mxu0
  %v10877 = vpop.f32.mrb[0].mxu0
  %v10878 = vadd.f32 0.0, %v10877
  %v10879 = vpop.f32.mrb[0].mxu0
  %10880 = vdwg.mxu0
  %v10881 = vadd.f32 %v9984, %v10627
  %v10882 = vadd.f32 %v9985, %v10630
  %v10883 = vadd.f32 %v9986, %v10635
  %v10884 = vadd.f32 %v9987, %v10638
  %v10885 = vadd.f32 %v9988, %v10643
  %v10886 = vadd.f32 %v9989, %v10646
  %v10887 = vadd.f32 %v9990, %v10651
  %v10888 = vadd.f32 %v9991, %v10654
  %v10889 = vadd.f32 %v9992, %v10659
  %v10890 = vadd.f32 %v9993, %v10662
  %v10891 = vadd.f32 %v9994, %v10667
  %v10892 = vadd.f32 %v9995, %v10670
  %v10893 = vadd.f32 %v9996, %v10675
  %v10894 = vadd.f32 %v9997, %v10678
  %v10895 = vadd.f32 %v9998, %v10683
  %v10896 = vadd.f32 %v9999, %v10686
  %v10897 = vadd.f32 %v10000, %v10691
  %v10898 = vadd.f32 %v10001, %v10694
  %v10899 = vadd.f32 %v10002, %v10699
  %v10900 = vadd.f32 %v10003, %v10702
  %v10901 = vadd.f32 %v10004, %v10707
  %v10902 = vadd.f32 %v10005, %v10710
  %v10903 = vadd.f32 %v10006, %v10715
  %v10904 = vadd.f32 %v10007, %v10718
  %v10905 = vadd.f32 %v10008, %v10723
  %v10906 = vadd.f32 %v10009, %v10726
  %v10907 = vadd.f32 %v10010, %v10731
  %v10908 = vadd.f32 %v10011, %v10734
  %v10909 = vadd.f32 %v10012, %v10739
  %v10910 = vadd.f32 %v10013, %v10742
  %v10911 = vadd.f32 %v10014, %v10747
  %v10912 = vadd.f32 %v10015, %v10750
  %v10913 = vadd.f32 %v10016, %v10755
  %v10914 = vadd.f32 %v10017, %v10758
  %v10915 = vadd.f32 %v10018, %v10763
  %v10916 = vadd.f32 %v10019, %v10766
  %v10917 = vadd.f32 %v10020, %v10771
  %v10918 = vadd.f32 %v10021, %v10774
  %v10919 = vadd.f32 %v10022, %v10779
  %v10920 = vadd.f32 %v10023, %v10782
  %v10921 = vadd.f32 %v10024, %v10787
  %v10922 = vadd.f32 %v10025, %v10790
  %v10923 = vadd.f32 %v10026, %v10795
  %v10924 = vadd.f32 %v10027, %v10798
  %v10925 = vadd.f32 %v10028, %v10803
  %v10926 = vadd.f32 %v10029, %v10806
  %v10927 = vadd.f32 %v10030, %v10811
  %v10928 = vadd.f32 %v10031, %v10814
  %v10929 = vadd.f32 %v10032, %v10819
  %v10930 = vadd.f32 %v10033, %v10822
  %v10931 = vadd.f32 %v10034, %v10827
  %v10932 = vadd.f32 %v10035, %v10830
  %v10933 = vadd.f32 %v10036, %v10835
  %v10934 = vadd.f32 %v10037, %v10838
  %v10935 = vadd.f32 %v10038, %v10843
  %v10936 = vadd.f32 %v10039, %v10846
  %v10937 = vadd.f32 %v10040, %v10851
  %v10938 = vadd.f32 %v10041, %v10854
  %v10939 = vadd.f32 %v10042, %v10859
  %v10940 = vadd.f32 %v10043, %v10862
  %v10941 = vadd.f32 %v10044, %v10867
  %v10942 = vadd.f32 %v10045, %v10870
  %v10943 = vadd.f32 %v10046, %v10875
  %v10944 = vadd.f32 %v10047, %v10878
  %v10945 = vadd.f32 %v10881, %v10882
  %v10946 = vadd.f32 %v10945, %v10883
  %v10947 = vadd.f32 %v10946, %v10884
  %v10948 = vadd.f32 %v10947, %v10885
  %v10949 = vadd.f32 %v10948, %v10886
  %v10950 = vadd.f32 %v10949, %v10887
  %v10951 = vadd.f32 %v10950, %v10888
  %v10952 = vadd.f32 %v10951, %v10889
  %v10953 = vadd.f32 %v10952, %v10890
  %v10954 = vadd.f32 %v10953, %v10891
  %v10955 = vadd.f32 %v10954, %v10892
  %v10956 = vadd.f32 %v10955, %v10893
  %v10957 = vadd.f32 %v10956, %v10894
  %v10958 = vadd.f32 %v10957, %v10895
  %v10959 = vadd.f32 %v10958, %v10896
  %v10960 = vadd.f32 %v10959, %v10897
  %v10961 = vadd.f32 %v10960, %v10898
  %v10962 = vadd.f32 %v10961, %v10899
  %v10963 = vadd.f32 %v10962, %v10900
  %v10964 = vadd.f32 %v10963, %v10901
  %v10965 = vadd.f32 %v10964, %v10902
  %v10966 = vadd.f32 %v10965, %v10903
  %v10967 = vadd.f32 %v10966, %v10904
  %v10968 = vadd.f32 %v10967, %v10905
  %v10969 = vadd.f32 %v10968, %v10906
  %v10970 = vadd.f32 %v10969, %v10907
  %v10971 = vadd.f32 %v10970, %v10908
  %v10972 = vadd.f32 %v10971, %v10909
  %v10973 = vadd.f32 %v10972, %v10910
  %v10974 = vadd.f32 %v10973, %v10911
  %v10975 = vadd.f32 %v10974, %v10912
  %v10976 = vadd.f32 %v10975, %v10913
  %v10977 = vadd.f32 %v10976, %v10914
  %v10978 = vadd.f32 %v10977, %v10915
  %v10979 = vadd.f32 %v10978, %v10916
  %v10980 = vadd.f32 %v10979, %v10917
  %v10981 = vadd.f32 %v10980, %v10918
  %v10982 = vadd.f32 %v10981, %v10919
  %v10983 = vadd.f32 %v10982, %v10920
  %v10984 = vadd.f32 %v10983, %v10921
  %v10985 = vadd.f32 %v10984, %v10922
  %v10986 = vadd.f32 %v10985, %v10923
  %v10987 = vadd.f32 %v10986, %v10924
  %v10988 = vadd.f32 %v10987, %v10925
  %v10989 = vadd.f32 %v10988, %v10926
  %v10990 = vadd.f32 %v10989, %v10927
  %v10991 = vadd.f32 %v10990, %v10928
  %v10992 = vadd.f32 %v10991, %v10929
  %v10993 = vadd.f32 %v10992, %v10930
  %v10994 = vadd.f32 %v10993, %v10931
  %v10995 = vadd.f32 %v10994, %v10932
  %v10996 = vadd.f32 %v10995, %v10933
  %v10997 = vadd.f32 %v10996, %v10934
  %v10998 = vadd.f32 %v10997, %v10935
  %v10999 = vadd.f32 %v10998, %v10936
  %v11000 = vadd.f32 %v10999, %v10937
  %v11001 = vadd.f32 %v11000, %v10938
  %v11002 = vadd.f32 %v11001, %v10939
  %v11003 = vadd.f32 %v11002, %v10940
  %v11004 = vadd.f32 %v11003, %v10941
  %v11005 = vadd.f32 %v11004, %v10942
  %v11006 = vadd.f32 %v11005, %v10943
  %v11007 = vadd.f32 %v11006, %v10944
  %v11008 = vrot.slane %v11007, 4
  %v11009 = vadd.f32 %v11007, %v11008
  %v11010 = vrot.slane %v11009, 2
  %v11011 = vadd.f32 %v11009, %v11010
  %v11012 = vrot.slane %v11011, 1
  %v11013 = vadd.f32 %v11011, %v11012
  %v11014 = vmul.f32 %v10881, %v10881
  %v11015 = vmul.f32 %v10882, %v10882
  %v11016 = vmul.f32 %v10883, %v10883
  %v11017 = vmul.f32 %v10884, %v10884
  %v11018 = vmul.f32 %v10885, %v10885
  %v11019 = vmul.f32 %v10886, %v10886
  %v11020 = vmul.f32 %v10887, %v10887
  %v11021 = vmul.f32 %v10888, %v10888
  %v11022 = vmul.f32 %v10889, %v10889
  %v11023 = vmul.f32 %v10890, %v10890
  %v11024 = vmul.f32 %v10891, %v10891
  %v11025 = vmul.f32 %v10892, %v10892
  %v11026 = vmul.f32 %v10893, %v10893
  %v11027 = vmul.f32 %v10894, %v10894
  %v11028 = vmul.f32 %v10895, %v10895
  %v11029 = vmul.f32 %v10896, %v10896
  %v11030 = vmul.f32 %v10897, %v10897
  %v11031 = vmul.f32 %v10898, %v10898
  %v11032 = vmul.f32 %v10899, %v10899
  %v11033 = vmul.f32 %v10900, %v10900
  %v11034 = vmul.f32 %v10901, %v10901
  %v11035 = vmul.f32 %v10902, %v10902
  %v11036 = vmul.f32 %v10903, %v10903
  %v11037 = vmul.f32 %v10904, %v10904
  %v11038 = vmul.f32 %v10905, %v10905
  %v11039 = vmul.f32 %v10906, %v10906
  %v11040 = vmul.f32 %v10907, %v10907
  %v11041 = vmul.f32 %v10908, %v10908
  %v11042 = vmul.f32 %v10909, %v10909
  %v11043 = vmul.f32 %v10910, %v10910
  %v11044 = vmul.f32 %v10911, %v10911
  %v11045 = vmul.f32 %v10912, %v10912
  %v11046 = vmul.f32 %v10913, %v10913
  %v11047 = vmul.f32 %v10914, %v10914
  %v11048 = vmul.f32 %v10915, %v10915
  %v11049 = vmul.f32 %v10916, %v10916
  %v11050 = vmul.f32 %v10917, %v10917
  %v11051 = vmul.f32 %v10918, %v10918
  %v11052 = vmul.f32 %v10919, %v10919
  %v11053 = vmul.f32 %v10920, %v10920
  %v11054 = vmul.f32 %v10921, %v10921
  %v11055 = vmul.f32 %v10922, %v10922
  %v11056 = vmul.f32 %v10923, %v10923
  %v11057 = vmul.f32 %v10924, %v10924
  %v11058 = vmul.f32 %v10925, %v10925
  %v11059 = vmul.f32 %v10926, %v10926
  %v11060 = vmul.f32 %v10927, %v10927
  %v11061 = vmul.f32 %v10928, %v10928
  %v11062 = vmul.f32 %v10929, %v10929
  %v11063 = vmul.f32 %v10930, %v10930
  %v11064 = vmul.f32 %v10931, %v10931
  %v11065 = vmul.f32 %v10932, %v10932
  %v11066 = vmul.f32 %v10933, %v10933
  %v11067 = vmul.f32 %v10934, %v10934
  %v11068 = vmul.f32 %v10935, %v10935
  %v11069 = vmul.f32 %v10936, %v10936
  %v11070 = vmul.f32 %v10937, %v10937
  %v11071 = vmul.f32 %v10938, %v10938
  %v11072 = vmul.f32 %v10939, %v10939
  %v11073 = vmul.f32 %v10940, %v10940
  %v11074 = vmul.f32 %v10941, %v10941
  %v11075 = vmul.f32 %v10942, %v10942
  %v11076 = vmul.f32 %v10943, %v10943
  %v11077 = vmul.f32 %v10944, %v10944
  %v11078 = vadd.f32 %v11014, %v11015
  %v11079 = vadd.f32 %v11078, %v11016
  %v11080 = vadd.f32 %v11079, %v11017
  %v11081 = vadd.f32 %v11080, %v11018
  %v11082 = vadd.f32 %v11081, %v11019
  %v11083 = vadd.f32 %v11082, %v11020
  %v11084 = vadd.f32 %v11083, %v11021
  %v11085 = vadd.f32 %v11084, %v11022
  %v11086 = vadd.f32 %v11085, %v11023
  %v11087 = vadd.f32 %v11086, %v11024
  %v11088 = vadd.f32 %v11087, %v11025
  %v11089 = vadd.f32 %v11088, %v11026
  %v11090 = vadd.f32 %v11089, %v11027
  %v11091 = vadd.f32 %v11090, %v11028
  %v11092 = vadd.f32 %v11091, %v11029
  %v11093 = vadd.f32 %v11092, %v11030
  %v11094 = vadd.f32 %v11093, %v11031
  %v11095 = vadd.f32 %v11094, %v11032
  %v11096 = vadd.f32 %v11095, %v11033
  %v11097 = vadd.f32 %v11096, %v11034
  %v11098 = vadd.f32 %v11097, %v11035
  %v11099 = vadd.f32 %v11098, %v11036
  %v11100 = vadd.f32 %v11099, %v11037
  %v11101 = vadd.f32 %v11100, %v11038
  %v11102 = vadd.f32 %v11101, %v11039
  %v11103 = vadd.f32 %v11102, %v11040
  %v11104 = vadd.f32 %v11103, %v11041
  %v11105 = vadd.f32 %v11104, %v11042
  %v11106 = vadd.f32 %v11105, %v11043
  %v11107 = vadd.f32 %v11106, %v11044
  %v11108 = vadd.f32 %v11107, %v11045
  %v11109 = vadd.f32 %v11108, %v11046
  %v11110 = vadd.f32 %v11109, %v11047
  %v11111 = vadd.f32 %v11110, %v11048
  %v11112 = vadd.f32 %v11111, %v11049
  %v11113 = vadd.f32 %v11112, %v11050
  %v11114 = vadd.f32 %v11113, %v11051
  %v11115 = vadd.f32 %v11114, %v11052
  %v11116 = vadd.f32 %v11115, %v11053
  %v11117 = vadd.f32 %v11116, %v11054
  %v11118 = vadd.f32 %v11117, %v11055
  %v11119 = vadd.f32 %v11118, %v11056
  %v11120 = vadd.f32 %v11119, %v11057
  %v11121 = vadd.f32 %v11120, %v11058
  %v11122 = vadd.f32 %v11121, %v11059
  %v11123 = vadd.f32 %v11122, %v11060
  %v11124 = vadd.f32 %v11123, %v11061
  %v11125 = vadd.f32 %v11124, %v11062
  %v11126 = vadd.f32 %v11125, %v11063
  %v11127 = vadd.f32 %v11126, %v11064
  %v11128 = vadd.f32 %v11127, %v11065
  %v11129 = vadd.f32 %v11128, %v11066
  %v11130 = vadd.f32 %v11129, %v11067
  %v11131 = vadd.f32 %v11130, %v11068
  %v11132 = vadd.f32 %v11131, %v11069
  %v11133 = vadd.f32 %v11132, %v11070
  %v11134 = vadd.f32 %v11133, %v11071
  %v11135 = vadd.f32 %v11134, %v11072
  %v11136 = vadd.f32 %v11135, %v11073
  %v11137 = vadd.f32 %v11136, %v11074
  %v11138 = vadd.f32 %v11137, %v11075
  %v11139 = vadd.f32 %v11138, %v11076
  %v11140 = vadd.f32 %v11139, %v11077
  %v11141 = vrot.slane %v11140, 4
  %v11142 = vadd.f32 %v11140, %v11141
  %v11143 = vrot.slane %v11142, 2
  %v11144 = vadd.f32 %v11142, %v11143
  %v11145 = vrot.slane %v11144, 1
  %v11146 = vadd.f32 %v11144, %v11145
  %v11147 = vmul.f32 %v11013, 0.001953125
  %v11148 = vmul.f32 %v11146, 0.001953125
  %v11149 = vmul.f32 %v11147, %v11147
  %v11150 = vsub.f32 %v11148, %v11149
  %v11151 = vmax.f32 %v11150, 0.0
  %v11152 = vadd.f32 %v11151, 1e-05
  %v11153 = vrsqrt.pop %v11152
  %v11154 = vld [vmem:[%s5] sm:$0x1]
  %v11155 = vmul.f32 %v11153, %v11154
  %v11156 = vld [vmem:[%s6] sm:$0x1]
  %v11157 = vmul.f32 %v11147, %v11155
  %v11158 = vsub.f32 %v11156, %v11157
  %v11159 = vlaneseq
  %v11160 = vshrl.u32 %v11159, 7
  %v11161 = vsub.s32 0, %v11160
  %v11162 = vrot.slane %v11155, %v11161
  %v11163 = vmul.f32 %v10881, %v11162
  %v11164 = vmul.f32 %v10882, %v11162
  %v11165 = vmul.f32 %v10883, %v11162
  %v11166 = vmul.f32 %v10884, %v11162
  %v11167 = vmul.f32 %v10885, %v11162
  %v11168 = vmul.f32 %v10886, %v11162
  %v11169 = vmul.f32 %v10887, %v11162
  %v11170 = vmul.f32 %v10888, %v11162
  %v11171 = vmul.f32 %v10889, %v11162
  %v11172 = vmul.f32 %v10890, %v11162
  %v11173 = vmul.f32 %v10891, %v11162
  %v11174 = vmul.f32 %v10892, %v11162
  %v11175 = vmul.f32 %v10893, %v11162
  %v11176 = vmul.f32 %v10894, %v11162
  %v11177 = vmul.f32 %v10895, %v11162
  %v11178 = vmul.f32 %v10896, %v11162
  %v11179 = vmul.f32 %v10897, %v11162
  %v11180 = vmul.f32 %v10898, %v11162
  %v11181 = vmul.f32 %v10899, %v11162
  %v11182 = vmul.f32 %v10900, %v11162
  %v11183 = vmul.f32 %v10901, %v11162
  %v11184 = vmul.f32 %v10902, %v11162
  %v11185 = vmul.f32 %v10903, %v11162
  %v11186 = vmul.f32 %v10904, %v11162
  %v11187 = vmul.f32 %v10905, %v11162
  %v11188 = vmul.f32 %v10906, %v11162
  %v11189 = vmul.f32 %v10907, %v11162
  %v11190 = vmul.f32 %v10908, %v11162
  %v11191 = vmul.f32 %v10909, %v11162
  %v11192 = vmul.f32 %v10910, %v11162
  %v11193 = vmul.f32 %v10911, %v11162
  %v11194 = vmul.f32 %v10912, %v11162
  %v11195 = vmul.f32 %v10913, %v11162
  %v11196 = vmul.f32 %v10914, %v11162
  %v11197 = vmul.f32 %v10915, %v11162
  %v11198 = vmul.f32 %v10916, %v11162
  %v11199 = vmul.f32 %v10917, %v11162
  %v11200 = vmul.f32 %v10918, %v11162
  %v11201 = vmul.f32 %v10919, %v11162
  %v11202 = vmul.f32 %v10920, %v11162
  %v11203 = vmul.f32 %v10921, %v11162
  %v11204 = vmul.f32 %v10922, %v11162
  %v11205 = vmul.f32 %v10923, %v11162
  %v11206 = vmul.f32 %v10924, %v11162
  %v11207 = vmul.f32 %v10925, %v11162
  %v11208 = vmul.f32 %v10926, %v11162
  %v11209 = vmul.f32 %v10927, %v11162
  %v11210 = vmul.f32 %v10928, %v11162
  %v11211 = vmul.f32 %v10929, %v11162
  %v11212 = vmul.f32 %v10930, %v11162
  %v11213 = vmul.f32 %v10931, %v11162
  %v11214 = vmul.f32 %v10932, %v11162
  %v11215 = vmul.f32 %v10933, %v11162
  %v11216 = vmul.f32 %v10934, %v11162
  %v11217 = vmul.f32 %v10935, %v11162
  %v11218 = vmul.f32 %v10936, %v11162
  %v11219 = vmul.f32 %v10937, %v11162
  %v11220 = vmul.f32 %v10938, %v11162
  %v11221 = vmul.f32 %v10939, %v11162
  %v11222 = vmul.f32 %v10940, %v11162
  %v11223 = vmul.f32 %v10941, %v11162
  %v11224 = vmul.f32 %v10942, %v11162
  %v11225 = vmul.f32 %v10943, %v11162
  %v11226 = vmul.f32 %v10944, %v11162
  %v11228 = vlaneseq
  %v11229 = vshrl.u32 %v11228, 7
  %v11230 = vsub.s32 0, %v11229
  %v11231 = vrot.slane %v11158, %v11230
  %v11233 = vadd.f32 %v11163, %v11231
  %v11234 = vadd.f32 %v11164, %v11231
  %v11235 = vadd.f32 %v11165, %v11231
  %v11236 = vadd.f32 %v11166, %v11231
  %v11237 = vadd.f32 %v11167, %v11231
  %v11238 = vadd.f32 %v11168, %v11231
  %v11239 = vadd.f32 %v11169, %v11231
  %v11240 = vadd.f32 %v11170, %v11231
  %v11241 = vadd.f32 %v11171, %v11231
  %v11242 = vadd.f32 %v11172, %v11231
  %v11243 = vadd.f32 %v11173, %v11231
  %v11244 = vadd.f32 %v11174, %v11231
  %v11245 = vadd.f32 %v11175, %v11231
  %v11246 = vadd.f32 %v11176, %v11231
  %v11247 = vadd.f32 %v11177, %v11231
  %v11248 = vadd.f32 %v11178, %v11231
  %v11249 = vadd.f32 %v11179, %v11231
  %v11250 = vadd.f32 %v11180, %v11231
  %v11251 = vadd.f32 %v11181, %v11231
  %v11252 = vadd.f32 %v11182, %v11231
  %v11253 = vadd.f32 %v11183, %v11231
  %v11254 = vadd.f32 %v11184, %v11231
  %v11255 = vadd.f32 %v11185, %v11231
  %v11256 = vadd.f32 %v11186, %v11231
  %v11257 = vadd.f32 %v11187, %v11231
  %v11258 = vadd.f32 %v11188, %v11231
  %v11259 = vadd.f32 %v11189, %v11231
  %v11260 = vadd.f32 %v11190, %v11231
  %v11261 = vadd.f32 %v11191, %v11231
  %v11262 = vadd.f32 %v11192, %v11231
  %v11263 = vadd.f32 %v11193, %v11231
  %v11264 = vadd.f32 %v11194, %v11231
  %v11265 = vadd.f32 %v11195, %v11231
  %v11266 = vadd.f32 %v11196, %v11231
  %v11267 = vadd.f32 %v11197, %v11231
  %v11268 = vadd.f32 %v11198, %v11231
  %v11269 = vadd.f32 %v11199, %v11231
  %v11270 = vadd.f32 %v11200, %v11231
  %v11271 = vadd.f32 %v11201, %v11231
  %v11272 = vadd.f32 %v11202, %v11231
  %v11273 = vadd.f32 %v11203, %v11231
  %v11274 = vadd.f32 %v11204, %v11231
  %v11275 = vadd.f32 %v11205, %v11231
  %v11276 = vadd.f32 %v11206, %v11231
  %v11277 = vadd.f32 %v11207, %v11231
  %v11278 = vadd.f32 %v11208, %v11231
  %v11279 = vadd.f32 %v11209, %v11231
  %v11280 = vadd.f32 %v11210, %v11231
  %v11281 = vadd.f32 %v11211, %v11231
  %v11282 = vadd.f32 %v11212, %v11231
  %v11283 = vadd.f32 %v11213, %v11231
  %v11284 = vadd.f32 %v11214, %v11231
  %v11285 = vadd.f32 %v11215, %v11231
  %v11286 = vadd.f32 %v11216, %v11231
  %v11287 = vadd.f32 %v11217, %v11231
  %v11288 = vadd.f32 %v11218, %v11231
  %v11289 = vadd.f32 %v11219, %v11231
  %v11290 = vadd.f32 %v11220, %v11231
  %v11291 = vadd.f32 %v11221, %v11231
  %v11292 = vadd.f32 %v11222, %v11231
  %v11293 = vadd.f32 %v11223, %v11231
  %v11294 = vadd.f32 %v11224, %v11231
  %v11295 = vadd.f32 %v11225, %v11231
  %v11296 = vadd.f32 %v11226, %v11231
  %v11297 = vmax.f32 %v11233, 0.0
  %v11298 = vmax.f32 %v11234, 0.0
  %v11299 = vmax.f32 %v11235, 0.0
  %v11300 = vmax.f32 %v11236, 0.0
  %v11301 = vmax.f32 %v11237, 0.0
  %v11302 = vmax.f32 %v11238, 0.0
  %v11303 = vmax.f32 %v11239, 0.0
  %v11304 = vmax.f32 %v11240, 0.0
  %v11305 = vmax.f32 %v11241, 0.0
  %v11306 = vmax.f32 %v11242, 0.0
  %v11307 = vmax.f32 %v11243, 0.0
  %v11308 = vmax.f32 %v11244, 0.0
  %v11309 = vmax.f32 %v11245, 0.0
  %v11310 = vmax.f32 %v11246, 0.0
  %v11311 = vmax.f32 %v11247, 0.0
  %v11312 = vmax.f32 %v11248, 0.0
  %v11313 = vmax.f32 %v11249, 0.0
  %v11314 = vmax.f32 %v11250, 0.0
  %v11315 = vmax.f32 %v11251, 0.0
  %v11316 = vmax.f32 %v11252, 0.0
  %v11317 = vmax.f32 %v11253, 0.0
  %v11318 = vmax.f32 %v11254, 0.0
  %v11319 = vmax.f32 %v11255, 0.0
  %v11320 = vmax.f32 %v11256, 0.0
  %v11321 = vmax.f32 %v11257, 0.0
  %v11322 = vmax.f32 %v11258, 0.0
  %v11323 = vmax.f32 %v11259, 0.0
  %v11324 = vmax.f32 %v11260, 0.0
  %v11325 = vmax.f32 %v11261, 0.0
  %v11326 = vmax.f32 %v11262, 0.0
  %v11327 = vmax.f32 %v11263, 0.0
  %v11328 = vmax.f32 %v11264, 0.0
  %v11329 = vmax.f32 %v11265, 0.0
  %v11330 = vmax.f32 %v11266, 0.0
  %v11331 = vmax.f32 %v11267, 0.0
  %v11332 = vmax.f32 %v11268, 0.0
  %v11333 = vmax.f32 %v11269, 0.0
  %v11334 = vmax.f32 %v11270, 0.0
  %v11335 = vmax.f32 %v11271, 0.0
  %v11336 = vmax.f32 %v11272, 0.0
  %v11337 = vmax.f32 %v11273, 0.0
  %v11338 = vmax.f32 %v11274, 0.0
  %v11339 = vmax.f32 %v11275, 0.0
  %v11340 = vmax.f32 %v11276, 0.0
  %v11341 = vmax.f32 %v11277, 0.0
  %v11342 = vmax.f32 %v11278, 0.0
  %v11343 = vmax.f32 %v11279, 0.0
  %v11344 = vmax.f32 %v11280, 0.0
  %v11345 = vmax.f32 %v11281, 0.0
  %v11346 = vmax.f32 %v11282, 0.0
  %v11347 = vmax.f32 %v11283, 0.0
  %v11348 = vmax.f32 %v11284, 0.0
  %v11349 = vmax.f32 %v11285, 0.0
  %v11350 = vmax.f32 %v11286, 0.0
  %v11351 = vmax.f32 %v11287, 0.0
  %v11352 = vmax.f32 %v11288, 0.0
  %v11353 = vmax.f32 %v11289, 0.0
  %v11354 = vmax.f32 %v11290, 0.0
  %v11355 = vmax.f32 %v11291, 0.0
  %v11356 = vmax.f32 %v11292, 0.0
  %v11357 = vmax.f32 %v11293, 0.0
  %v11358 = vmax.f32 %v11294, 0.0
  %v11359 = vmax.f32 %v11295, 0.0
  %v11360 = vmax.f32 %v11296, 0.0
  %v11361 = vpack.c.bf16 %v11298, %v11297
  %v11362 = vpack.c.bf16 %v11300, %v11299
  %v11363 = vpack.c.bf16 %v11302, %v11301
  %v11364 = vpack.c.bf16 %v11304, %v11303
  %v11365 = vpack.c.bf16 %v11306, %v11305
  %v11366 = vpack.c.bf16 %v11308, %v11307
  %v11367 = vpack.c.bf16 %v11310, %v11309
  %v11368 = vpack.c.bf16 %v11312, %v11311
  %v11369 = vpack.c.bf16 %v11314, %v11313
  %v11370 = vpack.c.bf16 %v11316, %v11315
  %v11371 = vpack.c.bf16 %v11318, %v11317
  %v11372 = vpack.c.bf16 %v11320, %v11319
  %v11373 = vpack.c.bf16 %v11322, %v11321
  %v11374 = vpack.c.bf16 %v11324, %v11323
  %v11375 = vpack.c.bf16 %v11326, %v11325
  %v11376 = vpack.c.bf16 %v11328, %v11327
  %v11377 = vpack.c.bf16 %v11330, %v11329
  %v11378 = vpack.c.bf16 %v11332, %v11331
  %v11379 = vpack.c.bf16 %v11334, %v11333
  %v11380 = vpack.c.bf16 %v11336, %v11335
  %v11381 = vpack.c.bf16 %v11338, %v11337
  %v11382 = vpack.c.bf16 %v11340, %v11339
  %v11383 = vpack.c.bf16 %v11342, %v11341
  %v11384 = vpack.c.bf16 %v11344, %v11343
  %v11385 = vpack.c.bf16 %v11346, %v11345
  %v11386 = vpack.c.bf16 %v11348, %v11347
  %v11387 = vpack.c.bf16 %v11350, %v11349
  %v11388 = vpack.c.bf16 %v11352, %v11351
  %v11389 = vpack.c.bf16 %v11354, %v11353
  %v11390 = vpack.c.bf16 %v11356, %v11355
  %v11391 = vpack.c.bf16 %v11358, %v11357
  %v11392 = vpack.c.bf16 %v11360, %v11359
  %v11425 = vunpack.c.l.b16 %v11361
  %v11426 = vunpack.c.h.b16 %v11361
  %v11427 = vunpack.c.l.b16 %v11362
  %v11428 = vunpack.c.h.b16 %v11362
  %v11429 = vunpack.c.l.b16 %v11363
  %v11430 = vunpack.c.h.b16 %v11363
  %v11431 = vunpack.c.l.b16 %v11364
  %v11432 = vunpack.c.h.b16 %v11364
  %v11433 = vunpack.c.l.b16 %v11365
  %v11434 = vunpack.c.h.b16 %v11365
  %v11435 = vunpack.c.l.b16 %v11366
  %v11436 = vunpack.c.h.b16 %v11366
  %v11437 = vunpack.c.l.b16 %v11367
  %v11438 = vunpack.c.h.b16 %v11367
  %v11439 = vunpack.c.l.b16 %v11368
  %v11440 = vunpack.c.h.b16 %v11368
  %v11441 = vunpack.c.l.b16 %v11369
  %v11442 = vunpack.c.h.b16 %v11369
  %v11443 = vunpack.c.l.b16 %v11370
  %v11444 = vunpack.c.h.b16 %v11370
  %v11445 = vunpack.c.l.b16 %v11371
  %v11446 = vunpack.c.h.b16 %v11371
  %v11447 = vunpack.c.l.b16 %v11372
  %v11448 = vunpack.c.h.b16 %v11372
  %v11449 = vunpack.c.l.b16 %v11373
  %v11450 = vunpack.c.h.b16 %v11373
  %v11451 = vunpack.c.l.b16 %v11374
  %v11452 = vunpack.c.h.b16 %v11374
  %v11453 = vunpack.c.l.b16 %v11375
  %v11454 = vunpack.c.h.b16 %v11375
  %v11455 = vunpack.c.l.b16 %v11376
  %v11456 = vunpack.c.h.b16 %v11376
  %v11457 = vunpack.c.l.b16 %v11377
  %v11458 = vunpack.c.h.b16 %v11377
  %v11459 = vunpack.c.l.b16 %v11378
  %v11460 = vunpack.c.h.b16 %v11378
  %v11461 = vunpack.c.l.b16 %v11379
  %v11462 = vunpack.c.h.b16 %v11379
  %v11463 = vunpack.c.l.b16 %v11380
  %v11464 = vunpack.c.h.b16 %v11380
  %v11465 = vunpack.c.l.b16 %v11381
  %v11466 = vunpack.c.h.b16 %v11381
  %v11467 = vunpack.c.l.b16 %v11382
  %v11468 = vunpack.c.h.b16 %v11382
  %v11469 = vunpack.c.l.b16 %v11383
  %v11470 = vunpack.c.h.b16 %v11383
  %v11471 = vunpack.c.l.b16 %v11384
  %v11472 = vunpack.c.h.b16 %v11384
  %v11473 = vunpack.c.l.b16 %v11385
  %v11474 = vunpack.c.h.b16 %v11385
  %v11475 = vunpack.c.l.b16 %v11386
  %v11476 = vunpack.c.h.b16 %v11386
  %v11477 = vunpack.c.l.b16 %v11387
  %v11478 = vunpack.c.h.b16 %v11387
  %v11479 = vunpack.c.l.b16 %v11388
  %v11480 = vunpack.c.h.b16 %v11388
  %v11481 = vunpack.c.l.b16 %v11389
  %v11482 = vunpack.c.h.b16 %v11389
  %v11483 = vunpack.c.l.b16 %v11390
  %v11484 = vunpack.c.h.b16 %v11390
  %v11485 = vunpack.c.l.b16 %v11391
  %v11486 = vunpack.c.h.b16 %v11391
  %v11487 = vunpack.c.l.b16 %v11392
  %v11488 = vunpack.c.h.b16 %v11392
  %v11489 = vpack.c.b16 %v11425, %v11425
  %v11490 = vpack.c.b16 %v11426, %v11426
  %v11491 = vpack.c.b16 %v11427, %v11427
  %v11492 = vpack.c.b16 %v11428, %v11428
  %v11493 = vpack.c.b16 %v11429, %v11429
  %v11494 = vpack.c.b16 %v11430, %v11430
  %v11495 = vpack.c.b16 %v11431, %v11431
  %v11496 = vpack.c.b16 %v11432, %v11432
  %v11497 = vpack.c.b16 %v11433, %v11433
  %v11498 = vpack.c.b16 %v11434, %v11434
  %v11499 = vpack.c.b16 %v11435, %v11435
  %v11500 = vpack.c.b16 %v11436, %v11436
  %v11501 = vpack.c.b16 %v11437, %v11437
  %v11502 = vpack.c.b16 %v11438, %v11438
  %v11503 = vpack.c.b16 %v11439, %v11439
  %v11504 = vpack.c.b16 %v11440, %v11440
  %v11505 = vpack.c.b16 %v11441, %v11441
  %v11506 = vpack.c.b16 %v11442, %v11442
  %v11507 = vpack.c.b16 %v11443, %v11443
  %v11508 = vpack.c.b16 %v11444, %v11444
  %v11509 = vpack.c.b16 %v11445, %v11445
  %v11510 = vpack.c.b16 %v11446, %v11446
  %v11511 = vpack.c.b16 %v11447, %v11447
  %v11512 = vpack.c.b16 %v11448, %v11448
  %v11513 = vpack.c.b16 %v11449, %v11449
  %v11514 = vpack.c.b16 %v11450, %v11450
  %v11515 = vpack.c.b16 %v11451, %v11451
  %v11516 = vpack.c.b16 %v11452, %v11452
  %v11517 = vpack.c.b16 %v11453, %v11453
  %v11518 = vpack.c.b16 %v11454, %v11454
  %v11519 = vpack.c.b16 %v11455, %v11455
  %v11520 = vpack.c.b16 %v11456, %v11456
  %v11521 = vpack.c.b16 %v11457, %v11457
  %v11522 = vpack.c.b16 %v11458, %v11458
  %v11523 = vpack.c.b16 %v11459, %v11459
  %v11524 = vpack.c.b16 %v11460, %v11460
  %v11525 = vpack.c.b16 %v11461, %v11461
  %v11526 = vpack.c.b16 %v11462, %v11462
  %v11527 = vpack.c.b16 %v11463, %v11463
  %v11528 = vpack.c.b16 %v11464, %v11464
  %v11529 = vpack.c.b16 %v11465, %v11465
  %v11530 = vpack.c.b16 %v11466, %v11466
  %v11531 = vpack.c.b16 %v11467, %v11467
  %v11532 = vpack.c.b16 %v11468, %v11468
  %v11533 = vpack.c.b16 %v11469, %v11469
  %v11534 = vpack.c.b16 %v11470, %v11470
  %v11535 = vpack.c.b16 %v11471, %v11471
  %v11536 = vpack.c.b16 %v11472, %v11472
  %v11537 = vpack.c.b16 %v11473, %v11473
  %v11538 = vpack.c.b16 %v11474, %v11474
  %v11539 = vpack.c.b16 %v11475, %v11475
  %v11540 = vpack.c.b16 %v11476, %v11476
  %v11541 = vpack.c.b16 %v11477, %v11477
  %v11542 = vpack.c.b16 %v11478, %v11478
  %v11543 = vpack.c.b16 %v11479, %v11479
  %v11544 = vpack.c.b16 %v11480, %v11480
  %v11545 = vpack.c.b16 %v11481, %v11481
  %v11546 = vpack.c.b16 %v11482, %v11482
  %v11547 = vpack.c.b16 %v11483, %v11483
  %v11548 = vpack.c.b16 %v11484, %v11484
  %v11549 = vpack.c.b16 %v11485, %v11485
  %v11550 = vpack.c.b16 %v11486, %v11486
  %v11551 = vpack.c.b16 %v11487, %v11487
  %v11552 = vpack.c.b16 %v11488, %v11488
  %11617 = vst [vmem:[%s7] sm:$0xf] %v11489
  %11618 = vst [vmem:[%s7 + $0x4] sm:$0xf] %v11490
  %11619 = vst [vmem:[%s7 + $0x8] sm:$0xf] %v11491
  %11620 = vst [vmem:[%s7 + $0xc] sm:$0xf] %v11492
  %11621 = vst [vmem:[%s7 + $0x10] sm:$0xf] %v11493
  %11622 = vst [vmem:[%s7 + $0x14] sm:$0xf] %v11494
  %11623 = vst [vmem:[%s7 + $0x18] sm:$0xf] %v11495
  %11624 = vst [vmem:[%s7 + $0x1c] sm:$0xf] %v11496
  %11625 = vst [vmem:[%s7 + $0x20] sm:$0xf] %v11497
  %11626 = vst [vmem:[%s7 + $0x24] sm:$0xf] %v11498
  %11627 = vst [vmem:[%s7 + $0x28] sm:$0xf] %v11499
  %11628 = vst [vmem:[%s7 + $0x2c] sm:$0xf] %v11500
  %11629 = vst [vmem:[%s7 + $0x30] sm:$0xf] %v11501
  %11630 = vst [vmem:[%s7 + $0x34] sm:$0xf] %v11502
  %11631 = vst [vmem:[%s7 + $0x38] sm:$0xf] %v11503
  %11632 = vst [vmem:[%s7 + $0x3c] sm:$0xf] %v11504
  %11633 = vst [vmem:[%s7 + $0x40] sm:$0xf] %v11505
  %11634 = vst [vmem:[%s7 + $0x44] sm:$0xf] %v11506
  %11635 = vst [vmem:[%s7 + $0x48] sm:$0xf] %v11507
  %11636 = vst [vmem:[%s7 + $0x4c] sm:$0xf] %v11508
  %11637 = vst [vmem:[%s7 + $0x50] sm:$0xf] %v11509
  %11638 = vst [vmem:[%s7 + $0x54] sm:$0xf] %v11510
  %11639 = vst [vmem:[%s7 + $0x58] sm:$0xf] %v11511
  %11640 = vst [vmem:[%s7 + $0x5c] sm:$0xf] %v11512
  %11641 = vst [vmem:[%s7 + $0x60] sm:$0xf] %v11513
  %11642 = vst [vmem:[%s7 + $0x64] sm:$0xf] %v11514
  %11643 = vst [vmem:[%s7 + $0x68] sm:$0xf] %v11515
  %11644 = vst [vmem:[%s7 + $0x6c] sm:$0xf] %v11516
  %11645 = vst [vmem:[%s7 + $0x70] sm:$0xf] %v11517
  %11646 = vst [vmem:[%s7 + $0x74] sm:$0xf] %v11518
  %11647 = vst [vmem:[%s7 + $0x78] sm:$0xf] %v11519
  %11648 = vst [vmem:[%s7 + $0x7c] sm:$0xf] %v11520
  %11649 = vst [vmem:[%s7 + $0x80] sm:$0xf] %v11521
  %11650 = vst [vmem:[%s7 + $0x84] sm:$0xf] %v11522
  %11651 = vst [vmem:[%s7 + $0x88] sm:$0xf] %v11523
  %11652 = vst [vmem:[%s7 + $0x8c] sm:$0xf] %v11524
  %11653 = vst [vmem:[%s7 + $0x90] sm:$0xf] %v11525
  %11654 = vst [vmem:[%s7 + $0x94] sm:$0xf] %v11526
  %11655 = vst [vmem:[%s7 + $0x98] sm:$0xf] %v11527
  %11656 = vst [vmem:[%s7 + $0x9c] sm:$0xf] %v11528
  %11657 = vst [vmem:[%s7 + $0xa0] sm:$0xf] %v11529
  %11658 = vst [vmem:[%s7 + $0xa4] sm:$0xf] %v11530
  %11659 = vst [vmem:[%s7 + $0xa8] sm:$0xf] %v11531
  %11660 = vst [vmem:[%s7 + $0xac] sm:$0xf] %v11532
  %11661 = vst [vmem:[%s7 + $0xb0] sm:$0xf] %v11533
  %11662 = vst [vmem:[%s7 + $0xb4] sm:$0xf] %v11534
  %11663 = vst [vmem:[%s7 + $0xb8] sm:$0xf] %v11535
  %11664 = vst [vmem:[%s7 + $0xbc] sm:$0xf] %v11536
  %11665 = vst [vmem:[%s7 + $0xc0] sm:$0xf] %v11537
  %11666 = vst [vmem:[%s7 + $0xc4] sm:$0xf] %v11538
  %11667 = vst [vmem:[%s7 + $0xc8] sm:$0xf] %v11539
  %11668 = vst [vmem:[%s7 + $0xcc] sm:$0xf] %v11540
  %11669 = vst [vmem:[%s7 + $0xd0] sm:$0xf] %v11541
  %11670 = vst [vmem:[%s7 + $0xd4] sm:$0xf] %v11542
  %11671 = vst [vmem:[%s7 + $0xd8] sm:$0xf] %v11543
  %11672 = vst [vmem:[%s7 + $0xdc] sm:$0xf] %v11544
  %11673 = vst [vmem:[%s7 + $0xe0] sm:$0xf] %v11545
  %11674 = vst [vmem:[%s7 + $0xe4] sm:$0xf] %v11546
  %11675 = vst [vmem:[%s7 + $0xe8] sm:$0xf] %v11547
  %11676 = vst [vmem:[%s7 + $0xec] sm:$0xf] %v11548
  %11677 = vst [vmem:[%s7 + $0xf0] sm:$0xf] %v11549
  %11678 = vst [vmem:[%s7 + $0xf4] sm:$0xf] %v11550
  %11679 = vst [vmem:[%s7 + $0xf8] sm:$0xf] %v11551
  %11680 = vst [vmem:[%s7 + $0xfc] sm:$0xf] %v11552
  // Predicated region
  $region30: #{double_conv.1} parent=0 // pred_check
    _
  $region31: #{double_conv.1} parent=0 // pred_check_branch
    %11682 = sbr.rel (0) target = $region33
  $region32: #{double_conv.1} parent=0 // pred_region
    _
  $region33: #{double_conv.1} parent=0 // pred_fallthru
    _
  // Predicated region
  $region34: #{double_conv.1} parent=0 // pred_check
    _
  $region35: #{double_conv.1} parent=0 // pred_check_branch
    %11684 = sbr.rel (0) target = $region37
  $region36: #{double_conv.1} parent=0 // pred_region
    _
  $region37: #{double_conv.1} parent=0 // pred_fallthru
    _

</llo_original>
